<compile_context>
chip_gen: v6e
topology: v6e:2x2x1
jax: 0.10.0
libtpu: 0.0.40
codegen_flags: <defaults>
</compile_context>

<pallas_src>
import functools
from math import sqrt

import jax
import jax.numpy as jnp
from jax.experimental import pallas as pl
from jax.experimental.pallas import tpu as pltpu


# --------------------------------------------------------------------------- #
# Kernel                                                                      #
# --------------------------------------------------------------------------- #
def _mhcsa_kernel(x_ref, y_ref, wq_ref, wkv_ref, o_ref, *,
                  num_heads, dk, dv, n_x, L_y, dim_in_x, dim_in_y,
                  bblk, norm_fact, compute_dtype):
    """One grid step == one block of `bblk` batch elements (all in VMEM)."""
    dim_k = num_heads * dk
    dim_v = num_heads * dv

    # Fold (batch-block, seq) into the matmul M dimension.
    x = x_ref[...].reshape(bblk * n_x, dim_in_x)     # (Bblk*n_x, dim_in_x) bf16
    y = y_ref[...].reshape(bblk * L_y, dim_in_y)     # (Bblk*L_y, dim_in_y) bf16

    # Fused projections: ONE dot for Q (all heads), ONE dot for K|V (all heads).
    q = jnp.dot(x, wq_ref[...], preferred_element_type=jnp.float32)    # (M, dim_k)
    kv = jnp.dot(y, wkv_ref[...], preferred_element_type=jnp.float32)  # (N, dim_k+dim_v)

    # Cast once to bf16 for the MXU attention matmuls (f32 accumulate below).
    q = q.astype(compute_dtype)
    kv = kv.astype(compute_dtype)

    head_outs = []
    for h in range(num_heads):                       # static loop, small num_heads
        # Head split = static lane slices of the fused projection outputs.
        qh = q[:, h * dk:(h + 1) * dk].reshape(bblk, n_x, dk)
        kh = kv[:, h * dk:(h + 1) * dk].reshape(bblk, L_y, dk)
        vh = kv[:, dim_k + h * dv: dim_k + (h + 1) * dv].reshape(bblk, L_y, dv)

        # Scaled dot-product attention: bf16 operands, f32 accumulation/softmax.
        s = jnp.einsum("bqd,bkd->bqk", qh, kh,
                       preferred_element_type=jnp.float32) * norm_fact
        s = s - jnp.max(s, axis=-1, keepdims=True)
        p = jnp.exp(s)
        inv = pl.reciprocal(jnp.sum(p, axis=-1, keepdims=True), approx=True)
        p = (p * inv).astype(compute_dtype)          # softmax probs -> bf16 for MXU
        # TODO(synk): attention-map dropout (p=0.5) skipped (eval-mode identity).

        oh = jnp.einsum("bqk,bkd->bqd", p, vh,
                        preferred_element_type=jnp.float32)   # (Bblk, n_x, dv) f32
        head_outs.append(oh)

    out = jnp.concatenate(head_outs, axis=-1)        # (Bblk, n_x, dim_v) f32
    # Single lane-dense store per block (last dim n_x*dim_v, multiple of 128 here).
    o_ref[...] = out.reshape(bblk, n_x * dim_v).astype(o_ref.dtype)


# --------------------------------------------------------------------------- #
# VMEM accounting & block selection                                           #
# --------------------------------------------------------------------------- #
def _round_up(v, m):
    return ((v + m - 1) // m) * m


def _padded_bytes(shape, dtype):
    """Bytes of a VMEM tile with (sublane, 128-lane) padding."""
    dt = jnp.dtype(dtype)
    item = dt.itemsize
    shape = tuple(int(s) for s in shape)
    if len(shape) == 0:
        return item
    if len(shape) == 1:
        return _round_up(shape[0], 128) * item
    sub = 8 * max(1, 4 // item)                  # f32 -> 8 sublanes, bf16 -> 16
    lead = 1
    for d in shape[:-2]:
        lead *= d
    return lead * _round_up(shape[-2], sub) * _round_up(shape[-1], 128) * item


def _block_vmem_bytes(bblk, *, n_x, L_y, dim_in_x, dim_in_y, dim_k, dim_v,
                      num_heads, cdt, out_dtype):
    """Padded VMEM footprint of one grid step: pipelined blocks + weights +
    the in-kernel f32/bf16 intermediates."""
    dk = dim_k // num_heads
    dv = dim_v // num_heads
    pb = _padded_bytes
    f32 = jnp.float32
    total = 0
    # Pipelined I/O blocks (double-buffered by the auto-pipeliner).
    total += 2 * pb((bblk, n_x, dim_in_x), cdt)
    total += 2 * pb((bblk, L_y, dim_in_y), cdt)
    total += 2 * pb((bblk, n_x * dim_v), out_dtype)
    # Weights: constant index_map -> single-buffered (pl.Buffered(1)).
    total += pb((dim_in_x, dim_k), cdt)
    total += pb((dim_in_y, dim_k + dim_v), cdt)
    # In-kernel intermediates (conservative: f32 projections + bf16 copies,
    # per-head scores/probs, all per-head f32 outputs live until the concat).
    total += pb((bblk * n_x, dim_k), f32) + pb((bblk * n_x, dim_k), cdt)
    total += pb((bblk * L_y, dim_k + dim_v), f32) + pb((bblk * L_y, dim_k + dim_v), cdt)
    total += pb((bblk, n_x, dk), cdt) + 2 * pb((bblk, L_y, max(dk, dv)), cdt)
    total += 2 * pb((bblk, n_x, L_y), f32) + pb((bblk, n_x, L_y), cdt)
    total += num_heads * pb((bblk, n_x, dv), f32)
    total += pb((bblk, n_x, dim_v), f32) + pb((bblk, n_x * dim_v), f32)
    return total


def _device_tuning():
    """(min_grid_steps, vmem_budget_bytes, vmem_limit_bytes) per TPU generation."""
    try:
        kind = jax.devices()[0].device_kind.lower()
    except Exception:
        kind = ""
    if "v7" in kind:
        # v7x: 2 TensorCores/chip, 64 MiB physical VMEM.  Keep >= 2 grid steps
        # so both cores get work; budget tightly under the 32 MiB limit.
        return 2, 24 << 20, 32 << 20
    # v5e / v6e: single TensorCore, 128 MiB VMEM.  No megacore benefit from
    # extra grid steps -> prefer the largest block_batch that fits (even grid=(1,)).
    return 1, 48 << 20, 64 << 20


def _pick_block_batch(B, vmem_fn, vmem_budget, min_steps):
    """Largest divisor of B with >= min_steps grid steps fitting the VMEM budget."""
    min_steps = max(1, min(min_steps, B))
    divisors = sorted((d for d in range(1, B + 1) if B % d == 0), reverse=True)
    for d in divisors:                           # largest block first
        if B // d < min_steps:
            continue
        if vmem_fn(d) <= vmem_budget:
            return d
    for d in reversed(divisors):                 # fallback: smallest admissible
        if B // d >= min_steps:
            return d
    return 1


# --------------------------------------------------------------------------- #
# Wrapper                                                                     #
# --------------------------------------------------------------------------- #
def multi_head_cross_self_attention(x, y, wq, wk, wv, *, num_heads,
                                    compute_dtype=jnp.bfloat16,
                                    block_batch=None):
    """x: (B, n_x, dim_in_x), y: (B, L_y, dim_in_y)
       wq: (dim_k, dim_in_x), wk: (dim_k, dim_in_y), wv: (dim_v, dim_in_y)
       (PyTorch nn.Linear (out, in) convention).  Returns (B, n_x, dim_v)."""
    B, n_x, dim_in_x = x.shape
    By, L_y, dim_in_y = y.shape
    assert By == B
    dim_k = wq.shape[0]
    dim_v = wv.shape[0]
    assert dim_k % num_heads == 0 and dim_v % num_heads == 0
    dk = dim_k // num_heads
    dv = dim_v // num_heads
    norm_fact = 1.0 / sqrt(dk)

    cdt = jnp.dtype(compute_dtype)
    out_dtype = jnp.asarray(x).dtype

    x_c = jnp.asarray(x).astype(cdt)
    y_c = jnp.asarray(y).astype(cdt)
    # Fused (in, out)-oriented weights: Q weight (dim_in_x, dim_k) and the
    # concatenated K|V weight (dim_in_y, dim_k + dim_v).
    wq_io = jnp.asarray(wq).astype(cdt).T
    wkv_io = jnp.concatenate(
        [jnp.asarray(wk).astype(cdt).T, jnp.asarray(wv).astype(cdt).T], axis=1)

    min_steps, vmem_budget, vmem_limit = _device_tuning()
    if block_batch is None:
        vmem_fn = functools.partial(
            _block_vmem_bytes, n_x=n_x, L_y=L_y, dim_in_x=dim_in_x,
            dim_in_y=dim_in_y, dim_k=dim_k, dim_v=dim_v, num_heads=num_heads,
            cdt=cdt, out_dtype=out_dtype)
        block_batch = _pick_block_batch(B, vmem_fn, vmem_budget, min_steps)
    assert B % block_batch == 0, "block_batch must divide batch"
    grid = (B // block_batch,)

    kernel = functools.partial(
        _mhcsa_kernel, num_heads=num_heads, dk=dk, dv=dv,
        n_x=n_x, L_y=L_y, dim_in_x=dim_in_x, dim_in_y=dim_in_y,
        bblk=block_batch, norm_fact=norm_fact, compute_dtype=cdt)

    out_flat = pl.pallas_call(
        kernel,
        out_shape=jax.ShapeDtypeStruct((B, n_x * dim_v), out_dtype),
        grid_spec=pltpu.PrefetchScalarGridSpec(
            num_scalar_prefetch=0,
            grid=grid,
            in_specs=[
                pl.BlockSpec((block_batch, n_x, dim_in_x), lambda b: (b, 0, 0)),
                pl.BlockSpec((block_batch, L_y, dim_in_y), lambda b: (b, 0, 0)),
                # Weights: constant block -> single buffer is enough.
                pl.BlockSpec((dim_in_x, dim_k), lambda b: (0, 0),
                             pipeline_mode=pl.Buffered(1)),
                pl.BlockSpec((dim_in_y, dim_k + dim_v), lambda b: (0, 0),
                             pipeline_mode=pl.Buffered(1)),
            ],
            out_specs=pl.BlockSpec((block_batch, n_x * dim_v), lambda b: (b, 0)),
        ),
        compiler_params=pltpu.CompilerParams(
            dimension_semantics=("parallel",),
            vmem_limit_bytes=vmem_limit,
        ),
    )(x_c, y_c, wq_io, wkv_io)

    return out_flat.reshape(B, n_x, dim_v)


# --------------------------------------------------------------------------- #
# Pure-JAX reference (PyTorch eval-mode mirror)                               #
# --------------------------------------------------------------------------- #
def _reference(x, y, wq, wk, wv, num_heads, compute_dtype=jnp.bfloat16):
    """Mirror of the PyTorch forward (eval mode), with the same bf16 rounding
       of inputs/weights as the kernel boundary; all math in f32."""
    cdt = jnp.dtype(compute_dtype)
    xf = x.astype(cdt).astype(jnp.float32)
    yf = y.astype(cdt).astype(jnp.float32)
    wqf = wq.astype(cdt).astype(jnp.float32)
    wkf = wk.astype(cdt).astype(jnp.float32)
    wvf = wv.astype(cdt).astype(jnp.float32)

    B, n_x, _ = x.shape
    _, L_y, _ = y.shape
    dim_k = wq.shape[0]
    dim_v = wv.shape[0]
    dk = dim_k // num_heads
    dv = dim_v // num_heads
    q = (xf @ wqf.T).reshape(B, n_x, num_heads, dk).transpose(0, 2, 1, 3)
    k = (yf @ wkf.T).reshape(B, L_y, num_heads, dk).transpose(0, 2, 1, 3)
    v = (yf @ wvf.T).reshape(B, L_y, num_heads, dv).transpose(0, 2, 1, 3)
    dist = jnp.einsum("bhqd,bhkd->bhqk", q, k) / sqrt(dk)
    dist = jax.nn.softmax(dist, axis=-1)
    att = jnp.einsum("bhqk,bhkd->bhqd", dist, v)
    return att.transpose(0, 2, 1, 3).reshape(B, n_x, dim_v).astype(x.dtype)


if __name__ == "__main__":
    # Small shapes consistent with the module (dim_k % num_heads == 0 etc.).
    batch, n_x, length_y = 32, 8, 8
    dim_in_x, dim_in_y = 48, 32
    dim_k, dim_v, num_heads = 32, 32, 2

    key = jax.random.PRNGKey(0)
    kx, ky, kq, kk, kv = jax.random.split(key, 5)
    x = jax.random.normal(kx, (batch, n_x, dim_in_x), dtype=jnp.float32)
    y = jax.random.normal(ky, (batch, length_y, dim_in_y), dtype=jnp.float32)
    # Deterministic "Linear" weights (PyTorch shape convention: (out, in)).
    wq = 0.1 * jax.random.normal(kq, (dim_k, dim_in_x), dtype=jnp.float32)
    wk = 0.1 * jax.random.normal(kk, (dim_k, dim_in_y), dtype=jnp.float32)
    wv = 0.1 * jax.random.normal(kv, (dim_v, dim_in_y), dtype=jnp.float32)

    out = multi_head_cross_self_attention(x, y, wq, wk, wv, num_heads=num_heads)
    out = jax.block_until_ready(out)

    ref = _reference(x, y, wq, wk, wv, num_heads)
    assert out.shape == (batch, n_x, dim_v)
    assert jnp.allclose(out, ref, atol=2e-2, rtol=2e-2), "mismatch vs reference"

    print("KERNEL_OK")
</pallas_src>

<mosaic_0001>
module attributes {stable_mosaic.version = 11 : i64} {
  func.func @_mhcsa_kernel(%arg0: i32, %arg1: memref<32x8x48xbf16, #tpu.memory_space<vmem>>, %arg2: memref<32x8x32xbf16, #tpu.memory_space<vmem>>, %arg3: memref<48x32xbf16, #tpu.memory_space<vmem>>, %arg4: memref<32x64xbf16, #tpu.memory_space<vmem>>, %arg5: memref<32x256xf32, #tpu.memory_space<vmem>>) attributes {dimension_semantics = [#tpu.dimension_semantics<parallel>], iteration_bounds = array<i64: 1>, scalar_prefetch = 0 : i64, scratch_operands = 0 : i64, tpu.core_type = #tpu.core_type<tc>, window_params = [{transform_indices = @transform_0, window_bounds = array<i64: 32, 8, 48>}, {transform_indices = @transform_1, window_bounds = array<i64: 32, 8, 32>}, {pipeline_mode = #tpu.pipeline_mode<synchronous>, transform_indices = @transform_2, window_bounds = array<i64: 48, 32>}, {pipeline_mode = #tpu.pipeline_mode<synchronous>, transform_indices = @transform_3, window_bounds = array<i64: 32, 64>}, {transform_indices = @transform_4, window_bounds = array<i64: 32, 256>}]} {
    %c0 = arith.constant 0 : index
    %c0_0 = arith.constant 0 : index
    %c0_1 = arith.constant 0 : index
    %0 = vector.load %arg1[%c0, %c0_0, %c0_1] : memref<32x8x48xbf16, #tpu.memory_space<vmem>>, vector<32x8x48xbf16>
    %1 = vector.shape_cast %0 : vector<32x8x48xbf16> to vector<256x48xbf16>
    %c0_2 = arith.constant 0 : index
    %c0_3 = arith.constant 0 : index
    %c0_4 = arith.constant 0 : index
    %2 = vector.load %arg2[%c0_2, %c0_3, %c0_4] : memref<32x8x32xbf16, #tpu.memory_space<vmem>>, vector<32x8x32xbf16>
    %3 = vector.shape_cast %2 : vector<32x8x32xbf16> to vector<256x32xbf16>
    %c0_5 = arith.constant 0 : index
    %c0_6 = arith.constant 0 : index
    %4 = vector.load %arg3[%c0_5, %c0_6] : memref<48x32xbf16, #tpu.memory_space<vmem>>, vector<48x32xbf16>
    %cst = arith.constant dense<0.000000e+00> : vector<256x32xf32>
    %5 = tpu.matmul %1, %4, %cst {dimension_numbers = #tpu.dot_dimension_numbers<[1], [0], [0], [1], [0, 0, 1, 1], [], []>} : vector<256x48xbf16>, vector<48x32xbf16>, vector<256x32xf32> -> vector<256x32xf32>
    %c0_7 = arith.constant 0 : index
    %c0_8 = arith.constant 0 : index
    %6 = vector.load %arg4[%c0_7, %c0_8] : memref<32x64xbf16, #tpu.memory_space<vmem>>, vector<32x64xbf16>
    %cst_9 = arith.constant dense<0.000000e+00> : vector<256x64xf32>
    %7 = tpu.matmul %3, %6, %cst_9 {dimension_numbers = #tpu.dot_dimension_numbers<[1], [0], [0], [1], [0, 0, 1, 1], [], []>} : vector<256x32xbf16>, vector<32x64xbf16>, vector<256x64xf32> -> vector<256x64xf32>
    %8 = arith.truncf %5 : vector<256x32xf32> to vector<256x32xbf16>
    %9 = arith.truncf %7 : vector<256x64xf32> to vector<256x64xbf16>
    %10 = vector.extract_strided_slice %8 {offsets = [0, 0], sizes = [256, 16], strides = [1, 1]} : vector<256x32xbf16> to vector<256x16xbf16>
    %11 = vector.shape_cast %10 : vector<256x16xbf16> to vector<32x8x16xbf16>
    %12 = vector.extract_strided_slice %9 {offsets = [0, 0], sizes = [256, 16], strides = [1, 1]} : vector<256x64xbf16> to vector<256x16xbf16>
    %13 = vector.shape_cast %12 : vector<256x16xbf16> to vector<32x8x16xbf16>
    %14 = vector.extract_strided_slice %9 {offsets = [0, 32], sizes = [256, 16], strides = [1, 1]} : vector<256x64xbf16> to vector<256x16xbf16>
    %15 = vector.shape_cast %14 : vector<256x16xbf16> to vector<32x8x16xbf16>
    "tpu.trace_start"() <{level = 10 : i32, message = "bqd,bkd->bqk"}> : () -> ()
    %cst_10 = arith.constant dense<0.000000e+00> : vector<32x8x8xf32>
    %16 = tpu.matmul %11, %13, %cst_10 {dimension_numbers = #tpu.dot_dimension_numbers<[2], [2], [1], [1], [0, 0, 0, 1, 1, 1], [0], [0]>} : vector<32x8x16xbf16>, vector<32x8x16xbf16>, vector<32x8x8xf32> -> vector<32x8x8xf32>
    "tpu.trace_stop"() : () -> ()
    %cst_11 = arith.constant 2.500000e-01 : f32
    %17 = vector.broadcast %cst_11 : f32 to vector<32x8x8xf32>
    %18 = arith.mulf %16, %17 : vector<32x8x8xf32>
    %cst_12 = arith.constant dense<0xFF800000> : vector<32x8xf32>
    %19 = vector.multi_reduction <maximumf>, %18, %cst_12 [2] : vector<32x8x8xf32> to vector<32x8xf32>
    %20 = vector.shape_cast %19 : vector<32x8xf32> to vector<32x8x1xf32>
    %21 = vector.broadcast %20 : vector<32x8x1xf32> to vector<32x8x8xf32>
    %22 = arith.subf %18, %21 : vector<32x8x8xf32>
    %23 = math.exp %22 : vector<32x8x8xf32>
    %cst_13 = arith.constant dense<0.000000e+00> : vector<32x8xf32>
    %24 = vector.multi_reduction <add>, %23, %cst_13 [2] : vector<32x8x8xf32> to vector<32x8xf32>
    %25 = vector.shape_cast %24 : vector<32x8xf32> to vector<32x8x1xf32>
    %26 = tpu.reciprocal %25 {approx = true} : vector<32x8x1xf32> -> vector<32x8x1xf32>
    %27 = vector.broadcast %26 : vector<32x8x1xf32> to vector<32x8x8xf32>
    %28 = arith.mulf %23, %27 : vector<32x8x8xf32>
    %29 = arith.truncf %28 : vector<32x8x8xf32> to vector<32x8x8xbf16>
    "tpu.trace_start"() <{level = 10 : i32, message = "bqk,bkd->bqd"}> : () -> ()
    %cst_14 = arith.constant dense<0.000000e+00> : vector<32x8x16xf32>
    %30 = tpu.matmul %29, %15, %cst_14 {dimension_numbers = #tpu.dot_dimension_numbers<[2], [1], [1], [2], [0, 0, 0, 1, 1, 2], [0], [0]>} : vector<32x8x8xbf16>, vector<32x8x16xbf16>, vector<32x8x16xf32> -> vector<32x8x16xf32>
    "tpu.trace_stop"() : () -> ()
    %31 = vector.extract_strided_slice %8 {offsets = [0, 16], sizes = [256, 16], strides = [1, 1]} : vector<256x32xbf16> to vector<256x16xbf16>
    %32 = vector.shape_cast %31 : vector<256x16xbf16> to vector<32x8x16xbf16>
    %33 = vector.extract_strided_slice %9 {offsets = [0, 16], sizes = [256, 16], strides = [1, 1]} : vector<256x64xbf16> to vector<256x16xbf16>
    %34 = vector.shape_cast %33 : vector<256x16xbf16> to vector<32x8x16xbf16>
    %35 = vector.extract_strided_slice %9 {offsets = [0, 48], sizes = [256, 16], strides = [1, 1]} : vector<256x64xbf16> to vector<256x16xbf16>
    %36 = vector.shape_cast %35 : vector<256x16xbf16> to vector<32x8x16xbf16>
    "tpu.trace_start"() <{level = 10 : i32, message = "bqd,bkd->bqk"}> : () -> ()
    %cst_15 = arith.constant dense<0.000000e+00> : vector<32x8x8xf32>
    %37 = tpu.matmul %32, %34, %cst_15 {dimension_numbers = #tpu.dot_dimension_numbers<[2], [2], [1], [1], [0, 0, 0, 1, 1, 1], [0], [0]>} : vector<32x8x16xbf16>, vector<32x8x16xbf16>, vector<32x8x8xf32> -> vector<32x8x8xf32>
    "tpu.trace_stop"() : () -> ()
    %cst_16 = arith.constant 2.500000e-01 : f32
    %38 = vector.broadcast %cst_16 : f32 to vector<32x8x8xf32>
    %39 = arith.mulf %37, %38 : vector<32x8x8xf32>
    %cst_17 = arith.constant dense<0xFF800000> : vector<32x8xf32>
    %40 = vector.multi_reduction <maximumf>, %39, %cst_17 [2] : vector<32x8x8xf32> to vector<32x8xf32>
    %41 = vector.shape_cast %40 : vector<32x8xf32> to vector<32x8x1xf32>
    %42 = vector.broadcast %41 : vector<32x8x1xf32> to vector<32x8x8xf32>
    %43 = arith.subf %39, %42 : vector<32x8x8xf32>
    %44 = math.exp %43 : vector<32x8x8xf32>
    %cst_18 = arith.constant dense<0.000000e+00> : vector<32x8xf32>
    %45 = vector.multi_reduction <add>, %44, %cst_18 [2] : vector<32x8x8xf32> to vector<32x8xf32>
    %46 = vector.shape_cast %45 : vector<32x8xf32> to vector<32x8x1xf32>
    %47 = tpu.reciprocal %46 {approx = true} : vector<32x8x1xf32> -> vector<32x8x1xf32>
    %48 = vector.broadcast %47 : vector<32x8x1xf32> to vector<32x8x8xf32>
    %49 = arith.mulf %44, %48 : vector<32x8x8xf32>
    %50 = arith.truncf %49 : vector<32x8x8xf32> to vector<32x8x8xbf16>
    "tpu.trace_start"() <{level = 10 : i32, message = "bqk,bkd->bqd"}> : () -> ()
    %cst_19 = arith.constant dense<0.000000e+00> : vector<32x8x16xf32>
    %51 = tpu.matmul %50, %36, %cst_19 {dimension_numbers = #tpu.dot_dimension_numbers<[2], [1], [1], [2], [0, 0, 0, 1, 1, 2], [0], [0]>} : vector<32x8x8xbf16>, vector<32x8x16xbf16>, vector<32x8x16xf32> -> vector<32x8x16xf32>
    "tpu.trace_stop"() : () -> ()
    %52 = tpu.concatenate %30, %51 in 2 : vector<32x8x16xf32>, vector<32x8x16xf32> -> vector<32x8x32xf32>
    %53 = vector.shape_cast %52 : vector<32x8x32xf32> to vector<32x256xf32>
    %c0_20 = arith.constant 0 : index
    %c0_21 = arith.constant 0 : index
    %54 = vector.load %arg5[%c0_20, %c0_21] : memref<32x256xf32, #tpu.memory_space<vmem>>, vector<32x256xf32>
    tpu.vector_store %arg5[%c0_20, %c0_21], %53 {strides = array<i32>} : memref<32x256xf32, #tpu.memory_space<vmem>>, vector<32x256xf32>,
    return
  }
  func.func @transform_0(%arg0: i32) -> (i32, i32, i32) {
    %c0_i32 = arith.constant 0 : i32
    %c0_i32_0 = arith.constant 0 : i32
    %c0_i32_1 = arith.constant 0 : i32
    return %arg0, %c0_i32, %c0_i32_0 : i32, i32, i32
  }
  func.func @transform_1(%arg0: i32) -> (i32, i32, i32) {
    %c0_i32 = arith.constant 0 : i32
    %c0_i32_0 = arith.constant 0 : i32
    %c0_i32_1 = arith.constant 0 : i32
    return %arg0, %c0_i32, %c0_i32_0 : i32, i32, i32
  }
  func.func @transform_2(%arg0: i32) -> (i32, i32) {
    %c0_i32 = arith.constant 0 : i32
    %c0_i32_0 = arith.constant 0 : i32
    %c0_i32_1 = arith.constant 0 : i32
    return %c0_i32, %c0_i32_0 : i32, i32
  }
  func.func @transform_3(%arg0: i32) -> (i32, i32) {
    %c0_i32 = arith.constant 0 : i32
    %c0_i32_0 = arith.constant 0 : i32
    %c0_i32_1 = arith.constant 0 : i32
    return %c0_i32, %c0_i32_0 : i32, i32
  }
  func.func @transform_4(%arg0: i32) -> (i32, i32) {
    %c0_i32 = arith.constant 0 : i32
    %c0_i32_0 = arith.constant 0 : i32
    return %arg0, %c0_i32 : i32, i32
  }
}

</mosaic_0001>

<llo_original>
// kernel: tpu_custom_call.1
$region0: #{tpu_custom_call.1}
  #allocation0 [shape = 'u32[]', space=smem, size = 0x4, offset = 0x4, fixed_abs, tag = 'smem constant byte address 0x4 - core index']
  #allocation1 [shape = 'u32[144,128]{1,0:T(1,128)}', space=vmem, size = 0x12000, scoped, tag = 'internal scratch']
  %s0 = inlined_call_operand.hbm [shape: bf16[32,8,48], index: 0, kind: input, shape index: {}]
  %s1 = inlined_call_operand.hbm [shape: bf16[32,8,32], index: 1, kind: input, shape index: {}]
  %s2 = inlined_call_operand.vmem [shape: bf16[48,32], index: 2, kind: input, shape index: {}]
  %s3 = inlined_call_operand.vmem [shape: bf16[32,64], index: 3, kind: input, shape index: {}]
  %s4 = inlined_call_operand.hbm [shape: f32[32,256], index: 4, kind: output, shape index: {}]
  %s5 = sld [smem:[#allocation0]]
  $region34: #{tpu_custom_call.1} parent=0
    _
  %s7 = ssub.s32 1, %s5
  %s8 = scalar_select 0, %s7, %s5
  $region1: #{tpu_custom_call.1} parent=0
    #allocation2 [shape = 'u8[65536]{0}', space=vmem, size = 0x10000, scoped, tag = 'input window, operand 0, single buffered']
    #allocation3 [shape = 's32[1]{0}', space=sflag, size = 0x4, scoped, tag = 'scoped memory for tpu_custom_call.1']
    #allocation4 [shape = 's32[1]{0}', space=sflag, size = 0x4, scoped, tag = 'scoped memory for tpu_custom_call.1']
    #allocation5 [shape = 'u8[65536]{0}', space=vmem, size = 0x10000, scoped, tag = 'input window, operand 1, single buffered']
    #allocation6 [shape = 's32[1]{0}', space=sflag, size = 0x4, scoped, tag = 'scoped memory for tpu_custom_call.1']
    #allocation7 [shape = 'u8[32768]{0}', space=vmem, size = 0x8000, scoped, tag = 'output window, operand 0, single buffered']
    %9 = vsyncpa [#allocation3], 0
    %10 = vsyncpa [#allocation6], 0
    %11 = vsyncpa [#allocation4], 0
    // Predicated region
    $region2: #{tpu_custom_call.1} parent=1 // pred_check
      _
    $region3: #{tpu_custom_call.1} parent=1 // pred_check_branch
      %13 = sbr.rel (0) target = $region5
    $region4: #{tpu_custom_call.1} parent=1 // pred_region
      %s15 = ssub.s32 2048, 2048
      %16 = vsyncadd [#allocation3], %s15
      %s17 = sshll.u32 [#allocation2], 4
      %s18 = int_to_ptr.vmem [resolvable:$true] %s17
      %23 = dma.hbm_to_vmem [thread:$0]  %s0, 2048, %s18, [#allocation3], 64, 64, 4
    $region5: #{tpu_custom_call.1} parent=1 // pred_fallthru
      _
    // Predicated region
    $region6: #{tpu_custom_call.1} parent=1 // pred_check
      _
    $region7: #{tpu_custom_call.1} parent=1 // pred_check_branch
      %25 = sbr.rel (0) target = $region9
    $region8: #{tpu_custom_call.1} parent=1 // pred_region
      %s27 = ssub.s32 2048, 2048
      %28 = vsyncadd [#allocation6], %s27
      %s29 = sshll.u32 [#allocation5], 4
      %s30 = int_to_ptr.vmem [resolvable:$true] %s29
      %35 = dma.hbm_to_vmem [thread:$0]  %s1, 2048, %s30, [#allocation6], 64, 64, 4
    $region9: #{tpu_custom_call.1} parent=1 // pred_fallthru
      _
    // Predicated region
    $region10: #{tpu_custom_call.1} parent=1 // pred_check
      _
    $region11: #{tpu_custom_call.1} parent=1 // pred_check_branch
      %37 = sbr.rel (0) target = $region13
    $region12: #{tpu_custom_call.1} parent=1 // pred_region
      _
    $region13: #{tpu_custom_call.1} parent=1 // pred_fallthru
      _
    // Predicated region
    $region14: #{tpu_custom_call.1} parent=1 // pred_check
      _
    $region15: #{tpu_custom_call.1} parent=1 // pred_check_branch
      %39 = sbr.rel (0) target = $region17
    $region16: #{tpu_custom_call.1} parent=1 // pred_region
      _
    $region17: #{tpu_custom_call.1} parent=1 // pred_fallthru
      _
    // Predicated region
    $region18: #{tpu_custom_call.1} parent=1 // pred_check
      _
    $region19: #{tpu_custom_call.1} parent=1 // pred_check_branch
      %41 = sbr.rel (0) target = $region21
    $region20: #{tpu_custom_call.1} parent=1 // pred_region
      %42 = dma.done [#allocation3], 2048
    $region21: #{tpu_custom_call.1} parent=1 // pred_fallthru
      _
    // Predicated region
    $region22: #{tpu_custom_call.1} parent=1 // pred_check
      _
    $region23: #{tpu_custom_call.1} parent=1 // pred_check_branch
      %44 = sbr.rel (0) target = $region25
    $region24: #{tpu_custom_call.1} parent=1 // pred_region
      %45 = dma.done [#allocation6], 2048
    $region25: #{tpu_custom_call.1} parent=1 // pred_fallthru
      _
    %v47 = vld [vmem:[#allocation2] sm:$0xf]
    %v48 = vld [vmem:[#allocation2 + $0x4] sm:$0xf]
    %v49 = vld [vmem:[#allocation2 + $0x8] sm:$0xf]
    %v50 = vld [vmem:[#allocation2 + $0xc] sm:$0xf]
    %v51 = vld [vmem:[#allocation2 + $0x10] sm:$0xf]
    %v52 = vld [vmem:[#allocation2 + $0x14] sm:$0xf]
    %v53 = vld [vmem:[#allocation2 + $0x18] sm:$0xf]
    %v54 = vld [vmem:[#allocation2 + $0x1c] sm:$0xf]
    %v55 = vld [vmem:[#allocation2 + $0x20] sm:$0xf]
    %v56 = vld [vmem:[#allocation2 + $0x24] sm:$0xf]
    %v57 = vld [vmem:[#allocation2 + $0x28] sm:$0xf]
    %v58 = vld [vmem:[#allocation2 + $0x2c] sm:$0xf]
    %v59 = vld [vmem:[#allocation2 + $0x30] sm:$0xf]
    %v60 = vld [vmem:[#allocation2 + $0x34] sm:$0xf]
    %v61 = vld [vmem:[#allocation2 + $0x38] sm:$0xf]
    %v62 = vld [vmem:[#allocation2 + $0x3c] sm:$0xf]
    %v63 = vld [vmem:[#allocation2 + $0x40] sm:$0xf]
    %v64 = vld [vmem:[#allocation2 + $0x44] sm:$0xf]
    %v65 = vld [vmem:[#allocation2 + $0x48] sm:$0xf]
    %v66 = vld [vmem:[#allocation2 + $0x4c] sm:$0xf]
    %v67 = vld [vmem:[#allocation2 + $0x50] sm:$0xf]
    %v68 = vld [vmem:[#allocation2 + $0x54] sm:$0xf]
    %v69 = vld [vmem:[#allocation2 + $0x58] sm:$0xf]
    %v70 = vld [vmem:[#allocation2 + $0x5c] sm:$0xf]
    %v71 = vld [vmem:[#allocation2 + $0x60] sm:$0xf]
    %v72 = vld [vmem:[#allocation2 + $0x64] sm:$0xf]
    %v73 = vld [vmem:[#allocation2 + $0x68] sm:$0xf]
    %v74 = vld [vmem:[#allocation2 + $0x6c] sm:$0xf]
    %v75 = vld [vmem:[#allocation2 + $0x70] sm:$0xf]
    %v76 = vld [vmem:[#allocation2 + $0x74] sm:$0xf]
    %v77 = vld [vmem:[#allocation2 + $0x78] sm:$0xf]
    %v78 = vld [vmem:[#allocation2 + $0x7c] sm:$0xf]
    %v79 = vld [vmem:[#allocation5] sm:$0xf]
    %v80 = vld [vmem:[#allocation5 + $0x4] sm:$0xf]
    %v81 = vld [vmem:[#allocation5 + $0x8] sm:$0xf]
    %v82 = vld [vmem:[#allocation5 + $0xc] sm:$0xf]
    %v83 = vld [vmem:[#allocation5 + $0x10] sm:$0xf]
    %v84 = vld [vmem:[#allocation5 + $0x14] sm:$0xf]
    %v85 = vld [vmem:[#allocation5 + $0x18] sm:$0xf]
    %v86 = vld [vmem:[#allocation5 + $0x1c] sm:$0xf]
    %v87 = vld [vmem:[#allocation5 + $0x20] sm:$0xf]
    %v88 = vld [vmem:[#allocation5 + $0x24] sm:$0xf]
    %v89 = vld [vmem:[#allocation5 + $0x28] sm:$0xf]
    %v90 = vld [vmem:[#allocation5 + $0x2c] sm:$0xf]
    %v91 = vld [vmem:[#allocation5 + $0x30] sm:$0xf]
    %v92 = vld [vmem:[#allocation5 + $0x34] sm:$0xf]
    %v93 = vld [vmem:[#allocation5 + $0x38] sm:$0xf]
    %v94 = vld [vmem:[#allocation5 + $0x3c] sm:$0xf]
    %v95 = vld [vmem:[#allocation5 + $0x40] sm:$0xf]
    %v96 = vld [vmem:[#allocation5 + $0x44] sm:$0xf]
    %v97 = vld [vmem:[#allocation5 + $0x48] sm:$0xf]
    %v98 = vld [vmem:[#allocation5 + $0x4c] sm:$0xf]
    %v99 = vld [vmem:[#allocation5 + $0x50] sm:$0xf]
    %v100 = vld [vmem:[#allocation5 + $0x54] sm:$0xf]
    %v101 = vld [vmem:[#allocation5 + $0x58] sm:$0xf]
    %v102 = vld [vmem:[#allocation5 + $0x5c] sm:$0xf]
    %v103 = vld [vmem:[#allocation5 + $0x60] sm:$0xf]
    %v104 = vld [vmem:[#allocation5 + $0x64] sm:$0xf]
    %v105 = vld [vmem:[#allocation5 + $0x68] sm:$0xf]
    %v106 = vld [vmem:[#allocation5 + $0x6c] sm:$0xf]
    %v107 = vld [vmem:[#allocation5 + $0x70] sm:$0xf]
    %v108 = vld [vmem:[#allocation5 + $0x74] sm:$0xf]
    %v109 = vld [vmem:[#allocation5 + $0x78] sm:$0xf]
    %v110 = vld [vmem:[#allocation5 + $0x7c] sm:$0xf]
    %v111 = vld [vmem:[%s2] sm:$0xf]
    %v112 = vld [vmem:[%s2 + $0x4] sm:$0xf]
    %v113 = vld [vmem:[%s2 + $0x8] sm:$0xf]
    %v114 = vld [vmem:[%s2 + $0xc] sm:$0xf]
    %v115 = vld [vmem:[%s2 + $0x10] sm:$0xf]
    %v116 = vld [vmem:[%s2 + $0x14] sm:$0xf]
    %v149 = vunpack.c.l.b16 %v47
    %v150 = vunpack.c.l.b16 %v48
    %v151 = vunpack.c.l.b16 %v49
    %v152 = vunpack.c.l.b16 %v50
    %v153 = vunpack.c.l.b16 %v51
    %v154 = vunpack.c.l.b16 %v52
    %v155 = vunpack.c.l.b16 %v53
    %v156 = vunpack.c.l.b16 %v54
    %v157 = vunpack.c.l.b16 %v55
    %v158 = vunpack.c.l.b16 %v56
    %v159 = vunpack.c.l.b16 %v57
    %v160 = vunpack.c.l.b16 %v58
    %v161 = vunpack.c.l.b16 %v59
    %v162 = vunpack.c.l.b16 %v60
    %v163 = vunpack.c.l.b16 %v61
    %v164 = vunpack.c.l.b16 %v62
    %v165 = vunpack.c.l.b16 %v63
    %v166 = vunpack.c.l.b16 %v64
    %v167 = vunpack.c.l.b16 %v65
    %v168 = vunpack.c.l.b16 %v66
    %v169 = vunpack.c.l.b16 %v67
    %v170 = vunpack.c.l.b16 %v68
    %v171 = vunpack.c.l.b16 %v69
    %v172 = vunpack.c.l.b16 %v70
    %v173 = vunpack.c.l.b16 %v71
    %v174 = vunpack.c.l.b16 %v72
    %v175 = vunpack.c.l.b16 %v73
    %v176 = vunpack.c.l.b16 %v74
    %v177 = vunpack.c.l.b16 %v75
    %v178 = vunpack.c.l.b16 %v76
    %v179 = vunpack.c.l.b16 %v77
    %v180 = vunpack.c.l.b16 %v78
    %v181 = vpack.c.b16 %v150, %v149
    %v182 = vpack.c.b16 %v152, %v151
    %v183 = vpack.c.b16 %v154, %v153
    %v184 = vpack.c.b16 %v156, %v155
    %v185 = vpack.c.b16 %v158, %v157
    %v186 = vpack.c.b16 %v160, %v159
    %v187 = vpack.c.b16 %v162, %v161
    %v188 = vpack.c.b16 %v164, %v163
    %v189 = vpack.c.b16 %v166, %v165
    %v190 = vpack.c.b16 %v168, %v167
    %v191 = vpack.c.b16 %v170, %v169
    %v192 = vpack.c.b16 %v172, %v171
    %v193 = vpack.c.b16 %v174, %v173
    %v194 = vpack.c.b16 %v176, %v175
    %v195 = vpack.c.b16 %v178, %v177
    %v196 = vpack.c.b16 %v180, %v179
    %v203 = vunpack.c.l.b16 %v111
    %v204 = vunpack.c.l.b16 %v112
    %v205 = vunpack.c.l.b16 %v113
    %v206 = vunpack.c.l.b16 %v114
    %v207 = vunpack.c.l.b16 %v115
    %v208 = vunpack.c.l.b16 %v116
    %v209 = vpack.c.b16 %v204, %v203
    %v210 = vpack.c.b16 %v206, %v205
    %v211 = vpack.c.b16 %v208, %v207
    %vm215 = vcmask 392192
    %v217 = vsel %vm215, %v181, 0
    %v220 = vsel %vm215, %v182, 0
    %v223 = vsel %vm215, %v183, 0
    %v226 = vsel %vm215, %v184, 0
    %v229 = vsel %vm215, %v185, 0
    %v232 = vsel %vm215, %v186, 0
    %v235 = vsel %vm215, %v187, 0
    %v238 = vsel %vm215, %v188, 0
    %v241 = vsel %vm215, %v189, 0
    %v244 = vsel %vm215, %v190, 0
    %v247 = vsel %vm215, %v191, 0
    %v250 = vsel %vm215, %v192, 0
    %v253 = vsel %vm215, %v193, 0
    %v256 = vsel %vm215, %v194, 0
    %v259 = vsel %vm215, %v195, 0
    %v262 = vsel %vm215, %v196, 0
    %264 = vmatprep.subr.bf16.mxu0 0
    %265 = vmatpush1.bf16.msra.mxu0 0
    %266 = vmatprep.subr.bf16.mxu0 0
    %267 = vmatpush1.bf16.msra.mxu0 0
    %268 = vmatprep.subr.bf16.mxu0 0
    %269 = vmatpush1.bf16.msra.mxu0 0
    %270 = vmatprep.subr.bf16.mxu0 0
    %271 = vmatpush1.bf16.msra.mxu0 0
    %272 = vmatprep.subr.bf16.mxu0 0
    %273 = vmatpush1.bf16.msra.mxu0 0
    %274 = vmatprep.subr.bf16.mxu0 0
    %275 = vmatpush1.bf16.msra.mxu0 %v211
    %276 = vmatprep.subr.bf16.mxu0 0
    %277 = vmatpush1.bf16.msra.mxu0 %v210
    %278 = vmatprep.subr.bf16.mxu0 0
    %279 = vmatpush1.bf16.msra.mxu0 %v209
    %280 = vmatprep.subr.bf16.mxu0 0
    %281 = vmatpush2.bf16.msra.mxu0 0
    %282 = vmatprep.subr.bf16.mxu0 0
    %283 = vmatpush2.bf16.msra.mxu0 0
    %284 = vmatprep.subr.bf16.mxu0 0
    %285 = vmatpush2.bf16.msra.mxu0 0
    %286 = vmatprep.subr.bf16.mxu0 0
    %287 = vmatpush2.bf16.msra.mxu0 0
    %288 = vmatprep.subr.bf16.mxu0 0
    %289 = vmatpush2.bf16.msra.mxu0 0
    %290 = vmatprep.subr.bf16.mxu0 0
    %291 = vmatpush2.bf16.msra.mxu0 0
    %292 = vmatprep.subr.bf16.mxu0 0
    %293 = vmatpush2.bf16.msra.mxu0 0
    %294 = vmatprep.subr.bf16.mxu0 0
    %295 = vmatpush2.bf16.msra.mxu0 0
    %296 = vmatprep.mubr.bf16.mxu0 0
    %297 = vmatmul.mubr.bf16.gmra.mxu0 %v217
    %v298 = vpop.f32.mrf.mxu0
    %v299 = vadd.f32 0.0, %v298
    %v300 = vpop.f32.mrf.mxu0
    %v301 = vpop.f32.mrf.mxu0
    %v302 = vadd.f32 0.0, %v301
    %v303 = vpop.f32.mrf.mxu0
    %304 = vmatprep.mubr.bf16.mxu0 0
    %305 = vmatmul.mubr.bf16.gmra.mxu0 %v220
    %v306 = vpop.f32.mrf.mxu0
    %v307 = vadd.f32 0.0, %v306
    %v308 = vpop.f32.mrf.mxu0
    %v309 = vpop.f32.mrf.mxu0
    %v310 = vadd.f32 0.0, %v309
    %v311 = vpop.f32.mrf.mxu0
    %312 = vmatprep.mubr.bf16.mxu0 0
    %313 = vmatmul.mubr.bf16.gmra.mxu0 %v223
    %v314 = vpop.f32.mrf.mxu0
    %v315 = vadd.f32 0.0, %v314
    %v316 = vpop.f32.mrf.mxu0
    %v317 = vpop.f32.mrf.mxu0
    %v318 = vadd.f32 0.0, %v317
    %v319 = vpop.f32.mrf.mxu0
    %320 = vmatprep.mubr.bf16.mxu0 0
    %321 = vmatmul.mubr.bf16.gmra.mxu0 %v226
    %v322 = vpop.f32.mrf.mxu0
    %v323 = vadd.f32 0.0, %v322
    %v324 = vpop.f32.mrf.mxu0
    %v325 = vpop.f32.mrf.mxu0
    %v326 = vadd.f32 0.0, %v325
    %v327 = vpop.f32.mrf.mxu0
    %328 = vmatprep.mubr.bf16.mxu0 0
    %329 = vmatmul.mubr.bf16.gmra.mxu0 %v229
    %v330 = vpop.f32.mrf.mxu0
    %v331 = vadd.f32 0.0, %v330
    %v332 = vpop.f32.mrf.mxu0
    %v333 = vpop.f32.mrf.mxu0
    %v334 = vadd.f32 0.0, %v333
    %v335 = vpop.f32.mrf.mxu0
    %336 = vmatprep.mubr.bf16.mxu0 0
    %337 = vmatmul.mubr.bf16.gmra.mxu0 %v232
    %v338 = vpop.f32.mrf.mxu0
    %v339 = vadd.f32 0.0, %v338
    %v340 = vpop.f32.mrf.mxu0
    %v341 = vpop.f32.mrf.mxu0
    %v342 = vadd.f32 0.0, %v341
    %v343 = vpop.f32.mrf.mxu0
    %344 = vmatprep.mubr.bf16.mxu0 0
    %345 = vmatmul.mubr.bf16.gmra.mxu0 %v235
    %v346 = vpop.f32.mrf.mxu0
    %v347 = vadd.f32 0.0, %v346
    %v348 = vpop.f32.mrf.mxu0
    %v349 = vpop.f32.mrf.mxu0
    %v350 = vadd.f32 0.0, %v349
    %v351 = vpop.f32.mrf.mxu0
    %352 = vmatprep.mubr.bf16.mxu0 0
    %353 = vmatmul.mubr.bf16.gmra.mxu0 %v238
    %v354 = vpop.f32.mrf.mxu0
    %v355 = vadd.f32 0.0, %v354
    %v356 = vpop.f32.mrf.mxu0
    %v357 = vpop.f32.mrf.mxu0
    %v358 = vadd.f32 0.0, %v357
    %v359 = vpop.f32.mrf.mxu0
    %360 = vmatprep.mubr.bf16.mxu0 0
    %361 = vmatmul.mubr.bf16.gmra.mxu0 %v241
    %v362 = vpop.f32.mrf.mxu0
    %v363 = vadd.f32 0.0, %v362
    %v364 = vpop.f32.mrf.mxu0
    %v365 = vpop.f32.mrf.mxu0
    %v366 = vadd.f32 0.0, %v365
    %v367 = vpop.f32.mrf.mxu0
    %368 = vmatprep.mubr.bf16.mxu0 0
    %369 = vmatmul.mubr.bf16.gmra.mxu0 %v244
    %v370 = vpop.f32.mrf.mxu0
    %v371 = vadd.f32 0.0, %v370
    %v372 = vpop.f32.mrf.mxu0
    %v373 = vpop.f32.mrf.mxu0
    %v374 = vadd.f32 0.0, %v373
    %v375 = vpop.f32.mrf.mxu0
    %376 = vmatprep.mubr.bf16.mxu0 0
    %377 = vmatmul.mubr.bf16.gmra.mxu0 %v247
    %v378 = vpop.f32.mrf.mxu0
    %v379 = vadd.f32 0.0, %v378
    %v380 = vpop.f32.mrf.mxu0
    %v381 = vpop.f32.mrf.mxu0
    %v382 = vadd.f32 0.0, %v381
    %v383 = vpop.f32.mrf.mxu0
    %384 = vmatprep.mubr.bf16.mxu0 0
    %385 = vmatmul.mubr.bf16.gmra.mxu0 %v250
    %v386 = vpop.f32.mrf.mxu0
    %v387 = vadd.f32 0.0, %v386
    %v388 = vpop.f32.mrf.mxu0
    %v389 = vpop.f32.mrf.mxu0
    %v390 = vadd.f32 0.0, %v389
    %v391 = vpop.f32.mrf.mxu0
    %392 = vmatprep.mubr.bf16.mxu0 0
    %393 = vmatmul.mubr.bf16.gmra.mxu0 %v253
    %v394 = vpop.f32.mrf.mxu0
    %v395 = vadd.f32 0.0, %v394
    %v396 = vpop.f32.mrf.mxu0
    %v397 = vpop.f32.mrf.mxu0
    %v398 = vadd.f32 0.0, %v397
    %v399 = vpop.f32.mrf.mxu0
    %400 = vmatprep.mubr.bf16.mxu0 0
    %401 = vmatmul.mubr.bf16.gmra.mxu0 %v256
    %v402 = vpop.f32.mrf.mxu0
    %v403 = vadd.f32 0.0, %v402
    %v404 = vpop.f32.mrf.mxu0
    %v405 = vpop.f32.mrf.mxu0
    %v406 = vadd.f32 0.0, %v405
    %v407 = vpop.f32.mrf.mxu0
    %408 = vmatprep.mubr.bf16.mxu0 0
    %409 = vmatmul.mubr.bf16.gmra.mxu0 %v259
    %v410 = vpop.f32.mrf.mxu0
    %v411 = vadd.f32 0.0, %v410
    %v412 = vpop.f32.mrf.mxu0
    %v413 = vpop.f32.mrf.mxu0
    %v414 = vadd.f32 0.0, %v413
    %v415 = vpop.f32.mrf.mxu0
    %416 = vmatprep.mubr.bf16.mxu0 0
    %417 = vmatmul.mubr.bf16.gmra.mxu0 %v262
    %v418 = vpop.f32.mrf.mxu0
    %v419 = vadd.f32 0.0, %v418
    %v420 = vpop.f32.mrf.mxu0
    %v421 = vpop.f32.mrf.mxu0
    %v422 = vadd.f32 0.0, %v421
    %v423 = vpop.f32.mrf.mxu0
    %424 = vdwg.mxu0
    %v425 = vld [vmem:[%s3] sm:$0xf]
    %v426 = vld [vmem:[%s3 + $0x4] sm:$0xf]
    %v427 = vld [vmem:[%s3 + $0x8] sm:$0xf]
    %v428 = vld [vmem:[%s3 + $0xc] sm:$0xf]
    %v461 = vunpack.c.l.b16 %v79
    %v462 = vunpack.c.l.b16 %v80
    %v463 = vunpack.c.l.b16 %v81
    %v464 = vunpack.c.l.b16 %v82
    %v465 = vunpack.c.l.b16 %v83
    %v466 = vunpack.c.l.b16 %v84
    %v467 = vunpack.c.l.b16 %v85
    %v468 = vunpack.c.l.b16 %v86
    %v469 = vunpack.c.l.b16 %v87
    %v470 = vunpack.c.l.b16 %v88
    %v471 = vunpack.c.l.b16 %v89
    %v472 = vunpack.c.l.b16 %v90
    %v473 = vunpack.c.l.b16 %v91
    %v474 = vunpack.c.l.b16 %v92
    %v475 = vunpack.c.l.b16 %v93
    %v476 = vunpack.c.l.b16 %v94
    %v477 = vunpack.c.l.b16 %v95
    %v478 = vunpack.c.l.b16 %v96
    %v479 = vunpack.c.l.b16 %v97
    %v480 = vunpack.c.l.b16 %v98
    %v481 = vunpack.c.l.b16 %v99
    %v482 = vunpack.c.l.b16 %v100
    %v483 = vunpack.c.l.b16 %v101
    %v484 = vunpack.c.l.b16 %v102
    %v485 = vunpack.c.l.b16 %v103
    %v486 = vunpack.c.l.b16 %v104
    %v487 = vunpack.c.l.b16 %v105
    %v488 = vunpack.c.l.b16 %v106
    %v489 = vunpack.c.l.b16 %v107
    %v490 = vunpack.c.l.b16 %v108
    %v491 = vunpack.c.l.b16 %v109
    %v492 = vunpack.c.l.b16 %v110
    %v493 = vpack.c.b16 %v462, %v461
    %v494 = vpack.c.b16 %v464, %v463
    %v495 = vpack.c.b16 %v466, %v465
    %v496 = vpack.c.b16 %v468, %v467
    %v497 = vpack.c.b16 %v470, %v469
    %v498 = vpack.c.b16 %v472, %v471
    %v499 = vpack.c.b16 %v474, %v473
    %v500 = vpack.c.b16 %v476, %v475
    %v501 = vpack.c.b16 %v478, %v477
    %v502 = vpack.c.b16 %v480, %v479
    %v503 = vpack.c.b16 %v482, %v481
    %v504 = vpack.c.b16 %v484, %v483
    %v505 = vpack.c.b16 %v486, %v485
    %v506 = vpack.c.b16 %v488, %v487
    %v507 = vpack.c.b16 %v490, %v489
    %v508 = vpack.c.b16 %v492, %v491
    %v513 = vunpack.c.l.b16 %v425
    %v514 = vunpack.c.l.b16 %v426
    %v515 = vunpack.c.l.b16 %v427
    %v516 = vunpack.c.l.b16 %v428
    %v517 = vpack.c.b16 %v514, %v513
    %v518 = vpack.c.b16 %v516, %v515
    %vm521 = vcmask 261120
    %v523 = vsel %vm521, %v493, 0
    %v526 = vsel %vm521, %v494, 0
    %v529 = vsel %vm521, %v495, 0
    %v532 = vsel %vm521, %v496, 0
    %v535 = vsel %vm521, %v497, 0
    %v538 = vsel %vm521, %v498, 0
    %v541 = vsel %vm521, %v499, 0
    %v544 = vsel %vm521, %v500, 0
    %v547 = vsel %vm521, %v501, 0
    %v550 = vsel %vm521, %v502, 0
    %v553 = vsel %vm521, %v503, 0
    %v556 = vsel %vm521, %v504, 0
    %v559 = vsel %vm521, %v505, 0
    %v562 = vsel %vm521, %v506, 0
    %v565 = vsel %vm521, %v507, 0
    %v568 = vsel %vm521, %v508, 0
    %570 = vmatprep.subr.bf16.mxu0 0
    %571 = vmatpush1.bf16.msra.mxu0 0
    %572 = vmatprep.subr.bf16.mxu0 0
    %573 = vmatpush1.bf16.msra.mxu0 0
    %574 = vmatprep.subr.bf16.mxu0 0
    %575 = vmatpush1.bf16.msra.mxu0 0
    %576 = vmatprep.subr.bf16.mxu0 0
    %577 = vmatpush1.bf16.msra.mxu0 0
    %578 = vmatprep.subr.bf16.mxu0 0
    %579 = vmatpush1.bf16.msra.mxu0 0
    %580 = vmatprep.subr.bf16.mxu0 0
    %581 = vmatpush1.bf16.msra.mxu0 0
    %582 = vmatprep.subr.bf16.mxu0 0
    %583 = vmatpush1.bf16.msra.mxu0 %v518
    %584 = vmatprep.subr.bf16.mxu0 0
    %585 = vmatpush1.bf16.msra.mxu0 %v517
    %586 = vmatprep.subr.bf16.mxu0 0
    %587 = vmatpush2.bf16.msra.mxu0 0
    %588 = vmatprep.subr.bf16.mxu0 0
    %589 = vmatpush2.bf16.msra.mxu0 0
    %590 = vmatprep.subr.bf16.mxu0 0
    %591 = vmatpush2.bf16.msra.mxu0 0
    %592 = vmatprep.subr.bf16.mxu0 0
    %593 = vmatpush2.bf16.msra.mxu0 0
    %594 = vmatprep.subr.bf16.mxu0 0
    %595 = vmatpush2.bf16.msra.mxu0 0
    %596 = vmatprep.subr.bf16.mxu0 0
    %597 = vmatpush2.bf16.msra.mxu0 0
    %598 = vmatprep.subr.bf16.mxu0 0
    %599 = vmatpush2.bf16.msra.mxu0 0
    %600 = vmatprep.subr.bf16.mxu0 0
    %601 = vmatpush2.bf16.msra.mxu0 0
    %602 = vmatprep.mubr.bf16.mxu0 0
    %603 = vmatmul.mubr.bf16.gmra.mxu0 %v523
    %v604 = vpop.f32.mrf.mxu0
    %v605 = vadd.f32 0.0, %v604
    %v606 = vpop.f32.mrf.mxu0
    %v607 = vpop.f32.mrf.mxu0
    %v608 = vadd.f32 0.0, %v607
    %v609 = vpop.f32.mrf.mxu0
    %610 = vmatprep.mubr.bf16.mxu0 0
    %611 = vmatmul.mubr.bf16.gmra.mxu0 %v526
    %v612 = vpop.f32.mrf.mxu0
    %v613 = vadd.f32 0.0, %v612
    %v614 = vpop.f32.mrf.mxu0
    %v615 = vpop.f32.mrf.mxu0
    %v616 = vadd.f32 0.0, %v615
    %v617 = vpop.f32.mrf.mxu0
    %618 = vmatprep.mubr.bf16.mxu0 0
    %619 = vmatmul.mubr.bf16.gmra.mxu0 %v529
    %v620 = vpop.f32.mrf.mxu0
    %v621 = vadd.f32 0.0, %v620
    %v622 = vpop.f32.mrf.mxu0
    %v623 = vpop.f32.mrf.mxu0
    %v624 = vadd.f32 0.0, %v623
    %v625 = vpop.f32.mrf.mxu0
    %626 = vmatprep.mubr.bf16.mxu0 0
    %627 = vmatmul.mubr.bf16.gmra.mxu0 %v532
    %v628 = vpop.f32.mrf.mxu0
    %v629 = vadd.f32 0.0, %v628
    %v630 = vpop.f32.mrf.mxu0
    %v631 = vpop.f32.mrf.mxu0
    %v632 = vadd.f32 0.0, %v631
    %v633 = vpop.f32.mrf.mxu0
    %634 = vmatprep.mubr.bf16.mxu0 0
    %635 = vmatmul.mubr.bf16.gmra.mxu0 %v535
    %v636 = vpop.f32.mrf.mxu0
    %v637 = vadd.f32 0.0, %v636
    %v638 = vpop.f32.mrf.mxu0
    %v639 = vpop.f32.mrf.mxu0
    %v640 = vadd.f32 0.0, %v639
    %v641 = vpop.f32.mrf.mxu0
    %642 = vmatprep.mubr.bf16.mxu0 0
    %643 = vmatmul.mubr.bf16.gmra.mxu0 %v538
    %v644 = vpop.f32.mrf.mxu0
    %v645 = vadd.f32 0.0, %v644
    %v646 = vpop.f32.mrf.mxu0
    %v647 = vpop.f32.mrf.mxu0
    %v648 = vadd.f32 0.0, %v647
    %v649 = vpop.f32.mrf.mxu0
    %650 = vmatprep.mubr.bf16.mxu0 0
    %651 = vmatmul.mubr.bf16.gmra.mxu0 %v541
    %v652 = vpop.f32.mrf.mxu0
    %v653 = vadd.f32 0.0, %v652
    %v654 = vpop.f32.mrf.mxu0
    %v655 = vpop.f32.mrf.mxu0
    %v656 = vadd.f32 0.0, %v655
    %v657 = vpop.f32.mrf.mxu0
    %658 = vmatprep.mubr.bf16.mxu0 0
    %659 = vmatmul.mubr.bf16.gmra.mxu0 %v544
    %v660 = vpop.f32.mrf.mxu0
    %v661 = vadd.f32 0.0, %v660
    %v662 = vpop.f32.mrf.mxu0
    %v663 = vpop.f32.mrf.mxu0
    %v664 = vadd.f32 0.0, %v663
    %v665 = vpop.f32.mrf.mxu0
    %666 = vmatprep.mubr.bf16.mxu0 0
    %667 = vmatmul.mubr.bf16.gmra.mxu0 %v547
    %v668 = vpop.f32.mrf.mxu0
    %v669 = vadd.f32 0.0, %v668
    %v670 = vpop.f32.mrf.mxu0
    %v671 = vpop.f32.mrf.mxu0
    %v672 = vadd.f32 0.0, %v671
    %v673 = vpop.f32.mrf.mxu0
    %674 = vmatprep.mubr.bf16.mxu0 0
    %675 = vmatmul.mubr.bf16.gmra.mxu0 %v550
    %v676 = vpop.f32.mrf.mxu0
    %v677 = vadd.f32 0.0, %v676
    %v678 = vpop.f32.mrf.mxu0
    %v679 = vpop.f32.mrf.mxu0
    %v680 = vadd.f32 0.0, %v679
    %v681 = vpop.f32.mrf.mxu0
    %682 = vmatprep.mubr.bf16.mxu0 0
    %683 = vmatmul.mubr.bf16.gmra.mxu0 %v553
    %v684 = vpop.f32.mrf.mxu0
    %v685 = vadd.f32 0.0, %v684
    %v686 = vpop.f32.mrf.mxu0
    %v687 = vpop.f32.mrf.mxu0
    %v688 = vadd.f32 0.0, %v687
    %v689 = vpop.f32.mrf.mxu0
    %690 = vmatprep.mubr.bf16.mxu0 0
    %691 = vmatmul.mubr.bf16.gmra.mxu0 %v556
    %v692 = vpop.f32.mrf.mxu0
    %v693 = vadd.f32 0.0, %v692
    %v694 = vpop.f32.mrf.mxu0
    %v695 = vpop.f32.mrf.mxu0
    %v696 = vadd.f32 0.0, %v695
    %v697 = vpop.f32.mrf.mxu0
    %698 = vmatprep.mubr.bf16.mxu0 0
    %699 = vmatmul.mubr.bf16.gmra.mxu0 %v559
    %v700 = vpop.f32.mrf.mxu0
    %v701 = vadd.f32 0.0, %v700
    %v702 = vpop.f32.mrf.mxu0
    %v703 = vpop.f32.mrf.mxu0
    %v704 = vadd.f32 0.0, %v703
    %v705 = vpop.f32.mrf.mxu0
    %706 = vmatprep.mubr.bf16.mxu0 0
    %707 = vmatmul.mubr.bf16.gmra.mxu0 %v562
    %v708 = vpop.f32.mrf.mxu0
    %v709 = vadd.f32 0.0, %v708
    %v710 = vpop.f32.mrf.mxu0
    %v711 = vpop.f32.mrf.mxu0
    %v712 = vadd.f32 0.0, %v711
    %v713 = vpop.f32.mrf.mxu0
    %714 = vmatprep.mubr.bf16.mxu0 0
    %715 = vmatmul.mubr.bf16.gmra.mxu0 %v565
    %v716 = vpop.f32.mrf.mxu0
    %v717 = vadd.f32 0.0, %v716
    %v718 = vpop.f32.mrf.mxu0
    %v719 = vpop.f32.mrf.mxu0
    %v720 = vadd.f32 0.0, %v719
    %v721 = vpop.f32.mrf.mxu0
    %722 = vmatprep.mubr.bf16.mxu0 0
    %723 = vmatmul.mubr.bf16.gmra.mxu0 %v568
    %v724 = vpop.f32.mrf.mxu0
    %v725 = vadd.f32 0.0, %v724
    %v726 = vpop.f32.mrf.mxu0
    %v727 = vpop.f32.mrf.mxu0
    %v728 = vadd.f32 0.0, %v727
    %v729 = vpop.f32.mrf.mxu0
    %730 = vdwg.mxu0
    %v731 = vpack.c.bf16 %v302, %v299
    %v732 = vpack.c.bf16 %v310, %v307
    %v733 = vpack.c.bf16 %v318, %v315
    %v734 = vpack.c.bf16 %v326, %v323
    %v735 = vpack.c.bf16 %v334, %v331
    %v736 = vpack.c.bf16 %v342, %v339
    %v737 = vpack.c.bf16 %v350, %v347
    %v738 = vpack.c.bf16 %v358, %v355
    %v739 = vpack.c.bf16 %v366, %v363
    %v740 = vpack.c.bf16 %v374, %v371
    %v741 = vpack.c.bf16 %v382, %v379
    %v742 = vpack.c.bf16 %v390, %v387
    %v743 = vpack.c.bf16 %v398, %v395
    %v744 = vpack.c.bf16 %v406, %v403
    %v745 = vpack.c.bf16 %v414, %v411
    %v746 = vpack.c.bf16 %v422, %v419
    %v747 = vpack.c.bf16 %v608, %v605
    %v748 = vpack.c.bf16 %v616, %v613
    %v749 = vpack.c.bf16 %v624, %v621
    %v750 = vpack.c.bf16 %v632, %v629
    %v751 = vpack.c.bf16 %v640, %v637
    %v752 = vpack.c.bf16 %v648, %v645
    %v753 = vpack.c.bf16 %v656, %v653
    %v754 = vpack.c.bf16 %v664, %v661
    %v755 = vpack.c.bf16 %v672, %v669
    %v756 = vpack.c.bf16 %v680, %v677
    %v757 = vpack.c.bf16 %v688, %v685
    %v758 = vpack.c.bf16 %v696, %v693
    %v759 = vpack.c.bf16 %v704, %v701
    %v760 = vpack.c.bf16 %v712, %v709
    %v761 = vpack.c.bf16 %v720, %v717
    %v762 = vpack.c.bf16 %v728, %v725
    %v779 = vunpack.c.l.b16 %v731
    %v780 = vunpack.c.h.b16 %v731
    %v781 = vunpack.c.l.b16 %v732
    %v782 = vunpack.c.h.b16 %v732
    %v783 = vunpack.c.l.b16 %v733
    %v784 = vunpack.c.h.b16 %v733
    %v785 = vunpack.c.l.b16 %v734
    %v786 = vunpack.c.h.b16 %v734
    %v787 = vunpack.c.l.b16 %v735
    %v788 = vunpack.c.h.b16 %v735
    %v789 = vunpack.c.l.b16 %v736
    %v790 = vunpack.c.h.b16 %v736
    %v791 = vunpack.c.l.b16 %v737
    %v792 = vunpack.c.h.b16 %v737
    %v793 = vunpack.c.l.b16 %v738
    %v794 = vunpack.c.h.b16 %v738
    %v795 = vunpack.c.l.b16 %v739
    %v796 = vunpack.c.h.b16 %v739
    %v797 = vunpack.c.l.b16 %v740
    %v798 = vunpack.c.h.b16 %v740
    %v799 = vunpack.c.l.b16 %v741
    %v800 = vunpack.c.h.b16 %v741
    %v801 = vunpack.c.l.b16 %v742
    %v802 = vunpack.c.h.b16 %v742
    %v803 = vunpack.c.l.b16 %v743
    %v804 = vunpack.c.h.b16 %v743
    %v805 = vunpack.c.l.b16 %v744
    %v806 = vunpack.c.h.b16 %v744
    %v807 = vunpack.c.l.b16 %v745
    %v808 = vunpack.c.h.b16 %v745
    %v809 = vunpack.c.l.b16 %v746
    %v810 = vunpack.c.h.b16 %v746
    %v811 = vpack.c.b16 %v779, %v779
    %v812 = vpack.c.b16 %v780, %v780
    %v813 = vpack.c.b16 %v781, %v781
    %v814 = vpack.c.b16 %v782, %v782
    %v815 = vpack.c.b16 %v783, %v783
    %v816 = vpack.c.b16 %v784, %v784
    %v817 = vpack.c.b16 %v785, %v785
    %v818 = vpack.c.b16 %v786, %v786
    %v819 = vpack.c.b16 %v787, %v787
    %v820 = vpack.c.b16 %v788, %v788
    %v821 = vpack.c.b16 %v789, %v789
    %v822 = vpack.c.b16 %v790, %v790
    %v823 = vpack.c.b16 %v791, %v791
    %v824 = vpack.c.b16 %v792, %v792
    %v825 = vpack.c.b16 %v793, %v793
    %v826 = vpack.c.b16 %v794, %v794
    %v827 = vpack.c.b16 %v795, %v795
    %v828 = vpack.c.b16 %v796, %v796
    %v829 = vpack.c.b16 %v797, %v797
    %v830 = vpack.c.b16 %v798, %v798
    %v831 = vpack.c.b16 %v799, %v799
    %v832 = vpack.c.b16 %v800, %v800
    %v833 = vpack.c.b16 %v801, %v801
    %v834 = vpack.c.b16 %v802, %v802
    %v835 = vpack.c.b16 %v803, %v803
    %v836 = vpack.c.b16 %v804, %v804
    %v837 = vpack.c.b16 %v805, %v805
    %v838 = vpack.c.b16 %v806, %v806
    %v839 = vpack.c.b16 %v807, %v807
    %v840 = vpack.c.b16 %v808, %v808
    %v841 = vpack.c.b16 %v809, %v809
    %v842 = vpack.c.b16 %v810, %v810
    %v859 = vunpack.c.l.b16 %v747
    %v860 = vunpack.c.h.b16 %v747
    %v861 = vunpack.c.l.b16 %v748
    %v862 = vunpack.c.h.b16 %v748
    %v863 = vunpack.c.l.b16 %v749
    %v864 = vunpack.c.h.b16 %v749
    %v865 = vunpack.c.l.b16 %v750
    %v866 = vunpack.c.h.b16 %v750
    %v867 = vunpack.c.l.b16 %v751
    %v868 = vunpack.c.h.b16 %v751
    %v869 = vunpack.c.l.b16 %v752
    %v870 = vunpack.c.h.b16 %v752
    %v871 = vunpack.c.l.b16 %v753
    %v872 = vunpack.c.h.b16 %v753
    %v873 = vunpack.c.l.b16 %v754
    %v874 = vunpack.c.h.b16 %v754
    %v875 = vunpack.c.l.b16 %v755
    %v876 = vunpack.c.h.b16 %v755
    %v877 = vunpack.c.l.b16 %v756
    %v878 = vunpack.c.h.b16 %v756
    %v879 = vunpack.c.l.b16 %v757
    %v880 = vunpack.c.h.b16 %v757
    %v881 = vunpack.c.l.b16 %v758
    %v882 = vunpack.c.h.b16 %v758
    %v883 = vunpack.c.l.b16 %v759
    %v884 = vunpack.c.h.b16 %v759
    %v885 = vunpack.c.l.b16 %v760
    %v886 = vunpack.c.h.b16 %v760
    %v887 = vunpack.c.l.b16 %v761
    %v888 = vunpack.c.h.b16 %v761
    %v889 = vunpack.c.l.b16 %v762
    %v890 = vunpack.c.h.b16 %v762
    %v891 = vpack.c.b16 %v859, %v859
    %v892 = vpack.c.b16 %v860, %v860
    %v893 = vpack.c.b16 %v861, %v861
    %v894 = vpack.c.b16 %v862, %v862
    %v895 = vpack.c.b16 %v863, %v863
    %v896 = vpack.c.b16 %v864, %v864
    %v897 = vpack.c.b16 %v865, %v865
    %v898 = vpack.c.b16 %v866, %v866
    %v899 = vpack.c.b16 %v867, %v867
    %v900 = vpack.c.b16 %v868, %v868
    %v901 = vpack.c.b16 %v869, %v869
    %v902 = vpack.c.b16 %v870, %v870
    %v903 = vpack.c.b16 %v871, %v871
    %v904 = vpack.c.b16 %v872, %v872
    %v905 = vpack.c.b16 %v873, %v873
    %v906 = vpack.c.b16 %v874, %v874
    %v907 = vpack.c.b16 %v875, %v875
    %v908 = vpack.c.b16 %v876, %v876
    %v909 = vpack.c.b16 %v877, %v877
    %v910 = vpack.c.b16 %v878, %v878
    %v911 = vpack.c.b16 %v879, %v879
    %v912 = vpack.c.b16 %v880, %v880
    %v913 = vpack.c.b16 %v881, %v881
    %v914 = vpack.c.b16 %v882, %v882
    %v915 = vpack.c.b16 %v883, %v883
    %v916 = vpack.c.b16 %v884, %v884
    %v917 = vpack.c.b16 %v885, %v885
    %v918 = vpack.c.b16 %v886, %v886
    %v919 = vpack.c.b16 %v887, %v887
    %v920 = vpack.c.b16 %v888, %v888
    %v921 = vpack.c.b16 %v889, %v889
    %v922 = vpack.c.b16 %v890, %v890
    %vm923 = vcmask 130048
    %v925 = vsel %vm923, %v811, 0
    %v928 = vsel %vm923, %v891, 0
    %930 = vmatprep.subr.bf16.mxu0 0
    %931 = vmatpush1.bf16.xpose.msra.mxu0 0
    %932 = vmatprep.subr.bf16.mxu0 0
    %933 = vmatpush1.bf16.xpose.msra.mxu0 0
    %934 = vmatprep.subr.bf16.mxu0 0
    %935 = vmatpush1.bf16.xpose.msra.mxu0 0
    %936 = vmatprep.subr.bf16.mxu0 0
    %937 = vmatpush1.bf16.xpose.msra.mxu0 0
    %938 = vmatprep.subr.bf16.mxu0 0
    %939 = vmatpush1.bf16.xpose.msra.mxu0 0
    %940 = vmatprep.subr.bf16.mxu0 0
    %941 = vmatpush1.bf16.xpose.msra.mxu0 0
    %942 = vmatprep.subr.bf16.mxu0 0
    %943 = vmatpush1.bf16.xpose.msra.mxu0 0
    %944 = vmatprep.subr.bf16.mxu0 0
    %945 = vmatpush1.bf16.xpose.msra.mxu0 %v928
    %946 = vmatprep.subr.bf16.mxu0 0
    %947 = vmatpush2.bf16.xpose.msra.mxu0 0
    %948 = vmatprep.subr.bf16.mxu0 0
    %949 = vmatpush2.bf16.xpose.msra.mxu0 0
    %950 = vmatprep.subr.bf16.mxu0 0
    %951 = vmatpush2.bf16.xpose.msra.mxu0 0
    %952 = vmatprep.subr.bf16.mxu0 0
    %953 = vmatpush2.bf16.xpose.msra.mxu0 0
    %954 = vmatprep.subr.bf16.mxu0 0
    %955 = vmatpush2.bf16.xpose.msra.mxu0 0
    %956 = vmatprep.subr.bf16.mxu0 0
    %957 = vmatpush2.bf16.xpose.msra.mxu0 0
    %958 = vmatprep.subr.bf16.mxu0 0
    %959 = vmatpush2.bf16.xpose.msra.mxu0 0
    %960 = vmatprep.subr.bf16.mxu0 0
    %961 = vmatpush2.bf16.xpose.msra.mxu0 0
    %962 = vmatprep.mubr.bf16.mxu0 0
    %963 = vmatmul.mubr.bf16.gmra.mxu0 %v925
    %v964 = vpop.f32.mrf.mxu0
    %v965 = vadd.f32 0.0, %v964
    %v966 = vpop.f32.mrf.mxu0
    %v967 = vpop.f32.mrf.mxu0
    %v968 = vpop.f32.mrf.mxu0
    %969 = vdwg.mxu0
    %v971 = vsel %vm923, %v812, 0
    %v974 = vsel %vm923, %v892, 0
    %976 = vmatprep.subr.bf16.mxu0 0
    %977 = vmatpush1.bf16.xpose.msra.mxu0 0
    %978 = vmatprep.subr.bf16.mxu0 0
    %979 = vmatpush1.bf16.xpose.msra.mxu0 0
    %980 = vmatprep.subr.bf16.mxu0 0
    %981 = vmatpush1.bf16.xpose.msra.mxu0 0
    %982 = vmatprep.subr.bf16.mxu0 0
    %983 = vmatpush1.bf16.xpose.msra.mxu0 0
    %984 = vmatprep.subr.bf16.mxu0 0
    %985 = vmatpush1.bf16.xpose.msra.mxu0 0
    %986 = vmatprep.subr.bf16.mxu0 0
    %987 = vmatpush1.bf16.xpose.msra.mxu0 0
    %988 = vmatprep.subr.bf16.mxu0 0
    %989 = vmatpush1.bf16.xpose.msra.mxu0 0
    %990 = vmatprep.subr.bf16.mxu0 0
    %991 = vmatpush1.bf16.xpose.msra.mxu0 %v974
    %992 = vmatprep.subr.bf16.mxu0 0
    %993 = vmatpush2.bf16.xpose.msra.mxu0 0
    %994 = vmatprep.subr.bf16.mxu0 0
    %995 = vmatpush2.bf16.xpose.msra.mxu0 0
    %996 = vmatprep.subr.bf16.mxu0 0
    %997 = vmatpush2.bf16.xpose.msra.mxu0 0
    %998 = vmatprep.subr.bf16.mxu0 0
    %999 = vmatpush2.bf16.xpose.msra.mxu0 0
    %1000 = vmatprep.subr.bf16.mxu0 0
    %1001 = vmatpush2.bf16.xpose.msra.mxu0 0
    %1002 = vmatprep.subr.bf16.mxu0 0
    %1003 = vmatpush2.bf16.xpose.msra.mxu0 0
    %1004 = vmatprep.subr.bf16.mxu0 0
    %1005 = vmatpush2.bf16.xpose.msra.mxu0 0
    %1006 = vmatprep.subr.bf16.mxu0 0
    %1007 = vmatpush2.bf16.xpose.msra.mxu0 0
    %1008 = vmatprep.mubr.bf16.mxu0 0
    %1009 = vmatmul.mubr.bf16.gmra.mxu0 %v971
    %v1010 = vpop.f32.mrf.mxu0
    %v1011 = vadd.f32 0.0, %v1010
    %v1012 = vpop.f32.mrf.mxu0
    %v1013 = vpop.f32.mrf.mxu0
    %v1014 = vpop.f32.mrf.mxu0
    %1015 = vdwg.mxu0
    %v1017 = vsel %vm923, %v813, 0
    %v1020 = vsel %vm923, %v893, 0
    %1022 = vmatprep.subr.bf16.mxu0 0
    %1023 = vmatpush1.bf16.xpose.msra.mxu0 0
    %1024 = vmatprep.subr.bf16.mxu0 0
    %1025 = vmatpush1.bf16.xpose.msra.mxu0 0
    %1026 = vmatprep.subr.bf16.mxu0 0
    %1027 = vmatpush1.bf16.xpose.msra.mxu0 0
    %1028 = vmatprep.subr.bf16.mxu0 0
    %1029 = vmatpush1.bf16.xpose.msra.mxu0 0
    %1030 = vmatprep.subr.bf16.mxu0 0
    %1031 = vmatpush1.bf16.xpose.msra.mxu0 0
    %1032 = vmatprep.subr.bf16.mxu0 0
    %1033 = vmatpush1.bf16.xpose.msra.mxu0 0
    %1034 = vmatprep.subr.bf16.mxu0 0
    %1035 = vmatpush1.bf16.xpose.msra.mxu0 0
    %1036 = vmatprep.subr.bf16.mxu0 0
    %1037 = vmatpush1.bf16.xpose.msra.mxu0 %v1020
    %1038 = vmatprep.subr.bf16.mxu0 0
    %1039 = vmatpush2.bf16.xpose.msra.mxu0 0
    %1040 = vmatprep.subr.bf16.mxu0 0
    %1041 = vmatpush2.bf16.xpose.msra.mxu0 0
    %1042 = vmatprep.subr.bf16.mxu0 0
    %1043 = vmatpush2.bf16.xpose.msra.mxu0 0
    %1044 = vmatprep.subr.bf16.mxu0 0
    %1045 = vmatpush2.bf16.xpose.msra.mxu0 0
    %1046 = vmatprep.subr.bf16.mxu0 0
    %1047 = vmatpush2.bf16.xpose.msra.mxu0 0
    %1048 = vmatprep.subr.bf16.mxu0 0
    %1049 = vmatpush2.bf16.xpose.msra.mxu0 0
    %1050 = vmatprep.subr.bf16.mxu0 0
    %1051 = vmatpush2.bf16.xpose.msra.mxu0 0
    %1052 = vmatprep.subr.bf16.mxu0 0
    %1053 = vmatpush2.bf16.xpose.msra.mxu0 0
    %1054 = vmatprep.mubr.bf16.mxu0 0
    %1055 = vmatmul.mubr.bf16.gmra.mxu0 %v1017
    %v1056 = vpop.f32.mrf.mxu0
    %v1057 = vadd.f32 0.0, %v1056
    %v1058 = vpop.f32.mrf.mxu0
    %v1059 = vpop.f32.mrf.mxu0
    %v1060 = vpop.f32.mrf.mxu0
    %1061 = vdwg.mxu0
    %v1063 = vsel %vm923, %v814, 0
    %v1066 = vsel %vm923, %v894, 0
    %1068 = vmatprep.subr.bf16.mxu0 0
    %1069 = vmatpush1.bf16.xpose.msra.mxu0 0
    %1070 = vmatprep.subr.bf16.mxu0 0
    %1071 = vmatpush1.bf16.xpose.msra.mxu0 0
    %1072 = vmatprep.subr.bf16.mxu0 0
    %1073 = vmatpush1.bf16.xpose.msra.mxu0 0
    %1074 = vmatprep.subr.bf16.mxu0 0
    %1075 = vmatpush1.bf16.xpose.msra.mxu0 0
    %1076 = vmatprep.subr.bf16.mxu0 0
    %1077 = vmatpush1.bf16.xpose.msra.mxu0 0
    %1078 = vmatprep.subr.bf16.mxu0 0
    %1079 = vmatpush1.bf16.xpose.msra.mxu0 0
    %1080 = vmatprep.subr.bf16.mxu0 0
    %1081 = vmatpush1.bf16.xpose.msra.mxu0 0
    %1082 = vmatprep.subr.bf16.mxu0 0
    %1083 = vmatpush1.bf16.xpose.msra.mxu0 %v1066
    %1084 = vmatprep.subr.bf16.mxu0 0
    %1085 = vmatpush2.bf16.xpose.msra.mxu0 0
    %1086 = vmatprep.subr.bf16.mxu0 0
    %1087 = vmatpush2.bf16.xpose.msra.mxu0 0
    %1088 = vmatprep.subr.bf16.mxu0 0
    %1089 = vmatpush2.bf16.xpose.msra.mxu0 0
    %1090 = vmatprep.subr.bf16.mxu0 0
    %1091 = vmatpush2.bf16.xpose.msra.mxu0 0
    %1092 = vmatprep.subr.bf16.mxu0 0
    %1093 = vmatpush2.bf16.xpose.msra.mxu0 0
    %1094 = vmatprep.subr.bf16.mxu0 0
    %1095 = vmatpush2.bf16.xpose.msra.mxu0 0
    %1096 = vmatprep.subr.bf16.mxu0 0
    %1097 = vmatpush2.bf16.xpose.msra.mxu0 0
    %1098 = vmatprep.subr.bf16.mxu0 0
    %1099 = vmatpush2.bf16.xpose.msra.mxu0 0
    %1100 = vmatprep.mubr.bf16.mxu0 0
    %1101 = vmatmul.mubr.bf16.gmra.mxu0 %v1063
    %v1102 = vpop.f32.mrf.mxu0
    %v1103 = vadd.f32 0.0, %v1102
    %v1104 = vpop.f32.mrf.mxu0
    %v1105 = vpop.f32.mrf.mxu0
    %v1106 = vpop.f32.mrf.mxu0
    %1107 = vdwg.mxu0
    %v1109 = vsel %vm923, %v815, 0
    %v1112 = vsel %vm923, %v895, 0
    %1114 = vmatprep.subr.bf16.mxu0 0
    %1115 = vmatpush1.bf16.xpose.msra.mxu0 0
    %1116 = vmatprep.subr.bf16.mxu0 0
    %1117 = vmatpush1.bf16.xpose.msra.mxu0 0
    %1118 = vmatprep.subr.bf16.mxu0 0
    %1119 = vmatpush1.bf16.xpose.msra.mxu0 0
    %1120 = vmatprep.subr.bf16.mxu0 0
    %1121 = vmatpush1.bf16.xpose.msra.mxu0 0
    %1122 = vmatprep.subr.bf16.mxu0 0
    %1123 = vmatpush1.bf16.xpose.msra.mxu0 0
    %1124 = vmatprep.subr.bf16.mxu0 0
    %1125 = vmatpush1.bf16.xpose.msra.mxu0 0
    %1126 = vmatprep.subr.bf16.mxu0 0
    %1127 = vmatpush1.bf16.xpose.msra.mxu0 0
    %1128 = vmatprep.subr.bf16.mxu0 0
    %1129 = vmatpush1.bf16.xpose.msra.mxu0 %v1112
    %1130 = vmatprep.subr.bf16.mxu0 0
    %1131 = vmatpush2.bf16.xpose.msra.mxu0 0
    %1132 = vmatprep.subr.bf16.mxu0 0
    %1133 = vmatpush2.bf16.xpose.msra.mxu0 0
    %1134 = vmatprep.subr.bf16.mxu0 0
    %1135 = vmatpush2.bf16.xpose.msra.mxu0 0
    %1136 = vmatprep.subr.bf16.mxu0 0
    %1137 = vmatpush2.bf16.xpose.msra.mxu0 0
    %1138 = vmatprep.subr.bf16.mxu0 0
    %1139 = vmatpush2.bf16.xpose.msra.mxu0 0
    %1140 = vmatprep.subr.bf16.mxu0 0
    %1141 = vmatpush2.bf16.xpose.msra.mxu0 0
    %1142 = vmatprep.subr.bf16.mxu0 0
    %1143 = vmatpush2.bf16.xpose.msra.mxu0 0
    %1144 = vmatprep.subr.bf16.mxu0 0
    %1145 = vmatpush2.bf16.xpose.msra.mxu0 0
    %1146 = vmatprep.mubr.bf16.mxu0 0
    %1147 = vmatmul.mubr.bf16.gmra.mxu0 %v1109
    %v1148 = vpop.f32.mrf.mxu0
    %v1149 = vadd.f32 0.0, %v1148
    %v1150 = vpop.f32.mrf.mxu0
    %v1151 = vpop.f32.mrf.mxu0
    %v1152 = vpop.f32.mrf.mxu0
    %1153 = vdwg.mxu0
    %v1155 = vsel %vm923, %v816, 0
    %v1158 = vsel %vm923, %v896, 0
    %1160 = vmatprep.subr.bf16.mxu0 0
    %1161 = vmatpush1.bf16.xpose.msra.mxu0 0
    %1162 = vmatprep.subr.bf16.mxu0 0
    %1163 = vmatpush1.bf16.xpose.msra.mxu0 0
    %1164 = vmatprep.subr.bf16.mxu0 0
    %1165 = vmatpush1.bf16.xpose.msra.mxu0 0
    %1166 = vmatprep.subr.bf16.mxu0 0
    %1167 = vmatpush1.bf16.xpose.msra.mxu0 0
    %1168 = vmatprep.subr.bf16.mxu0 0
    %1169 = vmatpush1.bf16.xpose.msra.mxu0 0
    %1170 = vmatprep.subr.bf16.mxu0 0
    %1171 = vmatpush1.bf16.xpose.msra.mxu0 0
    %1172 = vmatprep.subr.bf16.mxu0 0
    %1173 = vmatpush1.bf16.xpose.msra.mxu0 0
    %1174 = vmatprep.subr.bf16.mxu0 0
    %1175 = vmatpush1.bf16.xpose.msra.mxu0 %v1158
    %1176 = vmatprep.subr.bf16.mxu0 0
    %1177 = vmatpush2.bf16.xpose.msra.mxu0 0
    %1178 = vmatprep.subr.bf16.mxu0 0
    %1179 = vmatpush2.bf16.xpose.msra.mxu0 0
    %1180 = vmatprep.subr.bf16.mxu0 0
    %1181 = vmatpush2.bf16.xpose.msra.mxu0 0
    %1182 = vmatprep.subr.bf16.mxu0 0
    %1183 = vmatpush2.bf16.xpose.msra.mxu0 0
    %1184 = vmatprep.subr.bf16.mxu0 0
    %1185 = vmatpush2.bf16.xpose.msra.mxu0 0
    %1186 = vmatprep.subr.bf16.mxu0 0
    %1187 = vmatpush2.bf16.xpose.msra.mxu0 0
    %1188 = vmatprep.subr.bf16.mxu0 0
    %1189 = vmatpush2.bf16.xpose.msra.mxu0 0
    %1190 = vmatprep.subr.bf16.mxu0 0
    %1191 = vmatpush2.bf16.xpose.msra.mxu0 0
    %1192 = vmatprep.mubr.bf16.mxu0 0
    %1193 = vmatmul.mubr.bf16.gmra.mxu0 %v1155
    %v1194 = vpop.f32.mrf.mxu0
    %v1195 = vadd.f32 0.0, %v1194
    %v1196 = vpop.f32.mrf.mxu0
    %v1197 = vpop.f32.mrf.mxu0
    %v1198 = vpop.f32.mrf.mxu0
    %1199 = vdwg.mxu0
    %v1201 = vsel %vm923, %v817, 0
    %v1204 = vsel %vm923, %v897, 0
    %1206 = vmatprep.subr.bf16.mxu0 0
    %1207 = vmatpush1.bf16.xpose.msra.mxu0 0
    %1208 = vmatprep.subr.bf16.mxu0 0
    %1209 = vmatpush1.bf16.xpose.msra.mxu0 0
    %1210 = vmatprep.subr.bf16.mxu0 0
    %1211 = vmatpush1.bf16.xpose.msra.mxu0 0
    %1212 = vmatprep.subr.bf16.mxu0 0
    %1213 = vmatpush1.bf16.xpose.msra.mxu0 0
    %1214 = vmatprep.subr.bf16.mxu0 0
    %1215 = vmatpush1.bf16.xpose.msra.mxu0 0
    %1216 = vmatprep.subr.bf16.mxu0 0
    %1217 = vmatpush1.bf16.xpose.msra.mxu0 0
    %1218 = vmatprep.subr.bf16.mxu0 0
    %1219 = vmatpush1.bf16.xpose.msra.mxu0 0
    %1220 = vmatprep.subr.bf16.mxu0 0
    %1221 = vmatpush1.bf16.xpose.msra.mxu0 %v1204
    %1222 = vmatprep.subr.bf16.mxu0 0
    %1223 = vmatpush2.bf16.xpose.msra.mxu0 0
    %1224 = vmatprep.subr.bf16.mxu0 0
    %1225 = vmatpush2.bf16.xpose.msra.mxu0 0
    %1226 = vmatprep.subr.bf16.mxu0 0
    %1227 = vmatpush2.bf16.xpose.msra.mxu0 0
    %1228 = vmatprep.subr.bf16.mxu0 0
    %1229 = vmatpush2.bf16.xpose.msra.mxu0 0
    %1230 = vmatprep.subr.bf16.mxu0 0
    %1231 = vmatpush2.bf16.xpose.msra.mxu0 0
    %1232 = vmatprep.subr.bf16.mxu0 0
    %1233 = vmatpush2.bf16.xpose.msra.mxu0 0
    %1234 = vmatprep.subr.bf16.mxu0 0
    %1235 = vmatpush2.bf16.xpose.msra.mxu0 0
    %1236 = vmatprep.subr.bf16.mxu0 0
    %1237 = vmatpush2.bf16.xpose.msra.mxu0 0
    %1238 = vmatprep.mubr.bf16.mxu0 0
    %1239 = vmatmul.mubr.bf16.gmra.mxu0 %v1201
    %v1240 = vpop.f32.mrf.mxu0
    %v1241 = vadd.f32 0.0, %v1240
    %v1242 = vpop.f32.mrf.mxu0
    %v1243 = vpop.f32.mrf.mxu0
    %v1244 = vpop.f32.mrf.mxu0
    %1245 = vdwg.mxu0
    %v1247 = vsel %vm923, %v818, 0
    %v1250 = vsel %vm923, %v898, 0
    %1252 = vmatprep.subr.bf16.mxu0 0
    %1253 = vmatpush1.bf16.xpose.msra.mxu0 0
    %1254 = vmatprep.subr.bf16.mxu0 0
    %1255 = vmatpush1.bf16.xpose.msra.mxu0 0
    %1256 = vmatprep.subr.bf16.mxu0 0
    %1257 = vmatpush1.bf16.xpose.msra.mxu0 0
    %1258 = vmatprep.subr.bf16.mxu0 0
    %1259 = vmatpush1.bf16.xpose.msra.mxu0 0
    %1260 = vmatprep.subr.bf16.mxu0 0
    %1261 = vmatpush1.bf16.xpose.msra.mxu0 0
    %1262 = vmatprep.subr.bf16.mxu0 0
    %1263 = vmatpush1.bf16.xpose.msra.mxu0 0
    %1264 = vmatprep.subr.bf16.mxu0 0
    %1265 = vmatpush1.bf16.xpose.msra.mxu0 0
    %1266 = vmatprep.subr.bf16.mxu0 0
    %1267 = vmatpush1.bf16.xpose.msra.mxu0 %v1250
    %1268 = vmatprep.subr.bf16.mxu0 0
    %1269 = vmatpush2.bf16.xpose.msra.mxu0 0
    %1270 = vmatprep.subr.bf16.mxu0 0
    %1271 = vmatpush2.bf16.xpose.msra.mxu0 0
    %1272 = vmatprep.subr.bf16.mxu0 0
    %1273 = vmatpush2.bf16.xpose.msra.mxu0 0
    %1274 = vmatprep.subr.bf16.mxu0 0
    %1275 = vmatpush2.bf16.xpose.msra.mxu0 0
    %1276 = vmatprep.subr.bf16.mxu0 0
    %1277 = vmatpush2.bf16.xpose.msra.mxu0 0
    %1278 = vmatprep.subr.bf16.mxu0 0
    %1279 = vmatpush2.bf16.xpose.msra.mxu0 0
    %1280 = vmatprep.subr.bf16.mxu0 0
    %1281 = vmatpush2.bf16.xpose.msra.mxu0 0
    %1282 = vmatprep.subr.bf16.mxu0 0
    %1283 = vmatpush2.bf16.xpose.msra.mxu0 0
    %1284 = vmatprep.mubr.bf16.mxu0 0
    %1285 = vmatmul.mubr.bf16.gmra.mxu0 %v1247
    %v1286 = vpop.f32.mrf.mxu0
    %v1287 = vadd.f32 0.0, %v1286
    %v1288 = vpop.f32.mrf.mxu0
    %v1289 = vpop.f32.mrf.mxu0
    %v1290 = vpop.f32.mrf.mxu0
    %1291 = vdwg.mxu0
    %v1293 = vsel %vm923, %v819, 0
    %v1296 = vsel %vm923, %v899, 0
    %1298 = vmatprep.subr.bf16.mxu0 0
    %1299 = vmatpush1.bf16.xpose.msra.mxu0 0
    %1300 = vmatprep.subr.bf16.mxu0 0
    %1301 = vmatpush1.bf16.xpose.msra.mxu0 0
    %1302 = vmatprep.subr.bf16.mxu0 0
    %1303 = vmatpush1.bf16.xpose.msra.mxu0 0
    %1304 = vmatprep.subr.bf16.mxu0 0
    %1305 = vmatpush1.bf16.xpose.msra.mxu0 0
    %1306 = vmatprep.subr.bf16.mxu0 0
    %1307 = vmatpush1.bf16.xpose.msra.mxu0 0
    %1308 = vmatprep.subr.bf16.mxu0 0
    %1309 = vmatpush1.bf16.xpose.msra.mxu0 0
    %1310 = vmatprep.subr.bf16.mxu0 0
    %1311 = vmatpush1.bf16.xpose.msra.mxu0 0
    %1312 = vmatprep.subr.bf16.mxu0 0
    %1313 = vmatpush1.bf16.xpose.msra.mxu0 %v1296
    %1314 = vmatprep.subr.bf16.mxu0 0
    %1315 = vmatpush2.bf16.xpose.msra.mxu0 0
    %1316 = vmatprep.subr.bf16.mxu0 0
    %1317 = vmatpush2.bf16.xpose.msra.mxu0 0
    %1318 = vmatprep.subr.bf16.mxu0 0
    %1319 = vmatpush2.bf16.xpose.msra.mxu0 0
    %1320 = vmatprep.subr.bf16.mxu0 0
    %1321 = vmatpush2.bf16.xpose.msra.mxu0 0
    %1322 = vmatprep.subr.bf16.mxu0 0
    %1323 = vmatpush2.bf16.xpose.msra.mxu0 0
    %1324 = vmatprep.subr.bf16.mxu0 0
    %1325 = vmatpush2.bf16.xpose.msra.mxu0 0
    %1326 = vmatprep.subr.bf16.mxu0 0
    %1327 = vmatpush2.bf16.xpose.msra.mxu0 0
    %1328 = vmatprep.subr.bf16.mxu0 0
    %1329 = vmatpush2.bf16.xpose.msra.mxu0 0
    %1330 = vmatprep.mubr.bf16.mxu0 0
    %1331 = vmatmul.mubr.bf16.gmra.mxu0 %v1293
    %v1332 = vpop.f32.mrf.mxu0
    %v1333 = vadd.f32 0.0, %v1332
    %v1334 = vpop.f32.mrf.mxu0
    %v1335 = vpop.f32.mrf.mxu0
    %v1336 = vpop.f32.mrf.mxu0
    %1337 = vdwg.mxu0
    %v1339 = vsel %vm923, %v820, 0
    %v1342 = vsel %vm923, %v900, 0
    %1344 = vmatprep.subr.bf16.mxu0 0
    %1345 = vmatpush1.bf16.xpose.msra.mxu0 0
    %1346 = vmatprep.subr.bf16.mxu0 0
    %1347 = vmatpush1.bf16.xpose.msra.mxu0 0
    %1348 = vmatprep.subr.bf16.mxu0 0
    %1349 = vmatpush1.bf16.xpose.msra.mxu0 0
    %1350 = vmatprep.subr.bf16.mxu0 0
    %1351 = vmatpush1.bf16.xpose.msra.mxu0 0
    %1352 = vmatprep.subr.bf16.mxu0 0
    %1353 = vmatpush1.bf16.xpose.msra.mxu0 0
    %1354 = vmatprep.subr.bf16.mxu0 0
    %1355 = vmatpush1.bf16.xpose.msra.mxu0 0
    %1356 = vmatprep.subr.bf16.mxu0 0
    %1357 = vmatpush1.bf16.xpose.msra.mxu0 0
    %1358 = vmatprep.subr.bf16.mxu0 0
    %1359 = vmatpush1.bf16.xpose.msra.mxu0 %v1342
    %1360 = vmatprep.subr.bf16.mxu0 0
    %1361 = vmatpush2.bf16.xpose.msra.mxu0 0
    %1362 = vmatprep.subr.bf16.mxu0 0
    %1363 = vmatpush2.bf16.xpose.msra.mxu0 0
    %1364 = vmatprep.subr.bf16.mxu0 0
    %1365 = vmatpush2.bf16.xpose.msra.mxu0 0
    %1366 = vmatprep.subr.bf16.mxu0 0
    %1367 = vmatpush2.bf16.xpose.msra.mxu0 0
    %1368 = vmatprep.subr.bf16.mxu0 0
    %1369 = vmatpush2.bf16.xpose.msra.mxu0 0
    %1370 = vmatprep.subr.bf16.mxu0 0
    %1371 = vmatpush2.bf16.xpose.msra.mxu0 0
    %1372 = vmatprep.subr.bf16.mxu0 0
    %1373 = vmatpush2.bf16.xpose.msra.mxu0 0
    %1374 = vmatprep.subr.bf16.mxu0 0
    %1375 = vmatpush2.bf16.xpose.msra.mxu0 0
    %1376 = vmatprep.mubr.bf16.mxu0 0
    %1377 = vmatmul.mubr.bf16.gmra.mxu0 %v1339
    %v1378 = vpop.f32.mrf.mxu0
    %v1379 = vadd.f32 0.0, %v1378
    %v1380 = vpop.f32.mrf.mxu0
    %v1381 = vpop.f32.mrf.mxu0
    %v1382 = vpop.f32.mrf.mxu0
    %1383 = vdwg.mxu0
    %v1385 = vsel %vm923, %v821, 0
    %v1388 = vsel %vm923, %v901, 0
    %1390 = vmatprep.subr.bf16.mxu0 0
    %1391 = vmatpush1.bf16.xpose.msra.mxu0 0
    %1392 = vmatprep.subr.bf16.mxu0 0
    %1393 = vmatpush1.bf16.xpose.msra.mxu0 0
    %1394 = vmatprep.subr.bf16.mxu0 0
    %1395 = vmatpush1.bf16.xpose.msra.mxu0 0
    %1396 = vmatprep.subr.bf16.mxu0 0
    %1397 = vmatpush1.bf16.xpose.msra.mxu0 0
    %1398 = vmatprep.subr.bf16.mxu0 0
    %1399 = vmatpush1.bf16.xpose.msra.mxu0 0
    %1400 = vmatprep.subr.bf16.mxu0 0
    %1401 = vmatpush1.bf16.xpose.msra.mxu0 0
    %1402 = vmatprep.subr.bf16.mxu0 0
    %1403 = vmatpush1.bf16.xpose.msra.mxu0 0
    %1404 = vmatprep.subr.bf16.mxu0 0
    %1405 = vmatpush1.bf16.xpose.msra.mxu0 %v1388
    %1406 = vmatprep.subr.bf16.mxu0 0
    %1407 = vmatpush2.bf16.xpose.msra.mxu0 0
    %1408 = vmatprep.subr.bf16.mxu0 0
    %1409 = vmatpush2.bf16.xpose.msra.mxu0 0
    %1410 = vmatprep.subr.bf16.mxu0 0
    %1411 = vmatpush2.bf16.xpose.msra.mxu0 0
    %1412 = vmatprep.subr.bf16.mxu0 0
    %1413 = vmatpush2.bf16.xpose.msra.mxu0 0
    %1414 = vmatprep.subr.bf16.mxu0 0
    %1415 = vmatpush2.bf16.xpose.msra.mxu0 0
    %1416 = vmatprep.subr.bf16.mxu0 0
    %1417 = vmatpush2.bf16.xpose.msra.mxu0 0
    %1418 = vmatprep.subr.bf16.mxu0 0
    %1419 = vmatpush2.bf16.xpose.msra.mxu0 0
    %1420 = vmatprep.subr.bf16.mxu0 0
    %1421 = vmatpush2.bf16.xpose.msra.mxu0 0
    %1422 = vmatprep.mubr.bf16.mxu0 0
    %1423 = vmatmul.mubr.bf16.gmra.mxu0 %v1385
    %v1424 = vpop.f32.mrf.mxu0
    %v1425 = vadd.f32 0.0, %v1424
    %v1426 = vpop.f32.mrf.mxu0
    %v1427 = vpop.f32.mrf.mxu0
    %v1428 = vpop.f32.mrf.mxu0
    %1429 = vdwg.mxu0
    %v1431 = vsel %vm923, %v822, 0
    %v1434 = vsel %vm923, %v902, 0
    %1436 = vmatprep.subr.bf16.mxu0 0
    %1437 = vmatpush1.bf16.xpose.msra.mxu0 0
    %1438 = vmatprep.subr.bf16.mxu0 0
    %1439 = vmatpush1.bf16.xpose.msra.mxu0 0
    %1440 = vmatprep.subr.bf16.mxu0 0
    %1441 = vmatpush1.bf16.xpose.msra.mxu0 0
    %1442 = vmatprep.subr.bf16.mxu0 0
    %1443 = vmatpush1.bf16.xpose.msra.mxu0 0
    %1444 = vmatprep.subr.bf16.mxu0 0
    %1445 = vmatpush1.bf16.xpose.msra.mxu0 0
    %1446 = vmatprep.subr.bf16.mxu0 0
    %1447 = vmatpush1.bf16.xpose.msra.mxu0 0
    %1448 = vmatprep.subr.bf16.mxu0 0
    %1449 = vmatpush1.bf16.xpose.msra.mxu0 0
    %1450 = vmatprep.subr.bf16.mxu0 0
    %1451 = vmatpush1.bf16.xpose.msra.mxu0 %v1434
    %1452 = vmatprep.subr.bf16.mxu0 0
    %1453 = vmatpush2.bf16.xpose.msra.mxu0 0
    %1454 = vmatprep.subr.bf16.mxu0 0
    %1455 = vmatpush2.bf16.xpose.msra.mxu0 0
    %1456 = vmatprep.subr.bf16.mxu0 0
    %1457 = vmatpush2.bf16.xpose.msra.mxu0 0
    %1458 = vmatprep.subr.bf16.mxu0 0
    %1459 = vmatpush2.bf16.xpose.msra.mxu0 0
    %1460 = vmatprep.subr.bf16.mxu0 0
    %1461 = vmatpush2.bf16.xpose.msra.mxu0 0
    %1462 = vmatprep.subr.bf16.mxu0 0
    %1463 = vmatpush2.bf16.xpose.msra.mxu0 0
    %1464 = vmatprep.subr.bf16.mxu0 0
    %1465 = vmatpush2.bf16.xpose.msra.mxu0 0
    %1466 = vmatprep.subr.bf16.mxu0 0
    %1467 = vmatpush2.bf16.xpose.msra.mxu0 0
    %1468 = vmatprep.mubr.bf16.mxu0 0
    %1469 = vmatmul.mubr.bf16.gmra.mxu0 %v1431
    %v1470 = vpop.f32.mrf.mxu0
    %v1471 = vadd.f32 0.0, %v1470
    %v1472 = vpop.f32.mrf.mxu0
    %v1473 = vpop.f32.mrf.mxu0
    %v1474 = vpop.f32.mrf.mxu0
    %1475 = vdwg.mxu0
    %v1477 = vsel %vm923, %v823, 0
    %v1480 = vsel %vm923, %v903, 0
    %1482 = vmatprep.subr.bf16.mxu0 0
    %1483 = vmatpush1.bf16.xpose.msra.mxu0 0
    %1484 = vmatprep.subr.bf16.mxu0 0
    %1485 = vmatpush1.bf16.xpose.msra.mxu0 0
    %1486 = vmatprep.subr.bf16.mxu0 0
    %1487 = vmatpush1.bf16.xpose.msra.mxu0 0
    %1488 = vmatprep.subr.bf16.mxu0 0
    %1489 = vmatpush1.bf16.xpose.msra.mxu0 0
    %1490 = vmatprep.subr.bf16.mxu0 0
    %1491 = vmatpush1.bf16.xpose.msra.mxu0 0
    %1492 = vmatprep.subr.bf16.mxu0 0
    %1493 = vmatpush1.bf16.xpose.msra.mxu0 0
    %1494 = vmatprep.subr.bf16.mxu0 0
    %1495 = vmatpush1.bf16.xpose.msra.mxu0 0
    %1496 = vmatprep.subr.bf16.mxu0 0
    %1497 = vmatpush1.bf16.xpose.msra.mxu0 %v1480
    %1498 = vmatprep.subr.bf16.mxu0 0
    %1499 = vmatpush2.bf16.xpose.msra.mxu0 0
    %1500 = vmatprep.subr.bf16.mxu0 0
    %1501 = vmatpush2.bf16.xpose.msra.mxu0 0
    %1502 = vmatprep.subr.bf16.mxu0 0
    %1503 = vmatpush2.bf16.xpose.msra.mxu0 0
    %1504 = vmatprep.subr.bf16.mxu0 0
    %1505 = vmatpush2.bf16.xpose.msra.mxu0 0
    %1506 = vmatprep.subr.bf16.mxu0 0
    %1507 = vmatpush2.bf16.xpose.msra.mxu0 0
    %1508 = vmatprep.subr.bf16.mxu0 0
    %1509 = vmatpush2.bf16.xpose.msra.mxu0 0
    %1510 = vmatprep.subr.bf16.mxu0 0
    %1511 = vmatpush2.bf16.xpose.msra.mxu0 0
    %1512 = vmatprep.subr.bf16.mxu0 0
    %1513 = vmatpush2.bf16.xpose.msra.mxu0 0
    %1514 = vmatprep.mubr.bf16.mxu0 0
    %1515 = vmatmul.mubr.bf16.gmra.mxu0 %v1477
    %v1516 = vpop.f32.mrf.mxu0
    %v1517 = vadd.f32 0.0, %v1516
    %v1518 = vpop.f32.mrf.mxu0
    %v1519 = vpop.f32.mrf.mxu0
    %v1520 = vpop.f32.mrf.mxu0
    %1521 = vdwg.mxu0
    %v1523 = vsel %vm923, %v824, 0
    %v1526 = vsel %vm923, %v904, 0
    %1528 = vmatprep.subr.bf16.mxu0 0
    %1529 = vmatpush1.bf16.xpose.msra.mxu0 0
    %1530 = vmatprep.subr.bf16.mxu0 0
    %1531 = vmatpush1.bf16.xpose.msra.mxu0 0
    %1532 = vmatprep.subr.bf16.mxu0 0
    %1533 = vmatpush1.bf16.xpose.msra.mxu0 0
    %1534 = vmatprep.subr.bf16.mxu0 0
    %1535 = vmatpush1.bf16.xpose.msra.mxu0 0
    %1536 = vmatprep.subr.bf16.mxu0 0
    %1537 = vmatpush1.bf16.xpose.msra.mxu0 0
    %1538 = vmatprep.subr.bf16.mxu0 0
    %1539 = vmatpush1.bf16.xpose.msra.mxu0 0
    %1540 = vmatprep.subr.bf16.mxu0 0
    %1541 = vmatpush1.bf16.xpose.msra.mxu0 0
    %1542 = vmatprep.subr.bf16.mxu0 0
    %1543 = vmatpush1.bf16.xpose.msra.mxu0 %v1526
    %1544 = vmatprep.subr.bf16.mxu0 0
    %1545 = vmatpush2.bf16.xpose.msra.mxu0 0
    %1546 = vmatprep.subr.bf16.mxu0 0
    %1547 = vmatpush2.bf16.xpose.msra.mxu0 0
    %1548 = vmatprep.subr.bf16.mxu0 0
    %1549 = vmatpush2.bf16.xpose.msra.mxu0 0
    %1550 = vmatprep.subr.bf16.mxu0 0
    %1551 = vmatpush2.bf16.xpose.msra.mxu0 0
    %1552 = vmatprep.subr.bf16.mxu0 0
    %1553 = vmatpush2.bf16.xpose.msra.mxu0 0
    %1554 = vmatprep.subr.bf16.mxu0 0
    %1555 = vmatpush2.bf16.xpose.msra.mxu0 0
    %1556 = vmatprep.subr.bf16.mxu0 0
    %1557 = vmatpush2.bf16.xpose.msra.mxu0 0
    %1558 = vmatprep.subr.bf16.mxu0 0
    %1559 = vmatpush2.bf16.xpose.msra.mxu0 0
    %1560 = vmatprep.mubr.bf16.mxu0 0
    %1561 = vmatmul.mubr.bf16.gmra.mxu0 %v1523
    %v1562 = vpop.f32.mrf.mxu0
    %v1563 = vadd.f32 0.0, %v1562
    %v1564 = vpop.f32.mrf.mxu0
    %v1565 = vpop.f32.mrf.mxu0
    %v1566 = vpop.f32.mrf.mxu0
    %1567 = vdwg.mxu0
    %v1569 = vsel %vm923, %v825, 0
    %v1572 = vsel %vm923, %v905, 0
    %1574 = vmatprep.subr.bf16.mxu0 0
    %1575 = vmatpush1.bf16.xpose.msra.mxu0 0
    %1576 = vmatprep.subr.bf16.mxu0 0
    %1577 = vmatpush1.bf16.xpose.msra.mxu0 0
    %1578 = vmatprep.subr.bf16.mxu0 0
    %1579 = vmatpush1.bf16.xpose.msra.mxu0 0
    %1580 = vmatprep.subr.bf16.mxu0 0
    %1581 = vmatpush1.bf16.xpose.msra.mxu0 0
    %1582 = vmatprep.subr.bf16.mxu0 0
    %1583 = vmatpush1.bf16.xpose.msra.mxu0 0
    %1584 = vmatprep.subr.bf16.mxu0 0
    %1585 = vmatpush1.bf16.xpose.msra.mxu0 0
    %1586 = vmatprep.subr.bf16.mxu0 0
    %1587 = vmatpush1.bf16.xpose.msra.mxu0 0
    %1588 = vmatprep.subr.bf16.mxu0 0
    %1589 = vmatpush1.bf16.xpose.msra.mxu0 %v1572
    %1590 = vmatprep.subr.bf16.mxu0 0
    %1591 = vmatpush2.bf16.xpose.msra.mxu0 0
    %1592 = vmatprep.subr.bf16.mxu0 0
    %1593 = vmatpush2.bf16.xpose.msra.mxu0 0
    %1594 = vmatprep.subr.bf16.mxu0 0
    %1595 = vmatpush2.bf16.xpose.msra.mxu0 0
    %1596 = vmatprep.subr.bf16.mxu0 0
    %1597 = vmatpush2.bf16.xpose.msra.mxu0 0
    %1598 = vmatprep.subr.bf16.mxu0 0
    %1599 = vmatpush2.bf16.xpose.msra.mxu0 0
    %1600 = vmatprep.subr.bf16.mxu0 0
    %1601 = vmatpush2.bf16.xpose.msra.mxu0 0
    %1602 = vmatprep.subr.bf16.mxu0 0
    %1603 = vmatpush2.bf16.xpose.msra.mxu0 0
    %1604 = vmatprep.subr.bf16.mxu0 0
    %1605 = vmatpush2.bf16.xpose.msra.mxu0 0
    %1606 = vmatprep.mubr.bf16.mxu0 0
    %1607 = vmatmul.mubr.bf16.gmra.mxu0 %v1569
    %v1608 = vpop.f32.mrf.mxu0
    %v1609 = vadd.f32 0.0, %v1608
    %v1610 = vpop.f32.mrf.mxu0
    %v1611 = vpop.f32.mrf.mxu0
    %v1612 = vpop.f32.mrf.mxu0
    %1613 = vdwg.mxu0
    %v1615 = vsel %vm923, %v826, 0
    %v1618 = vsel %vm923, %v906, 0
    %1620 = vmatprep.subr.bf16.mxu0 0
    %1621 = vmatpush1.bf16.xpose.msra.mxu0 0
    %1622 = vmatprep.subr.bf16.mxu0 0
    %1623 = vmatpush1.bf16.xpose.msra.mxu0 0
    %1624 = vmatprep.subr.bf16.mxu0 0
    %1625 = vmatpush1.bf16.xpose.msra.mxu0 0
    %1626 = vmatprep.subr.bf16.mxu0 0
    %1627 = vmatpush1.bf16.xpose.msra.mxu0 0
    %1628 = vmatprep.subr.bf16.mxu0 0
    %1629 = vmatpush1.bf16.xpose.msra.mxu0 0
    %1630 = vmatprep.subr.bf16.mxu0 0
    %1631 = vmatpush1.bf16.xpose.msra.mxu0 0
    %1632 = vmatprep.subr.bf16.mxu0 0
    %1633 = vmatpush1.bf16.xpose.msra.mxu0 0
    %1634 = vmatprep.subr.bf16.mxu0 0
    %1635 = vmatpush1.bf16.xpose.msra.mxu0 %v1618
    %1636 = vmatprep.subr.bf16.mxu0 0
    %1637 = vmatpush2.bf16.xpose.msra.mxu0 0
    %1638 = vmatprep.subr.bf16.mxu0 0
    %1639 = vmatpush2.bf16.xpose.msra.mxu0 0
    %1640 = vmatprep.subr.bf16.mxu0 0
    %1641 = vmatpush2.bf16.xpose.msra.mxu0 0
    %1642 = vmatprep.subr.bf16.mxu0 0
    %1643 = vmatpush2.bf16.xpose.msra.mxu0 0
    %1644 = vmatprep.subr.bf16.mxu0 0
    %1645 = vmatpush2.bf16.xpose.msra.mxu0 0
    %1646 = vmatprep.subr.bf16.mxu0 0
    %1647 = vmatpush2.bf16.xpose.msra.mxu0 0
    %1648 = vmatprep.subr.bf16.mxu0 0
    %1649 = vmatpush2.bf16.xpose.msra.mxu0 0
    %1650 = vmatprep.subr.bf16.mxu0 0
    %1651 = vmatpush2.bf16.xpose.msra.mxu0 0
    %1652 = vmatprep.mubr.bf16.mxu0 0
    %1653 = vmatmul.mubr.bf16.gmra.mxu0 %v1615
    %v1654 = vpop.f32.mrf.mxu0
    %v1655 = vadd.f32 0.0, %v1654
    %v1656 = vpop.f32.mrf.mxu0
    %v1657 = vpop.f32.mrf.mxu0
    %v1658 = vpop.f32.mrf.mxu0
    %1659 = vdwg.mxu0
    %v1661 = vsel %vm923, %v827, 0
    %v1664 = vsel %vm923, %v907, 0
    %1666 = vmatprep.subr.bf16.mxu0 0
    %1667 = vmatpush1.bf16.xpose.msra.mxu0 0
    %1668 = vmatprep.subr.bf16.mxu0 0
    %1669 = vmatpush1.bf16.xpose.msra.mxu0 0
    %1670 = vmatprep.subr.bf16.mxu0 0
    %1671 = vmatpush1.bf16.xpose.msra.mxu0 0
    %1672 = vmatprep.subr.bf16.mxu0 0
    %1673 = vmatpush1.bf16.xpose.msra.mxu0 0
    %1674 = vmatprep.subr.bf16.mxu0 0
    %1675 = vmatpush1.bf16.xpose.msra.mxu0 0
    %1676 = vmatprep.subr.bf16.mxu0 0
    %1677 = vmatpush1.bf16.xpose.msra.mxu0 0
    %1678 = vmatprep.subr.bf16.mxu0 0
    %1679 = vmatpush1.bf16.xpose.msra.mxu0 0
    %1680 = vmatprep.subr.bf16.mxu0 0
    %1681 = vmatpush1.bf16.xpose.msra.mxu0 %v1664
    %1682 = vmatprep.subr.bf16.mxu0 0
    %1683 = vmatpush2.bf16.xpose.msra.mxu0 0
    %1684 = vmatprep.subr.bf16.mxu0 0
    %1685 = vmatpush2.bf16.xpose.msra.mxu0 0
    %1686 = vmatprep.subr.bf16.mxu0 0
    %1687 = vmatpush2.bf16.xpose.msra.mxu0 0
    %1688 = vmatprep.subr.bf16.mxu0 0
    %1689 = vmatpush2.bf16.xpose.msra.mxu0 0
    %1690 = vmatprep.subr.bf16.mxu0 0
    %1691 = vmatpush2.bf16.xpose.msra.mxu0 0
    %1692 = vmatprep.subr.bf16.mxu0 0
    %1693 = vmatpush2.bf16.xpose.msra.mxu0 0
    %1694 = vmatprep.subr.bf16.mxu0 0
    %1695 = vmatpush2.bf16.xpose.msra.mxu0 0
    %1696 = vmatprep.subr.bf16.mxu0 0
    %1697 = vmatpush2.bf16.xpose.msra.mxu0 0
    %1698 = vmatprep.mubr.bf16.mxu0 0
    %1699 = vmatmul.mubr.bf16.gmra.mxu0 %v1661
    %v1700 = vpop.f32.mrf.mxu0
    %v1701 = vadd.f32 0.0, %v1700
    %v1702 = vpop.f32.mrf.mxu0
    %v1703 = vpop.f32.mrf.mxu0
    %v1704 = vpop.f32.mrf.mxu0
    %1705 = vdwg.mxu0
    %v1707 = vsel %vm923, %v828, 0
    %v1710 = vsel %vm923, %v908, 0
    %1712 = vmatprep.subr.bf16.mxu0 0
    %1713 = vmatpush1.bf16.xpose.msra.mxu0 0
    %1714 = vmatprep.subr.bf16.mxu0 0
    %1715 = vmatpush1.bf16.xpose.msra.mxu0 0
    %1716 = vmatprep.subr.bf16.mxu0 0
    %1717 = vmatpush1.bf16.xpose.msra.mxu0 0
    %1718 = vmatprep.subr.bf16.mxu0 0
    %1719 = vmatpush1.bf16.xpose.msra.mxu0 0
    %1720 = vmatprep.subr.bf16.mxu0 0
    %1721 = vmatpush1.bf16.xpose.msra.mxu0 0
    %1722 = vmatprep.subr.bf16.mxu0 0
    %1723 = vmatpush1.bf16.xpose.msra.mxu0 0
    %1724 = vmatprep.subr.bf16.mxu0 0
    %1725 = vmatpush1.bf16.xpose.msra.mxu0 0
    %1726 = vmatprep.subr.bf16.mxu0 0
    %1727 = vmatpush1.bf16.xpose.msra.mxu0 %v1710
    %1728 = vmatprep.subr.bf16.mxu0 0
    %1729 = vmatpush2.bf16.xpose.msra.mxu0 0
    %1730 = vmatprep.subr.bf16.mxu0 0
    %1731 = vmatpush2.bf16.xpose.msra.mxu0 0
    %1732 = vmatprep.subr.bf16.mxu0 0
    %1733 = vmatpush2.bf16.xpose.msra.mxu0 0
    %1734 = vmatprep.subr.bf16.mxu0 0
    %1735 = vmatpush2.bf16.xpose.msra.mxu0 0
    %1736 = vmatprep.subr.bf16.mxu0 0
    %1737 = vmatpush2.bf16.xpose.msra.mxu0 0
    %1738 = vmatprep.subr.bf16.mxu0 0
    %1739 = vmatpush2.bf16.xpose.msra.mxu0 0
    %1740 = vmatprep.subr.bf16.mxu0 0
    %1741 = vmatpush2.bf16.xpose.msra.mxu0 0
    %1742 = vmatprep.subr.bf16.mxu0 0
    %1743 = vmatpush2.bf16.xpose.msra.mxu0 0
    %1744 = vmatprep.mubr.bf16.mxu0 0
    %1745 = vmatmul.mubr.bf16.gmra.mxu0 %v1707
    %v1746 = vpop.f32.mrf.mxu0
    %v1747 = vadd.f32 0.0, %v1746
    %v1748 = vpop.f32.mrf.mxu0
    %v1749 = vpop.f32.mrf.mxu0
    %v1750 = vpop.f32.mrf.mxu0
    %1751 = vdwg.mxu0
    %v1753 = vsel %vm923, %v829, 0
    %v1756 = vsel %vm923, %v909, 0
    %1758 = vmatprep.subr.bf16.mxu0 0
    %1759 = vmatpush1.bf16.xpose.msra.mxu0 0
    %1760 = vmatprep.subr.bf16.mxu0 0
    %1761 = vmatpush1.bf16.xpose.msra.mxu0 0
    %1762 = vmatprep.subr.bf16.mxu0 0
    %1763 = vmatpush1.bf16.xpose.msra.mxu0 0
    %1764 = vmatprep.subr.bf16.mxu0 0
    %1765 = vmatpush1.bf16.xpose.msra.mxu0 0
    %1766 = vmatprep.subr.bf16.mxu0 0
    %1767 = vmatpush1.bf16.xpose.msra.mxu0 0
    %1768 = vmatprep.subr.bf16.mxu0 0
    %1769 = vmatpush1.bf16.xpose.msra.mxu0 0
    %1770 = vmatprep.subr.bf16.mxu0 0
    %1771 = vmatpush1.bf16.xpose.msra.mxu0 0
    %1772 = vmatprep.subr.bf16.mxu0 0
    %1773 = vmatpush1.bf16.xpose.msra.mxu0 %v1756
    %1774 = vmatprep.subr.bf16.mxu0 0
    %1775 = vmatpush2.bf16.xpose.msra.mxu0 0
    %1776 = vmatprep.subr.bf16.mxu0 0
    %1777 = vmatpush2.bf16.xpose.msra.mxu0 0
    %1778 = vmatprep.subr.bf16.mxu0 0
    %1779 = vmatpush2.bf16.xpose.msra.mxu0 0
    %1780 = vmatprep.subr.bf16.mxu0 0
    %1781 = vmatpush2.bf16.xpose.msra.mxu0 0
    %1782 = vmatprep.subr.bf16.mxu0 0
    %1783 = vmatpush2.bf16.xpose.msra.mxu0 0
    %1784 = vmatprep.subr.bf16.mxu0 0
    %1785 = vmatpush2.bf16.xpose.msra.mxu0 0
    %1786 = vmatprep.subr.bf16.mxu0 0
    %1787 = vmatpush2.bf16.xpose.msra.mxu0 0
    %1788 = vmatprep.subr.bf16.mxu0 0
    %1789 = vmatpush2.bf16.xpose.msra.mxu0 0
    %1790 = vmatprep.mubr.bf16.mxu0 0
    %1791 = vmatmul.mubr.bf16.gmra.mxu0 %v1753
    %v1792 = vpop.f32.mrf.mxu0
    %v1793 = vadd.f32 0.0, %v1792
    %v1794 = vpop.f32.mrf.mxu0
    %v1795 = vpop.f32.mrf.mxu0
    %v1796 = vpop.f32.mrf.mxu0
    %1797 = vdwg.mxu0
    %v1799 = vsel %vm923, %v830, 0
    %v1802 = vsel %vm923, %v910, 0
    %1804 = vmatprep.subr.bf16.mxu0 0
    %1805 = vmatpush1.bf16.xpose.msra.mxu0 0
    %1806 = vmatprep.subr.bf16.mxu0 0
    %1807 = vmatpush1.bf16.xpose.msra.mxu0 0
    %1808 = vmatprep.subr.bf16.mxu0 0
    %1809 = vmatpush1.bf16.xpose.msra.mxu0 0
    %1810 = vmatprep.subr.bf16.mxu0 0
    %1811 = vmatpush1.bf16.xpose.msra.mxu0 0
    %1812 = vmatprep.subr.bf16.mxu0 0
    %1813 = vmatpush1.bf16.xpose.msra.mxu0 0
    %1814 = vmatprep.subr.bf16.mxu0 0
    %1815 = vmatpush1.bf16.xpose.msra.mxu0 0
    %1816 = vmatprep.subr.bf16.mxu0 0
    %1817 = vmatpush1.bf16.xpose.msra.mxu0 0
    %1818 = vmatprep.subr.bf16.mxu0 0
    %1819 = vmatpush1.bf16.xpose.msra.mxu0 %v1802
    %1820 = vmatprep.subr.bf16.mxu0 0
    %1821 = vmatpush2.bf16.xpose.msra.mxu0 0
    %1822 = vmatprep.subr.bf16.mxu0 0
    %1823 = vmatpush2.bf16.xpose.msra.mxu0 0
    %1824 = vmatprep.subr.bf16.mxu0 0
    %1825 = vmatpush2.bf16.xpose.msra.mxu0 0
    %1826 = vmatprep.subr.bf16.mxu0 0
    %1827 = vmatpush2.bf16.xpose.msra.mxu0 0
    %1828 = vmatprep.subr.bf16.mxu0 0
    %1829 = vmatpush2.bf16.xpose.msra.mxu0 0
    %1830 = vmatprep.subr.bf16.mxu0 0
    %1831 = vmatpush2.bf16.xpose.msra.mxu0 0
    %1832 = vmatprep.subr.bf16.mxu0 0
    %1833 = vmatpush2.bf16.xpose.msra.mxu0 0
    %1834 = vmatprep.subr.bf16.mxu0 0
    %1835 = vmatpush2.bf16.xpose.msra.mxu0 0
    %1836 = vmatprep.mubr.bf16.mxu0 0
    %1837 = vmatmul.mubr.bf16.gmra.mxu0 %v1799
    %v1838 = vpop.f32.mrf.mxu0
    %v1839 = vadd.f32 0.0, %v1838
    %v1840 = vpop.f32.mrf.mxu0
    %v1841 = vpop.f32.mrf.mxu0
    %v1842 = vpop.f32.mrf.mxu0
    %1843 = vdwg.mxu0
    %v1845 = vsel %vm923, %v831, 0
    %v1848 = vsel %vm923, %v911, 0
    %1850 = vmatprep.subr.bf16.mxu0 0
    %1851 = vmatpush1.bf16.xpose.msra.mxu0 0
    %1852 = vmatprep.subr.bf16.mxu0 0
    %1853 = vmatpush1.bf16.xpose.msra.mxu0 0
    %1854 = vmatprep.subr.bf16.mxu0 0
    %1855 = vmatpush1.bf16.xpose.msra.mxu0 0
    %1856 = vmatprep.subr.bf16.mxu0 0
    %1857 = vmatpush1.bf16.xpose.msra.mxu0 0
    %1858 = vmatprep.subr.bf16.mxu0 0
    %1859 = vmatpush1.bf16.xpose.msra.mxu0 0
    %1860 = vmatprep.subr.bf16.mxu0 0
    %1861 = vmatpush1.bf16.xpose.msra.mxu0 0
    %1862 = vmatprep.subr.bf16.mxu0 0
    %1863 = vmatpush1.bf16.xpose.msra.mxu0 0
    %1864 = vmatprep.subr.bf16.mxu0 0
    %1865 = vmatpush1.bf16.xpose.msra.mxu0 %v1848
    %1866 = vmatprep.subr.bf16.mxu0 0
    %1867 = vmatpush2.bf16.xpose.msra.mxu0 0
    %1868 = vmatprep.subr.bf16.mxu0 0
    %1869 = vmatpush2.bf16.xpose.msra.mxu0 0
    %1870 = vmatprep.subr.bf16.mxu0 0
    %1871 = vmatpush2.bf16.xpose.msra.mxu0 0
    %1872 = vmatprep.subr.bf16.mxu0 0
    %1873 = vmatpush2.bf16.xpose.msra.mxu0 0
    %1874 = vmatprep.subr.bf16.mxu0 0
    %1875 = vmatpush2.bf16.xpose.msra.mxu0 0
    %1876 = vmatprep.subr.bf16.mxu0 0
    %1877 = vmatpush2.bf16.xpose.msra.mxu0 0
    %1878 = vmatprep.subr.bf16.mxu0 0
    %1879 = vmatpush2.bf16.xpose.msra.mxu0 0
    %1880 = vmatprep.subr.bf16.mxu0 0
    %1881 = vmatpush2.bf16.xpose.msra.mxu0 0
    %1882 = vmatprep.mubr.bf16.mxu0 0
    %1883 = vmatmul.mubr.bf16.gmra.mxu0 %v1845
    %v1884 = vpop.f32.mrf.mxu0
    %v1885 = vadd.f32 0.0, %v1884
    %v1886 = vpop.f32.mrf.mxu0
    %v1887 = vpop.f32.mrf.mxu0
    %v1888 = vpop.f32.mrf.mxu0
    %1889 = vdwg.mxu0
    %v1891 = vsel %vm923, %v832, 0
    %v1894 = vsel %vm923, %v912, 0
    %1896 = vmatprep.subr.bf16.mxu0 0
    %1897 = vmatpush1.bf16.xpose.msra.mxu0 0
    %1898 = vmatprep.subr.bf16.mxu0 0
    %1899 = vmatpush1.bf16.xpose.msra.mxu0 0
    %1900 = vmatprep.subr.bf16.mxu0 0
    %1901 = vmatpush1.bf16.xpose.msra.mxu0 0
    %1902 = vmatprep.subr.bf16.mxu0 0
    %1903 = vmatpush1.bf16.xpose.msra.mxu0 0
    %1904 = vmatprep.subr.bf16.mxu0 0
    %1905 = vmatpush1.bf16.xpose.msra.mxu0 0
    %1906 = vmatprep.subr.bf16.mxu0 0
    %1907 = vmatpush1.bf16.xpose.msra.mxu0 0
    %1908 = vmatprep.subr.bf16.mxu0 0
    %1909 = vmatpush1.bf16.xpose.msra.mxu0 0
    %1910 = vmatprep.subr.bf16.mxu0 0
    %1911 = vmatpush1.bf16.xpose.msra.mxu0 %v1894
    %1912 = vmatprep.subr.bf16.mxu0 0
    %1913 = vmatpush2.bf16.xpose.msra.mxu0 0
    %1914 = vmatprep.subr.bf16.mxu0 0
    %1915 = vmatpush2.bf16.xpose.msra.mxu0 0
    %1916 = vmatprep.subr.bf16.mxu0 0
    %1917 = vmatpush2.bf16.xpose.msra.mxu0 0
    %1918 = vmatprep.subr.bf16.mxu0 0
    %1919 = vmatpush2.bf16.xpose.msra.mxu0 0
    %1920 = vmatprep.subr.bf16.mxu0 0
    %1921 = vmatpush2.bf16.xpose.msra.mxu0 0
    %1922 = vmatprep.subr.bf16.mxu0 0
    %1923 = vmatpush2.bf16.xpose.msra.mxu0 0
    %1924 = vmatprep.subr.bf16.mxu0 0
    %1925 = vmatpush2.bf16.xpose.msra.mxu0 0
    %1926 = vmatprep.subr.bf16.mxu0 0
    %1927 = vmatpush2.bf16.xpose.msra.mxu0 0
    %1928 = vmatprep.mubr.bf16.mxu0 0
    %1929 = vmatmul.mubr.bf16.gmra.mxu0 %v1891
    %v1930 = vpop.f32.mrf.mxu0
    %v1931 = vadd.f32 0.0, %v1930
    %v1932 = vpop.f32.mrf.mxu0
    %v1933 = vpop.f32.mrf.mxu0
    %v1934 = vpop.f32.mrf.mxu0
    %1935 = vdwg.mxu0
    %v1937 = vsel %vm923, %v833, 0
    %v1940 = vsel %vm923, %v913, 0
    %1942 = vmatprep.subr.bf16.mxu0 0
    %1943 = vmatpush1.bf16.xpose.msra.mxu0 0
    %1944 = vmatprep.subr.bf16.mxu0 0
    %1945 = vmatpush1.bf16.xpose.msra.mxu0 0
    %1946 = vmatprep.subr.bf16.mxu0 0
    %1947 = vmatpush1.bf16.xpose.msra.mxu0 0
    %1948 = vmatprep.subr.bf16.mxu0 0
    %1949 = vmatpush1.bf16.xpose.msra.mxu0 0
    %1950 = vmatprep.subr.bf16.mxu0 0
    %1951 = vmatpush1.bf16.xpose.msra.mxu0 0
    %1952 = vmatprep.subr.bf16.mxu0 0
    %1953 = vmatpush1.bf16.xpose.msra.mxu0 0
    %1954 = vmatprep.subr.bf16.mxu0 0
    %1955 = vmatpush1.bf16.xpose.msra.mxu0 0
    %1956 = vmatprep.subr.bf16.mxu0 0
    %1957 = vmatpush1.bf16.xpose.msra.mxu0 %v1940
    %1958 = vmatprep.subr.bf16.mxu0 0
    %1959 = vmatpush2.bf16.xpose.msra.mxu0 0
    %1960 = vmatprep.subr.bf16.mxu0 0
    %1961 = vmatpush2.bf16.xpose.msra.mxu0 0
    %1962 = vmatprep.subr.bf16.mxu0 0
    %1963 = vmatpush2.bf16.xpose.msra.mxu0 0
    %1964 = vmatprep.subr.bf16.mxu0 0
    %1965 = vmatpush2.bf16.xpose.msra.mxu0 0
    %1966 = vmatprep.subr.bf16.mxu0 0
    %1967 = vmatpush2.bf16.xpose.msra.mxu0 0
    %1968 = vmatprep.subr.bf16.mxu0 0
    %1969 = vmatpush2.bf16.xpose.msra.mxu0 0
    %1970 = vmatprep.subr.bf16.mxu0 0
    %1971 = vmatpush2.bf16.xpose.msra.mxu0 0
    %1972 = vmatprep.subr.bf16.mxu0 0
    %1973 = vmatpush2.bf16.xpose.msra.mxu0 0
    %1974 = vmatprep.mubr.bf16.mxu0 0
    %1975 = vmatmul.mubr.bf16.gmra.mxu0 %v1937
    %v1976 = vpop.f32.mrf.mxu0
    %v1977 = vadd.f32 0.0, %v1976
    %v1978 = vpop.f32.mrf.mxu0
    %v1979 = vpop.f32.mrf.mxu0
    %v1980 = vpop.f32.mrf.mxu0
    %1981 = vdwg.mxu0
    %v1983 = vsel %vm923, %v834, 0
    %v1986 = vsel %vm923, %v914, 0
    %1988 = vmatprep.subr.bf16.mxu0 0
    %1989 = vmatpush1.bf16.xpose.msra.mxu0 0
    %1990 = vmatprep.subr.bf16.mxu0 0
    %1991 = vmatpush1.bf16.xpose.msra.mxu0 0
    %1992 = vmatprep.subr.bf16.mxu0 0
    %1993 = vmatpush1.bf16.xpose.msra.mxu0 0
    %1994 = vmatprep.subr.bf16.mxu0 0
    %1995 = vmatpush1.bf16.xpose.msra.mxu0 0
    %1996 = vmatprep.subr.bf16.mxu0 0
    %1997 = vmatpush1.bf16.xpose.msra.mxu0 0
    %1998 = vmatprep.subr.bf16.mxu0 0
    %1999 = vmatpush1.bf16.xpose.msra.mxu0 0
    %2000 = vmatprep.subr.bf16.mxu0 0
    %2001 = vmatpush1.bf16.xpose.msra.mxu0 0
    %2002 = vmatprep.subr.bf16.mxu0 0
    %2003 = vmatpush1.bf16.xpose.msra.mxu0 %v1986
    %2004 = vmatprep.subr.bf16.mxu0 0
    %2005 = vmatpush2.bf16.xpose.msra.mxu0 0
    %2006 = vmatprep.subr.bf16.mxu0 0
    %2007 = vmatpush2.bf16.xpose.msra.mxu0 0
    %2008 = vmatprep.subr.bf16.mxu0 0
    %2009 = vmatpush2.bf16.xpose.msra.mxu0 0
    %2010 = vmatprep.subr.bf16.mxu0 0
    %2011 = vmatpush2.bf16.xpose.msra.mxu0 0
    %2012 = vmatprep.subr.bf16.mxu0 0
    %2013 = vmatpush2.bf16.xpose.msra.mxu0 0
    %2014 = vmatprep.subr.bf16.mxu0 0
    %2015 = vmatpush2.bf16.xpose.msra.mxu0 0
    %2016 = vmatprep.subr.bf16.mxu0 0
    %2017 = vmatpush2.bf16.xpose.msra.mxu0 0
    %2018 = vmatprep.subr.bf16.mxu0 0
    %2019 = vmatpush2.bf16.xpose.msra.mxu0 0
    %2020 = vmatprep.mubr.bf16.mxu0 0
    %2021 = vmatmul.mubr.bf16.gmra.mxu0 %v1983
    %v2022 = vpop.f32.mrf.mxu0
    %v2023 = vadd.f32 0.0, %v2022
    %v2024 = vpop.f32.mrf.mxu0
    %v2025 = vpop.f32.mrf.mxu0
    %v2026 = vpop.f32.mrf.mxu0
    %2027 = vdwg.mxu0
    %v2029 = vsel %vm923, %v835, 0
    %v2032 = vsel %vm923, %v915, 0
    %2034 = vmatprep.subr.bf16.mxu0 0
    %2035 = vmatpush1.bf16.xpose.msra.mxu0 0
    %2036 = vmatprep.subr.bf16.mxu0 0
    %2037 = vmatpush1.bf16.xpose.msra.mxu0 0
    %2038 = vmatprep.subr.bf16.mxu0 0
    %2039 = vmatpush1.bf16.xpose.msra.mxu0 0
    %2040 = vmatprep.subr.bf16.mxu0 0
    %2041 = vmatpush1.bf16.xpose.msra.mxu0 0
    %2042 = vmatprep.subr.bf16.mxu0 0
    %2043 = vmatpush1.bf16.xpose.msra.mxu0 0
    %2044 = vmatprep.subr.bf16.mxu0 0
    %2045 = vmatpush1.bf16.xpose.msra.mxu0 0
    %2046 = vmatprep.subr.bf16.mxu0 0
    %2047 = vmatpush1.bf16.xpose.msra.mxu0 0
    %2048 = vmatprep.subr.bf16.mxu0 0
    %2049 = vmatpush1.bf16.xpose.msra.mxu0 %v2032
    %2050 = vmatprep.subr.bf16.mxu0 0
    %2051 = vmatpush2.bf16.xpose.msra.mxu0 0
    %2052 = vmatprep.subr.bf16.mxu0 0
    %2053 = vmatpush2.bf16.xpose.msra.mxu0 0
    %2054 = vmatprep.subr.bf16.mxu0 0
    %2055 = vmatpush2.bf16.xpose.msra.mxu0 0
    %2056 = vmatprep.subr.bf16.mxu0 0
    %2057 = vmatpush2.bf16.xpose.msra.mxu0 0
    %2058 = vmatprep.subr.bf16.mxu0 0
    %2059 = vmatpush2.bf16.xpose.msra.mxu0 0
    %2060 = vmatprep.subr.bf16.mxu0 0
    %2061 = vmatpush2.bf16.xpose.msra.mxu0 0
    %2062 = vmatprep.subr.bf16.mxu0 0
    %2063 = vmatpush2.bf16.xpose.msra.mxu0 0
    %2064 = vmatprep.subr.bf16.mxu0 0
    %2065 = vmatpush2.bf16.xpose.msra.mxu0 0
    %2066 = vmatprep.mubr.bf16.mxu0 0
    %2067 = vmatmul.mubr.bf16.gmra.mxu0 %v2029
    %v2068 = vpop.f32.mrf.mxu0
    %v2069 = vadd.f32 0.0, %v2068
    %v2070 = vpop.f32.mrf.mxu0
    %v2071 = vpop.f32.mrf.mxu0
    %v2072 = vpop.f32.mrf.mxu0
    %2073 = vdwg.mxu0
    %v2075 = vsel %vm923, %v836, 0
    %v2078 = vsel %vm923, %v916, 0
    %2080 = vmatprep.subr.bf16.mxu0 0
    %2081 = vmatpush1.bf16.xpose.msra.mxu0 0
    %2082 = vmatprep.subr.bf16.mxu0 0
    %2083 = vmatpush1.bf16.xpose.msra.mxu0 0
    %2084 = vmatprep.subr.bf16.mxu0 0
    %2085 = vmatpush1.bf16.xpose.msra.mxu0 0
    %2086 = vmatprep.subr.bf16.mxu0 0
    %2087 = vmatpush1.bf16.xpose.msra.mxu0 0
    %2088 = vmatprep.subr.bf16.mxu0 0
    %2089 = vmatpush1.bf16.xpose.msra.mxu0 0
    %2090 = vmatprep.subr.bf16.mxu0 0
    %2091 = vmatpush1.bf16.xpose.msra.mxu0 0
    %2092 = vmatprep.subr.bf16.mxu0 0
    %2093 = vmatpush1.bf16.xpose.msra.mxu0 0
    %2094 = vmatprep.subr.bf16.mxu0 0
    %2095 = vmatpush1.bf16.xpose.msra.mxu0 %v2078
    %2096 = vmatprep.subr.bf16.mxu0 0
    %2097 = vmatpush2.bf16.xpose.msra.mxu0 0
    %2098 = vmatprep.subr.bf16.mxu0 0
    %2099 = vmatpush2.bf16.xpose.msra.mxu0 0
    %2100 = vmatprep.subr.bf16.mxu0 0
    %2101 = vmatpush2.bf16.xpose.msra.mxu0 0
    %2102 = vmatprep.subr.bf16.mxu0 0
    %2103 = vmatpush2.bf16.xpose.msra.mxu0 0
    %2104 = vmatprep.subr.bf16.mxu0 0
    %2105 = vmatpush2.bf16.xpose.msra.mxu0 0
    %2106 = vmatprep.subr.bf16.mxu0 0
    %2107 = vmatpush2.bf16.xpose.msra.mxu0 0
    %2108 = vmatprep.subr.bf16.mxu0 0
    %2109 = vmatpush2.bf16.xpose.msra.mxu0 0
    %2110 = vmatprep.subr.bf16.mxu0 0
    %2111 = vmatpush2.bf16.xpose.msra.mxu0 0
    %2112 = vmatprep.mubr.bf16.mxu0 0
    %2113 = vmatmul.mubr.bf16.gmra.mxu0 %v2075
    %v2114 = vpop.f32.mrf.mxu0
    %v2115 = vadd.f32 0.0, %v2114
    %v2116 = vpop.f32.mrf.mxu0
    %v2117 = vpop.f32.mrf.mxu0
    %v2118 = vpop.f32.mrf.mxu0
    %2119 = vdwg.mxu0
    %v2121 = vsel %vm923, %v837, 0
    %v2124 = vsel %vm923, %v917, 0
    %2126 = vmatprep.subr.bf16.mxu0 0
    %2127 = vmatpush1.bf16.xpose.msra.mxu0 0
    %2128 = vmatprep.subr.bf16.mxu0 0
    %2129 = vmatpush1.bf16.xpose.msra.mxu0 0
    %2130 = vmatprep.subr.bf16.mxu0 0
    %2131 = vmatpush1.bf16.xpose.msra.mxu0 0
    %2132 = vmatprep.subr.bf16.mxu0 0
    %2133 = vmatpush1.bf16.xpose.msra.mxu0 0
    %2134 = vmatprep.subr.bf16.mxu0 0
    %2135 = vmatpush1.bf16.xpose.msra.mxu0 0
    %2136 = vmatprep.subr.bf16.mxu0 0
    %2137 = vmatpush1.bf16.xpose.msra.mxu0 0
    %2138 = vmatprep.subr.bf16.mxu0 0
    %2139 = vmatpush1.bf16.xpose.msra.mxu0 0
    %2140 = vmatprep.subr.bf16.mxu0 0
    %2141 = vmatpush1.bf16.xpose.msra.mxu0 %v2124
    %2142 = vmatprep.subr.bf16.mxu0 0
    %2143 = vmatpush2.bf16.xpose.msra.mxu0 0
    %2144 = vmatprep.subr.bf16.mxu0 0
    %2145 = vmatpush2.bf16.xpose.msra.mxu0 0
    %2146 = vmatprep.subr.bf16.mxu0 0
    %2147 = vmatpush2.bf16.xpose.msra.mxu0 0
    %2148 = vmatprep.subr.bf16.mxu0 0
    %2149 = vmatpush2.bf16.xpose.msra.mxu0 0
    %2150 = vmatprep.subr.bf16.mxu0 0
    %2151 = vmatpush2.bf16.xpose.msra.mxu0 0
    %2152 = vmatprep.subr.bf16.mxu0 0
    %2153 = vmatpush2.bf16.xpose.msra.mxu0 0
    %2154 = vmatprep.subr.bf16.mxu0 0
    %2155 = vmatpush2.bf16.xpose.msra.mxu0 0
    %2156 = vmatprep.subr.bf16.mxu0 0
    %2157 = vmatpush2.bf16.xpose.msra.mxu0 0
    %2158 = vmatprep.mubr.bf16.mxu0 0
    %2159 = vmatmul.mubr.bf16.gmra.mxu0 %v2121
    %v2160 = vpop.f32.mrf.mxu0
    %v2161 = vadd.f32 0.0, %v2160
    %v2162 = vpop.f32.mrf.mxu0
    %v2163 = vpop.f32.mrf.mxu0
    %v2164 = vpop.f32.mrf.mxu0
    %2165 = vdwg.mxu0
    %v2167 = vsel %vm923, %v838, 0
    %v2170 = vsel %vm923, %v918, 0
    %2172 = vmatprep.subr.bf16.mxu0 0
    %2173 = vmatpush1.bf16.xpose.msra.mxu0 0
    %2174 = vmatprep.subr.bf16.mxu0 0
    %2175 = vmatpush1.bf16.xpose.msra.mxu0 0
    %2176 = vmatprep.subr.bf16.mxu0 0
    %2177 = vmatpush1.bf16.xpose.msra.mxu0 0
    %2178 = vmatprep.subr.bf16.mxu0 0
    %2179 = vmatpush1.bf16.xpose.msra.mxu0 0
    %2180 = vmatprep.subr.bf16.mxu0 0
    %2181 = vmatpush1.bf16.xpose.msra.mxu0 0
    %2182 = vmatprep.subr.bf16.mxu0 0
    %2183 = vmatpush1.bf16.xpose.msra.mxu0 0
    %2184 = vmatprep.subr.bf16.mxu0 0
    %2185 = vmatpush1.bf16.xpose.msra.mxu0 0
    %2186 = vmatprep.subr.bf16.mxu0 0
    %2187 = vmatpush1.bf16.xpose.msra.mxu0 %v2170
    %2188 = vmatprep.subr.bf16.mxu0 0
    %2189 = vmatpush2.bf16.xpose.msra.mxu0 0
    %2190 = vmatprep.subr.bf16.mxu0 0
    %2191 = vmatpush2.bf16.xpose.msra.mxu0 0
    %2192 = vmatprep.subr.bf16.mxu0 0
    %2193 = vmatpush2.bf16.xpose.msra.mxu0 0
    %2194 = vmatprep.subr.bf16.mxu0 0
    %2195 = vmatpush2.bf16.xpose.msra.mxu0 0
    %2196 = vmatprep.subr.bf16.mxu0 0
    %2197 = vmatpush2.bf16.xpose.msra.mxu0 0
    %2198 = vmatprep.subr.bf16.mxu0 0
    %2199 = vmatpush2.bf16.xpose.msra.mxu0 0
    %2200 = vmatprep.subr.bf16.mxu0 0
    %2201 = vmatpush2.bf16.xpose.msra.mxu0 0
    %2202 = vmatprep.subr.bf16.mxu0 0
    %2203 = vmatpush2.bf16.xpose.msra.mxu0 0
    %2204 = vmatprep.mubr.bf16.mxu0 0
    %2205 = vmatmul.mubr.bf16.gmra.mxu0 %v2167
    %v2206 = vpop.f32.mrf.mxu0
    %v2207 = vadd.f32 0.0, %v2206
    %v2208 = vpop.f32.mrf.mxu0
    %v2209 = vpop.f32.mrf.mxu0
    %v2210 = vpop.f32.mrf.mxu0
    %2211 = vdwg.mxu0
    %v2213 = vsel %vm923, %v839, 0
    %v2216 = vsel %vm923, %v919, 0
    %2218 = vmatprep.subr.bf16.mxu0 0
    %2219 = vmatpush1.bf16.xpose.msra.mxu0 0
    %2220 = vmatprep.subr.bf16.mxu0 0
    %2221 = vmatpush1.bf16.xpose.msra.mxu0 0
    %2222 = vmatprep.subr.bf16.mxu0 0
    %2223 = vmatpush1.bf16.xpose.msra.mxu0 0
    %2224 = vmatprep.subr.bf16.mxu0 0
    %2225 = vmatpush1.bf16.xpose.msra.mxu0 0
    %2226 = vmatprep.subr.bf16.mxu0 0
    %2227 = vmatpush1.bf16.xpose.msra.mxu0 0
    %2228 = vmatprep.subr.bf16.mxu0 0
    %2229 = vmatpush1.bf16.xpose.msra.mxu0 0
    %2230 = vmatprep.subr.bf16.mxu0 0
    %2231 = vmatpush1.bf16.xpose.msra.mxu0 0
    %2232 = vmatprep.subr.bf16.mxu0 0
    %2233 = vmatpush1.bf16.xpose.msra.mxu0 %v2216
    %2234 = vmatprep.subr.bf16.mxu0 0
    %2235 = vmatpush2.bf16.xpose.msra.mxu0 0
    %2236 = vmatprep.subr.bf16.mxu0 0
    %2237 = vmatpush2.bf16.xpose.msra.mxu0 0
    %2238 = vmatprep.subr.bf16.mxu0 0
    %2239 = vmatpush2.bf16.xpose.msra.mxu0 0
    %2240 = vmatprep.subr.bf16.mxu0 0
    %2241 = vmatpush2.bf16.xpose.msra.mxu0 0
    %2242 = vmatprep.subr.bf16.mxu0 0
    %2243 = vmatpush2.bf16.xpose.msra.mxu0 0
    %2244 = vmatprep.subr.bf16.mxu0 0
    %2245 = vmatpush2.bf16.xpose.msra.mxu0 0
    %2246 = vmatprep.subr.bf16.mxu0 0
    %2247 = vmatpush2.bf16.xpose.msra.mxu0 0
    %2248 = vmatprep.subr.bf16.mxu0 0
    %2249 = vmatpush2.bf16.xpose.msra.mxu0 0
    %2250 = vmatprep.mubr.bf16.mxu0 0
    %2251 = vmatmul.mubr.bf16.gmra.mxu0 %v2213
    %v2252 = vpop.f32.mrf.mxu0
    %v2253 = vadd.f32 0.0, %v2252
    %v2254 = vpop.f32.mrf.mxu0
    %v2255 = vpop.f32.mrf.mxu0
    %v2256 = vpop.f32.mrf.mxu0
    %2257 = vdwg.mxu0
    %v2259 = vsel %vm923, %v840, 0
    %v2262 = vsel %vm923, %v920, 0
    %2264 = vmatprep.subr.bf16.mxu0 0
    %2265 = vmatpush1.bf16.xpose.msra.mxu0 0
    %2266 = vmatprep.subr.bf16.mxu0 0
    %2267 = vmatpush1.bf16.xpose.msra.mxu0 0
    %2268 = vmatprep.subr.bf16.mxu0 0
    %2269 = vmatpush1.bf16.xpose.msra.mxu0 0
    %2270 = vmatprep.subr.bf16.mxu0 0
    %2271 = vmatpush1.bf16.xpose.msra.mxu0 0
    %2272 = vmatprep.subr.bf16.mxu0 0
    %2273 = vmatpush1.bf16.xpose.msra.mxu0 0
    %2274 = vmatprep.subr.bf16.mxu0 0
    %2275 = vmatpush1.bf16.xpose.msra.mxu0 0
    %2276 = vmatprep.subr.bf16.mxu0 0
    %2277 = vmatpush1.bf16.xpose.msra.mxu0 0
    %2278 = vmatprep.subr.bf16.mxu0 0
    %2279 = vmatpush1.bf16.xpose.msra.mxu0 %v2262
    %2280 = vmatprep.subr.bf16.mxu0 0
    %2281 = vmatpush2.bf16.xpose.msra.mxu0 0
    %2282 = vmatprep.subr.bf16.mxu0 0
    %2283 = vmatpush2.bf16.xpose.msra.mxu0 0
    %2284 = vmatprep.subr.bf16.mxu0 0
    %2285 = vmatpush2.bf16.xpose.msra.mxu0 0
    %2286 = vmatprep.subr.bf16.mxu0 0
    %2287 = vmatpush2.bf16.xpose.msra.mxu0 0
    %2288 = vmatprep.subr.bf16.mxu0 0
    %2289 = vmatpush2.bf16.xpose.msra.mxu0 0
    %2290 = vmatprep.subr.bf16.mxu0 0
    %2291 = vmatpush2.bf16.xpose.msra.mxu0 0
    %2292 = vmatprep.subr.bf16.mxu0 0
    %2293 = vmatpush2.bf16.xpose.msra.mxu0 0
    %2294 = vmatprep.subr.bf16.mxu0 0
    %2295 = vmatpush2.bf16.xpose.msra.mxu0 0
    %2296 = vmatprep.mubr.bf16.mxu0 0
    %2297 = vmatmul.mubr.bf16.gmra.mxu0 %v2259
    %v2298 = vpop.f32.mrf.mxu0
    %v2299 = vadd.f32 0.0, %v2298
    %v2300 = vpop.f32.mrf.mxu0
    %v2301 = vpop.f32.mrf.mxu0
    %v2302 = vpop.f32.mrf.mxu0
    %2303 = vdwg.mxu0
    %v2305 = vsel %vm923, %v841, 0
    %v2308 = vsel %vm923, %v921, 0
    %2310 = vmatprep.subr.bf16.mxu0 0
    %2311 = vmatpush1.bf16.xpose.msra.mxu0 0
    %2312 = vmatprep.subr.bf16.mxu0 0
    %2313 = vmatpush1.bf16.xpose.msra.mxu0 0
    %2314 = vmatprep.subr.bf16.mxu0 0
    %2315 = vmatpush1.bf16.xpose.msra.mxu0 0
    %2316 = vmatprep.subr.bf16.mxu0 0
    %2317 = vmatpush1.bf16.xpose.msra.mxu0 0
    %2318 = vmatprep.subr.bf16.mxu0 0
    %2319 = vmatpush1.bf16.xpose.msra.mxu0 0
    %2320 = vmatprep.subr.bf16.mxu0 0
    %2321 = vmatpush1.bf16.xpose.msra.mxu0 0
    %2322 = vmatprep.subr.bf16.mxu0 0
    %2323 = vmatpush1.bf16.xpose.msra.mxu0 0
    %2324 = vmatprep.subr.bf16.mxu0 0
    %2325 = vmatpush1.bf16.xpose.msra.mxu0 %v2308
    %2326 = vmatprep.subr.bf16.mxu0 0
    %2327 = vmatpush2.bf16.xpose.msra.mxu0 0
    %2328 = vmatprep.subr.bf16.mxu0 0
    %2329 = vmatpush2.bf16.xpose.msra.mxu0 0
    %2330 = vmatprep.subr.bf16.mxu0 0
    %2331 = vmatpush2.bf16.xpose.msra.mxu0 0
    %2332 = vmatprep.subr.bf16.mxu0 0
    %2333 = vmatpush2.bf16.xpose.msra.mxu0 0
    %2334 = vmatprep.subr.bf16.mxu0 0
    %2335 = vmatpush2.bf16.xpose.msra.mxu0 0
    %2336 = vmatprep.subr.bf16.mxu0 0
    %2337 = vmatpush2.bf16.xpose.msra.mxu0 0
    %2338 = vmatprep.subr.bf16.mxu0 0
    %2339 = vmatpush2.bf16.xpose.msra.mxu0 0
    %2340 = vmatprep.subr.bf16.mxu0 0
    %2341 = vmatpush2.bf16.xpose.msra.mxu0 0
    %2342 = vmatprep.mubr.bf16.mxu0 0
    %2343 = vmatmul.mubr.bf16.gmra.mxu0 %v2305
    %v2344 = vpop.f32.mrf.mxu0
    %v2345 = vadd.f32 0.0, %v2344
    %v2346 = vpop.f32.mrf.mxu0
    %v2347 = vpop.f32.mrf.mxu0
    %v2348 = vpop.f32.mrf.mxu0
    %2349 = vdwg.mxu0
    %v2351 = vsel %vm923, %v842, 0
    %v2354 = vsel %vm923, %v922, 0
    %2356 = vmatprep.subr.bf16.mxu0 0
    %2357 = vmatpush1.bf16.xpose.msra.mxu0 0
    %2358 = vmatprep.subr.bf16.mxu0 0
    %2359 = vmatpush1.bf16.xpose.msra.mxu0 0
    %2360 = vmatprep.subr.bf16.mxu0 0
    %2361 = vmatpush1.bf16.xpose.msra.mxu0 0
    %2362 = vmatprep.subr.bf16.mxu0 0
    %2363 = vmatpush1.bf16.xpose.msra.mxu0 0
    %2364 = vmatprep.subr.bf16.mxu0 0
    %2365 = vmatpush1.bf16.xpose.msra.mxu0 0
    %2366 = vmatprep.subr.bf16.mxu0 0
    %2367 = vmatpush1.bf16.xpose.msra.mxu0 0
    %2368 = vmatprep.subr.bf16.mxu0 0
    %2369 = vmatpush1.bf16.xpose.msra.mxu0 0
    %2370 = vmatprep.subr.bf16.mxu0 0
    %2371 = vmatpush1.bf16.xpose.msra.mxu0 %v2354
    %2372 = vmatprep.subr.bf16.mxu0 0
    %2373 = vmatpush2.bf16.xpose.msra.mxu0 0
    %2374 = vmatprep.subr.bf16.mxu0 0
    %2375 = vmatpush2.bf16.xpose.msra.mxu0 0
    %2376 = vmatprep.subr.bf16.mxu0 0
    %2377 = vmatpush2.bf16.xpose.msra.mxu0 0
    %2378 = vmatprep.subr.bf16.mxu0 0
    %2379 = vmatpush2.bf16.xpose.msra.mxu0 0
    %2380 = vmatprep.subr.bf16.mxu0 0
    %2381 = vmatpush2.bf16.xpose.msra.mxu0 0
    %2382 = vmatprep.subr.bf16.mxu0 0
    %2383 = vmatpush2.bf16.xpose.msra.mxu0 0
    %2384 = vmatprep.subr.bf16.mxu0 0
    %2385 = vmatpush2.bf16.xpose.msra.mxu0 0
    %2386 = vmatprep.subr.bf16.mxu0 0
    %2387 = vmatpush2.bf16.xpose.msra.mxu0 0
    %2388 = vmatprep.mubr.bf16.mxu0 0
    %2389 = vmatmul.mubr.bf16.gmra.mxu0 %v2351
    %v2390 = vpop.f32.mrf.mxu0
    %v2391 = vadd.f32 0.0, %v2390
    %v2392 = vpop.f32.mrf.mxu0
    %v2393 = vpop.f32.mrf.mxu0
    %v2394 = vpop.f32.mrf.mxu0
    %2395 = vdwg.mxu0
    %v2396 = vmul.f32 %v965, 0.25
    %v2397 = vmul.f32 %v1011, 0.25
    %v2398 = vmul.f32 %v1057, 0.25
    %v2399 = vmul.f32 %v1103, 0.25
    %v2400 = vmul.f32 %v1149, 0.25
    %v2401 = vmul.f32 %v1195, 0.25
    %v2402 = vmul.f32 %v1241, 0.25
    %v2403 = vmul.f32 %v1287, 0.25
    %v2404 = vmul.f32 %v1333, 0.25
    %v2405 = vmul.f32 %v1379, 0.25
    %v2406 = vmul.f32 %v1425, 0.25
    %v2407 = vmul.f32 %v1471, 0.25
    %v2408 = vmul.f32 %v1517, 0.25
    %v2409 = vmul.f32 %v1563, 0.25
    %v2410 = vmul.f32 %v1609, 0.25
    %v2411 = vmul.f32 %v1655, 0.25
    %v2412 = vmul.f32 %v1701, 0.25
    %v2413 = vmul.f32 %v1747, 0.25
    %v2414 = vmul.f32 %v1793, 0.25
    %v2415 = vmul.f32 %v1839, 0.25
    %v2416 = vmul.f32 %v1885, 0.25
    %v2417 = vmul.f32 %v1931, 0.25
    %v2418 = vmul.f32 %v1977, 0.25
    %v2419 = vmul.f32 %v2023, 0.25
    %v2420 = vmul.f32 %v2069, 0.25
    %v2421 = vmul.f32 %v2115, 0.25
    %v2422 = vmul.f32 %v2161, 0.25
    %v2423 = vmul.f32 %v2207, 0.25
    %v2424 = vmul.f32 %v2253, 0.25
    %v2425 = vmul.f32 %v2299, 0.25
    %v2426 = vmul.f32 %v2345, 0.25
    %v2427 = vmul.f32 %v2391, 0.25
    %vm2428 = vcmask 64512
    %v2429 = vsel %vm2428, %v2396, -inf
    %2430 = vmax.xlane.f32.xlu0 %v2429
    %v2431 = vpop.xlane.xlu0 %2430
    %v2432 = vsel %vm2428, %v2397, -inf
    %2433 = vmax.xlane.f32.xlu0 %v2432
    %v2434 = vpop.xlane.xlu0 %2433
    %v2435 = vsel %vm2428, %v2398, -inf
    %2436 = vmax.xlane.f32.xlu0 %v2435
    %v2437 = vpop.xlane.xlu0 %2436
    %v2438 = vsel %vm2428, %v2399, -inf
    %2439 = vmax.xlane.f32.xlu0 %v2438
    %v2440 = vpop.xlane.xlu0 %2439
    %v2441 = vsel %vm2428, %v2400, -inf
    %2442 = vmax.xlane.f32.xlu0 %v2441
    %v2443 = vpop.xlane.xlu0 %2442
    %v2444 = vsel %vm2428, %v2401, -inf
    %2445 = vmax.xlane.f32.xlu0 %v2444
    %v2446 = vpop.xlane.xlu0 %2445
    %v2447 = vsel %vm2428, %v2402, -inf
    %2448 = vmax.xlane.f32.xlu0 %v2447
    %v2449 = vpop.xlane.xlu0 %2448
    %v2450 = vsel %vm2428, %v2403, -inf
    %2451 = vmax.xlane.f32.xlu0 %v2450
    %v2452 = vpop.xlane.xlu0 %2451
    %v2453 = vsel %vm2428, %v2404, -inf
    %2454 = vmax.xlane.f32.xlu0 %v2453
    %v2455 = vpop.xlane.xlu0 %2454
    %v2456 = vsel %vm2428, %v2405, -inf
    %2457 = vmax.xlane.f32.xlu0 %v2456
    %v2458 = vpop.xlane.xlu0 %2457
    %v2459 = vsel %vm2428, %v2406, -inf
    %2460 = vmax.xlane.f32.xlu0 %v2459
    %v2461 = vpop.xlane.xlu0 %2460
    %v2462 = vsel %vm2428, %v2407, -inf
    %2463 = vmax.xlane.f32.xlu0 %v2462
    %v2464 = vpop.xlane.xlu0 %2463
    %v2465 = vsel %vm2428, %v2408, -inf
    %2466 = vmax.xlane.f32.xlu0 %v2465
    %v2467 = vpop.xlane.xlu0 %2466
    %v2468 = vsel %vm2428, %v2409, -inf
    %2469 = vmax.xlane.f32.xlu0 %v2468
    %v2470 = vpop.xlane.xlu0 %2469
    %v2471 = vsel %vm2428, %v2410, -inf
    %2472 = vmax.xlane.f32.xlu0 %v2471
    %v2473 = vpop.xlane.xlu0 %2472
    %v2474 = vsel %vm2428, %v2411, -inf
    %2475 = vmax.xlane.f32.xlu0 %v2474
    %v2476 = vpop.xlane.xlu0 %2475
    %v2477 = vsel %vm2428, %v2412, -inf
    %2478 = vmax.xlane.f32.xlu0 %v2477
    %v2479 = vpop.xlane.xlu0 %2478
    %v2480 = vsel %vm2428, %v2413, -inf
    %2481 = vmax.xlane.f32.xlu0 %v2480
    %v2482 = vpop.xlane.xlu0 %2481
    %v2483 = vsel %vm2428, %v2414, -inf
    %2484 = vmax.xlane.f32.xlu0 %v2483
    %v2485 = vpop.xlane.xlu0 %2484
    %v2486 = vsel %vm2428, %v2415, -inf
    %2487 = vmax.xlane.f32.xlu0 %v2486
    %v2488 = vpop.xlane.xlu0 %2487
    %v2489 = vsel %vm2428, %v2416, -inf
    %2490 = vmax.xlane.f32.xlu0 %v2489
    %v2491 = vpop.xlane.xlu0 %2490
    %v2492 = vsel %vm2428, %v2417, -inf
    %2493 = vmax.xlane.f32.xlu0 %v2492
    %v2494 = vpop.xlane.xlu0 %2493
    %v2495 = vsel %vm2428, %v2418, -inf
    %2496 = vmax.xlane.f32.xlu0 %v2495
    %v2497 = vpop.xlane.xlu0 %2496
    %v2498 = vsel %vm2428, %v2419, -inf
    %2499 = vmax.xlane.f32.xlu0 %v2498
    %v2500 = vpop.xlane.xlu0 %2499
    %v2501 = vsel %vm2428, %v2420, -inf
    %2502 = vmax.xlane.f32.xlu0 %v2501
    %v2503 = vpop.xlane.xlu0 %2502
    %v2504 = vsel %vm2428, %v2421, -inf
    %2505 = vmax.xlane.f32.xlu0 %v2504
    %v2506 = vpop.xlane.xlu0 %2505
    %v2507 = vsel %vm2428, %v2422, -inf
    %2508 = vmax.xlane.f32.xlu0 %v2507
    %v2509 = vpop.xlane.xlu0 %2508
    %v2510 = vsel %vm2428, %v2423, -inf
    %2511 = vmax.xlane.f32.xlu0 %v2510
    %v2512 = vpop.xlane.xlu0 %2511
    %v2513 = vsel %vm2428, %v2424, -inf
    %2514 = vmax.xlane.f32.xlu0 %v2513
    %v2515 = vpop.xlane.xlu0 %2514
    %v2516 = vsel %vm2428, %v2425, -inf
    %2517 = vmax.xlane.f32.xlu0 %v2516
    %v2518 = vpop.xlane.xlu0 %2517
    %v2519 = vsel %vm2428, %v2426, -inf
    %2520 = vmax.xlane.f32.xlu0 %v2519
    %v2521 = vpop.xlane.xlu0 %2520
    %v2522 = vsel %vm2428, %v2427, -inf
    %2523 = vmax.xlane.f32.xlu0 %v2522
    %v2524 = vpop.xlane.xlu0 %2523
    %v2525 = vsub.f32 %v2396, %v2431
    %v2526 = vsub.f32 %v2397, %v2434
    %v2527 = vsub.f32 %v2398, %v2437
    %v2528 = vsub.f32 %v2399, %v2440
    %v2529 = vsub.f32 %v2400, %v2443
    %v2530 = vsub.f32 %v2401, %v2446
    %v2531 = vsub.f32 %v2402, %v2449
    %v2532 = vsub.f32 %v2403, %v2452
    %v2533 = vsub.f32 %v2404, %v2455
    %v2534 = vsub.f32 %v2405, %v2458
    %v2535 = vsub.f32 %v2406, %v2461
    %v2536 = vsub.f32 %v2407, %v2464
    %v2537 = vsub.f32 %v2408, %v2467
    %v2538 = vsub.f32 %v2409, %v2470
    %v2539 = vsub.f32 %v2410, %v2473
    %v2540 = vsub.f32 %v2411, %v2476
    %v2541 = vsub.f32 %v2412, %v2479
    %v2542 = vsub.f32 %v2413, %v2482
    %v2543 = vsub.f32 %v2414, %v2485
    %v2544 = vsub.f32 %v2415, %v2488
    %v2545 = vsub.f32 %v2416, %v2491
    %v2546 = vsub.f32 %v2417, %v2494
    %v2547 = vsub.f32 %v2418, %v2497
    %v2548 = vsub.f32 %v2419, %v2500
    %v2549 = vsub.f32 %v2420, %v2503
    %v2550 = vsub.f32 %v2421, %v2506
    %v2551 = vsub.f32 %v2422, %v2509
    %v2552 = vsub.f32 %v2423, %v2512
    %v2553 = vsub.f32 %v2424, %v2515
    %v2554 = vsub.f32 %v2425, %v2518
    %v2555 = vsub.f32 %v2426, %v2521
    %v2556 = vsub.f32 %v2427, %v2524
    %v2557 = vmul.f32 %v2525, 1.442695
    %v2558 = vpow.pop %v2557
    %v2559 = vmul.f32 %v2526, 1.442695
    %v2560 = vpow.pop %v2559
    %v2561 = vmul.f32 %v2527, 1.442695
    %v2562 = vpow.pop %v2561
    %v2563 = vmul.f32 %v2528, 1.442695
    %v2564 = vpow.pop %v2563
    %v2565 = vmul.f32 %v2529, 1.442695
    %v2566 = vpow.pop %v2565
    %v2567 = vmul.f32 %v2530, 1.442695
    %v2568 = vpow.pop %v2567
    %v2569 = vmul.f32 %v2531, 1.442695
    %v2570 = vpow.pop %v2569
    %v2571 = vmul.f32 %v2532, 1.442695
    %v2572 = vpow.pop %v2571
    %v2573 = vmul.f32 %v2533, 1.442695
    %v2574 = vpow.pop %v2573
    %v2575 = vmul.f32 %v2534, 1.442695
    %v2576 = vpow.pop %v2575
    %v2577 = vmul.f32 %v2535, 1.442695
    %v2578 = vpow.pop %v2577
    %v2579 = vmul.f32 %v2536, 1.442695
    %v2580 = vpow.pop %v2579
    %v2581 = vmul.f32 %v2537, 1.442695
    %v2582 = vpow.pop %v2581
    %v2583 = vmul.f32 %v2538, 1.442695
    %v2584 = vpow.pop %v2583
    %v2585 = vmul.f32 %v2539, 1.442695
    %v2586 = vpow.pop %v2585
    %v2587 = vmul.f32 %v2540, 1.442695
    %v2588 = vpow.pop %v2587
    %v2589 = vmul.f32 %v2541, 1.442695
    %v2590 = vpow.pop %v2589
    %v2591 = vmul.f32 %v2542, 1.442695
    %v2592 = vpow.pop %v2591
    %v2593 = vmul.f32 %v2543, 1.442695
    %v2594 = vpow.pop %v2593
    %v2595 = vmul.f32 %v2544, 1.442695
    %v2596 = vpow.pop %v2595
    %v2597 = vmul.f32 %v2545, 1.442695
    %v2598 = vpow.pop %v2597
    %v2599 = vmul.f32 %v2546, 1.442695
    %v2600 = vpow.pop %v2599
    %v2601 = vmul.f32 %v2547, 1.442695
    %v2602 = vpow.pop %v2601
    %v2603 = vmul.f32 %v2548, 1.442695
    %v2604 = vpow.pop %v2603
    %v2605 = vmul.f32 %v2549, 1.442695
    %v2606 = vpow.pop %v2605
    %v2607 = vmul.f32 %v2550, 1.442695
    %v2608 = vpow.pop %v2607
    %v2609 = vmul.f32 %v2551, 1.442695
    %v2610 = vpow.pop %v2609
    %v2611 = vmul.f32 %v2552, 1.442695
    %v2612 = vpow.pop %v2611
    %v2613 = vmul.f32 %v2553, 1.442695
    %v2614 = vpow.pop %v2613
    %v2615 = vmul.f32 %v2554, 1.442695
    %v2616 = vpow.pop %v2615
    %v2617 = vmul.f32 %v2555, 1.442695
    %v2618 = vpow.pop %v2617
    %v2619 = vmul.f32 %v2556, 1.442695
    %v2620 = vpow.pop %v2619
    %v2621 = vsel %vm2428, %v2558, 0.0
    %2622 = vadd.xlane.f32.xlu0 %v2621
    %v2623 = vpop.xlane.xlu0 %2622
    %v2624 = vsel %vm2428, %v2560, 0.0
    %2625 = vadd.xlane.f32.xlu0 %v2624
    %v2626 = vpop.xlane.xlu0 %2625
    %v2627 = vsel %vm2428, %v2562, 0.0
    %2628 = vadd.xlane.f32.xlu0 %v2627
    %v2629 = vpop.xlane.xlu0 %2628
    %v2630 = vsel %vm2428, %v2564, 0.0
    %2631 = vadd.xlane.f32.xlu0 %v2630
    %v2632 = vpop.xlane.xlu0 %2631
    %v2633 = vsel %vm2428, %v2566, 0.0
    %2634 = vadd.xlane.f32.xlu0 %v2633
    %v2635 = vpop.xlane.xlu0 %2634
    %v2636 = vsel %vm2428, %v2568, 0.0
    %2637 = vadd.xlane.f32.xlu0 %v2636
    %v2638 = vpop.xlane.xlu0 %2637
    %v2639 = vsel %vm2428, %v2570, 0.0
    %2640 = vadd.xlane.f32.xlu0 %v2639
    %v2641 = vpop.xlane.xlu0 %2640
    %v2642 = vsel %vm2428, %v2572, 0.0
    %2643 = vadd.xlane.f32.xlu0 %v2642
    %v2644 = vpop.xlane.xlu0 %2643
    %v2645 = vsel %vm2428, %v2574, 0.0
    %2646 = vadd.xlane.f32.xlu0 %v2645
    %v2647 = vpop.xlane.xlu0 %2646
    %v2648 = vsel %vm2428, %v2576, 0.0
    %2649 = vadd.xlane.f32.xlu0 %v2648
    %v2650 = vpop.xlane.xlu0 %2649
    %v2651 = vsel %vm2428, %v2578, 0.0
    %2652 = vadd.xlane.f32.xlu0 %v2651
    %v2653 = vpop.xlane.xlu0 %2652
    %v2654 = vsel %vm2428, %v2580, 0.0
    %2655 = vadd.xlane.f32.xlu0 %v2654
    %v2656 = vpop.xlane.xlu0 %2655
    %v2657 = vsel %vm2428, %v2582, 0.0
    %2658 = vadd.xlane.f32.xlu0 %v2657
    %v2659 = vpop.xlane.xlu0 %2658
    %v2660 = vsel %vm2428, %v2584, 0.0
    %2661 = vadd.xlane.f32.xlu0 %v2660
    %v2662 = vpop.xlane.xlu0 %2661
    %v2663 = vsel %vm2428, %v2586, 0.0
    %2664 = vadd.xlane.f32.xlu0 %v2663
    %v2665 = vpop.xlane.xlu0 %2664
    %v2666 = vsel %vm2428, %v2588, 0.0
    %2667 = vadd.xlane.f32.xlu0 %v2666
    %v2668 = vpop.xlane.xlu0 %2667
    %v2669 = vsel %vm2428, %v2590, 0.0
    %2670 = vadd.xlane.f32.xlu0 %v2669
    %v2671 = vpop.xlane.xlu0 %2670
    %v2672 = vsel %vm2428, %v2592, 0.0
    %2673 = vadd.xlane.f32.xlu0 %v2672
    %v2674 = vpop.xlane.xlu0 %2673
    %v2675 = vsel %vm2428, %v2594, 0.0
    %2676 = vadd.xlane.f32.xlu0 %v2675
    %v2677 = vpop.xlane.xlu0 %2676
    %v2678 = vsel %vm2428, %v2596, 0.0
    %2679 = vadd.xlane.f32.xlu0 %v2678
    %v2680 = vpop.xlane.xlu0 %2679
    %v2681 = vsel %vm2428, %v2598, 0.0
    %2682 = vadd.xlane.f32.xlu0 %v2681
    %v2683 = vpop.xlane.xlu0 %2682
    %v2684 = vsel %vm2428, %v2600, 0.0
    %2685 = vadd.xlane.f32.xlu0 %v2684
    %v2686 = vpop.xlane.xlu0 %2685
    %v2687 = vsel %vm2428, %v2602, 0.0
    %2688 = vadd.xlane.f32.xlu0 %v2687
    %v2689 = vpop.xlane.xlu0 %2688
    %v2690 = vsel %vm2428, %v2604, 0.0
    %2691 = vadd.xlane.f32.xlu0 %v2690
    %v2692 = vpop.xlane.xlu0 %2691
    %v2693 = vsel %vm2428, %v2606, 0.0
    %2694 = vadd.xlane.f32.xlu0 %v2693
    %v2695 = vpop.xlane.xlu0 %2694
    %v2696 = vsel %vm2428, %v2608, 0.0
    %2697 = vadd.xlane.f32.xlu0 %v2696
    %v2698 = vpop.xlane.xlu0 %2697
    %v2699 = vsel %vm2428, %v2610, 0.0
    %2700 = vadd.xlane.f32.xlu0 %v2699
    %v2701 = vpop.xlane.xlu0 %2700
    %v2702 = vsel %vm2428, %v2612, 0.0
    %2703 = vadd.xlane.f32.xlu0 %v2702
    %v2704 = vpop.xlane.xlu0 %2703
    %v2705 = vsel %vm2428, %v2614, 0.0
    %2706 = vadd.xlane.f32.xlu0 %v2705
    %v2707 = vpop.xlane.xlu0 %2706
    %v2708 = vsel %vm2428, %v2616, 0.0
    %2709 = vadd.xlane.f32.xlu0 %v2708
    %v2710 = vpop.xlane.xlu0 %2709
    %v2711 = vsel %vm2428, %v2618, 0.0
    %2712 = vadd.xlane.f32.xlu0 %v2711
    %v2713 = vpop.xlane.xlu0 %2712
    %v2714 = vsel %vm2428, %v2620, 0.0
    %2715 = vadd.xlane.f32.xlu0 %v2714
    %v2716 = vpop.xlane.xlu0 %2715
    %v2717 = vrcp.pop %v2623
    %v2718 = vrcp.pop %v2626
    %v2719 = vrcp.pop %v2629
    %v2720 = vrcp.pop %v2632
    %v2721 = vrcp.pop %v2635
    %v2722 = vrcp.pop %v2638
    %v2723 = vrcp.pop %v2641
    %v2724 = vrcp.pop %v2644
    %v2725 = vrcp.pop %v2647
    %v2726 = vrcp.pop %v2650
    %v2727 = vrcp.pop %v2653
    %v2728 = vrcp.pop %v2656
    %v2729 = vrcp.pop %v2659
    %v2730 = vrcp.pop %v2662
    %v2731 = vrcp.pop %v2665
    %v2732 = vrcp.pop %v2668
    %v2733 = vrcp.pop %v2671
    %v2734 = vrcp.pop %v2674
    %v2735 = vrcp.pop %v2677
    %v2736 = vrcp.pop %v2680
    %v2737 = vrcp.pop %v2683
    %v2738 = vrcp.pop %v2686
    %v2739 = vrcp.pop %v2689
    %v2740 = vrcp.pop %v2692
    %v2741 = vrcp.pop %v2695
    %v2742 = vrcp.pop %v2698
    %v2743 = vrcp.pop %v2701
    %v2744 = vrcp.pop %v2704
    %v2745 = vrcp.pop %v2707
    %v2746 = vrcp.pop %v2710
    %v2747 = vrcp.pop %v2713
    %v2748 = vrcp.pop %v2716
    %v2749 = vmul.f32 %v2558, %v2717
    %v2750 = vmul.f32 %v2560, %v2718
    %v2751 = vmul.f32 %v2562, %v2719
    %v2752 = vmul.f32 %v2564, %v2720
    %v2753 = vmul.f32 %v2566, %v2721
    %v2754 = vmul.f32 %v2568, %v2722
    %v2755 = vmul.f32 %v2570, %v2723
    %v2756 = vmul.f32 %v2572, %v2724
    %v2757 = vmul.f32 %v2574, %v2725
    %v2758 = vmul.f32 %v2576, %v2726
    %v2759 = vmul.f32 %v2578, %v2727
    %v2760 = vmul.f32 %v2580, %v2728
    %v2761 = vmul.f32 %v2582, %v2729
    %v2762 = vmul.f32 %v2584, %v2730
    %v2763 = vmul.f32 %v2586, %v2731
    %v2764 = vmul.f32 %v2588, %v2732
    %v2765 = vmul.f32 %v2590, %v2733
    %v2766 = vmul.f32 %v2592, %v2734
    %v2767 = vmul.f32 %v2594, %v2735
    %v2768 = vmul.f32 %v2596, %v2736
    %v2769 = vmul.f32 %v2598, %v2737
    %v2770 = vmul.f32 %v2600, %v2738
    %v2771 = vmul.f32 %v2602, %v2739
    %v2772 = vmul.f32 %v2604, %v2740
    %v2773 = vmul.f32 %v2606, %v2741
    %v2774 = vmul.f32 %v2608, %v2742
    %v2775 = vmul.f32 %v2610, %v2743
    %v2776 = vmul.f32 %v2612, %v2744
    %v2777 = vmul.f32 %v2614, %v2745
    %v2778 = vmul.f32 %v2616, %v2746
    %v2779 = vmul.f32 %v2618, %v2747
    %v2780 = vmul.f32 %v2620, %v2748
    %v2781 = vpack.c.bf16 %v2749, %v2749
    %v2782 = vpack.c.bf16 %v2750, %v2750
    %v2783 = vpack.c.bf16 %v2751, %v2751
    %v2784 = vpack.c.bf16 %v2752, %v2752
    %v2785 = vpack.c.bf16 %v2753, %v2753
    %v2786 = vpack.c.bf16 %v2754, %v2754
    %v2787 = vpack.c.bf16 %v2755, %v2755
    %v2788 = vpack.c.bf16 %v2756, %v2756
    %v2789 = vpack.c.bf16 %v2757, %v2757
    %v2790 = vpack.c.bf16 %v2758, %v2758
    %v2791 = vpack.c.bf16 %v2759, %v2759
    %v2792 = vpack.c.bf16 %v2760, %v2760
    %v2793 = vpack.c.bf16 %v2761, %v2761
    %v2794 = vpack.c.bf16 %v2762, %v2762
    %v2795 = vpack.c.bf16 %v2763, %v2763
    %v2796 = vpack.c.bf16 %v2764, %v2764
    %v2797 = vpack.c.bf16 %v2765, %v2765
    %v2798 = vpack.c.bf16 %v2766, %v2766
    %v2799 = vpack.c.bf16 %v2767, %v2767
    %v2800 = vpack.c.bf16 %v2768, %v2768
    %v2801 = vpack.c.bf16 %v2769, %v2769
    %v2802 = vpack.c.bf16 %v2770, %v2770
    %v2803 = vpack.c.bf16 %v2771, %v2771
    %v2804 = vpack.c.bf16 %v2772, %v2772
    %v2805 = vpack.c.bf16 %v2773, %v2773
    %v2806 = vpack.c.bf16 %v2774, %v2774
    %v2807 = vpack.c.bf16 %v2775, %v2775
    %v2808 = vpack.c.bf16 %v2776, %v2776
    %v2809 = vpack.c.bf16 %v2777, %v2777
    %v2810 = vpack.c.bf16 %v2778, %v2778
    %v2811 = vpack.c.bf16 %v2779, %v2779
    %v2812 = vpack.c.bf16 %v2780, %v2780
    %2813 = vrot.lane.b32.xlu0 %v891, 96
    %v2814 = vpop.permute.xlu0 %2813
    %v2816 = vsel %vm2428, %v2781, 0
    %vm2818 = vcmask 1043456
    %v2820 = vsel %vm2818, %v2814, 0
    %2822 = vmatprep.subr.bf16.mxu0 0
    %2823 = vmatpush1.bf16.msra.mxu0 0
    %2824 = vmatprep.subr.bf16.mxu0 0
    %2825 = vmatpush1.bf16.msra.mxu0 0
    %2826 = vmatprep.subr.bf16.mxu0 0
    %2827 = vmatpush1.bf16.msra.mxu0 0
    %2828 = vmatprep.subr.bf16.mxu0 0
    %2829 = vmatpush1.bf16.msra.mxu0 0
    %2830 = vmatprep.subr.bf16.mxu0 0
    %2831 = vmatpush1.bf16.msra.mxu0 0
    %2832 = vmatprep.subr.bf16.mxu0 0
    %2833 = vmatpush1.bf16.msra.mxu0 0
    %2834 = vmatprep.subr.bf16.mxu0 0
    %2835 = vmatpush1.bf16.msra.mxu0 0
    %2836 = vmatprep.subr.bf16.mxu0 0
    %2837 = vmatpush1.bf16.msra.mxu0 %v2820
    %2838 = vmatprep.subr.bf16.mxu0 0
    %2839 = vmatpush2.bf16.msra.mxu0 0
    %2840 = vmatprep.subr.bf16.mxu0 0
    %2841 = vmatpush2.bf16.msra.mxu0 0
    %2842 = vmatprep.subr.bf16.mxu0 0
    %2843 = vmatpush2.bf16.msra.mxu0 0
    %2844 = vmatprep.subr.bf16.mxu0 0
    %2845 = vmatpush2.bf16.msra.mxu0 0
    %2846 = vmatprep.subr.bf16.mxu0 0
    %2847 = vmatpush2.bf16.msra.mxu0 0
    %2848 = vmatprep.subr.bf16.mxu0 0
    %2849 = vmatpush2.bf16.msra.mxu0 0
    %2850 = vmatprep.subr.bf16.mxu0 0
    %2851 = vmatpush2.bf16.msra.mxu0 0
    %2852 = vmatprep.subr.bf16.mxu0 0
    %2853 = vmatpush2.bf16.msra.mxu0 0
    %2854 = vmatprep.mubr.bf16.mxu0 0
    %2855 = vmatmul.mubr.bf16.gmra.mxu0 %v2816
    %v2856 = vpop.f32.mrf.mxu0
    %v2857 = vadd.f32 0.0, %v2856
    %v2858 = vpop.f32.mrf.mxu0
    %v2859 = vpop.f32.mrf.mxu0
    %v2860 = vpop.f32.mrf.mxu0
    %2861 = vdwg.mxu0
    %2862 = vrot.lane.b32.xlu0 %v892, 96
    %v2863 = vpop.permute.xlu0 %2862
    %v2865 = vsel %vm2428, %v2782, 0
    %v2868 = vsel %vm2818, %v2863, 0
    %2870 = vmatprep.subr.bf16.mxu0 0
    %2871 = vmatpush1.bf16.msra.mxu0 0
    %2872 = vmatprep.subr.bf16.mxu0 0
    %2873 = vmatpush1.bf16.msra.mxu0 0
    %2874 = vmatprep.subr.bf16.mxu0 0
    %2875 = vmatpush1.bf16.msra.mxu0 0
    %2876 = vmatprep.subr.bf16.mxu0 0
    %2877 = vmatpush1.bf16.msra.mxu0 0
    %2878 = vmatprep.subr.bf16.mxu0 0
    %2879 = vmatpush1.bf16.msra.mxu0 0
    %2880 = vmatprep.subr.bf16.mxu0 0
    %2881 = vmatpush1.bf16.msra.mxu0 0
    %2882 = vmatprep.subr.bf16.mxu0 0
    %2883 = vmatpush1.bf16.msra.mxu0 0
    %2884 = vmatprep.subr.bf16.mxu0 0
    %2885 = vmatpush1.bf16.msra.mxu0 %v2868
    %2886 = vmatprep.subr.bf16.mxu0 0
    %2887 = vmatpush2.bf16.msra.mxu0 0
    %2888 = vmatprep.subr.bf16.mxu0 0
    %2889 = vmatpush2.bf16.msra.mxu0 0
    %2890 = vmatprep.subr.bf16.mxu0 0
    %2891 = vmatpush2.bf16.msra.mxu0 0
    %2892 = vmatprep.subr.bf16.mxu0 0
    %2893 = vmatpush2.bf16.msra.mxu0 0
    %2894 = vmatprep.subr.bf16.mxu0 0
    %2895 = vmatpush2.bf16.msra.mxu0 0
    %2896 = vmatprep.subr.bf16.mxu0 0
    %2897 = vmatpush2.bf16.msra.mxu0 0
    %2898 = vmatprep.subr.bf16.mxu0 0
    %2899 = vmatpush2.bf16.msra.mxu0 0
    %2900 = vmatprep.subr.bf16.mxu0 0
    %2901 = vmatpush2.bf16.msra.mxu0 0
    %2902 = vmatprep.mubr.bf16.mxu0 0
    %2903 = vmatmul.mubr.bf16.gmra.mxu0 %v2865
    %v2904 = vpop.f32.mrf.mxu0
    %v2905 = vadd.f32 0.0, %v2904
    %v2906 = vpop.f32.mrf.mxu0
    %v2907 = vpop.f32.mrf.mxu0
    %v2908 = vpop.f32.mrf.mxu0
    %2909 = vdwg.mxu0
    %2910 = vrot.lane.b32.xlu0 %v893, 96
    %v2911 = vpop.permute.xlu0 %2910
    %v2913 = vsel %vm2428, %v2783, 0
    %v2916 = vsel %vm2818, %v2911, 0
    %2918 = vmatprep.subr.bf16.mxu0 0
    %2919 = vmatpush1.bf16.msra.mxu0 0
    %2920 = vmatprep.subr.bf16.mxu0 0
    %2921 = vmatpush1.bf16.msra.mxu0 0
    %2922 = vmatprep.subr.bf16.mxu0 0
    %2923 = vmatpush1.bf16.msra.mxu0 0
    %2924 = vmatprep.subr.bf16.mxu0 0
    %2925 = vmatpush1.bf16.msra.mxu0 0
    %2926 = vmatprep.subr.bf16.mxu0 0
    %2927 = vmatpush1.bf16.msra.mxu0 0
    %2928 = vmatprep.subr.bf16.mxu0 0
    %2929 = vmatpush1.bf16.msra.mxu0 0
    %2930 = vmatprep.subr.bf16.mxu0 0
    %2931 = vmatpush1.bf16.msra.mxu0 0
    %2932 = vmatprep.subr.bf16.mxu0 0
    %2933 = vmatpush1.bf16.msra.mxu0 %v2916
    %2934 = vmatprep.subr.bf16.mxu0 0
    %2935 = vmatpush2.bf16.msra.mxu0 0
    %2936 = vmatprep.subr.bf16.mxu0 0
    %2937 = vmatpush2.bf16.msra.mxu0 0
    %2938 = vmatprep.subr.bf16.mxu0 0
    %2939 = vmatpush2.bf16.msra.mxu0 0
    %2940 = vmatprep.subr.bf16.mxu0 0
    %2941 = vmatpush2.bf16.msra.mxu0 0
    %2942 = vmatprep.subr.bf16.mxu0 0
    %2943 = vmatpush2.bf16.msra.mxu0 0
    %2944 = vmatprep.subr.bf16.mxu0 0
    %2945 = vmatpush2.bf16.msra.mxu0 0
    %2946 = vmatprep.subr.bf16.mxu0 0
    %2947 = vmatpush2.bf16.msra.mxu0 0
    %2948 = vmatprep.subr.bf16.mxu0 0
    %2949 = vmatpush2.bf16.msra.mxu0 0
    %2950 = vmatprep.mubr.bf16.mxu0 0
    %2951 = vmatmul.mubr.bf16.gmra.mxu0 %v2913
    %v2952 = vpop.f32.mrf.mxu0
    %v2953 = vadd.f32 0.0, %v2952
    %v2954 = vpop.f32.mrf.mxu0
    %v2955 = vpop.f32.mrf.mxu0
    %v2956 = vpop.f32.mrf.mxu0
    %2957 = vdwg.mxu0
    %2958 = vrot.lane.b32.xlu0 %v894, 96
    %v2959 = vpop.permute.xlu0 %2958
    %v2961 = vsel %vm2428, %v2784, 0
    %v2964 = vsel %vm2818, %v2959, 0
    %2966 = vmatprep.subr.bf16.mxu0 0
    %2967 = vmatpush1.bf16.msra.mxu0 0
    %2968 = vmatprep.subr.bf16.mxu0 0
    %2969 = vmatpush1.bf16.msra.mxu0 0
    %2970 = vmatprep.subr.bf16.mxu0 0
    %2971 = vmatpush1.bf16.msra.mxu0 0
    %2972 = vmatprep.subr.bf16.mxu0 0
    %2973 = vmatpush1.bf16.msra.mxu0 0
    %2974 = vmatprep.subr.bf16.mxu0 0
    %2975 = vmatpush1.bf16.msra.mxu0 0
    %2976 = vmatprep.subr.bf16.mxu0 0
    %2977 = vmatpush1.bf16.msra.mxu0 0
    %2978 = vmatprep.subr.bf16.mxu0 0
    %2979 = vmatpush1.bf16.msra.mxu0 0
    %2980 = vmatprep.subr.bf16.mxu0 0
    %2981 = vmatpush1.bf16.msra.mxu0 %v2964
    %2982 = vmatprep.subr.bf16.mxu0 0
    %2983 = vmatpush2.bf16.msra.mxu0 0
    %2984 = vmatprep.subr.bf16.mxu0 0
    %2985 = vmatpush2.bf16.msra.mxu0 0
    %2986 = vmatprep.subr.bf16.mxu0 0
    %2987 = vmatpush2.bf16.msra.mxu0 0
    %2988 = vmatprep.subr.bf16.mxu0 0
    %2989 = vmatpush2.bf16.msra.mxu0 0
    %2990 = vmatprep.subr.bf16.mxu0 0
    %2991 = vmatpush2.bf16.msra.mxu0 0
    %2992 = vmatprep.subr.bf16.mxu0 0
    %2993 = vmatpush2.bf16.msra.mxu0 0
    %2994 = vmatprep.subr.bf16.mxu0 0
    %2995 = vmatpush2.bf16.msra.mxu0 0
    %2996 = vmatprep.subr.bf16.mxu0 0
    %2997 = vmatpush2.bf16.msra.mxu0 0
    %2998 = vmatprep.mubr.bf16.mxu0 0
    %2999 = vmatmul.mubr.bf16.gmra.mxu0 %v2961
    %v3000 = vpop.f32.mrf.mxu0
    %v3001 = vadd.f32 0.0, %v3000
    %v3002 = vpop.f32.mrf.mxu0
    %v3003 = vpop.f32.mrf.mxu0
    %v3004 = vpop.f32.mrf.mxu0
    %3005 = vdwg.mxu0
    %3006 = vrot.lane.b32.xlu0 %v895, 96
    %v3007 = vpop.permute.xlu0 %3006
    %v3009 = vsel %vm2428, %v2785, 0
    %v3012 = vsel %vm2818, %v3007, 0
    %3014 = vmatprep.subr.bf16.mxu0 0
    %3015 = vmatpush1.bf16.msra.mxu0 0
    %3016 = vmatprep.subr.bf16.mxu0 0
    %3017 = vmatpush1.bf16.msra.mxu0 0
    %3018 = vmatprep.subr.bf16.mxu0 0
    %3019 = vmatpush1.bf16.msra.mxu0 0
    %3020 = vmatprep.subr.bf16.mxu0 0
    %3021 = vmatpush1.bf16.msra.mxu0 0
    %3022 = vmatprep.subr.bf16.mxu0 0
    %3023 = vmatpush1.bf16.msra.mxu0 0
    %3024 = vmatprep.subr.bf16.mxu0 0
    %3025 = vmatpush1.bf16.msra.mxu0 0
    %3026 = vmatprep.subr.bf16.mxu0 0
    %3027 = vmatpush1.bf16.msra.mxu0 0
    %3028 = vmatprep.subr.bf16.mxu0 0
    %3029 = vmatpush1.bf16.msra.mxu0 %v3012
    %3030 = vmatprep.subr.bf16.mxu0 0
    %3031 = vmatpush2.bf16.msra.mxu0 0
    %3032 = vmatprep.subr.bf16.mxu0 0
    %3033 = vmatpush2.bf16.msra.mxu0 0
    %3034 = vmatprep.subr.bf16.mxu0 0
    %3035 = vmatpush2.bf16.msra.mxu0 0
    %3036 = vmatprep.subr.bf16.mxu0 0
    %3037 = vmatpush2.bf16.msra.mxu0 0
    %3038 = vmatprep.subr.bf16.mxu0 0
    %3039 = vmatpush2.bf16.msra.mxu0 0
    %3040 = vmatprep.subr.bf16.mxu0 0
    %3041 = vmatpush2.bf16.msra.mxu0 0
    %3042 = vmatprep.subr.bf16.mxu0 0
    %3043 = vmatpush2.bf16.msra.mxu0 0
    %3044 = vmatprep.subr.bf16.mxu0 0
    %3045 = vmatpush2.bf16.msra.mxu0 0
    %3046 = vmatprep.mubr.bf16.mxu0 0
    %3047 = vmatmul.mubr.bf16.gmra.mxu0 %v3009
    %v3048 = vpop.f32.mrf.mxu0
    %v3049 = vadd.f32 0.0, %v3048
    %v3050 = vpop.f32.mrf.mxu0
    %v3051 = vpop.f32.mrf.mxu0
    %v3052 = vpop.f32.mrf.mxu0
    %3053 = vdwg.mxu0
    %3054 = vrot.lane.b32.xlu0 %v896, 96
    %v3055 = vpop.permute.xlu0 %3054
    %v3057 = vsel %vm2428, %v2786, 0
    %v3060 = vsel %vm2818, %v3055, 0
    %3062 = vmatprep.subr.bf16.mxu0 0
    %3063 = vmatpush1.bf16.msra.mxu0 0
    %3064 = vmatprep.subr.bf16.mxu0 0
    %3065 = vmatpush1.bf16.msra.mxu0 0
    %3066 = vmatprep.subr.bf16.mxu0 0
    %3067 = vmatpush1.bf16.msra.mxu0 0
    %3068 = vmatprep.subr.bf16.mxu0 0
    %3069 = vmatpush1.bf16.msra.mxu0 0
    %3070 = vmatprep.subr.bf16.mxu0 0
    %3071 = vmatpush1.bf16.msra.mxu0 0
    %3072 = vmatprep.subr.bf16.mxu0 0
    %3073 = vmatpush1.bf16.msra.mxu0 0
    %3074 = vmatprep.subr.bf16.mxu0 0
    %3075 = vmatpush1.bf16.msra.mxu0 0
    %3076 = vmatprep.subr.bf16.mxu0 0
    %3077 = vmatpush1.bf16.msra.mxu0 %v3060
    %3078 = vmatprep.subr.bf16.mxu0 0
    %3079 = vmatpush2.bf16.msra.mxu0 0
    %3080 = vmatprep.subr.bf16.mxu0 0
    %3081 = vmatpush2.bf16.msra.mxu0 0
    %3082 = vmatprep.subr.bf16.mxu0 0
    %3083 = vmatpush2.bf16.msra.mxu0 0
    %3084 = vmatprep.subr.bf16.mxu0 0
    %3085 = vmatpush2.bf16.msra.mxu0 0
    %3086 = vmatprep.subr.bf16.mxu0 0
    %3087 = vmatpush2.bf16.msra.mxu0 0
    %3088 = vmatprep.subr.bf16.mxu0 0
    %3089 = vmatpush2.bf16.msra.mxu0 0
    %3090 = vmatprep.subr.bf16.mxu0 0
    %3091 = vmatpush2.bf16.msra.mxu0 0
    %3092 = vmatprep.subr.bf16.mxu0 0
    %3093 = vmatpush2.bf16.msra.mxu0 0
    %3094 = vmatprep.mubr.bf16.mxu0 0
    %3095 = vmatmul.mubr.bf16.gmra.mxu0 %v3057
    %v3096 = vpop.f32.mrf.mxu0
    %v3097 = vadd.f32 0.0, %v3096
    %v3098 = vpop.f32.mrf.mxu0
    %v3099 = vpop.f32.mrf.mxu0
    %v3100 = vpop.f32.mrf.mxu0
    %3101 = vdwg.mxu0
    %3102 = vrot.lane.b32.xlu0 %v897, 96
    %v3103 = vpop.permute.xlu0 %3102
    %v3105 = vsel %vm2428, %v2787, 0
    %v3108 = vsel %vm2818, %v3103, 0
    %3110 = vmatprep.subr.bf16.mxu0 0
    %3111 = vmatpush1.bf16.msra.mxu0 0
    %3112 = vmatprep.subr.bf16.mxu0 0
    %3113 = vmatpush1.bf16.msra.mxu0 0
    %3114 = vmatprep.subr.bf16.mxu0 0
    %3115 = vmatpush1.bf16.msra.mxu0 0
    %3116 = vmatprep.subr.bf16.mxu0 0
    %3117 = vmatpush1.bf16.msra.mxu0 0
    %3118 = vmatprep.subr.bf16.mxu0 0
    %3119 = vmatpush1.bf16.msra.mxu0 0
    %3120 = vmatprep.subr.bf16.mxu0 0
    %3121 = vmatpush1.bf16.msra.mxu0 0
    %3122 = vmatprep.subr.bf16.mxu0 0
    %3123 = vmatpush1.bf16.msra.mxu0 0
    %3124 = vmatprep.subr.bf16.mxu0 0
    %3125 = vmatpush1.bf16.msra.mxu0 %v3108
    %3126 = vmatprep.subr.bf16.mxu0 0
    %3127 = vmatpush2.bf16.msra.mxu0 0
    %3128 = vmatprep.subr.bf16.mxu0 0
    %3129 = vmatpush2.bf16.msra.mxu0 0
    %3130 = vmatprep.subr.bf16.mxu0 0
    %3131 = vmatpush2.bf16.msra.mxu0 0
    %3132 = vmatprep.subr.bf16.mxu0 0
    %3133 = vmatpush2.bf16.msra.mxu0 0
    %3134 = vmatprep.subr.bf16.mxu0 0
    %3135 = vmatpush2.bf16.msra.mxu0 0
    %3136 = vmatprep.subr.bf16.mxu0 0
    %3137 = vmatpush2.bf16.msra.mxu0 0
    %3138 = vmatprep.subr.bf16.mxu0 0
    %3139 = vmatpush2.bf16.msra.mxu0 0
    %3140 = vmatprep.subr.bf16.mxu0 0
    %3141 = vmatpush2.bf16.msra.mxu0 0
    %3142 = vmatprep.mubr.bf16.mxu0 0
    %3143 = vmatmul.mubr.bf16.gmra.mxu0 %v3105
    %v3144 = vpop.f32.mrf.mxu0
    %v3145 = vadd.f32 0.0, %v3144
    %v3146 = vpop.f32.mrf.mxu0
    %v3147 = vpop.f32.mrf.mxu0
    %v3148 = vpop.f32.mrf.mxu0
    %3149 = vdwg.mxu0
    %3150 = vrot.lane.b32.xlu0 %v898, 96
    %v3151 = vpop.permute.xlu0 %3150
    %v3153 = vsel %vm2428, %v2788, 0
    %v3156 = vsel %vm2818, %v3151, 0
    %3158 = vmatprep.subr.bf16.mxu0 0
    %3159 = vmatpush1.bf16.msra.mxu0 0
    %3160 = vmatprep.subr.bf16.mxu0 0
    %3161 = vmatpush1.bf16.msra.mxu0 0
    %3162 = vmatprep.subr.bf16.mxu0 0
    %3163 = vmatpush1.bf16.msra.mxu0 0
    %3164 = vmatprep.subr.bf16.mxu0 0
    %3165 = vmatpush1.bf16.msra.mxu0 0
    %3166 = vmatprep.subr.bf16.mxu0 0
    %3167 = vmatpush1.bf16.msra.mxu0 0
    %3168 = vmatprep.subr.bf16.mxu0 0
    %3169 = vmatpush1.bf16.msra.mxu0 0
    %3170 = vmatprep.subr.bf16.mxu0 0
    %3171 = vmatpush1.bf16.msra.mxu0 0
    %3172 = vmatprep.subr.bf16.mxu0 0
    %3173 = vmatpush1.bf16.msra.mxu0 %v3156
    %3174 = vmatprep.subr.bf16.mxu0 0
    %3175 = vmatpush2.bf16.msra.mxu0 0
    %3176 = vmatprep.subr.bf16.mxu0 0
    %3177 = vmatpush2.bf16.msra.mxu0 0
    %3178 = vmatprep.subr.bf16.mxu0 0
    %3179 = vmatpush2.bf16.msra.mxu0 0
    %3180 = vmatprep.subr.bf16.mxu0 0
    %3181 = vmatpush2.bf16.msra.mxu0 0
    %3182 = vmatprep.subr.bf16.mxu0 0
    %3183 = vmatpush2.bf16.msra.mxu0 0
    %3184 = vmatprep.subr.bf16.mxu0 0
    %3185 = vmatpush2.bf16.msra.mxu0 0
    %3186 = vmatprep.subr.bf16.mxu0 0
    %3187 = vmatpush2.bf16.msra.mxu0 0
    %3188 = vmatprep.subr.bf16.mxu0 0
    %3189 = vmatpush2.bf16.msra.mxu0 0
    %3190 = vmatprep.mubr.bf16.mxu0 0
    %3191 = vmatmul.mubr.bf16.gmra.mxu0 %v3153
    %v3192 = vpop.f32.mrf.mxu0
    %v3193 = vadd.f32 0.0, %v3192
    %v3194 = vpop.f32.mrf.mxu0
    %v3195 = vpop.f32.mrf.mxu0
    %v3196 = vpop.f32.mrf.mxu0
    %3197 = vdwg.mxu0
    %3198 = vrot.lane.b32.xlu0 %v899, 96
    %v3199 = vpop.permute.xlu0 %3198
    %v3201 = vsel %vm2428, %v2789, 0
    %v3204 = vsel %vm2818, %v3199, 0
    %3206 = vmatprep.subr.bf16.mxu0 0
    %3207 = vmatpush1.bf16.msra.mxu0 0
    %3208 = vmatprep.subr.bf16.mxu0 0
    %3209 = vmatpush1.bf16.msra.mxu0 0
    %3210 = vmatprep.subr.bf16.mxu0 0
    %3211 = vmatpush1.bf16.msra.mxu0 0
    %3212 = vmatprep.subr.bf16.mxu0 0
    %3213 = vmatpush1.bf16.msra.mxu0 0
    %3214 = vmatprep.subr.bf16.mxu0 0
    %3215 = vmatpush1.bf16.msra.mxu0 0
    %3216 = vmatprep.subr.bf16.mxu0 0
    %3217 = vmatpush1.bf16.msra.mxu0 0
    %3218 = vmatprep.subr.bf16.mxu0 0
    %3219 = vmatpush1.bf16.msra.mxu0 0
    %3220 = vmatprep.subr.bf16.mxu0 0
    %3221 = vmatpush1.bf16.msra.mxu0 %v3204
    %3222 = vmatprep.subr.bf16.mxu0 0
    %3223 = vmatpush2.bf16.msra.mxu0 0
    %3224 = vmatprep.subr.bf16.mxu0 0
    %3225 = vmatpush2.bf16.msra.mxu0 0
    %3226 = vmatprep.subr.bf16.mxu0 0
    %3227 = vmatpush2.bf16.msra.mxu0 0
    %3228 = vmatprep.subr.bf16.mxu0 0
    %3229 = vmatpush2.bf16.msra.mxu0 0
    %3230 = vmatprep.subr.bf16.mxu0 0
    %3231 = vmatpush2.bf16.msra.mxu0 0
    %3232 = vmatprep.subr.bf16.mxu0 0
    %3233 = vmatpush2.bf16.msra.mxu0 0
    %3234 = vmatprep.subr.bf16.mxu0 0
    %3235 = vmatpush2.bf16.msra.mxu0 0
    %3236 = vmatprep.subr.bf16.mxu0 0
    %3237 = vmatpush2.bf16.msra.mxu0 0
    %3238 = vmatprep.mubr.bf16.mxu0 0
    %3239 = vmatmul.mubr.bf16.gmra.mxu0 %v3201
    %v3240 = vpop.f32.mrf.mxu0
    %v3241 = vadd.f32 0.0, %v3240
    %v3242 = vpop.f32.mrf.mxu0
    %v3243 = vpop.f32.mrf.mxu0
    %v3244 = vpop.f32.mrf.mxu0
    %3245 = vdwg.mxu0
    %3246 = vrot.lane.b32.xlu0 %v900, 96
    %v3247 = vpop.permute.xlu0 %3246
    %v3249 = vsel %vm2428, %v2790, 0
    %v3252 = vsel %vm2818, %v3247, 0
    %3254 = vmatprep.subr.bf16.mxu0 0
    %3255 = vmatpush1.bf16.msra.mxu0 0
    %3256 = vmatprep.subr.bf16.mxu0 0
    %3257 = vmatpush1.bf16.msra.mxu0 0
    %3258 = vmatprep.subr.bf16.mxu0 0
    %3259 = vmatpush1.bf16.msra.mxu0 0
    %3260 = vmatprep.subr.bf16.mxu0 0
    %3261 = vmatpush1.bf16.msra.mxu0 0
    %3262 = vmatprep.subr.bf16.mxu0 0
    %3263 = vmatpush1.bf16.msra.mxu0 0
    %3264 = vmatprep.subr.bf16.mxu0 0
    %3265 = vmatpush1.bf16.msra.mxu0 0
    %3266 = vmatprep.subr.bf16.mxu0 0
    %3267 = vmatpush1.bf16.msra.mxu0 0
    %3268 = vmatprep.subr.bf16.mxu0 0
    %3269 = vmatpush1.bf16.msra.mxu0 %v3252
    %3270 = vmatprep.subr.bf16.mxu0 0
    %3271 = vmatpush2.bf16.msra.mxu0 0
    %3272 = vmatprep.subr.bf16.mxu0 0
    %3273 = vmatpush2.bf16.msra.mxu0 0
    %3274 = vmatprep.subr.bf16.mxu0 0
    %3275 = vmatpush2.bf16.msra.mxu0 0
    %3276 = vmatprep.subr.bf16.mxu0 0
    %3277 = vmatpush2.bf16.msra.mxu0 0
    %3278 = vmatprep.subr.bf16.mxu0 0
    %3279 = vmatpush2.bf16.msra.mxu0 0
    %3280 = vmatprep.subr.bf16.mxu0 0
    %3281 = vmatpush2.bf16.msra.mxu0 0
    %3282 = vmatprep.subr.bf16.mxu0 0
    %3283 = vmatpush2.bf16.msra.mxu0 0
    %3284 = vmatprep.subr.bf16.mxu0 0
    %3285 = vmatpush2.bf16.msra.mxu0 0
    %3286 = vmatprep.mubr.bf16.mxu0 0
    %3287 = vmatmul.mubr.bf16.gmra.mxu0 %v3249
    %v3288 = vpop.f32.mrf.mxu0
    %v3289 = vadd.f32 0.0, %v3288
    %v3290 = vpop.f32.mrf.mxu0
    %v3291 = vpop.f32.mrf.mxu0
    %v3292 = vpop.f32.mrf.mxu0
    %3293 = vdwg.mxu0
    %3294 = vrot.lane.b32.xlu0 %v901, 96
    %v3295 = vpop.permute.xlu0 %3294
    %v3297 = vsel %vm2428, %v2791, 0
    %v3300 = vsel %vm2818, %v3295, 0
    %3302 = vmatprep.subr.bf16.mxu0 0
    %3303 = vmatpush1.bf16.msra.mxu0 0
    %3304 = vmatprep.subr.bf16.mxu0 0
    %3305 = vmatpush1.bf16.msra.mxu0 0
    %3306 = vmatprep.subr.bf16.mxu0 0
    %3307 = vmatpush1.bf16.msra.mxu0 0
    %3308 = vmatprep.subr.bf16.mxu0 0
    %3309 = vmatpush1.bf16.msra.mxu0 0
    %3310 = vmatprep.subr.bf16.mxu0 0
    %3311 = vmatpush1.bf16.msra.mxu0 0
    %3312 = vmatprep.subr.bf16.mxu0 0
    %3313 = vmatpush1.bf16.msra.mxu0 0
    %3314 = vmatprep.subr.bf16.mxu0 0
    %3315 = vmatpush1.bf16.msra.mxu0 0
    %3316 = vmatprep.subr.bf16.mxu0 0
    %3317 = vmatpush1.bf16.msra.mxu0 %v3300
    %3318 = vmatprep.subr.bf16.mxu0 0
    %3319 = vmatpush2.bf16.msra.mxu0 0
    %3320 = vmatprep.subr.bf16.mxu0 0
    %3321 = vmatpush2.bf16.msra.mxu0 0
    %3322 = vmatprep.subr.bf16.mxu0 0
    %3323 = vmatpush2.bf16.msra.mxu0 0
    %3324 = vmatprep.subr.bf16.mxu0 0
    %3325 = vmatpush2.bf16.msra.mxu0 0
    %3326 = vmatprep.subr.bf16.mxu0 0
    %3327 = vmatpush2.bf16.msra.mxu0 0
    %3328 = vmatprep.subr.bf16.mxu0 0
    %3329 = vmatpush2.bf16.msra.mxu0 0
    %3330 = vmatprep.subr.bf16.mxu0 0
    %3331 = vmatpush2.bf16.msra.mxu0 0
    %3332 = vmatprep.subr.bf16.mxu0 0
    %3333 = vmatpush2.bf16.msra.mxu0 0
    %3334 = vmatprep.mubr.bf16.mxu0 0
    %3335 = vmatmul.mubr.bf16.gmra.mxu0 %v3297
    %v3336 = vpop.f32.mrf.mxu0
    %v3337 = vadd.f32 0.0, %v3336
    %v3338 = vpop.f32.mrf.mxu0
    %v3339 = vpop.f32.mrf.mxu0
    %v3340 = vpop.f32.mrf.mxu0
    %3341 = vdwg.mxu0
    %3342 = vrot.lane.b32.xlu0 %v902, 96
    %v3343 = vpop.permute.xlu0 %3342
    %v3345 = vsel %vm2428, %v2792, 0
    %v3348 = vsel %vm2818, %v3343, 0
    %3350 = vmatprep.subr.bf16.mxu0 0
    %3351 = vmatpush1.bf16.msra.mxu0 0
    %3352 = vmatprep.subr.bf16.mxu0 0
    %3353 = vmatpush1.bf16.msra.mxu0 0
    %3354 = vmatprep.subr.bf16.mxu0 0
    %3355 = vmatpush1.bf16.msra.mxu0 0
    %3356 = vmatprep.subr.bf16.mxu0 0
    %3357 = vmatpush1.bf16.msra.mxu0 0
    %3358 = vmatprep.subr.bf16.mxu0 0
    %3359 = vmatpush1.bf16.msra.mxu0 0
    %3360 = vmatprep.subr.bf16.mxu0 0
    %3361 = vmatpush1.bf16.msra.mxu0 0
    %3362 = vmatprep.subr.bf16.mxu0 0
    %3363 = vmatpush1.bf16.msra.mxu0 0
    %3364 = vmatprep.subr.bf16.mxu0 0
    %3365 = vmatpush1.bf16.msra.mxu0 %v3348
    %3366 = vmatprep.subr.bf16.mxu0 0
    %3367 = vmatpush2.bf16.msra.mxu0 0
    %3368 = vmatprep.subr.bf16.mxu0 0
    %3369 = vmatpush2.bf16.msra.mxu0 0
    %3370 = vmatprep.subr.bf16.mxu0 0
    %3371 = vmatpush2.bf16.msra.mxu0 0
    %3372 = vmatprep.subr.bf16.mxu0 0
    %3373 = vmatpush2.bf16.msra.mxu0 0
    %3374 = vmatprep.subr.bf16.mxu0 0
    %3375 = vmatpush2.bf16.msra.mxu0 0
    %3376 = vmatprep.subr.bf16.mxu0 0
    %3377 = vmatpush2.bf16.msra.mxu0 0
    %3378 = vmatprep.subr.bf16.mxu0 0
    %3379 = vmatpush2.bf16.msra.mxu0 0
    %3380 = vmatprep.subr.bf16.mxu0 0
    %3381 = vmatpush2.bf16.msra.mxu0 0
    %3382 = vmatprep.mubr.bf16.mxu0 0
    %3383 = vmatmul.mubr.bf16.gmra.mxu0 %v3345
    %v3384 = vpop.f32.mrf.mxu0
    %v3385 = vadd.f32 0.0, %v3384
    %v3386 = vpop.f32.mrf.mxu0
    %v3387 = vpop.f32.mrf.mxu0
    %v3388 = vpop.f32.mrf.mxu0
    %3389 = vdwg.mxu0
    %3390 = vrot.lane.b32.xlu0 %v903, 96
    %v3391 = vpop.permute.xlu0 %3390
    %v3393 = vsel %vm2428, %v2793, 0
    %v3396 = vsel %vm2818, %v3391, 0
    %3398 = vmatprep.subr.bf16.mxu0 0
    %3399 = vmatpush1.bf16.msra.mxu0 0
    %3400 = vmatprep.subr.bf16.mxu0 0
    %3401 = vmatpush1.bf16.msra.mxu0 0
    %3402 = vmatprep.subr.bf16.mxu0 0
    %3403 = vmatpush1.bf16.msra.mxu0 0
    %3404 = vmatprep.subr.bf16.mxu0 0
    %3405 = vmatpush1.bf16.msra.mxu0 0
    %3406 = vmatprep.subr.bf16.mxu0 0
    %3407 = vmatpush1.bf16.msra.mxu0 0
    %3408 = vmatprep.subr.bf16.mxu0 0
    %3409 = vmatpush1.bf16.msra.mxu0 0
    %3410 = vmatprep.subr.bf16.mxu0 0
    %3411 = vmatpush1.bf16.msra.mxu0 0
    %3412 = vmatprep.subr.bf16.mxu0 0
    %3413 = vmatpush1.bf16.msra.mxu0 %v3396
    %3414 = vmatprep.subr.bf16.mxu0 0
    %3415 = vmatpush2.bf16.msra.mxu0 0
    %3416 = vmatprep.subr.bf16.mxu0 0
    %3417 = vmatpush2.bf16.msra.mxu0 0
    %3418 = vmatprep.subr.bf16.mxu0 0
    %3419 = vmatpush2.bf16.msra.mxu0 0
    %3420 = vmatprep.subr.bf16.mxu0 0
    %3421 = vmatpush2.bf16.msra.mxu0 0
    %3422 = vmatprep.subr.bf16.mxu0 0
    %3423 = vmatpush2.bf16.msra.mxu0 0
    %3424 = vmatprep.subr.bf16.mxu0 0
    %3425 = vmatpush2.bf16.msra.mxu0 0
    %3426 = vmatprep.subr.bf16.mxu0 0
    %3427 = vmatpush2.bf16.msra.mxu0 0
    %3428 = vmatprep.subr.bf16.mxu0 0
    %3429 = vmatpush2.bf16.msra.mxu0 0
    %3430 = vmatprep.mubr.bf16.mxu0 0
    %3431 = vmatmul.mubr.bf16.gmra.mxu0 %v3393
    %v3432 = vpop.f32.mrf.mxu0
    %v3433 = vadd.f32 0.0, %v3432
    %v3434 = vpop.f32.mrf.mxu0
    %v3435 = vpop.f32.mrf.mxu0
    %v3436 = vpop.f32.mrf.mxu0
    %3437 = vdwg.mxu0
    %3438 = vrot.lane.b32.xlu0 %v904, 96
    %v3439 = vpop.permute.xlu0 %3438
    %v3441 = vsel %vm2428, %v2794, 0
    %v3444 = vsel %vm2818, %v3439, 0
    %3446 = vmatprep.subr.bf16.mxu0 0
    %3447 = vmatpush1.bf16.msra.mxu0 0
    %3448 = vmatprep.subr.bf16.mxu0 0
    %3449 = vmatpush1.bf16.msra.mxu0 0
    %3450 = vmatprep.subr.bf16.mxu0 0
    %3451 = vmatpush1.bf16.msra.mxu0 0
    %3452 = vmatprep.subr.bf16.mxu0 0
    %3453 = vmatpush1.bf16.msra.mxu0 0
    %3454 = vmatprep.subr.bf16.mxu0 0
    %3455 = vmatpush1.bf16.msra.mxu0 0
    %3456 = vmatprep.subr.bf16.mxu0 0
    %3457 = vmatpush1.bf16.msra.mxu0 0
    %3458 = vmatprep.subr.bf16.mxu0 0
    %3459 = vmatpush1.bf16.msra.mxu0 0
    %3460 = vmatprep.subr.bf16.mxu0 0
    %3461 = vmatpush1.bf16.msra.mxu0 %v3444
    %3462 = vmatprep.subr.bf16.mxu0 0
    %3463 = vmatpush2.bf16.msra.mxu0 0
    %3464 = vmatprep.subr.bf16.mxu0 0
    %3465 = vmatpush2.bf16.msra.mxu0 0
    %3466 = vmatprep.subr.bf16.mxu0 0
    %3467 = vmatpush2.bf16.msra.mxu0 0
    %3468 = vmatprep.subr.bf16.mxu0 0
    %3469 = vmatpush2.bf16.msra.mxu0 0
    %3470 = vmatprep.subr.bf16.mxu0 0
    %3471 = vmatpush2.bf16.msra.mxu0 0
    %3472 = vmatprep.subr.bf16.mxu0 0
    %3473 = vmatpush2.bf16.msra.mxu0 0
    %3474 = vmatprep.subr.bf16.mxu0 0
    %3475 = vmatpush2.bf16.msra.mxu0 0
    %3476 = vmatprep.subr.bf16.mxu0 0
    %3477 = vmatpush2.bf16.msra.mxu0 0
    %3478 = vmatprep.mubr.bf16.mxu0 0
    %3479 = vmatmul.mubr.bf16.gmra.mxu0 %v3441
    %v3480 = vpop.f32.mrf.mxu0
    %v3481 = vadd.f32 0.0, %v3480
    %v3482 = vpop.f32.mrf.mxu0
    %v3483 = vpop.f32.mrf.mxu0
    %v3484 = vpop.f32.mrf.mxu0
    %3485 = vdwg.mxu0
    %3486 = vrot.lane.b32.xlu0 %v905, 96
    %v3487 = vpop.permute.xlu0 %3486
    %v3489 = vsel %vm2428, %v2795, 0
    %v3492 = vsel %vm2818, %v3487, 0
    %3494 = vmatprep.subr.bf16.mxu0 0
    %3495 = vmatpush1.bf16.msra.mxu0 0
    %3496 = vmatprep.subr.bf16.mxu0 0
    %3497 = vmatpush1.bf16.msra.mxu0 0
    %3498 = vmatprep.subr.bf16.mxu0 0
    %3499 = vmatpush1.bf16.msra.mxu0 0
    %3500 = vmatprep.subr.bf16.mxu0 0
    %3501 = vmatpush1.bf16.msra.mxu0 0
    %3502 = vmatprep.subr.bf16.mxu0 0
    %3503 = vmatpush1.bf16.msra.mxu0 0
    %3504 = vmatprep.subr.bf16.mxu0 0
    %3505 = vmatpush1.bf16.msra.mxu0 0
    %3506 = vmatprep.subr.bf16.mxu0 0
    %3507 = vmatpush1.bf16.msra.mxu0 0
    %3508 = vmatprep.subr.bf16.mxu0 0
    %3509 = vmatpush1.bf16.msra.mxu0 %v3492
    %3510 = vmatprep.subr.bf16.mxu0 0
    %3511 = vmatpush2.bf16.msra.mxu0 0
    %3512 = vmatprep.subr.bf16.mxu0 0
    %3513 = vmatpush2.bf16.msra.mxu0 0
    %3514 = vmatprep.subr.bf16.mxu0 0
    %3515 = vmatpush2.bf16.msra.mxu0 0
    %3516 = vmatprep.subr.bf16.mxu0 0
    %3517 = vmatpush2.bf16.msra.mxu0 0
    %3518 = vmatprep.subr.bf16.mxu0 0
    %3519 = vmatpush2.bf16.msra.mxu0 0
    %3520 = vmatprep.subr.bf16.mxu0 0
    %3521 = vmatpush2.bf16.msra.mxu0 0
    %3522 = vmatprep.subr.bf16.mxu0 0
    %3523 = vmatpush2.bf16.msra.mxu0 0
    %3524 = vmatprep.subr.bf16.mxu0 0
    %3525 = vmatpush2.bf16.msra.mxu0 0
    %3526 = vmatprep.mubr.bf16.mxu0 0
    %3527 = vmatmul.mubr.bf16.gmra.mxu0 %v3489
    %v3528 = vpop.f32.mrf.mxu0
    %v3529 = vadd.f32 0.0, %v3528
    %v3530 = vpop.f32.mrf.mxu0
    %v3531 = vpop.f32.mrf.mxu0
    %v3532 = vpop.f32.mrf.mxu0
    %3533 = vdwg.mxu0
    %3534 = vrot.lane.b32.xlu0 %v906, 96
    %v3535 = vpop.permute.xlu0 %3534
    %v3537 = vsel %vm2428, %v2796, 0
    %v3540 = vsel %vm2818, %v3535, 0
    %3542 = vmatprep.subr.bf16.mxu0 0
    %3543 = vmatpush1.bf16.msra.mxu0 0
    %3544 = vmatprep.subr.bf16.mxu0 0
    %3545 = vmatpush1.bf16.msra.mxu0 0
    %3546 = vmatprep.subr.bf16.mxu0 0
    %3547 = vmatpush1.bf16.msra.mxu0 0
    %3548 = vmatprep.subr.bf16.mxu0 0
    %3549 = vmatpush1.bf16.msra.mxu0 0
    %3550 = vmatprep.subr.bf16.mxu0 0
    %3551 = vmatpush1.bf16.msra.mxu0 0
    %3552 = vmatprep.subr.bf16.mxu0 0
    %3553 = vmatpush1.bf16.msra.mxu0 0
    %3554 = vmatprep.subr.bf16.mxu0 0
    %3555 = vmatpush1.bf16.msra.mxu0 0
    %3556 = vmatprep.subr.bf16.mxu0 0
    %3557 = vmatpush1.bf16.msra.mxu0 %v3540
    %3558 = vmatprep.subr.bf16.mxu0 0
    %3559 = vmatpush2.bf16.msra.mxu0 0
    %3560 = vmatprep.subr.bf16.mxu0 0
    %3561 = vmatpush2.bf16.msra.mxu0 0
    %3562 = vmatprep.subr.bf16.mxu0 0
    %3563 = vmatpush2.bf16.msra.mxu0 0
    %3564 = vmatprep.subr.bf16.mxu0 0
    %3565 = vmatpush2.bf16.msra.mxu0 0
    %3566 = vmatprep.subr.bf16.mxu0 0
    %3567 = vmatpush2.bf16.msra.mxu0 0
    %3568 = vmatprep.subr.bf16.mxu0 0
    %3569 = vmatpush2.bf16.msra.mxu0 0
    %3570 = vmatprep.subr.bf16.mxu0 0
    %3571 = vmatpush2.bf16.msra.mxu0 0
    %3572 = vmatprep.subr.bf16.mxu0 0
    %3573 = vmatpush2.bf16.msra.mxu0 0
    %3574 = vmatprep.mubr.bf16.mxu0 0
    %3575 = vmatmul.mubr.bf16.gmra.mxu0 %v3537
    %v3576 = vpop.f32.mrf.mxu0
    %v3577 = vadd.f32 0.0, %v3576
    %v3578 = vpop.f32.mrf.mxu0
    %v3579 = vpop.f32.mrf.mxu0
    %v3580 = vpop.f32.mrf.mxu0
    %3581 = vdwg.mxu0
    %3582 = vrot.lane.b32.xlu0 %v907, 96
    %v3583 = vpop.permute.xlu0 %3582
    %v3585 = vsel %vm2428, %v2797, 0
    %v3588 = vsel %vm2818, %v3583, 0
    %3590 = vmatprep.subr.bf16.mxu0 0
    %3591 = vmatpush1.bf16.msra.mxu0 0
    %3592 = vmatprep.subr.bf16.mxu0 0
    %3593 = vmatpush1.bf16.msra.mxu0 0
    %3594 = vmatprep.subr.bf16.mxu0 0
    %3595 = vmatpush1.bf16.msra.mxu0 0
    %3596 = vmatprep.subr.bf16.mxu0 0
    %3597 = vmatpush1.bf16.msra.mxu0 0
    %3598 = vmatprep.subr.bf16.mxu0 0
    %3599 = vmatpush1.bf16.msra.mxu0 0
    %3600 = vmatprep.subr.bf16.mxu0 0
    %3601 = vmatpush1.bf16.msra.mxu0 0
    %3602 = vmatprep.subr.bf16.mxu0 0
    %3603 = vmatpush1.bf16.msra.mxu0 0
    %3604 = vmatprep.subr.bf16.mxu0 0
    %3605 = vmatpush1.bf16.msra.mxu0 %v3588
    %3606 = vmatprep.subr.bf16.mxu0 0
    %3607 = vmatpush2.bf16.msra.mxu0 0
    %3608 = vmatprep.subr.bf16.mxu0 0
    %3609 = vmatpush2.bf16.msra.mxu0 0
    %3610 = vmatprep.subr.bf16.mxu0 0
    %3611 = vmatpush2.bf16.msra.mxu0 0
    %3612 = vmatprep.subr.bf16.mxu0 0
    %3613 = vmatpush2.bf16.msra.mxu0 0
    %3614 = vmatprep.subr.bf16.mxu0 0
    %3615 = vmatpush2.bf16.msra.mxu0 0
    %3616 = vmatprep.subr.bf16.mxu0 0
    %3617 = vmatpush2.bf16.msra.mxu0 0
    %3618 = vmatprep.subr.bf16.mxu0 0
    %3619 = vmatpush2.bf16.msra.mxu0 0
    %3620 = vmatprep.subr.bf16.mxu0 0
    %3621 = vmatpush2.bf16.msra.mxu0 0
    %3622 = vmatprep.mubr.bf16.mxu0 0
    %3623 = vmatmul.mubr.bf16.gmra.mxu0 %v3585
    %v3624 = vpop.f32.mrf.mxu0
    %v3625 = vadd.f32 0.0, %v3624
    %v3626 = vpop.f32.mrf.mxu0
    %v3627 = vpop.f32.mrf.mxu0
    %v3628 = vpop.f32.mrf.mxu0
    %3629 = vdwg.mxu0
    %3630 = vrot.lane.b32.xlu0 %v908, 96
    %v3631 = vpop.permute.xlu0 %3630
    %v3633 = vsel %vm2428, %v2798, 0
    %v3636 = vsel %vm2818, %v3631, 0
    %3638 = vmatprep.subr.bf16.mxu0 0
    %3639 = vmatpush1.bf16.msra.mxu0 0
    %3640 = vmatprep.subr.bf16.mxu0 0
    %3641 = vmatpush1.bf16.msra.mxu0 0
    %3642 = vmatprep.subr.bf16.mxu0 0
    %3643 = vmatpush1.bf16.msra.mxu0 0
    %3644 = vmatprep.subr.bf16.mxu0 0
    %3645 = vmatpush1.bf16.msra.mxu0 0
    %3646 = vmatprep.subr.bf16.mxu0 0
    %3647 = vmatpush1.bf16.msra.mxu0 0
    %3648 = vmatprep.subr.bf16.mxu0 0
    %3649 = vmatpush1.bf16.msra.mxu0 0
    %3650 = vmatprep.subr.bf16.mxu0 0
    %3651 = vmatpush1.bf16.msra.mxu0 0
    %3652 = vmatprep.subr.bf16.mxu0 0
    %3653 = vmatpush1.bf16.msra.mxu0 %v3636
    %3654 = vmatprep.subr.bf16.mxu0 0
    %3655 = vmatpush2.bf16.msra.mxu0 0
    %3656 = vmatprep.subr.bf16.mxu0 0
    %3657 = vmatpush2.bf16.msra.mxu0 0
    %3658 = vmatprep.subr.bf16.mxu0 0
    %3659 = vmatpush2.bf16.msra.mxu0 0
    %3660 = vmatprep.subr.bf16.mxu0 0
    %3661 = vmatpush2.bf16.msra.mxu0 0
    %3662 = vmatprep.subr.bf16.mxu0 0
    %3663 = vmatpush2.bf16.msra.mxu0 0
    %3664 = vmatprep.subr.bf16.mxu0 0
    %3665 = vmatpush2.bf16.msra.mxu0 0
    %3666 = vmatprep.subr.bf16.mxu0 0
    %3667 = vmatpush2.bf16.msra.mxu0 0
    %3668 = vmatprep.subr.bf16.mxu0 0
    %3669 = vmatpush2.bf16.msra.mxu0 0
    %3670 = vmatprep.mubr.bf16.mxu0 0
    %3671 = vmatmul.mubr.bf16.gmra.mxu0 %v3633
    %v3672 = vpop.f32.mrf.mxu0
    %v3673 = vadd.f32 0.0, %v3672
    %v3674 = vpop.f32.mrf.mxu0
    %v3675 = vpop.f32.mrf.mxu0
    %v3676 = vpop.f32.mrf.mxu0
    %3677 = vdwg.mxu0
    %3678 = vrot.lane.b32.xlu0 %v909, 96
    %v3679 = vpop.permute.xlu0 %3678
    %v3681 = vsel %vm2428, %v2799, 0
    %v3684 = vsel %vm2818, %v3679, 0
    %3686 = vmatprep.subr.bf16.mxu0 0
    %3687 = vmatpush1.bf16.msra.mxu0 0
    %3688 = vmatprep.subr.bf16.mxu0 0
    %3689 = vmatpush1.bf16.msra.mxu0 0
    %3690 = vmatprep.subr.bf16.mxu0 0
    %3691 = vmatpush1.bf16.msra.mxu0 0
    %3692 = vmatprep.subr.bf16.mxu0 0
    %3693 = vmatpush1.bf16.msra.mxu0 0
    %3694 = vmatprep.subr.bf16.mxu0 0
    %3695 = vmatpush1.bf16.msra.mxu0 0
    %3696 = vmatprep.subr.bf16.mxu0 0
    %3697 = vmatpush1.bf16.msra.mxu0 0
    %3698 = vmatprep.subr.bf16.mxu0 0
    %3699 = vmatpush1.bf16.msra.mxu0 0
    %3700 = vmatprep.subr.bf16.mxu0 0
    %3701 = vmatpush1.bf16.msra.mxu0 %v3684
    %3702 = vmatprep.subr.bf16.mxu0 0
    %3703 = vmatpush2.bf16.msra.mxu0 0
    %3704 = vmatprep.subr.bf16.mxu0 0
    %3705 = vmatpush2.bf16.msra.mxu0 0
    %3706 = vmatprep.subr.bf16.mxu0 0
    %3707 = vmatpush2.bf16.msra.mxu0 0
    %3708 = vmatprep.subr.bf16.mxu0 0
    %3709 = vmatpush2.bf16.msra.mxu0 0
    %3710 = vmatprep.subr.bf16.mxu0 0
    %3711 = vmatpush2.bf16.msra.mxu0 0
    %3712 = vmatprep.subr.bf16.mxu0 0
    %3713 = vmatpush2.bf16.msra.mxu0 0
    %3714 = vmatprep.subr.bf16.mxu0 0
    %3715 = vmatpush2.bf16.msra.mxu0 0
    %3716 = vmatprep.subr.bf16.mxu0 0
    %3717 = vmatpush2.bf16.msra.mxu0 0
    %3718 = vmatprep.mubr.bf16.mxu0 0
    %3719 = vmatmul.mubr.bf16.gmra.mxu0 %v3681
    %v3720 = vpop.f32.mrf.mxu0
    %v3721 = vadd.f32 0.0, %v3720
    %v3722 = vpop.f32.mrf.mxu0
    %v3723 = vpop.f32.mrf.mxu0
    %v3724 = vpop.f32.mrf.mxu0
    %3725 = vdwg.mxu0
    %3726 = vrot.lane.b32.xlu0 %v910, 96
    %v3727 = vpop.permute.xlu0 %3726
    %v3729 = vsel %vm2428, %v2800, 0
    %v3732 = vsel %vm2818, %v3727, 0
    %3734 = vmatprep.subr.bf16.mxu0 0
    %3735 = vmatpush1.bf16.msra.mxu0 0
    %3736 = vmatprep.subr.bf16.mxu0 0
    %3737 = vmatpush1.bf16.msra.mxu0 0
    %3738 = vmatprep.subr.bf16.mxu0 0
    %3739 = vmatpush1.bf16.msra.mxu0 0
    %3740 = vmatprep.subr.bf16.mxu0 0
    %3741 = vmatpush1.bf16.msra.mxu0 0
    %3742 = vmatprep.subr.bf16.mxu0 0
    %3743 = vmatpush1.bf16.msra.mxu0 0
    %3744 = vmatprep.subr.bf16.mxu0 0
    %3745 = vmatpush1.bf16.msra.mxu0 0
    %3746 = vmatprep.subr.bf16.mxu0 0
    %3747 = vmatpush1.bf16.msra.mxu0 0
    %3748 = vmatprep.subr.bf16.mxu0 0
    %3749 = vmatpush1.bf16.msra.mxu0 %v3732
    %3750 = vmatprep.subr.bf16.mxu0 0
    %3751 = vmatpush2.bf16.msra.mxu0 0
    %3752 = vmatprep.subr.bf16.mxu0 0
    %3753 = vmatpush2.bf16.msra.mxu0 0
    %3754 = vmatprep.subr.bf16.mxu0 0
    %3755 = vmatpush2.bf16.msra.mxu0 0
    %3756 = vmatprep.subr.bf16.mxu0 0
    %3757 = vmatpush2.bf16.msra.mxu0 0
    %3758 = vmatprep.subr.bf16.mxu0 0
    %3759 = vmatpush2.bf16.msra.mxu0 0
    %3760 = vmatprep.subr.bf16.mxu0 0
    %3761 = vmatpush2.bf16.msra.mxu0 0
    %3762 = vmatprep.subr.bf16.mxu0 0
    %3763 = vmatpush2.bf16.msra.mxu0 0
    %3764 = vmatprep.subr.bf16.mxu0 0
    %3765 = vmatpush2.bf16.msra.mxu0 0
    %3766 = vmatprep.mubr.bf16.mxu0 0
    %3767 = vmatmul.mubr.bf16.gmra.mxu0 %v3729
    %v3768 = vpop.f32.mrf.mxu0
    %v3769 = vadd.f32 0.0, %v3768
    %v3770 = vpop.f32.mrf.mxu0
    %v3771 = vpop.f32.mrf.mxu0
    %v3772 = vpop.f32.mrf.mxu0
    %3773 = vdwg.mxu0
    %3774 = vrot.lane.b32.xlu0 %v911, 96
    %v3775 = vpop.permute.xlu0 %3774
    %v3777 = vsel %vm2428, %v2801, 0
    %v3780 = vsel %vm2818, %v3775, 0
    %3782 = vmatprep.subr.bf16.mxu0 0
    %3783 = vmatpush1.bf16.msra.mxu0 0
    %3784 = vmatprep.subr.bf16.mxu0 0
    %3785 = vmatpush1.bf16.msra.mxu0 0
    %3786 = vmatprep.subr.bf16.mxu0 0
    %3787 = vmatpush1.bf16.msra.mxu0 0
    %3788 = vmatprep.subr.bf16.mxu0 0
    %3789 = vmatpush1.bf16.msra.mxu0 0
    %3790 = vmatprep.subr.bf16.mxu0 0
    %3791 = vmatpush1.bf16.msra.mxu0 0
    %3792 = vmatprep.subr.bf16.mxu0 0
    %3793 = vmatpush1.bf16.msra.mxu0 0
    %3794 = vmatprep.subr.bf16.mxu0 0
    %3795 = vmatpush1.bf16.msra.mxu0 0
    %3796 = vmatprep.subr.bf16.mxu0 0
    %3797 = vmatpush1.bf16.msra.mxu0 %v3780
    %3798 = vmatprep.subr.bf16.mxu0 0
    %3799 = vmatpush2.bf16.msra.mxu0 0
    %3800 = vmatprep.subr.bf16.mxu0 0
    %3801 = vmatpush2.bf16.msra.mxu0 0
    %3802 = vmatprep.subr.bf16.mxu0 0
    %3803 = vmatpush2.bf16.msra.mxu0 0
    %3804 = vmatprep.subr.bf16.mxu0 0
    %3805 = vmatpush2.bf16.msra.mxu0 0
    %3806 = vmatprep.subr.bf16.mxu0 0
    %3807 = vmatpush2.bf16.msra.mxu0 0
    %3808 = vmatprep.subr.bf16.mxu0 0
    %3809 = vmatpush2.bf16.msra.mxu0 0
    %3810 = vmatprep.subr.bf16.mxu0 0
    %3811 = vmatpush2.bf16.msra.mxu0 0
    %3812 = vmatprep.subr.bf16.mxu0 0
    %3813 = vmatpush2.bf16.msra.mxu0 0
    %3814 = vmatprep.mubr.bf16.mxu0 0
    %3815 = vmatmul.mubr.bf16.gmra.mxu0 %v3777
    %v3816 = vpop.f32.mrf.mxu0
    %v3817 = vadd.f32 0.0, %v3816
    %v3818 = vpop.f32.mrf.mxu0
    %v3819 = vpop.f32.mrf.mxu0
    %v3820 = vpop.f32.mrf.mxu0
    %3821 = vdwg.mxu0
    %3822 = vrot.lane.b32.xlu0 %v912, 96
    %v3823 = vpop.permute.xlu0 %3822
    %v3825 = vsel %vm2428, %v2802, 0
    %v3828 = vsel %vm2818, %v3823, 0
    %3830 = vmatprep.subr.bf16.mxu0 0
    %3831 = vmatpush1.bf16.msra.mxu0 0
    %3832 = vmatprep.subr.bf16.mxu0 0
    %3833 = vmatpush1.bf16.msra.mxu0 0
    %3834 = vmatprep.subr.bf16.mxu0 0
    %3835 = vmatpush1.bf16.msra.mxu0 0
    %3836 = vmatprep.subr.bf16.mxu0 0
    %3837 = vmatpush1.bf16.msra.mxu0 0
    %3838 = vmatprep.subr.bf16.mxu0 0
    %3839 = vmatpush1.bf16.msra.mxu0 0
    %3840 = vmatprep.subr.bf16.mxu0 0
    %3841 = vmatpush1.bf16.msra.mxu0 0
    %3842 = vmatprep.subr.bf16.mxu0 0
    %3843 = vmatpush1.bf16.msra.mxu0 0
    %3844 = vmatprep.subr.bf16.mxu0 0
    %3845 = vmatpush1.bf16.msra.mxu0 %v3828
    %3846 = vmatprep.subr.bf16.mxu0 0
    %3847 = vmatpush2.bf16.msra.mxu0 0
    %3848 = vmatprep.subr.bf16.mxu0 0
    %3849 = vmatpush2.bf16.msra.mxu0 0
    %3850 = vmatprep.subr.bf16.mxu0 0
    %3851 = vmatpush2.bf16.msra.mxu0 0
    %3852 = vmatprep.subr.bf16.mxu0 0
    %3853 = vmatpush2.bf16.msra.mxu0 0
    %3854 = vmatprep.subr.bf16.mxu0 0
    %3855 = vmatpush2.bf16.msra.mxu0 0
    %3856 = vmatprep.subr.bf16.mxu0 0
    %3857 = vmatpush2.bf16.msra.mxu0 0
    %3858 = vmatprep.subr.bf16.mxu0 0
    %3859 = vmatpush2.bf16.msra.mxu0 0
    %3860 = vmatprep.subr.bf16.mxu0 0
    %3861 = vmatpush2.bf16.msra.mxu0 0
    %3862 = vmatprep.mubr.bf16.mxu0 0
    %3863 = vmatmul.mubr.bf16.gmra.mxu0 %v3825
    %v3864 = vpop.f32.mrf.mxu0
    %v3865 = vadd.f32 0.0, %v3864
    %v3866 = vpop.f32.mrf.mxu0
    %v3867 = vpop.f32.mrf.mxu0
    %v3868 = vpop.f32.mrf.mxu0
    %3869 = vdwg.mxu0
    %3870 = vrot.lane.b32.xlu0 %v913, 96
    %v3871 = vpop.permute.xlu0 %3870
    %v3873 = vsel %vm2428, %v2803, 0
    %v3876 = vsel %vm2818, %v3871, 0
    %3878 = vmatprep.subr.bf16.mxu0 0
    %3879 = vmatpush1.bf16.msra.mxu0 0
    %3880 = vmatprep.subr.bf16.mxu0 0
    %3881 = vmatpush1.bf16.msra.mxu0 0
    %3882 = vmatprep.subr.bf16.mxu0 0
    %3883 = vmatpush1.bf16.msra.mxu0 0
    %3884 = vmatprep.subr.bf16.mxu0 0
    %3885 = vmatpush1.bf16.msra.mxu0 0
    %3886 = vmatprep.subr.bf16.mxu0 0
    %3887 = vmatpush1.bf16.msra.mxu0 0
    %3888 = vmatprep.subr.bf16.mxu0 0
    %3889 = vmatpush1.bf16.msra.mxu0 0
    %3890 = vmatprep.subr.bf16.mxu0 0
    %3891 = vmatpush1.bf16.msra.mxu0 0
    %3892 = vmatprep.subr.bf16.mxu0 0
    %3893 = vmatpush1.bf16.msra.mxu0 %v3876
    %3894 = vmatprep.subr.bf16.mxu0 0
    %3895 = vmatpush2.bf16.msra.mxu0 0
    %3896 = vmatprep.subr.bf16.mxu0 0
    %3897 = vmatpush2.bf16.msra.mxu0 0
    %3898 = vmatprep.subr.bf16.mxu0 0
    %3899 = vmatpush2.bf16.msra.mxu0 0
    %3900 = vmatprep.subr.bf16.mxu0 0
    %3901 = vmatpush2.bf16.msra.mxu0 0
    %3902 = vmatprep.subr.bf16.mxu0 0
    %3903 = vmatpush2.bf16.msra.mxu0 0
    %3904 = vmatprep.subr.bf16.mxu0 0
    %3905 = vmatpush2.bf16.msra.mxu0 0
    %3906 = vmatprep.subr.bf16.mxu0 0
    %3907 = vmatpush2.bf16.msra.mxu0 0
    %3908 = vmatprep.subr.bf16.mxu0 0
    %3909 = vmatpush2.bf16.msra.mxu0 0
    %3910 = vmatprep.mubr.bf16.mxu0 0
    %3911 = vmatmul.mubr.bf16.gmra.mxu0 %v3873
    %v3912 = vpop.f32.mrf.mxu0
    %v3913 = vadd.f32 0.0, %v3912
    %v3914 = vpop.f32.mrf.mxu0
    %v3915 = vpop.f32.mrf.mxu0
    %v3916 = vpop.f32.mrf.mxu0
    %3917 = vdwg.mxu0
    %3918 = vrot.lane.b32.xlu0 %v914, 96
    %v3919 = vpop.permute.xlu0 %3918
    %v3921 = vsel %vm2428, %v2804, 0
    %v3924 = vsel %vm2818, %v3919, 0
    %3926 = vmatprep.subr.bf16.mxu0 0
    %3927 = vmatpush1.bf16.msra.mxu0 0
    %3928 = vmatprep.subr.bf16.mxu0 0
    %3929 = vmatpush1.bf16.msra.mxu0 0
    %3930 = vmatprep.subr.bf16.mxu0 0
    %3931 = vmatpush1.bf16.msra.mxu0 0
    %3932 = vmatprep.subr.bf16.mxu0 0
    %3933 = vmatpush1.bf16.msra.mxu0 0
    %3934 = vmatprep.subr.bf16.mxu0 0
    %3935 = vmatpush1.bf16.msra.mxu0 0
    %3936 = vmatprep.subr.bf16.mxu0 0
    %3937 = vmatpush1.bf16.msra.mxu0 0
    %3938 = vmatprep.subr.bf16.mxu0 0
    %3939 = vmatpush1.bf16.msra.mxu0 0
    %3940 = vmatprep.subr.bf16.mxu0 0
    %3941 = vmatpush1.bf16.msra.mxu0 %v3924
    %3942 = vmatprep.subr.bf16.mxu0 0
    %3943 = vmatpush2.bf16.msra.mxu0 0
    %3944 = vmatprep.subr.bf16.mxu0 0
    %3945 = vmatpush2.bf16.msra.mxu0 0
    %3946 = vmatprep.subr.bf16.mxu0 0
    %3947 = vmatpush2.bf16.msra.mxu0 0
    %3948 = vmatprep.subr.bf16.mxu0 0
    %3949 = vmatpush2.bf16.msra.mxu0 0
    %3950 = vmatprep.subr.bf16.mxu0 0
    %3951 = vmatpush2.bf16.msra.mxu0 0
    %3952 = vmatprep.subr.bf16.mxu0 0
    %3953 = vmatpush2.bf16.msra.mxu0 0
    %3954 = vmatprep.subr.bf16.mxu0 0
    %3955 = vmatpush2.bf16.msra.mxu0 0
    %3956 = vmatprep.subr.bf16.mxu0 0
    %3957 = vmatpush2.bf16.msra.mxu0 0
    %3958 = vmatprep.mubr.bf16.mxu0 0
    %3959 = vmatmul.mubr.bf16.gmra.mxu0 %v3921
    %v3960 = vpop.f32.mrf.mxu0
    %v3961 = vadd.f32 0.0, %v3960
    %v3962 = vpop.f32.mrf.mxu0
    %v3963 = vpop.f32.mrf.mxu0
    %v3964 = vpop.f32.mrf.mxu0
    %3965 = vdwg.mxu0
    %3966 = vrot.lane.b32.xlu0 %v915, 96
    %v3967 = vpop.permute.xlu0 %3966
    %v3969 = vsel %vm2428, %v2805, 0
    %v3972 = vsel %vm2818, %v3967, 0
    %3974 = vmatprep.subr.bf16.mxu0 0
    %3975 = vmatpush1.bf16.msra.mxu0 0
    %3976 = vmatprep.subr.bf16.mxu0 0
    %3977 = vmatpush1.bf16.msra.mxu0 0
    %3978 = vmatprep.subr.bf16.mxu0 0
    %3979 = vmatpush1.bf16.msra.mxu0 0
    %3980 = vmatprep.subr.bf16.mxu0 0
    %3981 = vmatpush1.bf16.msra.mxu0 0
    %3982 = vmatprep.subr.bf16.mxu0 0
    %3983 = vmatpush1.bf16.msra.mxu0 0
    %3984 = vmatprep.subr.bf16.mxu0 0
    %3985 = vmatpush1.bf16.msra.mxu0 0
    %3986 = vmatprep.subr.bf16.mxu0 0
    %3987 = vmatpush1.bf16.msra.mxu0 0
    %3988 = vmatprep.subr.bf16.mxu0 0
    %3989 = vmatpush1.bf16.msra.mxu0 %v3972
    %3990 = vmatprep.subr.bf16.mxu0 0
    %3991 = vmatpush2.bf16.msra.mxu0 0
    %3992 = vmatprep.subr.bf16.mxu0 0
    %3993 = vmatpush2.bf16.msra.mxu0 0
    %3994 = vmatprep.subr.bf16.mxu0 0
    %3995 = vmatpush2.bf16.msra.mxu0 0
    %3996 = vmatprep.subr.bf16.mxu0 0
    %3997 = vmatpush2.bf16.msra.mxu0 0
    %3998 = vmatprep.subr.bf16.mxu0 0
    %3999 = vmatpush2.bf16.msra.mxu0 0
    %4000 = vmatprep.subr.bf16.mxu0 0
    %4001 = vmatpush2.bf16.msra.mxu0 0
    %4002 = vmatprep.subr.bf16.mxu0 0
    %4003 = vmatpush2.bf16.msra.mxu0 0
    %4004 = vmatprep.subr.bf16.mxu0 0
    %4005 = vmatpush2.bf16.msra.mxu0 0
    %4006 = vmatprep.mubr.bf16.mxu0 0
    %4007 = vmatmul.mubr.bf16.gmra.mxu0 %v3969
    %v4008 = vpop.f32.mrf.mxu0
    %v4009 = vadd.f32 0.0, %v4008
    %v4010 = vpop.f32.mrf.mxu0
    %v4011 = vpop.f32.mrf.mxu0
    %v4012 = vpop.f32.mrf.mxu0
    %4013 = vdwg.mxu0
    %4014 = vrot.lane.b32.xlu0 %v916, 96
    %v4015 = vpop.permute.xlu0 %4014
    %v4017 = vsel %vm2428, %v2806, 0
    %v4020 = vsel %vm2818, %v4015, 0
    %4022 = vmatprep.subr.bf16.mxu0 0
    %4023 = vmatpush1.bf16.msra.mxu0 0
    %4024 = vmatprep.subr.bf16.mxu0 0
    %4025 = vmatpush1.bf16.msra.mxu0 0
    %4026 = vmatprep.subr.bf16.mxu0 0
    %4027 = vmatpush1.bf16.msra.mxu0 0
    %4028 = vmatprep.subr.bf16.mxu0 0
    %4029 = vmatpush1.bf16.msra.mxu0 0
    %4030 = vmatprep.subr.bf16.mxu0 0
    %4031 = vmatpush1.bf16.msra.mxu0 0
    %4032 = vmatprep.subr.bf16.mxu0 0
    %4033 = vmatpush1.bf16.msra.mxu0 0
    %4034 = vmatprep.subr.bf16.mxu0 0
    %4035 = vmatpush1.bf16.msra.mxu0 0
    %4036 = vmatprep.subr.bf16.mxu0 0
    %4037 = vmatpush1.bf16.msra.mxu0 %v4020
    %4038 = vmatprep.subr.bf16.mxu0 0
    %4039 = vmatpush2.bf16.msra.mxu0 0
    %4040 = vmatprep.subr.bf16.mxu0 0
    %4041 = vmatpush2.bf16.msra.mxu0 0
    %4042 = vmatprep.subr.bf16.mxu0 0
    %4043 = vmatpush2.bf16.msra.mxu0 0
    %4044 = vmatprep.subr.bf16.mxu0 0
    %4045 = vmatpush2.bf16.msra.mxu0 0
    %4046 = vmatprep.subr.bf16.mxu0 0
    %4047 = vmatpush2.bf16.msra.mxu0 0
    %4048 = vmatprep.subr.bf16.mxu0 0
    %4049 = vmatpush2.bf16.msra.mxu0 0
    %4050 = vmatprep.subr.bf16.mxu0 0
    %4051 = vmatpush2.bf16.msra.mxu0 0
    %4052 = vmatprep.subr.bf16.mxu0 0
    %4053 = vmatpush2.bf16.msra.mxu0 0
    %4054 = vmatprep.mubr.bf16.mxu0 0
    %4055 = vmatmul.mubr.bf16.gmra.mxu0 %v4017
    %v4056 = vpop.f32.mrf.mxu0
    %v4057 = vadd.f32 0.0, %v4056
    %v4058 = vpop.f32.mrf.mxu0
    %v4059 = vpop.f32.mrf.mxu0
    %v4060 = vpop.f32.mrf.mxu0
    %4061 = vdwg.mxu0
    %4062 = vrot.lane.b32.xlu0 %v917, 96
    %v4063 = vpop.permute.xlu0 %4062
    %v4065 = vsel %vm2428, %v2807, 0
    %v4068 = vsel %vm2818, %v4063, 0
    %4070 = vmatprep.subr.bf16.mxu0 0
    %4071 = vmatpush1.bf16.msra.mxu0 0
    %4072 = vmatprep.subr.bf16.mxu0 0
    %4073 = vmatpush1.bf16.msra.mxu0 0
    %4074 = vmatprep.subr.bf16.mxu0 0
    %4075 = vmatpush1.bf16.msra.mxu0 0
    %4076 = vmatprep.subr.bf16.mxu0 0
    %4077 = vmatpush1.bf16.msra.mxu0 0
    %4078 = vmatprep.subr.bf16.mxu0 0
    %4079 = vmatpush1.bf16.msra.mxu0 0
    %4080 = vmatprep.subr.bf16.mxu0 0
    %4081 = vmatpush1.bf16.msra.mxu0 0
    %4082 = vmatprep.subr.bf16.mxu0 0
    %4083 = vmatpush1.bf16.msra.mxu0 0
    %4084 = vmatprep.subr.bf16.mxu0 0
    %4085 = vmatpush1.bf16.msra.mxu0 %v4068
    %4086 = vmatprep.subr.bf16.mxu0 0
    %4087 = vmatpush2.bf16.msra.mxu0 0
    %4088 = vmatprep.subr.bf16.mxu0 0
    %4089 = vmatpush2.bf16.msra.mxu0 0
    %4090 = vmatprep.subr.bf16.mxu0 0
    %4091 = vmatpush2.bf16.msra.mxu0 0
    %4092 = vmatprep.subr.bf16.mxu0 0
    %4093 = vmatpush2.bf16.msra.mxu0 0
    %4094 = vmatprep.subr.bf16.mxu0 0
    %4095 = vmatpush2.bf16.msra.mxu0 0
    %4096 = vmatprep.subr.bf16.mxu0 0
    %4097 = vmatpush2.bf16.msra.mxu0 0
    %4098 = vmatprep.subr.bf16.mxu0 0
    %4099 = vmatpush2.bf16.msra.mxu0 0
    %4100 = vmatprep.subr.bf16.mxu0 0
    %4101 = vmatpush2.bf16.msra.mxu0 0
    %4102 = vmatprep.mubr.bf16.mxu0 0
    %4103 = vmatmul.mubr.bf16.gmra.mxu0 %v4065
    %v4104 = vpop.f32.mrf.mxu0
    %v4105 = vadd.f32 0.0, %v4104
    %v4106 = vpop.f32.mrf.mxu0
    %v4107 = vpop.f32.mrf.mxu0
    %v4108 = vpop.f32.mrf.mxu0
    %4109 = vdwg.mxu0
    %4110 = vrot.lane.b32.xlu0 %v918, 96
    %v4111 = vpop.permute.xlu0 %4110
    %v4113 = vsel %vm2428, %v2808, 0
    %v4116 = vsel %vm2818, %v4111, 0
    %4118 = vmatprep.subr.bf16.mxu0 0
    %4119 = vmatpush1.bf16.msra.mxu0 0
    %4120 = vmatprep.subr.bf16.mxu0 0
    %4121 = vmatpush1.bf16.msra.mxu0 0
    %4122 = vmatprep.subr.bf16.mxu0 0
    %4123 = vmatpush1.bf16.msra.mxu0 0
    %4124 = vmatprep.subr.bf16.mxu0 0
    %4125 = vmatpush1.bf16.msra.mxu0 0
    %4126 = vmatprep.subr.bf16.mxu0 0
    %4127 = vmatpush1.bf16.msra.mxu0 0
    %4128 = vmatprep.subr.bf16.mxu0 0
    %4129 = vmatpush1.bf16.msra.mxu0 0
    %4130 = vmatprep.subr.bf16.mxu0 0
    %4131 = vmatpush1.bf16.msra.mxu0 0
    %4132 = vmatprep.subr.bf16.mxu0 0
    %4133 = vmatpush1.bf16.msra.mxu0 %v4116
    %4134 = vmatprep.subr.bf16.mxu0 0
    %4135 = vmatpush2.bf16.msra.mxu0 0
    %4136 = vmatprep.subr.bf16.mxu0 0
    %4137 = vmatpush2.bf16.msra.mxu0 0
    %4138 = vmatprep.subr.bf16.mxu0 0
    %4139 = vmatpush2.bf16.msra.mxu0 0
    %4140 = vmatprep.subr.bf16.mxu0 0
    %4141 = vmatpush2.bf16.msra.mxu0 0
    %4142 = vmatprep.subr.bf16.mxu0 0
    %4143 = vmatpush2.bf16.msra.mxu0 0
    %4144 = vmatprep.subr.bf16.mxu0 0
    %4145 = vmatpush2.bf16.msra.mxu0 0
    %4146 = vmatprep.subr.bf16.mxu0 0
    %4147 = vmatpush2.bf16.msra.mxu0 0
    %4148 = vmatprep.subr.bf16.mxu0 0
    %4149 = vmatpush2.bf16.msra.mxu0 0
    %4150 = vmatprep.mubr.bf16.mxu0 0
    %4151 = vmatmul.mubr.bf16.gmra.mxu0 %v4113
    %v4152 = vpop.f32.mrf.mxu0
    %v4153 = vadd.f32 0.0, %v4152
    %v4154 = vpop.f32.mrf.mxu0
    %v4155 = vpop.f32.mrf.mxu0
    %v4156 = vpop.f32.mrf.mxu0
    %4157 = vdwg.mxu0
    %4158 = vrot.lane.b32.xlu0 %v919, 96
    %v4159 = vpop.permute.xlu0 %4158
    %v4161 = vsel %vm2428, %v2809, 0
    %v4164 = vsel %vm2818, %v4159, 0
    %4166 = vmatprep.subr.bf16.mxu0 0
    %4167 = vmatpush1.bf16.msra.mxu0 0
    %4168 = vmatprep.subr.bf16.mxu0 0
    %4169 = vmatpush1.bf16.msra.mxu0 0
    %4170 = vmatprep.subr.bf16.mxu0 0
    %4171 = vmatpush1.bf16.msra.mxu0 0
    %4172 = vmatprep.subr.bf16.mxu0 0
    %4173 = vmatpush1.bf16.msra.mxu0 0
    %4174 = vmatprep.subr.bf16.mxu0 0
    %4175 = vmatpush1.bf16.msra.mxu0 0
    %4176 = vmatprep.subr.bf16.mxu0 0
    %4177 = vmatpush1.bf16.msra.mxu0 0
    %4178 = vmatprep.subr.bf16.mxu0 0
    %4179 = vmatpush1.bf16.msra.mxu0 0
    %4180 = vmatprep.subr.bf16.mxu0 0
    %4181 = vmatpush1.bf16.msra.mxu0 %v4164
    %4182 = vmatprep.subr.bf16.mxu0 0
    %4183 = vmatpush2.bf16.msra.mxu0 0
    %4184 = vmatprep.subr.bf16.mxu0 0
    %4185 = vmatpush2.bf16.msra.mxu0 0
    %4186 = vmatprep.subr.bf16.mxu0 0
    %4187 = vmatpush2.bf16.msra.mxu0 0
    %4188 = vmatprep.subr.bf16.mxu0 0
    %4189 = vmatpush2.bf16.msra.mxu0 0
    %4190 = vmatprep.subr.bf16.mxu0 0
    %4191 = vmatpush2.bf16.msra.mxu0 0
    %4192 = vmatprep.subr.bf16.mxu0 0
    %4193 = vmatpush2.bf16.msra.mxu0 0
    %4194 = vmatprep.subr.bf16.mxu0 0
    %4195 = vmatpush2.bf16.msra.mxu0 0
    %4196 = vmatprep.subr.bf16.mxu0 0
    %4197 = vmatpush2.bf16.msra.mxu0 0
    %4198 = vmatprep.mubr.bf16.mxu0 0
    %4199 = vmatmul.mubr.bf16.gmra.mxu0 %v4161
    %v4200 = vpop.f32.mrf.mxu0
    %v4201 = vadd.f32 0.0, %v4200
    %v4202 = vpop.f32.mrf.mxu0
    %v4203 = vpop.f32.mrf.mxu0
    %v4204 = vpop.f32.mrf.mxu0
    %4205 = vdwg.mxu0
    %4206 = vrot.lane.b32.xlu0 %v920, 96
    %v4207 = vpop.permute.xlu0 %4206
    %v4209 = vsel %vm2428, %v2810, 0
    %v4212 = vsel %vm2818, %v4207, 0
    %4214 = vmatprep.subr.bf16.mxu0 0
    %4215 = vmatpush1.bf16.msra.mxu0 0
    %4216 = vmatprep.subr.bf16.mxu0 0
    %4217 = vmatpush1.bf16.msra.mxu0 0
    %4218 = vmatprep.subr.bf16.mxu0 0
    %4219 = vmatpush1.bf16.msra.mxu0 0
    %4220 = vmatprep.subr.bf16.mxu0 0
    %4221 = vmatpush1.bf16.msra.mxu0 0
    %4222 = vmatprep.subr.bf16.mxu0 0
    %4223 = vmatpush1.bf16.msra.mxu0 0
    %4224 = vmatprep.subr.bf16.mxu0 0
    %4225 = vmatpush1.bf16.msra.mxu0 0
    %4226 = vmatprep.subr.bf16.mxu0 0
    %4227 = vmatpush1.bf16.msra.mxu0 0
    %4228 = vmatprep.subr.bf16.mxu0 0
    %4229 = vmatpush1.bf16.msra.mxu0 %v4212
    %4230 = vmatprep.subr.bf16.mxu0 0
    %4231 = vmatpush2.bf16.msra.mxu0 0
    %4232 = vmatprep.subr.bf16.mxu0 0
    %4233 = vmatpush2.bf16.msra.mxu0 0
    %4234 = vmatprep.subr.bf16.mxu0 0
    %4235 = vmatpush2.bf16.msra.mxu0 0
    %4236 = vmatprep.subr.bf16.mxu0 0
    %4237 = vmatpush2.bf16.msra.mxu0 0
    %4238 = vmatprep.subr.bf16.mxu0 0
    %4239 = vmatpush2.bf16.msra.mxu0 0
    %4240 = vmatprep.subr.bf16.mxu0 0
    %4241 = vmatpush2.bf16.msra.mxu0 0
    %4242 = vmatprep.subr.bf16.mxu0 0
    %4243 = vmatpush2.bf16.msra.mxu0 0
    %4244 = vmatprep.subr.bf16.mxu0 0
    %4245 = vmatpush2.bf16.msra.mxu0 0
    %4246 = vmatprep.mubr.bf16.mxu0 0
    %4247 = vmatmul.mubr.bf16.gmra.mxu0 %v4209
    %v4248 = vpop.f32.mrf.mxu0
    %v4249 = vadd.f32 0.0, %v4248
    %v4250 = vpop.f32.mrf.mxu0
    %v4251 = vpop.f32.mrf.mxu0
    %v4252 = vpop.f32.mrf.mxu0
    %4253 = vdwg.mxu0
    %4254 = vrot.lane.b32.xlu0 %v921, 96
    %v4255 = vpop.permute.xlu0 %4254
    %v4257 = vsel %vm2428, %v2811, 0
    %v4260 = vsel %vm2818, %v4255, 0
    %4262 = vmatprep.subr.bf16.mxu0 0
    %4263 = vmatpush1.bf16.msra.mxu0 0
    %4264 = vmatprep.subr.bf16.mxu0 0
    %4265 = vmatpush1.bf16.msra.mxu0 0
    %4266 = vmatprep.subr.bf16.mxu0 0
    %4267 = vmatpush1.bf16.msra.mxu0 0
    %4268 = vmatprep.subr.bf16.mxu0 0
    %4269 = vmatpush1.bf16.msra.mxu0 0
    %4270 = vmatprep.subr.bf16.mxu0 0
    %4271 = vmatpush1.bf16.msra.mxu0 0
    %4272 = vmatprep.subr.bf16.mxu0 0
    %4273 = vmatpush1.bf16.msra.mxu0 0
    %4274 = vmatprep.subr.bf16.mxu0 0
    %4275 = vmatpush1.bf16.msra.mxu0 0
    %4276 = vmatprep.subr.bf16.mxu0 0
    %4277 = vmatpush1.bf16.msra.mxu0 %v4260
    %4278 = vmatprep.subr.bf16.mxu0 0
    %4279 = vmatpush2.bf16.msra.mxu0 0
    %4280 = vmatprep.subr.bf16.mxu0 0
    %4281 = vmatpush2.bf16.msra.mxu0 0
    %4282 = vmatprep.subr.bf16.mxu0 0
    %4283 = vmatpush2.bf16.msra.mxu0 0
    %4284 = vmatprep.subr.bf16.mxu0 0
    %4285 = vmatpush2.bf16.msra.mxu0 0
    %4286 = vmatprep.subr.bf16.mxu0 0
    %4287 = vmatpush2.bf16.msra.mxu0 0
    %4288 = vmatprep.subr.bf16.mxu0 0
    %4289 = vmatpush2.bf16.msra.mxu0 0
    %4290 = vmatprep.subr.bf16.mxu0 0
    %4291 = vmatpush2.bf16.msra.mxu0 0
    %4292 = vmatprep.subr.bf16.mxu0 0
    %4293 = vmatpush2.bf16.msra.mxu0 0
    %4294 = vmatprep.mubr.bf16.mxu0 0
    %4295 = vmatmul.mubr.bf16.gmra.mxu0 %v4257
    %v4296 = vpop.f32.mrf.mxu0
    %v4297 = vadd.f32 0.0, %v4296
    %v4298 = vpop.f32.mrf.mxu0
    %v4299 = vpop.f32.mrf.mxu0
    %v4300 = vpop.f32.mrf.mxu0
    %4301 = vdwg.mxu0
    %4302 = vrot.lane.b32.xlu0 %v922, 96
    %v4303 = vpop.permute.xlu0 %4302
    %v4305 = vsel %vm2428, %v2812, 0
    %v4308 = vsel %vm2818, %v4303, 0
    %4310 = vmatprep.subr.bf16.mxu0 0
    %4311 = vmatpush1.bf16.msra.mxu0 0
    %4312 = vmatprep.subr.bf16.mxu0 0
    %4313 = vmatpush1.bf16.msra.mxu0 0
    %4314 = vmatprep.subr.bf16.mxu0 0
    %4315 = vmatpush1.bf16.msra.mxu0 0
    %4316 = vmatprep.subr.bf16.mxu0 0
    %4317 = vmatpush1.bf16.msra.mxu0 0
    %4318 = vmatprep.subr.bf16.mxu0 0
    %4319 = vmatpush1.bf16.msra.mxu0 0
    %4320 = vmatprep.subr.bf16.mxu0 0
    %4321 = vmatpush1.bf16.msra.mxu0 0
    %4322 = vmatprep.subr.bf16.mxu0 0
    %4323 = vmatpush1.bf16.msra.mxu0 0
    %4324 = vmatprep.subr.bf16.mxu0 0
    %4325 = vmatpush1.bf16.msra.mxu0 %v4308
    %4326 = vmatprep.subr.bf16.mxu0 0
    %4327 = vmatpush2.bf16.msra.mxu0 0
    %4328 = vmatprep.subr.bf16.mxu0 0
    %4329 = vmatpush2.bf16.msra.mxu0 0
    %4330 = vmatprep.subr.bf16.mxu0 0
    %4331 = vmatpush2.bf16.msra.mxu0 0
    %4332 = vmatprep.subr.bf16.mxu0 0
    %4333 = vmatpush2.bf16.msra.mxu0 0
    %4334 = vmatprep.subr.bf16.mxu0 0
    %4335 = vmatpush2.bf16.msra.mxu0 0
    %4336 = vmatprep.subr.bf16.mxu0 0
    %4337 = vmatpush2.bf16.msra.mxu0 0
    %4338 = vmatprep.subr.bf16.mxu0 0
    %4339 = vmatpush2.bf16.msra.mxu0 0
    %4340 = vmatprep.subr.bf16.mxu0 0
    %4341 = vmatpush2.bf16.msra.mxu0 0
    %4342 = vmatprep.mubr.bf16.mxu0 0
    %4343 = vmatmul.mubr.bf16.gmra.mxu0 %v4305
    %v4344 = vpop.f32.mrf.mxu0
    %v4345 = vadd.f32 0.0, %v4344
    %v4346 = vpop.f32.mrf.mxu0
    %v4347 = vpop.f32.mrf.mxu0
    %v4348 = vpop.f32.mrf.mxu0
    %4349 = vdwg.mxu0
    %4350 = vrot.lane.b32.xlu0 %v811, 112
    %v4351 = vpop.permute.xlu0 %4350
    %4352 = vrot.lane.b32.xlu0 %v891, 112
    %v4353 = vpop.permute.xlu0 %4352
    %v4355 = vsel %vm923, %v4351, 0
    %v4358 = vsel %vm923, %v4353, 0
    %4360 = vmatprep.subr.bf16.mxu0 0
    %4361 = vmatpush1.bf16.xpose.msra.mxu0 0
    %4362 = vmatprep.subr.bf16.mxu0 0
    %4363 = vmatpush1.bf16.xpose.msra.mxu0 0
    %4364 = vmatprep.subr.bf16.mxu0 0
    %4365 = vmatpush1.bf16.xpose.msra.mxu0 0
    %4366 = vmatprep.subr.bf16.mxu0 0
    %4367 = vmatpush1.bf16.xpose.msra.mxu0 0
    %4368 = vmatprep.subr.bf16.mxu0 0
    %4369 = vmatpush1.bf16.xpose.msra.mxu0 0
    %4370 = vmatprep.subr.bf16.mxu0 0
    %4371 = vmatpush1.bf16.xpose.msra.mxu0 0
    %4372 = vmatprep.subr.bf16.mxu0 0
    %4373 = vmatpush1.bf16.xpose.msra.mxu0 0
    %4374 = vmatprep.subr.bf16.mxu0 0
    %4375 = vmatpush1.bf16.xpose.msra.mxu0 %v4358
    %4376 = vmatprep.subr.bf16.mxu0 0
    %4377 = vmatpush2.bf16.xpose.msra.mxu0 0
    %4378 = vmatprep.subr.bf16.mxu0 0
    %4379 = vmatpush2.bf16.xpose.msra.mxu0 0
    %4380 = vmatprep.subr.bf16.mxu0 0
    %4381 = vmatpush2.bf16.xpose.msra.mxu0 0
    %4382 = vmatprep.subr.bf16.mxu0 0
    %4383 = vmatpush2.bf16.xpose.msra.mxu0 0
    %4384 = vmatprep.subr.bf16.mxu0 0
    %4385 = vmatpush2.bf16.xpose.msra.mxu0 0
    %4386 = vmatprep.subr.bf16.mxu0 0
    %4387 = vmatpush2.bf16.xpose.msra.mxu0 0
    %4388 = vmatprep.subr.bf16.mxu0 0
    %4389 = vmatpush2.bf16.xpose.msra.mxu0 0
    %4390 = vmatprep.subr.bf16.mxu0 0
    %4391 = vmatpush2.bf16.xpose.msra.mxu0 0
    %4392 = vmatprep.mubr.bf16.mxu0 0
    %4393 = vmatmul.mubr.bf16.gmra.mxu0 %v4355
    %v4394 = vpop.f32.mrf.mxu0
    %v4395 = vadd.f32 0.0, %v4394
    %v4396 = vpop.f32.mrf.mxu0
    %v4397 = vpop.f32.mrf.mxu0
    %v4398 = vpop.f32.mrf.mxu0
    %4399 = vdwg.mxu0
    %4400 = vrot.lane.b32.xlu0 %v812, 112
    %v4401 = vpop.permute.xlu0 %4400
    %4402 = vrot.lane.b32.xlu0 %v892, 112
    %v4403 = vpop.permute.xlu0 %4402
    %v4405 = vsel %vm923, %v4401, 0
    %v4408 = vsel %vm923, %v4403, 0
    %4410 = vmatprep.subr.bf16.mxu0 0
    %4411 = vmatpush1.bf16.xpose.msra.mxu0 0
    %4412 = vmatprep.subr.bf16.mxu0 0
    %4413 = vmatpush1.bf16.xpose.msra.mxu0 0
    %4414 = vmatprep.subr.bf16.mxu0 0
    %4415 = vmatpush1.bf16.xpose.msra.mxu0 0
    %4416 = vmatprep.subr.bf16.mxu0 0
    %4417 = vmatpush1.bf16.xpose.msra.mxu0 0
    %4418 = vmatprep.subr.bf16.mxu0 0
    %4419 = vmatpush1.bf16.xpose.msra.mxu0 0
    %4420 = vmatprep.subr.bf16.mxu0 0
    %4421 = vmatpush1.bf16.xpose.msra.mxu0 0
    %4422 = vmatprep.subr.bf16.mxu0 0
    %4423 = vmatpush1.bf16.xpose.msra.mxu0 0
    %4424 = vmatprep.subr.bf16.mxu0 0
    %4425 = vmatpush1.bf16.xpose.msra.mxu0 %v4408
    %4426 = vmatprep.subr.bf16.mxu0 0
    %4427 = vmatpush2.bf16.xpose.msra.mxu0 0
    %4428 = vmatprep.subr.bf16.mxu0 0
    %4429 = vmatpush2.bf16.xpose.msra.mxu0 0
    %4430 = vmatprep.subr.bf16.mxu0 0
    %4431 = vmatpush2.bf16.xpose.msra.mxu0 0
    %4432 = vmatprep.subr.bf16.mxu0 0
    %4433 = vmatpush2.bf16.xpose.msra.mxu0 0
    %4434 = vmatprep.subr.bf16.mxu0 0
    %4435 = vmatpush2.bf16.xpose.msra.mxu0 0
    %4436 = vmatprep.subr.bf16.mxu0 0
    %4437 = vmatpush2.bf16.xpose.msra.mxu0 0
    %4438 = vmatprep.subr.bf16.mxu0 0
    %4439 = vmatpush2.bf16.xpose.msra.mxu0 0
    %4440 = vmatprep.subr.bf16.mxu0 0
    %4441 = vmatpush2.bf16.xpose.msra.mxu0 0
    %4442 = vmatprep.mubr.bf16.mxu0 0
    %4443 = vmatmul.mubr.bf16.gmra.mxu0 %v4405
    %v4444 = vpop.f32.mrf.mxu0
    %v4445 = vadd.f32 0.0, %v4444
    %v4446 = vpop.f32.mrf.mxu0
    %v4447 = vpop.f32.mrf.mxu0
    %v4448 = vpop.f32.mrf.mxu0
    %4449 = vdwg.mxu0
    %4450 = vrot.lane.b32.xlu0 %v813, 112
    %v4451 = vpop.permute.xlu0 %4450
    %4452 = vrot.lane.b32.xlu0 %v893, 112
    %v4453 = vpop.permute.xlu0 %4452
    %v4455 = vsel %vm923, %v4451, 0
    %v4458 = vsel %vm923, %v4453, 0
    %4460 = vmatprep.subr.bf16.mxu0 0
    %4461 = vmatpush1.bf16.xpose.msra.mxu0 0
    %4462 = vmatprep.subr.bf16.mxu0 0
    %4463 = vmatpush1.bf16.xpose.msra.mxu0 0
    %4464 = vmatprep.subr.bf16.mxu0 0
    %4465 = vmatpush1.bf16.xpose.msra.mxu0 0
    %4466 = vmatprep.subr.bf16.mxu0 0
    %4467 = vmatpush1.bf16.xpose.msra.mxu0 0
    %4468 = vmatprep.subr.bf16.mxu0 0
    %4469 = vmatpush1.bf16.xpose.msra.mxu0 0
    %4470 = vmatprep.subr.bf16.mxu0 0
    %4471 = vmatpush1.bf16.xpose.msra.mxu0 0
    %4472 = vmatprep.subr.bf16.mxu0 0
    %4473 = vmatpush1.bf16.xpose.msra.mxu0 0
    %4474 = vmatprep.subr.bf16.mxu0 0
    %4475 = vmatpush1.bf16.xpose.msra.mxu0 %v4458
    %4476 = vmatprep.subr.bf16.mxu0 0
    %4477 = vmatpush2.bf16.xpose.msra.mxu0 0
    %4478 = vmatprep.subr.bf16.mxu0 0
    %4479 = vmatpush2.bf16.xpose.msra.mxu0 0
    %4480 = vmatprep.subr.bf16.mxu0 0
    %4481 = vmatpush2.bf16.xpose.msra.mxu0 0
    %4482 = vmatprep.subr.bf16.mxu0 0
    %4483 = vmatpush2.bf16.xpose.msra.mxu0 0
    %4484 = vmatprep.subr.bf16.mxu0 0
    %4485 = vmatpush2.bf16.xpose.msra.mxu0 0
    %4486 = vmatprep.subr.bf16.mxu0 0
    %4487 = vmatpush2.bf16.xpose.msra.mxu0 0
    %4488 = vmatprep.subr.bf16.mxu0 0
    %4489 = vmatpush2.bf16.xpose.msra.mxu0 0
    %4490 = vmatprep.subr.bf16.mxu0 0
    %4491 = vmatpush2.bf16.xpose.msra.mxu0 0
    %4492 = vmatprep.mubr.bf16.mxu0 0
    %4493 = vmatmul.mubr.bf16.gmra.mxu0 %v4455
    %v4494 = vpop.f32.mrf.mxu0
    %v4495 = vadd.f32 0.0, %v4494
    %v4496 = vpop.f32.mrf.mxu0
    %v4497 = vpop.f32.mrf.mxu0
    %v4498 = vpop.f32.mrf.mxu0
    %4499 = vdwg.mxu0
    %4500 = vrot.lane.b32.xlu0 %v814, 112
    %v4501 = vpop.permute.xlu0 %4500
    %4502 = vrot.lane.b32.xlu0 %v894, 112
    %v4503 = vpop.permute.xlu0 %4502
    %v4505 = vsel %vm923, %v4501, 0
    %v4508 = vsel %vm923, %v4503, 0
    %4510 = vmatprep.subr.bf16.mxu0 0
    %4511 = vmatpush1.bf16.xpose.msra.mxu0 0
    %4512 = vmatprep.subr.bf16.mxu0 0
    %4513 = vmatpush1.bf16.xpose.msra.mxu0 0
    %4514 = vmatprep.subr.bf16.mxu0 0
    %4515 = vmatpush1.bf16.xpose.msra.mxu0 0
    %4516 = vmatprep.subr.bf16.mxu0 0
    %4517 = vmatpush1.bf16.xpose.msra.mxu0 0
    %4518 = vmatprep.subr.bf16.mxu0 0
    %4519 = vmatpush1.bf16.xpose.msra.mxu0 0
    %4520 = vmatprep.subr.bf16.mxu0 0
    %4521 = vmatpush1.bf16.xpose.msra.mxu0 0
    %4522 = vmatprep.subr.bf16.mxu0 0
    %4523 = vmatpush1.bf16.xpose.msra.mxu0 0
    %4524 = vmatprep.subr.bf16.mxu0 0
    %4525 = vmatpush1.bf16.xpose.msra.mxu0 %v4508
    %4526 = vmatprep.subr.bf16.mxu0 0
    %4527 = vmatpush2.bf16.xpose.msra.mxu0 0
    %4528 = vmatprep.subr.bf16.mxu0 0
    %4529 = vmatpush2.bf16.xpose.msra.mxu0 0
    %4530 = vmatprep.subr.bf16.mxu0 0
    %4531 = vmatpush2.bf16.xpose.msra.mxu0 0
    %4532 = vmatprep.subr.bf16.mxu0 0
    %4533 = vmatpush2.bf16.xpose.msra.mxu0 0
    %4534 = vmatprep.subr.bf16.mxu0 0
    %4535 = vmatpush2.bf16.xpose.msra.mxu0 0
    %4536 = vmatprep.subr.bf16.mxu0 0
    %4537 = vmatpush2.bf16.xpose.msra.mxu0 0
    %4538 = vmatprep.subr.bf16.mxu0 0
    %4539 = vmatpush2.bf16.xpose.msra.mxu0 0
    %4540 = vmatprep.subr.bf16.mxu0 0
    %4541 = vmatpush2.bf16.xpose.msra.mxu0 0
    %4542 = vmatprep.mubr.bf16.mxu0 0
    %4543 = vmatmul.mubr.bf16.gmra.mxu0 %v4505
    %v4544 = vpop.f32.mrf.mxu0
    %v4545 = vadd.f32 0.0, %v4544
    %v4546 = vpop.f32.mrf.mxu0
    %v4547 = vpop.f32.mrf.mxu0
    %v4548 = vpop.f32.mrf.mxu0
    %4549 = vdwg.mxu0
    %4550 = vrot.lane.b32.xlu0 %v815, 112
    %v4551 = vpop.permute.xlu0 %4550
    %4552 = vrot.lane.b32.xlu0 %v895, 112
    %v4553 = vpop.permute.xlu0 %4552
    %v4555 = vsel %vm923, %v4551, 0
    %v4558 = vsel %vm923, %v4553, 0
    %4560 = vmatprep.subr.bf16.mxu0 0
    %4561 = vmatpush1.bf16.xpose.msra.mxu0 0
    %4562 = vmatprep.subr.bf16.mxu0 0
    %4563 = vmatpush1.bf16.xpose.msra.mxu0 0
    %4564 = vmatprep.subr.bf16.mxu0 0
    %4565 = vmatpush1.bf16.xpose.msra.mxu0 0
    %4566 = vmatprep.subr.bf16.mxu0 0
    %4567 = vmatpush1.bf16.xpose.msra.mxu0 0
    %4568 = vmatprep.subr.bf16.mxu0 0
    %4569 = vmatpush1.bf16.xpose.msra.mxu0 0
    %4570 = vmatprep.subr.bf16.mxu0 0
    %4571 = vmatpush1.bf16.xpose.msra.mxu0 0
    %4572 = vmatprep.subr.bf16.mxu0 0
    %4573 = vmatpush1.bf16.xpose.msra.mxu0 0
    %4574 = vmatprep.subr.bf16.mxu0 0
    %4575 = vmatpush1.bf16.xpose.msra.mxu0 %v4558
    %4576 = vmatprep.subr.bf16.mxu0 0
    %4577 = vmatpush2.bf16.xpose.msra.mxu0 0
    %4578 = vmatprep.subr.bf16.mxu0 0
    %4579 = vmatpush2.bf16.xpose.msra.mxu0 0
    %4580 = vmatprep.subr.bf16.mxu0 0
    %4581 = vmatpush2.bf16.xpose.msra.mxu0 0
    %4582 = vmatprep.subr.bf16.mxu0 0
    %4583 = vmatpush2.bf16.xpose.msra.mxu0 0
    %4584 = vmatprep.subr.bf16.mxu0 0
    %4585 = vmatpush2.bf16.xpose.msra.mxu0 0
    %4586 = vmatprep.subr.bf16.mxu0 0
    %4587 = vmatpush2.bf16.xpose.msra.mxu0 0
    %4588 = vmatprep.subr.bf16.mxu0 0
    %4589 = vmatpush2.bf16.xpose.msra.mxu0 0
    %4590 = vmatprep.subr.bf16.mxu0 0
    %4591 = vmatpush2.bf16.xpose.msra.mxu0 0
    %4592 = vmatprep.mubr.bf16.mxu0 0
    %4593 = vmatmul.mubr.bf16.gmra.mxu0 %v4555
    %v4594 = vpop.f32.mrf.mxu0
    %v4595 = vadd.f32 0.0, %v4594
    %v4596 = vpop.f32.mrf.mxu0
    %v4597 = vpop.f32.mrf.mxu0
    %v4598 = vpop.f32.mrf.mxu0
    %4599 = vdwg.mxu0
    %4600 = vrot.lane.b32.xlu0 %v816, 112
    %v4601 = vpop.permute.xlu0 %4600
    %4602 = vrot.lane.b32.xlu0 %v896, 112
    %v4603 = vpop.permute.xlu0 %4602
    %v4605 = vsel %vm923, %v4601, 0
    %v4608 = vsel %vm923, %v4603, 0
    %4610 = vmatprep.subr.bf16.mxu0 0
    %4611 = vmatpush1.bf16.xpose.msra.mxu0 0
    %4612 = vmatprep.subr.bf16.mxu0 0
    %4613 = vmatpush1.bf16.xpose.msra.mxu0 0
    %4614 = vmatprep.subr.bf16.mxu0 0
    %4615 = vmatpush1.bf16.xpose.msra.mxu0 0
    %4616 = vmatprep.subr.bf16.mxu0 0
    %4617 = vmatpush1.bf16.xpose.msra.mxu0 0
    %4618 = vmatprep.subr.bf16.mxu0 0
    %4619 = vmatpush1.bf16.xpose.msra.mxu0 0
    %4620 = vmatprep.subr.bf16.mxu0 0
    %4621 = vmatpush1.bf16.xpose.msra.mxu0 0
    %4622 = vmatprep.subr.bf16.mxu0 0
    %4623 = vmatpush1.bf16.xpose.msra.mxu0 0
    %4624 = vmatprep.subr.bf16.mxu0 0
    %4625 = vmatpush1.bf16.xpose.msra.mxu0 %v4608
    %4626 = vmatprep.subr.bf16.mxu0 0
    %4627 = vmatpush2.bf16.xpose.msra.mxu0 0
    %4628 = vmatprep.subr.bf16.mxu0 0
    %4629 = vmatpush2.bf16.xpose.msra.mxu0 0
    %4630 = vmatprep.subr.bf16.mxu0 0
    %4631 = vmatpush2.bf16.xpose.msra.mxu0 0
    %4632 = vmatprep.subr.bf16.mxu0 0
    %4633 = vmatpush2.bf16.xpose.msra.mxu0 0
    %4634 = vmatprep.subr.bf16.mxu0 0
    %4635 = vmatpush2.bf16.xpose.msra.mxu0 0
    %4636 = vmatprep.subr.bf16.mxu0 0
    %4637 = vmatpush2.bf16.xpose.msra.mxu0 0
    %4638 = vmatprep.subr.bf16.mxu0 0
    %4639 = vmatpush2.bf16.xpose.msra.mxu0 0
    %4640 = vmatprep.subr.bf16.mxu0 0
    %4641 = vmatpush2.bf16.xpose.msra.mxu0 0
    %4642 = vmatprep.mubr.bf16.mxu0 0
    %4643 = vmatmul.mubr.bf16.gmra.mxu0 %v4605
    %v4644 = vpop.f32.mrf.mxu0
    %v4645 = vadd.f32 0.0, %v4644
    %v4646 = vpop.f32.mrf.mxu0
    %v4647 = vpop.f32.mrf.mxu0
    %v4648 = vpop.f32.mrf.mxu0
    %4649 = vdwg.mxu0
    %4650 = vrot.lane.b32.xlu0 %v817, 112
    %v4651 = vpop.permute.xlu0 %4650
    %4652 = vrot.lane.b32.xlu0 %v897, 112
    %v4653 = vpop.permute.xlu0 %4652
    %v4655 = vsel %vm923, %v4651, 0
    %v4658 = vsel %vm923, %v4653, 0
    %4660 = vmatprep.subr.bf16.mxu0 0
    %4661 = vmatpush1.bf16.xpose.msra.mxu0 0
    %4662 = vmatprep.subr.bf16.mxu0 0
    %4663 = vmatpush1.bf16.xpose.msra.mxu0 0
    %4664 = vmatprep.subr.bf16.mxu0 0
    %4665 = vmatpush1.bf16.xpose.msra.mxu0 0
    %4666 = vmatprep.subr.bf16.mxu0 0
    %4667 = vmatpush1.bf16.xpose.msra.mxu0 0
    %4668 = vmatprep.subr.bf16.mxu0 0
    %4669 = vmatpush1.bf16.xpose.msra.mxu0 0
    %4670 = vmatprep.subr.bf16.mxu0 0
    %4671 = vmatpush1.bf16.xpose.msra.mxu0 0
    %4672 = vmatprep.subr.bf16.mxu0 0
    %4673 = vmatpush1.bf16.xpose.msra.mxu0 0
    %4674 = vmatprep.subr.bf16.mxu0 0
    %4675 = vmatpush1.bf16.xpose.msra.mxu0 %v4658
    %4676 = vmatprep.subr.bf16.mxu0 0
    %4677 = vmatpush2.bf16.xpose.msra.mxu0 0
    %4678 = vmatprep.subr.bf16.mxu0 0
    %4679 = vmatpush2.bf16.xpose.msra.mxu0 0
    %4680 = vmatprep.subr.bf16.mxu0 0
    %4681 = vmatpush2.bf16.xpose.msra.mxu0 0
    %4682 = vmatprep.subr.bf16.mxu0 0
    %4683 = vmatpush2.bf16.xpose.msra.mxu0 0
    %4684 = vmatprep.subr.bf16.mxu0 0
    %4685 = vmatpush2.bf16.xpose.msra.mxu0 0
    %4686 = vmatprep.subr.bf16.mxu0 0
    %4687 = vmatpush2.bf16.xpose.msra.mxu0 0
    %4688 = vmatprep.subr.bf16.mxu0 0
    %4689 = vmatpush2.bf16.xpose.msra.mxu0 0
    %4690 = vmatprep.subr.bf16.mxu0 0
    %4691 = vmatpush2.bf16.xpose.msra.mxu0 0
    %4692 = vmatprep.mubr.bf16.mxu0 0
    %4693 = vmatmul.mubr.bf16.gmra.mxu0 %v4655
    %v4694 = vpop.f32.mrf.mxu0
    %v4695 = vadd.f32 0.0, %v4694
    %v4696 = vpop.f32.mrf.mxu0
    %v4697 = vpop.f32.mrf.mxu0
    %v4698 = vpop.f32.mrf.mxu0
    %4699 = vdwg.mxu0
    %4700 = vrot.lane.b32.xlu0 %v818, 112
    %v4701 = vpop.permute.xlu0 %4700
    %4702 = vrot.lane.b32.xlu0 %v898, 112
    %v4703 = vpop.permute.xlu0 %4702
    %v4705 = vsel %vm923, %v4701, 0
    %v4708 = vsel %vm923, %v4703, 0
    %4710 = vmatprep.subr.bf16.mxu0 0
    %4711 = vmatpush1.bf16.xpose.msra.mxu0 0
    %4712 = vmatprep.subr.bf16.mxu0 0
    %4713 = vmatpush1.bf16.xpose.msra.mxu0 0
    %4714 = vmatprep.subr.bf16.mxu0 0
    %4715 = vmatpush1.bf16.xpose.msra.mxu0 0
    %4716 = vmatprep.subr.bf16.mxu0 0
    %4717 = vmatpush1.bf16.xpose.msra.mxu0 0
    %4718 = vmatprep.subr.bf16.mxu0 0
    %4719 = vmatpush1.bf16.xpose.msra.mxu0 0
    %4720 = vmatprep.subr.bf16.mxu0 0
    %4721 = vmatpush1.bf16.xpose.msra.mxu0 0
    %4722 = vmatprep.subr.bf16.mxu0 0
    %4723 = vmatpush1.bf16.xpose.msra.mxu0 0
    %4724 = vmatprep.subr.bf16.mxu0 0
    %4725 = vmatpush1.bf16.xpose.msra.mxu0 %v4708
    %4726 = vmatprep.subr.bf16.mxu0 0
    %4727 = vmatpush2.bf16.xpose.msra.mxu0 0
    %4728 = vmatprep.subr.bf16.mxu0 0
    %4729 = vmatpush2.bf16.xpose.msra.mxu0 0
    %4730 = vmatprep.subr.bf16.mxu0 0
    %4731 = vmatpush2.bf16.xpose.msra.mxu0 0
    %4732 = vmatprep.subr.bf16.mxu0 0
    %4733 = vmatpush2.bf16.xpose.msra.mxu0 0
    %4734 = vmatprep.subr.bf16.mxu0 0
    %4735 = vmatpush2.bf16.xpose.msra.mxu0 0
    %4736 = vmatprep.subr.bf16.mxu0 0
    %4737 = vmatpush2.bf16.xpose.msra.mxu0 0
    %4738 = vmatprep.subr.bf16.mxu0 0
    %4739 = vmatpush2.bf16.xpose.msra.mxu0 0
    %4740 = vmatprep.subr.bf16.mxu0 0
    %4741 = vmatpush2.bf16.xpose.msra.mxu0 0
    %4742 = vmatprep.mubr.bf16.mxu0 0
    %4743 = vmatmul.mubr.bf16.gmra.mxu0 %v4705
    %v4744 = vpop.f32.mrf.mxu0
    %v4745 = vadd.f32 0.0, %v4744
    %v4746 = vpop.f32.mrf.mxu0
    %v4747 = vpop.f32.mrf.mxu0
    %v4748 = vpop.f32.mrf.mxu0
    %4749 = vdwg.mxu0
    %4750 = vrot.lane.b32.xlu0 %v819, 112
    %v4751 = vpop.permute.xlu0 %4750
    %4752 = vrot.lane.b32.xlu0 %v899, 112
    %v4753 = vpop.permute.xlu0 %4752
    %v4755 = vsel %vm923, %v4751, 0
    %v4758 = vsel %vm923, %v4753, 0
    %4760 = vmatprep.subr.bf16.mxu0 0
    %4761 = vmatpush1.bf16.xpose.msra.mxu0 0
    %4762 = vmatprep.subr.bf16.mxu0 0
    %4763 = vmatpush1.bf16.xpose.msra.mxu0 0
    %4764 = vmatprep.subr.bf16.mxu0 0
    %4765 = vmatpush1.bf16.xpose.msra.mxu0 0
    %4766 = vmatprep.subr.bf16.mxu0 0
    %4767 = vmatpush1.bf16.xpose.msra.mxu0 0
    %4768 = vmatprep.subr.bf16.mxu0 0
    %4769 = vmatpush1.bf16.xpose.msra.mxu0 0
    %4770 = vmatprep.subr.bf16.mxu0 0
    %4771 = vmatpush1.bf16.xpose.msra.mxu0 0
    %4772 = vmatprep.subr.bf16.mxu0 0
    %4773 = vmatpush1.bf16.xpose.msra.mxu0 0
    %4774 = vmatprep.subr.bf16.mxu0 0
    %4775 = vmatpush1.bf16.xpose.msra.mxu0 %v4758
    %4776 = vmatprep.subr.bf16.mxu0 0
    %4777 = vmatpush2.bf16.xpose.msra.mxu0 0
    %4778 = vmatprep.subr.bf16.mxu0 0
    %4779 = vmatpush2.bf16.xpose.msra.mxu0 0
    %4780 = vmatprep.subr.bf16.mxu0 0
    %4781 = vmatpush2.bf16.xpose.msra.mxu0 0
    %4782 = vmatprep.subr.bf16.mxu0 0
    %4783 = vmatpush2.bf16.xpose.msra.mxu0 0
    %4784 = vmatprep.subr.bf16.mxu0 0
    %4785 = vmatpush2.bf16.xpose.msra.mxu0 0
    %4786 = vmatprep.subr.bf16.mxu0 0
    %4787 = vmatpush2.bf16.xpose.msra.mxu0 0
    %4788 = vmatprep.subr.bf16.mxu0 0
    %4789 = vmatpush2.bf16.xpose.msra.mxu0 0
    %4790 = vmatprep.subr.bf16.mxu0 0
    %4791 = vmatpush2.bf16.xpose.msra.mxu0 0
    %4792 = vmatprep.mubr.bf16.mxu0 0
    %4793 = vmatmul.mubr.bf16.gmra.mxu0 %v4755
    %v4794 = vpop.f32.mrf.mxu0
    %v4795 = vadd.f32 0.0, %v4794
    %v4796 = vpop.f32.mrf.mxu0
    %v4797 = vpop.f32.mrf.mxu0
    %v4798 = vpop.f32.mrf.mxu0
    %4799 = vdwg.mxu0
    %4800 = vrot.lane.b32.xlu0 %v820, 112
    %v4801 = vpop.permute.xlu0 %4800
    %4802 = vrot.lane.b32.xlu0 %v900, 112
    %v4803 = vpop.permute.xlu0 %4802
    %v4805 = vsel %vm923, %v4801, 0
    %v4808 = vsel %vm923, %v4803, 0
    %4810 = vmatprep.subr.bf16.mxu0 0
    %4811 = vmatpush1.bf16.xpose.msra.mxu0 0
    %4812 = vmatprep.subr.bf16.mxu0 0
    %4813 = vmatpush1.bf16.xpose.msra.mxu0 0
    %4814 = vmatprep.subr.bf16.mxu0 0
    %4815 = vmatpush1.bf16.xpose.msra.mxu0 0
    %4816 = vmatprep.subr.bf16.mxu0 0
    %4817 = vmatpush1.bf16.xpose.msra.mxu0 0
    %4818 = vmatprep.subr.bf16.mxu0 0
    %4819 = vmatpush1.bf16.xpose.msra.mxu0 0
    %4820 = vmatprep.subr.bf16.mxu0 0
    %4821 = vmatpush1.bf16.xpose.msra.mxu0 0
    %4822 = vmatprep.subr.bf16.mxu0 0
    %4823 = vmatpush1.bf16.xpose.msra.mxu0 0
    %4824 = vmatprep.subr.bf16.mxu0 0
    %4825 = vmatpush1.bf16.xpose.msra.mxu0 %v4808
    %4826 = vmatprep.subr.bf16.mxu0 0
    %4827 = vmatpush2.bf16.xpose.msra.mxu0 0
    %4828 = vmatprep.subr.bf16.mxu0 0
    %4829 = vmatpush2.bf16.xpose.msra.mxu0 0
    %4830 = vmatprep.subr.bf16.mxu0 0
    %4831 = vmatpush2.bf16.xpose.msra.mxu0 0
    %4832 = vmatprep.subr.bf16.mxu0 0
    %4833 = vmatpush2.bf16.xpose.msra.mxu0 0
    %4834 = vmatprep.subr.bf16.mxu0 0
    %4835 = vmatpush2.bf16.xpose.msra.mxu0 0
    %4836 = vmatprep.subr.bf16.mxu0 0
    %4837 = vmatpush2.bf16.xpose.msra.mxu0 0
    %4838 = vmatprep.subr.bf16.mxu0 0
    %4839 = vmatpush2.bf16.xpose.msra.mxu0 0
    %4840 = vmatprep.subr.bf16.mxu0 0
    %4841 = vmatpush2.bf16.xpose.msra.mxu0 0
    %4842 = vmatprep.mubr.bf16.mxu0 0
    %4843 = vmatmul.mubr.bf16.gmra.mxu0 %v4805
    %v4844 = vpop.f32.mrf.mxu0
    %v4845 = vadd.f32 0.0, %v4844
    %v4846 = vpop.f32.mrf.mxu0
    %v4847 = vpop.f32.mrf.mxu0
    %v4848 = vpop.f32.mrf.mxu0
    %4849 = vdwg.mxu0
    %4850 = vrot.lane.b32.xlu0 %v821, 112
    %v4851 = vpop.permute.xlu0 %4850
    %4852 = vrot.lane.b32.xlu0 %v901, 112
    %v4853 = vpop.permute.xlu0 %4852
    %v4855 = vsel %vm923, %v4851, 0
    %v4858 = vsel %vm923, %v4853, 0
    %4860 = vmatprep.subr.bf16.mxu0 0
    %4861 = vmatpush1.bf16.xpose.msra.mxu0 0
    %4862 = vmatprep.subr.bf16.mxu0 0
    %4863 = vmatpush1.bf16.xpose.msra.mxu0 0
    %4864 = vmatprep.subr.bf16.mxu0 0
    %4865 = vmatpush1.bf16.xpose.msra.mxu0 0
    %4866 = vmatprep.subr.bf16.mxu0 0
    %4867 = vmatpush1.bf16.xpose.msra.mxu0 0
    %4868 = vmatprep.subr.bf16.mxu0 0
    %4869 = vmatpush1.bf16.xpose.msra.mxu0 0
    %4870 = vmatprep.subr.bf16.mxu0 0
    %4871 = vmatpush1.bf16.xpose.msra.mxu0 0
    %4872 = vmatprep.subr.bf16.mxu0 0
    %4873 = vmatpush1.bf16.xpose.msra.mxu0 0
    %4874 = vmatprep.subr.bf16.mxu0 0
    %4875 = vmatpush1.bf16.xpose.msra.mxu0 %v4858
    %4876 = vmatprep.subr.bf16.mxu0 0
    %4877 = vmatpush2.bf16.xpose.msra.mxu0 0
    %4878 = vmatprep.subr.bf16.mxu0 0
    %4879 = vmatpush2.bf16.xpose.msra.mxu0 0
    %4880 = vmatprep.subr.bf16.mxu0 0
    %4881 = vmatpush2.bf16.xpose.msra.mxu0 0
    %4882 = vmatprep.subr.bf16.mxu0 0
    %4883 = vmatpush2.bf16.xpose.msra.mxu0 0
    %4884 = vmatprep.subr.bf16.mxu0 0
    %4885 = vmatpush2.bf16.xpose.msra.mxu0 0
    %4886 = vmatprep.subr.bf16.mxu0 0
    %4887 = vmatpush2.bf16.xpose.msra.mxu0 0
    %4888 = vmatprep.subr.bf16.mxu0 0
    %4889 = vmatpush2.bf16.xpose.msra.mxu0 0
    %4890 = vmatprep.subr.bf16.mxu0 0
    %4891 = vmatpush2.bf16.xpose.msra.mxu0 0
    %4892 = vmatprep.mubr.bf16.mxu0 0
    %4893 = vmatmul.mubr.bf16.gmra.mxu0 %v4855
    %v4894 = vpop.f32.mrf.mxu0
    %v4895 = vadd.f32 0.0, %v4894
    %v4896 = vpop.f32.mrf.mxu0
    %v4897 = vpop.f32.mrf.mxu0
    %v4898 = vpop.f32.mrf.mxu0
    %4899 = vdwg.mxu0
    %4900 = vrot.lane.b32.xlu0 %v822, 112
    %v4901 = vpop.permute.xlu0 %4900
    %4902 = vrot.lane.b32.xlu0 %v902, 112
    %v4903 = vpop.permute.xlu0 %4902
    %v4905 = vsel %vm923, %v4901, 0
    %v4908 = vsel %vm923, %v4903, 0
    %4910 = vmatprep.subr.bf16.mxu0 0
    %4911 = vmatpush1.bf16.xpose.msra.mxu0 0
    %4912 = vmatprep.subr.bf16.mxu0 0
    %4913 = vmatpush1.bf16.xpose.msra.mxu0 0
    %4914 = vmatprep.subr.bf16.mxu0 0
    %4915 = vmatpush1.bf16.xpose.msra.mxu0 0
    %4916 = vmatprep.subr.bf16.mxu0 0
    %4917 = vmatpush1.bf16.xpose.msra.mxu0 0
    %4918 = vmatprep.subr.bf16.mxu0 0
    %4919 = vmatpush1.bf16.xpose.msra.mxu0 0
    %4920 = vmatprep.subr.bf16.mxu0 0
    %4921 = vmatpush1.bf16.xpose.msra.mxu0 0
    %4922 = vmatprep.subr.bf16.mxu0 0
    %4923 = vmatpush1.bf16.xpose.msra.mxu0 0
    %4924 = vmatprep.subr.bf16.mxu0 0
    %4925 = vmatpush1.bf16.xpose.msra.mxu0 %v4908
    %4926 = vmatprep.subr.bf16.mxu0 0
    %4927 = vmatpush2.bf16.xpose.msra.mxu0 0
    %4928 = vmatprep.subr.bf16.mxu0 0
    %4929 = vmatpush2.bf16.xpose.msra.mxu0 0
    %4930 = vmatprep.subr.bf16.mxu0 0
    %4931 = vmatpush2.bf16.xpose.msra.mxu0 0
    %4932 = vmatprep.subr.bf16.mxu0 0
    %4933 = vmatpush2.bf16.xpose.msra.mxu0 0
    %4934 = vmatprep.subr.bf16.mxu0 0
    %4935 = vmatpush2.bf16.xpose.msra.mxu0 0
    %4936 = vmatprep.subr.bf16.mxu0 0
    %4937 = vmatpush2.bf16.xpose.msra.mxu0 0
    %4938 = vmatprep.subr.bf16.mxu0 0
    %4939 = vmatpush2.bf16.xpose.msra.mxu0 0
    %4940 = vmatprep.subr.bf16.mxu0 0
    %4941 = vmatpush2.bf16.xpose.msra.mxu0 0
    %4942 = vmatprep.mubr.bf16.mxu0 0
    %4943 = vmatmul.mubr.bf16.gmra.mxu0 %v4905
    %v4944 = vpop.f32.mrf.mxu0
    %v4945 = vadd.f32 0.0, %v4944
    %v4946 = vpop.f32.mrf.mxu0
    %v4947 = vpop.f32.mrf.mxu0
    %v4948 = vpop.f32.mrf.mxu0
    %4949 = vdwg.mxu0
    %4950 = vrot.lane.b32.xlu0 %v823, 112
    %v4951 = vpop.permute.xlu0 %4950
    %4952 = vrot.lane.b32.xlu0 %v903, 112
    %v4953 = vpop.permute.xlu0 %4952
    %v4955 = vsel %vm923, %v4951, 0
    %v4958 = vsel %vm923, %v4953, 0
    %4960 = vmatprep.subr.bf16.mxu0 0
    %4961 = vmatpush1.bf16.xpose.msra.mxu0 0
    %4962 = vmatprep.subr.bf16.mxu0 0
    %4963 = vmatpush1.bf16.xpose.msra.mxu0 0
    %4964 = vmatprep.subr.bf16.mxu0 0
    %4965 = vmatpush1.bf16.xpose.msra.mxu0 0
    %4966 = vmatprep.subr.bf16.mxu0 0
    %4967 = vmatpush1.bf16.xpose.msra.mxu0 0
    %4968 = vmatprep.subr.bf16.mxu0 0
    %4969 = vmatpush1.bf16.xpose.msra.mxu0 0
    %4970 = vmatprep.subr.bf16.mxu0 0
    %4971 = vmatpush1.bf16.xpose.msra.mxu0 0
    %4972 = vmatprep.subr.bf16.mxu0 0
    %4973 = vmatpush1.bf16.xpose.msra.mxu0 0
    %4974 = vmatprep.subr.bf16.mxu0 0
    %4975 = vmatpush1.bf16.xpose.msra.mxu0 %v4958
    %4976 = vmatprep.subr.bf16.mxu0 0
    %4977 = vmatpush2.bf16.xpose.msra.mxu0 0
    %4978 = vmatprep.subr.bf16.mxu0 0
    %4979 = vmatpush2.bf16.xpose.msra.mxu0 0
    %4980 = vmatprep.subr.bf16.mxu0 0
    %4981 = vmatpush2.bf16.xpose.msra.mxu0 0
    %4982 = vmatprep.subr.bf16.mxu0 0
    %4983 = vmatpush2.bf16.xpose.msra.mxu0 0
    %4984 = vmatprep.subr.bf16.mxu0 0
    %4985 = vmatpush2.bf16.xpose.msra.mxu0 0
    %4986 = vmatprep.subr.bf16.mxu0 0
    %4987 = vmatpush2.bf16.xpose.msra.mxu0 0
    %4988 = vmatprep.subr.bf16.mxu0 0
    %4989 = vmatpush2.bf16.xpose.msra.mxu0 0
    %4990 = vmatprep.subr.bf16.mxu0 0
    %4991 = vmatpush2.bf16.xpose.msra.mxu0 0
    %4992 = vmatprep.mubr.bf16.mxu0 0
    %4993 = vmatmul.mubr.bf16.gmra.mxu0 %v4955
    %v4994 = vpop.f32.mrf.mxu0
    %v4995 = vadd.f32 0.0, %v4994
    %v4996 = vpop.f32.mrf.mxu0
    %v4997 = vpop.f32.mrf.mxu0
    %v4998 = vpop.f32.mrf.mxu0
    %4999 = vdwg.mxu0
    %5000 = vrot.lane.b32.xlu0 %v824, 112
    %v5001 = vpop.permute.xlu0 %5000
    %5002 = vrot.lane.b32.xlu0 %v904, 112
    %v5003 = vpop.permute.xlu0 %5002
    %v5005 = vsel %vm923, %v5001, 0
    %v5008 = vsel %vm923, %v5003, 0
    %5010 = vmatprep.subr.bf16.mxu0 0
    %5011 = vmatpush1.bf16.xpose.msra.mxu0 0
    %5012 = vmatprep.subr.bf16.mxu0 0
    %5013 = vmatpush1.bf16.xpose.msra.mxu0 0
    %5014 = vmatprep.subr.bf16.mxu0 0
    %5015 = vmatpush1.bf16.xpose.msra.mxu0 0
    %5016 = vmatprep.subr.bf16.mxu0 0
    %5017 = vmatpush1.bf16.xpose.msra.mxu0 0
    %5018 = vmatprep.subr.bf16.mxu0 0
    %5019 = vmatpush1.bf16.xpose.msra.mxu0 0
    %5020 = vmatprep.subr.bf16.mxu0 0
    %5021 = vmatpush1.bf16.xpose.msra.mxu0 0
    %5022 = vmatprep.subr.bf16.mxu0 0
    %5023 = vmatpush1.bf16.xpose.msra.mxu0 0
    %5024 = vmatprep.subr.bf16.mxu0 0
    %5025 = vmatpush1.bf16.xpose.msra.mxu0 %v5008
    %5026 = vmatprep.subr.bf16.mxu0 0
    %5027 = vmatpush2.bf16.xpose.msra.mxu0 0
    %5028 = vmatprep.subr.bf16.mxu0 0
    %5029 = vmatpush2.bf16.xpose.msra.mxu0 0
    %5030 = vmatprep.subr.bf16.mxu0 0
    %5031 = vmatpush2.bf16.xpose.msra.mxu0 0
    %5032 = vmatprep.subr.bf16.mxu0 0
    %5033 = vmatpush2.bf16.xpose.msra.mxu0 0
    %5034 = vmatprep.subr.bf16.mxu0 0
    %5035 = vmatpush2.bf16.xpose.msra.mxu0 0
    %5036 = vmatprep.subr.bf16.mxu0 0
    %5037 = vmatpush2.bf16.xpose.msra.mxu0 0
    %5038 = vmatprep.subr.bf16.mxu0 0
    %5039 = vmatpush2.bf16.xpose.msra.mxu0 0
    %5040 = vmatprep.subr.bf16.mxu0 0
    %5041 = vmatpush2.bf16.xpose.msra.mxu0 0
    %5042 = vmatprep.mubr.bf16.mxu0 0
    %5043 = vmatmul.mubr.bf16.gmra.mxu0 %v5005
    %v5044 = vpop.f32.mrf.mxu0
    %v5045 = vadd.f32 0.0, %v5044
    %v5046 = vpop.f32.mrf.mxu0
    %v5047 = vpop.f32.mrf.mxu0
    %v5048 = vpop.f32.mrf.mxu0
    %5049 = vdwg.mxu0
    %5050 = vrot.lane.b32.xlu0 %v825, 112
    %v5051 = vpop.permute.xlu0 %5050
    %5052 = vrot.lane.b32.xlu0 %v905, 112
    %v5053 = vpop.permute.xlu0 %5052
    %v5055 = vsel %vm923, %v5051, 0
    %v5058 = vsel %vm923, %v5053, 0
    %5060 = vmatprep.subr.bf16.mxu0 0
    %5061 = vmatpush1.bf16.xpose.msra.mxu0 0
    %5062 = vmatprep.subr.bf16.mxu0 0
    %5063 = vmatpush1.bf16.xpose.msra.mxu0 0
    %5064 = vmatprep.subr.bf16.mxu0 0
    %5065 = vmatpush1.bf16.xpose.msra.mxu0 0
    %5066 = vmatprep.subr.bf16.mxu0 0
    %5067 = vmatpush1.bf16.xpose.msra.mxu0 0
    %5068 = vmatprep.subr.bf16.mxu0 0
    %5069 = vmatpush1.bf16.xpose.msra.mxu0 0
    %5070 = vmatprep.subr.bf16.mxu0 0
    %5071 = vmatpush1.bf16.xpose.msra.mxu0 0
    %5072 = vmatprep.subr.bf16.mxu0 0
    %5073 = vmatpush1.bf16.xpose.msra.mxu0 0
    %5074 = vmatprep.subr.bf16.mxu0 0
    %5075 = vmatpush1.bf16.xpose.msra.mxu0 %v5058
    %5076 = vmatprep.subr.bf16.mxu0 0
    %5077 = vmatpush2.bf16.xpose.msra.mxu0 0
    %5078 = vmatprep.subr.bf16.mxu0 0
    %5079 = vmatpush2.bf16.xpose.msra.mxu0 0
    %5080 = vmatprep.subr.bf16.mxu0 0
    %5081 = vmatpush2.bf16.xpose.msra.mxu0 0
    %5082 = vmatprep.subr.bf16.mxu0 0
    %5083 = vmatpush2.bf16.xpose.msra.mxu0 0
    %5084 = vmatprep.subr.bf16.mxu0 0
    %5085 = vmatpush2.bf16.xpose.msra.mxu0 0
    %5086 = vmatprep.subr.bf16.mxu0 0
    %5087 = vmatpush2.bf16.xpose.msra.mxu0 0
    %5088 = vmatprep.subr.bf16.mxu0 0
    %5089 = vmatpush2.bf16.xpose.msra.mxu0 0
    %5090 = vmatprep.subr.bf16.mxu0 0
    %5091 = vmatpush2.bf16.xpose.msra.mxu0 0
    %5092 = vmatprep.mubr.bf16.mxu0 0
    %5093 = vmatmul.mubr.bf16.gmra.mxu0 %v5055
    %v5094 = vpop.f32.mrf.mxu0
    %v5095 = vadd.f32 0.0, %v5094
    %v5096 = vpop.f32.mrf.mxu0
    %v5097 = vpop.f32.mrf.mxu0
    %v5098 = vpop.f32.mrf.mxu0
    %5099 = vdwg.mxu0
    %5100 = vrot.lane.b32.xlu0 %v826, 112
    %v5101 = vpop.permute.xlu0 %5100
    %5102 = vrot.lane.b32.xlu0 %v906, 112
    %v5103 = vpop.permute.xlu0 %5102
    %v5105 = vsel %vm923, %v5101, 0
    %v5108 = vsel %vm923, %v5103, 0
    %5110 = vmatprep.subr.bf16.mxu0 0
    %5111 = vmatpush1.bf16.xpose.msra.mxu0 0
    %5112 = vmatprep.subr.bf16.mxu0 0
    %5113 = vmatpush1.bf16.xpose.msra.mxu0 0
    %5114 = vmatprep.subr.bf16.mxu0 0
    %5115 = vmatpush1.bf16.xpose.msra.mxu0 0
    %5116 = vmatprep.subr.bf16.mxu0 0
    %5117 = vmatpush1.bf16.xpose.msra.mxu0 0
    %5118 = vmatprep.subr.bf16.mxu0 0
    %5119 = vmatpush1.bf16.xpose.msra.mxu0 0
    %5120 = vmatprep.subr.bf16.mxu0 0
    %5121 = vmatpush1.bf16.xpose.msra.mxu0 0
    %5122 = vmatprep.subr.bf16.mxu0 0
    %5123 = vmatpush1.bf16.xpose.msra.mxu0 0
    %5124 = vmatprep.subr.bf16.mxu0 0
    %5125 = vmatpush1.bf16.xpose.msra.mxu0 %v5108
    %5126 = vmatprep.subr.bf16.mxu0 0
    %5127 = vmatpush2.bf16.xpose.msra.mxu0 0
    %5128 = vmatprep.subr.bf16.mxu0 0
    %5129 = vmatpush2.bf16.xpose.msra.mxu0 0
    %5130 = vmatprep.subr.bf16.mxu0 0
    %5131 = vmatpush2.bf16.xpose.msra.mxu0 0
    %5132 = vmatprep.subr.bf16.mxu0 0
    %5133 = vmatpush2.bf16.xpose.msra.mxu0 0
    %5134 = vmatprep.subr.bf16.mxu0 0
    %5135 = vmatpush2.bf16.xpose.msra.mxu0 0
    %5136 = vmatprep.subr.bf16.mxu0 0
    %5137 = vmatpush2.bf16.xpose.msra.mxu0 0
    %5138 = vmatprep.subr.bf16.mxu0 0
    %5139 = vmatpush2.bf16.xpose.msra.mxu0 0
    %5140 = vmatprep.subr.bf16.mxu0 0
    %5141 = vmatpush2.bf16.xpose.msra.mxu0 0
    %5142 = vmatprep.mubr.bf16.mxu0 0
    %5143 = vmatmul.mubr.bf16.gmra.mxu0 %v5105
    %v5144 = vpop.f32.mrf.mxu0
    %v5145 = vadd.f32 0.0, %v5144
    %v5146 = vpop.f32.mrf.mxu0
    %v5147 = vpop.f32.mrf.mxu0
    %v5148 = vpop.f32.mrf.mxu0
    %5149 = vdwg.mxu0
    %5150 = vrot.lane.b32.xlu0 %v827, 112
    %v5151 = vpop.permute.xlu0 %5150
    %5152 = vrot.lane.b32.xlu0 %v907, 112
    %v5153 = vpop.permute.xlu0 %5152
    %v5155 = vsel %vm923, %v5151, 0
    %v5158 = vsel %vm923, %v5153, 0
    %5160 = vmatprep.subr.bf16.mxu0 0
    %5161 = vmatpush1.bf16.xpose.msra.mxu0 0
    %5162 = vmatprep.subr.bf16.mxu0 0
    %5163 = vmatpush1.bf16.xpose.msra.mxu0 0
    %5164 = vmatprep.subr.bf16.mxu0 0
    %5165 = vmatpush1.bf16.xpose.msra.mxu0 0
    %5166 = vmatprep.subr.bf16.mxu0 0
    %5167 = vmatpush1.bf16.xpose.msra.mxu0 0
    %5168 = vmatprep.subr.bf16.mxu0 0
    %5169 = vmatpush1.bf16.xpose.msra.mxu0 0
    %5170 = vmatprep.subr.bf16.mxu0 0
    %5171 = vmatpush1.bf16.xpose.msra.mxu0 0
    %5172 = vmatprep.subr.bf16.mxu0 0
    %5173 = vmatpush1.bf16.xpose.msra.mxu0 0
    %5174 = vmatprep.subr.bf16.mxu0 0
    %5175 = vmatpush1.bf16.xpose.msra.mxu0 %v5158
    %5176 = vmatprep.subr.bf16.mxu0 0
    %5177 = vmatpush2.bf16.xpose.msra.mxu0 0
    %5178 = vmatprep.subr.bf16.mxu0 0
    %5179 = vmatpush2.bf16.xpose.msra.mxu0 0
    %5180 = vmatprep.subr.bf16.mxu0 0
    %5181 = vmatpush2.bf16.xpose.msra.mxu0 0
    %5182 = vmatprep.subr.bf16.mxu0 0
    %5183 = vmatpush2.bf16.xpose.msra.mxu0 0
    %5184 = vmatprep.subr.bf16.mxu0 0
    %5185 = vmatpush2.bf16.xpose.msra.mxu0 0
    %5186 = vmatprep.subr.bf16.mxu0 0
    %5187 = vmatpush2.bf16.xpose.msra.mxu0 0
    %5188 = vmatprep.subr.bf16.mxu0 0
    %5189 = vmatpush2.bf16.xpose.msra.mxu0 0
    %5190 = vmatprep.subr.bf16.mxu0 0
    %5191 = vmatpush2.bf16.xpose.msra.mxu0 0
    %5192 = vmatprep.mubr.bf16.mxu0 0
    %5193 = vmatmul.mubr.bf16.gmra.mxu0 %v5155
    %v5194 = vpop.f32.mrf.mxu0
    %v5195 = vadd.f32 0.0, %v5194
    %v5196 = vpop.f32.mrf.mxu0
    %v5197 = vpop.f32.mrf.mxu0
    %v5198 = vpop.f32.mrf.mxu0
    %5199 = vdwg.mxu0
    %5200 = vrot.lane.b32.xlu0 %v828, 112
    %v5201 = vpop.permute.xlu0 %5200
    %5202 = vrot.lane.b32.xlu0 %v908, 112
    %v5203 = vpop.permute.xlu0 %5202
    %v5205 = vsel %vm923, %v5201, 0
    %v5208 = vsel %vm923, %v5203, 0
    %5210 = vmatprep.subr.bf16.mxu0 0
    %5211 = vmatpush1.bf16.xpose.msra.mxu0 0
    %5212 = vmatprep.subr.bf16.mxu0 0
    %5213 = vmatpush1.bf16.xpose.msra.mxu0 0
    %5214 = vmatprep.subr.bf16.mxu0 0
    %5215 = vmatpush1.bf16.xpose.msra.mxu0 0
    %5216 = vmatprep.subr.bf16.mxu0 0
    %5217 = vmatpush1.bf16.xpose.msra.mxu0 0
    %5218 = vmatprep.subr.bf16.mxu0 0
    %5219 = vmatpush1.bf16.xpose.msra.mxu0 0
    %5220 = vmatprep.subr.bf16.mxu0 0
    %5221 = vmatpush1.bf16.xpose.msra.mxu0 0
    %5222 = vmatprep.subr.bf16.mxu0 0
    %5223 = vmatpush1.bf16.xpose.msra.mxu0 0
    %5224 = vmatprep.subr.bf16.mxu0 0
    %5225 = vmatpush1.bf16.xpose.msra.mxu0 %v5208
    %5226 = vmatprep.subr.bf16.mxu0 0
    %5227 = vmatpush2.bf16.xpose.msra.mxu0 0
    %5228 = vmatprep.subr.bf16.mxu0 0
    %5229 = vmatpush2.bf16.xpose.msra.mxu0 0
    %5230 = vmatprep.subr.bf16.mxu0 0
    %5231 = vmatpush2.bf16.xpose.msra.mxu0 0
    %5232 = vmatprep.subr.bf16.mxu0 0
    %5233 = vmatpush2.bf16.xpose.msra.mxu0 0
    %5234 = vmatprep.subr.bf16.mxu0 0
    %5235 = vmatpush2.bf16.xpose.msra.mxu0 0
    %5236 = vmatprep.subr.bf16.mxu0 0
    %5237 = vmatpush2.bf16.xpose.msra.mxu0 0
    %5238 = vmatprep.subr.bf16.mxu0 0
    %5239 = vmatpush2.bf16.xpose.msra.mxu0 0
    %5240 = vmatprep.subr.bf16.mxu0 0
    %5241 = vmatpush2.bf16.xpose.msra.mxu0 0
    %5242 = vmatprep.mubr.bf16.mxu0 0
    %5243 = vmatmul.mubr.bf16.gmra.mxu0 %v5205
    %v5244 = vpop.f32.mrf.mxu0
    %v5245 = vadd.f32 0.0, %v5244
    %v5246 = vpop.f32.mrf.mxu0
    %v5247 = vpop.f32.mrf.mxu0
    %v5248 = vpop.f32.mrf.mxu0
    %5249 = vdwg.mxu0
    %5250 = vrot.lane.b32.xlu0 %v829, 112
    %v5251 = vpop.permute.xlu0 %5250
    %5252 = vrot.lane.b32.xlu0 %v909, 112
    %v5253 = vpop.permute.xlu0 %5252
    %v5255 = vsel %vm923, %v5251, 0
    %v5258 = vsel %vm923, %v5253, 0
    %5260 = vmatprep.subr.bf16.mxu0 0
    %5261 = vmatpush1.bf16.xpose.msra.mxu0 0
    %5262 = vmatprep.subr.bf16.mxu0 0
    %5263 = vmatpush1.bf16.xpose.msra.mxu0 0
    %5264 = vmatprep.subr.bf16.mxu0 0
    %5265 = vmatpush1.bf16.xpose.msra.mxu0 0
    %5266 = vmatprep.subr.bf16.mxu0 0
    %5267 = vmatpush1.bf16.xpose.msra.mxu0 0
    %5268 = vmatprep.subr.bf16.mxu0 0
    %5269 = vmatpush1.bf16.xpose.msra.mxu0 0
    %5270 = vmatprep.subr.bf16.mxu0 0
    %5271 = vmatpush1.bf16.xpose.msra.mxu0 0
    %5272 = vmatprep.subr.bf16.mxu0 0
    %5273 = vmatpush1.bf16.xpose.msra.mxu0 0
    %5274 = vmatprep.subr.bf16.mxu0 0
    %5275 = vmatpush1.bf16.xpose.msra.mxu0 %v5258
    %5276 = vmatprep.subr.bf16.mxu0 0
    %5277 = vmatpush2.bf16.xpose.msra.mxu0 0
    %5278 = vmatprep.subr.bf16.mxu0 0
    %5279 = vmatpush2.bf16.xpose.msra.mxu0 0
    %5280 = vmatprep.subr.bf16.mxu0 0
    %5281 = vmatpush2.bf16.xpose.msra.mxu0 0
    %5282 = vmatprep.subr.bf16.mxu0 0
    %5283 = vmatpush2.bf16.xpose.msra.mxu0 0
    %5284 = vmatprep.subr.bf16.mxu0 0
    %5285 = vmatpush2.bf16.xpose.msra.mxu0 0
    %5286 = vmatprep.subr.bf16.mxu0 0
    %5287 = vmatpush2.bf16.xpose.msra.mxu0 0
    %5288 = vmatprep.subr.bf16.mxu0 0
    %5289 = vmatpush2.bf16.xpose.msra.mxu0 0
    %5290 = vmatprep.subr.bf16.mxu0 0
    %5291 = vmatpush2.bf16.xpose.msra.mxu0 0
    %5292 = vmatprep.mubr.bf16.mxu0 0
    %5293 = vmatmul.mubr.bf16.gmra.mxu0 %v5255
    %v5294 = vpop.f32.mrf.mxu0
    %v5295 = vadd.f32 0.0, %v5294
    %v5296 = vpop.f32.mrf.mxu0
    %v5297 = vpop.f32.mrf.mxu0
    %v5298 = vpop.f32.mrf.mxu0
    %5299 = vdwg.mxu0
    %5300 = vrot.lane.b32.xlu0 %v830, 112
    %v5301 = vpop.permute.xlu0 %5300
    %5302 = vrot.lane.b32.xlu0 %v910, 112
    %v5303 = vpop.permute.xlu0 %5302
    %v5305 = vsel %vm923, %v5301, 0
    %v5308 = vsel %vm923, %v5303, 0
    %5310 = vmatprep.subr.bf16.mxu0 0
    %5311 = vmatpush1.bf16.xpose.msra.mxu0 0
    %5312 = vmatprep.subr.bf16.mxu0 0
    %5313 = vmatpush1.bf16.xpose.msra.mxu0 0
    %5314 = vmatprep.subr.bf16.mxu0 0
    %5315 = vmatpush1.bf16.xpose.msra.mxu0 0
    %5316 = vmatprep.subr.bf16.mxu0 0
    %5317 = vmatpush1.bf16.xpose.msra.mxu0 0
    %5318 = vmatprep.subr.bf16.mxu0 0
    %5319 = vmatpush1.bf16.xpose.msra.mxu0 0
    %5320 = vmatprep.subr.bf16.mxu0 0
    %5321 = vmatpush1.bf16.xpose.msra.mxu0 0
    %5322 = vmatprep.subr.bf16.mxu0 0
    %5323 = vmatpush1.bf16.xpose.msra.mxu0 0
    %5324 = vmatprep.subr.bf16.mxu0 0
    %5325 = vmatpush1.bf16.xpose.msra.mxu0 %v5308
    %5326 = vmatprep.subr.bf16.mxu0 0
    %5327 = vmatpush2.bf16.xpose.msra.mxu0 0
    %5328 = vmatprep.subr.bf16.mxu0 0
    %5329 = vmatpush2.bf16.xpose.msra.mxu0 0
    %5330 = vmatprep.subr.bf16.mxu0 0
    %5331 = vmatpush2.bf16.xpose.msra.mxu0 0
    %5332 = vmatprep.subr.bf16.mxu0 0
    %5333 = vmatpush2.bf16.xpose.msra.mxu0 0
    %5334 = vmatprep.subr.bf16.mxu0 0
    %5335 = vmatpush2.bf16.xpose.msra.mxu0 0
    %5336 = vmatprep.subr.bf16.mxu0 0
    %5337 = vmatpush2.bf16.xpose.msra.mxu0 0
    %5338 = vmatprep.subr.bf16.mxu0 0
    %5339 = vmatpush2.bf16.xpose.msra.mxu0 0
    %5340 = vmatprep.subr.bf16.mxu0 0
    %5341 = vmatpush2.bf16.xpose.msra.mxu0 0
    %5342 = vmatprep.mubr.bf16.mxu0 0
    %5343 = vmatmul.mubr.bf16.gmra.mxu0 %v5305
    %v5344 = vpop.f32.mrf.mxu0
    %v5345 = vadd.f32 0.0, %v5344
    %v5346 = vpop.f32.mrf.mxu0
    %v5347 = vpop.f32.mrf.mxu0
    %v5348 = vpop.f32.mrf.mxu0
    %5349 = vdwg.mxu0
    %5350 = vrot.lane.b32.xlu0 %v831, 112
    %v5351 = vpop.permute.xlu0 %5350
    %5352 = vrot.lane.b32.xlu0 %v911, 112
    %v5353 = vpop.permute.xlu0 %5352
    %v5355 = vsel %vm923, %v5351, 0
    %v5358 = vsel %vm923, %v5353, 0
    %5360 = vmatprep.subr.bf16.mxu0 0
    %5361 = vmatpush1.bf16.xpose.msra.mxu0 0
    %5362 = vmatprep.subr.bf16.mxu0 0
    %5363 = vmatpush1.bf16.xpose.msra.mxu0 0
    %5364 = vmatprep.subr.bf16.mxu0 0
    %5365 = vmatpush1.bf16.xpose.msra.mxu0 0
    %5366 = vmatprep.subr.bf16.mxu0 0
    %5367 = vmatpush1.bf16.xpose.msra.mxu0 0
    %5368 = vmatprep.subr.bf16.mxu0 0
    %5369 = vmatpush1.bf16.xpose.msra.mxu0 0
    %5370 = vmatprep.subr.bf16.mxu0 0
    %5371 = vmatpush1.bf16.xpose.msra.mxu0 0
    %5372 = vmatprep.subr.bf16.mxu0 0
    %5373 = vmatpush1.bf16.xpose.msra.mxu0 0
    %5374 = vmatprep.subr.bf16.mxu0 0
    %5375 = vmatpush1.bf16.xpose.msra.mxu0 %v5358
    %5376 = vmatprep.subr.bf16.mxu0 0
    %5377 = vmatpush2.bf16.xpose.msra.mxu0 0
    %5378 = vmatprep.subr.bf16.mxu0 0
    %5379 = vmatpush2.bf16.xpose.msra.mxu0 0
    %5380 = vmatprep.subr.bf16.mxu0 0
    %5381 = vmatpush2.bf16.xpose.msra.mxu0 0
    %5382 = vmatprep.subr.bf16.mxu0 0
    %5383 = vmatpush2.bf16.xpose.msra.mxu0 0
    %5384 = vmatprep.subr.bf16.mxu0 0
    %5385 = vmatpush2.bf16.xpose.msra.mxu0 0
    %5386 = vmatprep.subr.bf16.mxu0 0
    %5387 = vmatpush2.bf16.xpose.msra.mxu0 0
    %5388 = vmatprep.subr.bf16.mxu0 0
    %5389 = vmatpush2.bf16.xpose.msra.mxu0 0
    %5390 = vmatprep.subr.bf16.mxu0 0
    %5391 = vmatpush2.bf16.xpose.msra.mxu0 0
    %5392 = vmatprep.mubr.bf16.mxu0 0
    %5393 = vmatmul.mubr.bf16.gmra.mxu0 %v5355
    %v5394 = vpop.f32.mrf.mxu0
    %v5395 = vadd.f32 0.0, %v5394
    %v5396 = vpop.f32.mrf.mxu0
    %v5397 = vpop.f32.mrf.mxu0
    %v5398 = vpop.f32.mrf.mxu0
    %5399 = vdwg.mxu0
    %5400 = vrot.lane.b32.xlu0 %v832, 112
    %v5401 = vpop.permute.xlu0 %5400
    %5402 = vrot.lane.b32.xlu0 %v912, 112
    %v5403 = vpop.permute.xlu0 %5402
    %v5405 = vsel %vm923, %v5401, 0
    %v5408 = vsel %vm923, %v5403, 0
    %5410 = vmatprep.subr.bf16.mxu0 0
    %5411 = vmatpush1.bf16.xpose.msra.mxu0 0
    %5412 = vmatprep.subr.bf16.mxu0 0
    %5413 = vmatpush1.bf16.xpose.msra.mxu0 0
    %5414 = vmatprep.subr.bf16.mxu0 0
    %5415 = vmatpush1.bf16.xpose.msra.mxu0 0
    %5416 = vmatprep.subr.bf16.mxu0 0
    %5417 = vmatpush1.bf16.xpose.msra.mxu0 0
    %5418 = vmatprep.subr.bf16.mxu0 0
    %5419 = vmatpush1.bf16.xpose.msra.mxu0 0
    %5420 = vmatprep.subr.bf16.mxu0 0
    %5421 = vmatpush1.bf16.xpose.msra.mxu0 0
    %5422 = vmatprep.subr.bf16.mxu0 0
    %5423 = vmatpush1.bf16.xpose.msra.mxu0 0
    %5424 = vmatprep.subr.bf16.mxu0 0
    %5425 = vmatpush1.bf16.xpose.msra.mxu0 %v5408
    %5426 = vmatprep.subr.bf16.mxu0 0
    %5427 = vmatpush2.bf16.xpose.msra.mxu0 0
    %5428 = vmatprep.subr.bf16.mxu0 0
    %5429 = vmatpush2.bf16.xpose.msra.mxu0 0
    %5430 = vmatprep.subr.bf16.mxu0 0
    %5431 = vmatpush2.bf16.xpose.msra.mxu0 0
    %5432 = vmatprep.subr.bf16.mxu0 0
    %5433 = vmatpush2.bf16.xpose.msra.mxu0 0
    %5434 = vmatprep.subr.bf16.mxu0 0
    %5435 = vmatpush2.bf16.xpose.msra.mxu0 0
    %5436 = vmatprep.subr.bf16.mxu0 0
    %5437 = vmatpush2.bf16.xpose.msra.mxu0 0
    %5438 = vmatprep.subr.bf16.mxu0 0
    %5439 = vmatpush2.bf16.xpose.msra.mxu0 0
    %5440 = vmatprep.subr.bf16.mxu0 0
    %5441 = vmatpush2.bf16.xpose.msra.mxu0 0
    %5442 = vmatprep.mubr.bf16.mxu0 0
    %5443 = vmatmul.mubr.bf16.gmra.mxu0 %v5405
    %v5444 = vpop.f32.mrf.mxu0
    %v5445 = vadd.f32 0.0, %v5444
    %v5446 = vpop.f32.mrf.mxu0
    %v5447 = vpop.f32.mrf.mxu0
    %v5448 = vpop.f32.mrf.mxu0
    %5449 = vdwg.mxu0
    %5450 = vrot.lane.b32.xlu0 %v833, 112
    %v5451 = vpop.permute.xlu0 %5450
    %5452 = vrot.lane.b32.xlu0 %v913, 112
    %v5453 = vpop.permute.xlu0 %5452
    %v5455 = vsel %vm923, %v5451, 0
    %v5458 = vsel %vm923, %v5453, 0
    %5460 = vmatprep.subr.bf16.mxu0 0
    %5461 = vmatpush1.bf16.xpose.msra.mxu0 0
    %5462 = vmatprep.subr.bf16.mxu0 0
    %5463 = vmatpush1.bf16.xpose.msra.mxu0 0
    %5464 = vmatprep.subr.bf16.mxu0 0
    %5465 = vmatpush1.bf16.xpose.msra.mxu0 0
    %5466 = vmatprep.subr.bf16.mxu0 0
    %5467 = vmatpush1.bf16.xpose.msra.mxu0 0
    %5468 = vmatprep.subr.bf16.mxu0 0
    %5469 = vmatpush1.bf16.xpose.msra.mxu0 0
    %5470 = vmatprep.subr.bf16.mxu0 0
    %5471 = vmatpush1.bf16.xpose.msra.mxu0 0
    %5472 = vmatprep.subr.bf16.mxu0 0
    %5473 = vmatpush1.bf16.xpose.msra.mxu0 0
    %5474 = vmatprep.subr.bf16.mxu0 0
    %5475 = vmatpush1.bf16.xpose.msra.mxu0 %v5458
    %5476 = vmatprep.subr.bf16.mxu0 0
    %5477 = vmatpush2.bf16.xpose.msra.mxu0 0
    %5478 = vmatprep.subr.bf16.mxu0 0
    %5479 = vmatpush2.bf16.xpose.msra.mxu0 0
    %5480 = vmatprep.subr.bf16.mxu0 0
    %5481 = vmatpush2.bf16.xpose.msra.mxu0 0
    %5482 = vmatprep.subr.bf16.mxu0 0
    %5483 = vmatpush2.bf16.xpose.msra.mxu0 0
    %5484 = vmatprep.subr.bf16.mxu0 0
    %5485 = vmatpush2.bf16.xpose.msra.mxu0 0
    %5486 = vmatprep.subr.bf16.mxu0 0
    %5487 = vmatpush2.bf16.xpose.msra.mxu0 0
    %5488 = vmatprep.subr.bf16.mxu0 0
    %5489 = vmatpush2.bf16.xpose.msra.mxu0 0
    %5490 = vmatprep.subr.bf16.mxu0 0
    %5491 = vmatpush2.bf16.xpose.msra.mxu0 0
    %5492 = vmatprep.mubr.bf16.mxu0 0
    %5493 = vmatmul.mubr.bf16.gmra.mxu0 %v5455
    %v5494 = vpop.f32.mrf.mxu0
    %v5495 = vadd.f32 0.0, %v5494
    %v5496 = vpop.f32.mrf.mxu0
    %v5497 = vpop.f32.mrf.mxu0
    %v5498 = vpop.f32.mrf.mxu0
    %5499 = vdwg.mxu0
    %5500 = vrot.lane.b32.xlu0 %v834, 112
    %v5501 = vpop.permute.xlu0 %5500
    %5502 = vrot.lane.b32.xlu0 %v914, 112
    %v5503 = vpop.permute.xlu0 %5502
    %v5505 = vsel %vm923, %v5501, 0
    %v5508 = vsel %vm923, %v5503, 0
    %5510 = vmatprep.subr.bf16.mxu0 0
    %5511 = vmatpush1.bf16.xpose.msra.mxu0 0
    %5512 = vmatprep.subr.bf16.mxu0 0
    %5513 = vmatpush1.bf16.xpose.msra.mxu0 0
    %5514 = vmatprep.subr.bf16.mxu0 0
    %5515 = vmatpush1.bf16.xpose.msra.mxu0 0
    %5516 = vmatprep.subr.bf16.mxu0 0
    %5517 = vmatpush1.bf16.xpose.msra.mxu0 0
    %5518 = vmatprep.subr.bf16.mxu0 0
    %5519 = vmatpush1.bf16.xpose.msra.mxu0 0
    %5520 = vmatprep.subr.bf16.mxu0 0
    %5521 = vmatpush1.bf16.xpose.msra.mxu0 0
    %5522 = vmatprep.subr.bf16.mxu0 0
    %5523 = vmatpush1.bf16.xpose.msra.mxu0 0
    %5524 = vmatprep.subr.bf16.mxu0 0
    %5525 = vmatpush1.bf16.xpose.msra.mxu0 %v5508
    %5526 = vmatprep.subr.bf16.mxu0 0
    %5527 = vmatpush2.bf16.xpose.msra.mxu0 0
    %5528 = vmatprep.subr.bf16.mxu0 0
    %5529 = vmatpush2.bf16.xpose.msra.mxu0 0
    %5530 = vmatprep.subr.bf16.mxu0 0
    %5531 = vmatpush2.bf16.xpose.msra.mxu0 0
    %5532 = vmatprep.subr.bf16.mxu0 0
    %5533 = vmatpush2.bf16.xpose.msra.mxu0 0
    %5534 = vmatprep.subr.bf16.mxu0 0
    %5535 = vmatpush2.bf16.xpose.msra.mxu0 0
    %5536 = vmatprep.subr.bf16.mxu0 0
    %5537 = vmatpush2.bf16.xpose.msra.mxu0 0
    %5538 = vmatprep.subr.bf16.mxu0 0
    %5539 = vmatpush2.bf16.xpose.msra.mxu0 0
    %5540 = vmatprep.subr.bf16.mxu0 0
    %5541 = vmatpush2.bf16.xpose.msra.mxu0 0
    %5542 = vmatprep.mubr.bf16.mxu0 0
    %5543 = vmatmul.mubr.bf16.gmra.mxu0 %v5505
    %v5544 = vpop.f32.mrf.mxu0
    %v5545 = vadd.f32 0.0, %v5544
    %v5546 = vpop.f32.mrf.mxu0
    %v5547 = vpop.f32.mrf.mxu0
    %v5548 = vpop.f32.mrf.mxu0
    %5549 = vdwg.mxu0
    %5550 = vrot.lane.b32.xlu0 %v835, 112
    %v5551 = vpop.permute.xlu0 %5550
    %5552 = vrot.lane.b32.xlu0 %v915, 112
    %v5553 = vpop.permute.xlu0 %5552
    %v5555 = vsel %vm923, %v5551, 0
    %v5558 = vsel %vm923, %v5553, 0
    %5560 = vmatprep.subr.bf16.mxu0 0
    %5561 = vmatpush1.bf16.xpose.msra.mxu0 0
    %5562 = vmatprep.subr.bf16.mxu0 0
    %5563 = vmatpush1.bf16.xpose.msra.mxu0 0
    %5564 = vmatprep.subr.bf16.mxu0 0
    %5565 = vmatpush1.bf16.xpose.msra.mxu0 0
    %5566 = vmatprep.subr.bf16.mxu0 0
    %5567 = vmatpush1.bf16.xpose.msra.mxu0 0
    %5568 = vmatprep.subr.bf16.mxu0 0
    %5569 = vmatpush1.bf16.xpose.msra.mxu0 0
    %5570 = vmatprep.subr.bf16.mxu0 0
    %5571 = vmatpush1.bf16.xpose.msra.mxu0 0
    %5572 = vmatprep.subr.bf16.mxu0 0
    %5573 = vmatpush1.bf16.xpose.msra.mxu0 0
    %5574 = vmatprep.subr.bf16.mxu0 0
    %5575 = vmatpush1.bf16.xpose.msra.mxu0 %v5558
    %5576 = vmatprep.subr.bf16.mxu0 0
    %5577 = vmatpush2.bf16.xpose.msra.mxu0 0
    %5578 = vmatprep.subr.bf16.mxu0 0
    %5579 = vmatpush2.bf16.xpose.msra.mxu0 0
    %5580 = vmatprep.subr.bf16.mxu0 0
    %5581 = vmatpush2.bf16.xpose.msra.mxu0 0
    %5582 = vmatprep.subr.bf16.mxu0 0
    %5583 = vmatpush2.bf16.xpose.msra.mxu0 0
    %5584 = vmatprep.subr.bf16.mxu0 0
    %5585 = vmatpush2.bf16.xpose.msra.mxu0 0
    %5586 = vmatprep.subr.bf16.mxu0 0
    %5587 = vmatpush2.bf16.xpose.msra.mxu0 0
    %5588 = vmatprep.subr.bf16.mxu0 0
    %5589 = vmatpush2.bf16.xpose.msra.mxu0 0
    %5590 = vmatprep.subr.bf16.mxu0 0
    %5591 = vmatpush2.bf16.xpose.msra.mxu0 0
    %5592 = vmatprep.mubr.bf16.mxu0 0
    %5593 = vmatmul.mubr.bf16.gmra.mxu0 %v5555
    %v5594 = vpop.f32.mrf.mxu0
    %v5595 = vadd.f32 0.0, %v5594
    %v5596 = vpop.f32.mrf.mxu0
    %v5597 = vpop.f32.mrf.mxu0
    %v5598 = vpop.f32.mrf.mxu0
    %5599 = vdwg.mxu0
    %5600 = vrot.lane.b32.xlu0 %v836, 112
    %v5601 = vpop.permute.xlu0 %5600
    %5602 = vrot.lane.b32.xlu0 %v916, 112
    %v5603 = vpop.permute.xlu0 %5602
    %v5605 = vsel %vm923, %v5601, 0
    %v5608 = vsel %vm923, %v5603, 0
    %5610 = vmatprep.subr.bf16.mxu0 0
    %5611 = vmatpush1.bf16.xpose.msra.mxu0 0
    %5612 = vmatprep.subr.bf16.mxu0 0
    %5613 = vmatpush1.bf16.xpose.msra.mxu0 0
    %5614 = vmatprep.subr.bf16.mxu0 0
    %5615 = vmatpush1.bf16.xpose.msra.mxu0 0
    %5616 = vmatprep.subr.bf16.mxu0 0
    %5617 = vmatpush1.bf16.xpose.msra.mxu0 0
    %5618 = vmatprep.subr.bf16.mxu0 0
    %5619 = vmatpush1.bf16.xpose.msra.mxu0 0
    %5620 = vmatprep.subr.bf16.mxu0 0
    %5621 = vmatpush1.bf16.xpose.msra.mxu0 0
    %5622 = vmatprep.subr.bf16.mxu0 0
    %5623 = vmatpush1.bf16.xpose.msra.mxu0 0
    %5624 = vmatprep.subr.bf16.mxu0 0
    %5625 = vmatpush1.bf16.xpose.msra.mxu0 %v5608
    %5626 = vmatprep.subr.bf16.mxu0 0
    %5627 = vmatpush2.bf16.xpose.msra.mxu0 0
    %5628 = vmatprep.subr.bf16.mxu0 0
    %5629 = vmatpush2.bf16.xpose.msra.mxu0 0
    %5630 = vmatprep.subr.bf16.mxu0 0
    %5631 = vmatpush2.bf16.xpose.msra.mxu0 0
    %5632 = vmatprep.subr.bf16.mxu0 0
    %5633 = vmatpush2.bf16.xpose.msra.mxu0 0
    %5634 = vmatprep.subr.bf16.mxu0 0
    %5635 = vmatpush2.bf16.xpose.msra.mxu0 0
    %5636 = vmatprep.subr.bf16.mxu0 0
    %5637 = vmatpush2.bf16.xpose.msra.mxu0 0
    %5638 = vmatprep.subr.bf16.mxu0 0
    %5639 = vmatpush2.bf16.xpose.msra.mxu0 0
    %5640 = vmatprep.subr.bf16.mxu0 0
    %5641 = vmatpush2.bf16.xpose.msra.mxu0 0
    %5642 = vmatprep.mubr.bf16.mxu0 0
    %5643 = vmatmul.mubr.bf16.gmra.mxu0 %v5605
    %v5644 = vpop.f32.mrf.mxu0
    %v5645 = vadd.f32 0.0, %v5644
    %v5646 = vpop.f32.mrf.mxu0
    %v5647 = vpop.f32.mrf.mxu0
    %v5648 = vpop.f32.mrf.mxu0
    %5649 = vdwg.mxu0
    %5650 = vrot.lane.b32.xlu0 %v837, 112
    %v5651 = vpop.permute.xlu0 %5650
    %5652 = vrot.lane.b32.xlu0 %v917, 112
    %v5653 = vpop.permute.xlu0 %5652
    %v5655 = vsel %vm923, %v5651, 0
    %v5658 = vsel %vm923, %v5653, 0
    %5660 = vmatprep.subr.bf16.mxu0 0
    %5661 = vmatpush1.bf16.xpose.msra.mxu0 0
    %5662 = vmatprep.subr.bf16.mxu0 0
    %5663 = vmatpush1.bf16.xpose.msra.mxu0 0
    %5664 = vmatprep.subr.bf16.mxu0 0
    %5665 = vmatpush1.bf16.xpose.msra.mxu0 0
    %5666 = vmatprep.subr.bf16.mxu0 0
    %5667 = vmatpush1.bf16.xpose.msra.mxu0 0
    %5668 = vmatprep.subr.bf16.mxu0 0
    %5669 = vmatpush1.bf16.xpose.msra.mxu0 0
    %5670 = vmatprep.subr.bf16.mxu0 0
    %5671 = vmatpush1.bf16.xpose.msra.mxu0 0
    %5672 = vmatprep.subr.bf16.mxu0 0
    %5673 = vmatpush1.bf16.xpose.msra.mxu0 0
    %5674 = vmatprep.subr.bf16.mxu0 0
    %5675 = vmatpush1.bf16.xpose.msra.mxu0 %v5658
    %5676 = vmatprep.subr.bf16.mxu0 0
    %5677 = vmatpush2.bf16.xpose.msra.mxu0 0
    %5678 = vmatprep.subr.bf16.mxu0 0
    %5679 = vmatpush2.bf16.xpose.msra.mxu0 0
    %5680 = vmatprep.subr.bf16.mxu0 0
    %5681 = vmatpush2.bf16.xpose.msra.mxu0 0
    %5682 = vmatprep.subr.bf16.mxu0 0
    %5683 = vmatpush2.bf16.xpose.msra.mxu0 0
    %5684 = vmatprep.subr.bf16.mxu0 0
    %5685 = vmatpush2.bf16.xpose.msra.mxu0 0
    %5686 = vmatprep.subr.bf16.mxu0 0
    %5687 = vmatpush2.bf16.xpose.msra.mxu0 0
    %5688 = vmatprep.subr.bf16.mxu0 0
    %5689 = vmatpush2.bf16.xpose.msra.mxu0 0
    %5690 = vmatprep.subr.bf16.mxu0 0
    %5691 = vmatpush2.bf16.xpose.msra.mxu0 0
    %5692 = vmatprep.mubr.bf16.mxu0 0
    %5693 = vmatmul.mubr.bf16.gmra.mxu0 %v5655
    %v5694 = vpop.f32.mrf.mxu0
    %v5695 = vadd.f32 0.0, %v5694
    %v5696 = vpop.f32.mrf.mxu0
    %v5697 = vpop.f32.mrf.mxu0
    %v5698 = vpop.f32.mrf.mxu0
    %5699 = vdwg.mxu0
    %5700 = vrot.lane.b32.xlu0 %v838, 112
    %v5701 = vpop.permute.xlu0 %5700
    %5702 = vrot.lane.b32.xlu0 %v918, 112
    %v5703 = vpop.permute.xlu0 %5702
    %v5705 = vsel %vm923, %v5701, 0
    %v5708 = vsel %vm923, %v5703, 0
    %5710 = vmatprep.subr.bf16.mxu0 0
    %5711 = vmatpush1.bf16.xpose.msra.mxu0 0
    %5712 = vmatprep.subr.bf16.mxu0 0
    %5713 = vmatpush1.bf16.xpose.msra.mxu0 0
    %5714 = vmatprep.subr.bf16.mxu0 0
    %5715 = vmatpush1.bf16.xpose.msra.mxu0 0
    %5716 = vmatprep.subr.bf16.mxu0 0
    %5717 = vmatpush1.bf16.xpose.msra.mxu0 0
    %5718 = vmatprep.subr.bf16.mxu0 0
    %5719 = vmatpush1.bf16.xpose.msra.mxu0 0
    %5720 = vmatprep.subr.bf16.mxu0 0
    %5721 = vmatpush1.bf16.xpose.msra.mxu0 0
    %5722 = vmatprep.subr.bf16.mxu0 0
    %5723 = vmatpush1.bf16.xpose.msra.mxu0 0
    %5724 = vmatprep.subr.bf16.mxu0 0
    %5725 = vmatpush1.bf16.xpose.msra.mxu0 %v5708
    %5726 = vmatprep.subr.bf16.mxu0 0
    %5727 = vmatpush2.bf16.xpose.msra.mxu0 0
    %5728 = vmatprep.subr.bf16.mxu0 0
    %5729 = vmatpush2.bf16.xpose.msra.mxu0 0
    %5730 = vmatprep.subr.bf16.mxu0 0
    %5731 = vmatpush2.bf16.xpose.msra.mxu0 0
    %5732 = vmatprep.subr.bf16.mxu0 0
    %5733 = vmatpush2.bf16.xpose.msra.mxu0 0
    %5734 = vmatprep.subr.bf16.mxu0 0
    %5735 = vmatpush2.bf16.xpose.msra.mxu0 0
    %5736 = vmatprep.subr.bf16.mxu0 0
    %5737 = vmatpush2.bf16.xpose.msra.mxu0 0
    %5738 = vmatprep.subr.bf16.mxu0 0
    %5739 = vmatpush2.bf16.xpose.msra.mxu0 0
    %5740 = vmatprep.subr.bf16.mxu0 0
    %5741 = vmatpush2.bf16.xpose.msra.mxu0 0
    %5742 = vmatprep.mubr.bf16.mxu0 0
    %5743 = vmatmul.mubr.bf16.gmra.mxu0 %v5705
    %v5744 = vpop.f32.mrf.mxu0
    %v5745 = vadd.f32 0.0, %v5744
    %v5746 = vpop.f32.mrf.mxu0
    %v5747 = vpop.f32.mrf.mxu0
    %v5748 = vpop.f32.mrf.mxu0
    %5749 = vdwg.mxu0
    %5750 = vrot.lane.b32.xlu0 %v839, 112
    %v5751 = vpop.permute.xlu0 %5750
    %5752 = vrot.lane.b32.xlu0 %v919, 112
    %v5753 = vpop.permute.xlu0 %5752
    %v5755 = vsel %vm923, %v5751, 0
    %v5758 = vsel %vm923, %v5753, 0
    %5760 = vmatprep.subr.bf16.mxu0 0
    %5761 = vmatpush1.bf16.xpose.msra.mxu0 0
    %5762 = vmatprep.subr.bf16.mxu0 0
    %5763 = vmatpush1.bf16.xpose.msra.mxu0 0
    %5764 = vmatprep.subr.bf16.mxu0 0
    %5765 = vmatpush1.bf16.xpose.msra.mxu0 0
    %5766 = vmatprep.subr.bf16.mxu0 0
    %5767 = vmatpush1.bf16.xpose.msra.mxu0 0
    %5768 = vmatprep.subr.bf16.mxu0 0
    %5769 = vmatpush1.bf16.xpose.msra.mxu0 0
    %5770 = vmatprep.subr.bf16.mxu0 0
    %5771 = vmatpush1.bf16.xpose.msra.mxu0 0
    %5772 = vmatprep.subr.bf16.mxu0 0
    %5773 = vmatpush1.bf16.xpose.msra.mxu0 0
    %5774 = vmatprep.subr.bf16.mxu0 0
    %5775 = vmatpush1.bf16.xpose.msra.mxu0 %v5758
    %5776 = vmatprep.subr.bf16.mxu0 0
    %5777 = vmatpush2.bf16.xpose.msra.mxu0 0
    %5778 = vmatprep.subr.bf16.mxu0 0
    %5779 = vmatpush2.bf16.xpose.msra.mxu0 0
    %5780 = vmatprep.subr.bf16.mxu0 0
    %5781 = vmatpush2.bf16.xpose.msra.mxu0 0
    %5782 = vmatprep.subr.bf16.mxu0 0
    %5783 = vmatpush2.bf16.xpose.msra.mxu0 0
    %5784 = vmatprep.subr.bf16.mxu0 0
    %5785 = vmatpush2.bf16.xpose.msra.mxu0 0
    %5786 = vmatprep.subr.bf16.mxu0 0
    %5787 = vmatpush2.bf16.xpose.msra.mxu0 0
    %5788 = vmatprep.subr.bf16.mxu0 0
    %5789 = vmatpush2.bf16.xpose.msra.mxu0 0
    %5790 = vmatprep.subr.bf16.mxu0 0
    %5791 = vmatpush2.bf16.xpose.msra.mxu0 0
    %5792 = vmatprep.mubr.bf16.mxu0 0
    %5793 = vmatmul.mubr.bf16.gmra.mxu0 %v5755
    %v5794 = vpop.f32.mrf.mxu0
    %v5795 = vadd.f32 0.0, %v5794
    %v5796 = vpop.f32.mrf.mxu0
    %v5797 = vpop.f32.mrf.mxu0
    %v5798 = vpop.f32.mrf.mxu0
    %5799 = vdwg.mxu0
    %5800 = vrot.lane.b32.xlu0 %v840, 112
    %v5801 = vpop.permute.xlu0 %5800
    %5802 = vrot.lane.b32.xlu0 %v920, 112
    %v5803 = vpop.permute.xlu0 %5802
    %v5805 = vsel %vm923, %v5801, 0
    %v5808 = vsel %vm923, %v5803, 0
    %5810 = vmatprep.subr.bf16.mxu0 0
    %5811 = vmatpush1.bf16.xpose.msra.mxu0 0
    %5812 = vmatprep.subr.bf16.mxu0 0
    %5813 = vmatpush1.bf16.xpose.msra.mxu0 0
    %5814 = vmatprep.subr.bf16.mxu0 0
    %5815 = vmatpush1.bf16.xpose.msra.mxu0 0
    %5816 = vmatprep.subr.bf16.mxu0 0
    %5817 = vmatpush1.bf16.xpose.msra.mxu0 0
    %5818 = vmatprep.subr.bf16.mxu0 0
    %5819 = vmatpush1.bf16.xpose.msra.mxu0 0
    %5820 = vmatprep.subr.bf16.mxu0 0
    %5821 = vmatpush1.bf16.xpose.msra.mxu0 0
    %5822 = vmatprep.subr.bf16.mxu0 0
    %5823 = vmatpush1.bf16.xpose.msra.mxu0 0
    %5824 = vmatprep.subr.bf16.mxu0 0
    %5825 = vmatpush1.bf16.xpose.msra.mxu0 %v5808
    %5826 = vmatprep.subr.bf16.mxu0 0
    %5827 = vmatpush2.bf16.xpose.msra.mxu0 0
    %5828 = vmatprep.subr.bf16.mxu0 0
    %5829 = vmatpush2.bf16.xpose.msra.mxu0 0
    %5830 = vmatprep.subr.bf16.mxu0 0
    %5831 = vmatpush2.bf16.xpose.msra.mxu0 0
    %5832 = vmatprep.subr.bf16.mxu0 0
    %5833 = vmatpush2.bf16.xpose.msra.mxu0 0
    %5834 = vmatprep.subr.bf16.mxu0 0
    %5835 = vmatpush2.bf16.xpose.msra.mxu0 0
    %5836 = vmatprep.subr.bf16.mxu0 0
    %5837 = vmatpush2.bf16.xpose.msra.mxu0 0
    %5838 = vmatprep.subr.bf16.mxu0 0
    %5839 = vmatpush2.bf16.xpose.msra.mxu0 0
    %5840 = vmatprep.subr.bf16.mxu0 0
    %5841 = vmatpush2.bf16.xpose.msra.mxu0 0
    %5842 = vmatprep.mubr.bf16.mxu0 0
    %5843 = vmatmul.mubr.bf16.gmra.mxu0 %v5805
    %v5844 = vpop.f32.mrf.mxu0
    %v5845 = vadd.f32 0.0, %v5844
    %v5846 = vpop.f32.mrf.mxu0
    %v5847 = vpop.f32.mrf.mxu0
    %v5848 = vpop.f32.mrf.mxu0
    %5849 = vdwg.mxu0
    %5850 = vrot.lane.b32.xlu0 %v841, 112
    %v5851 = vpop.permute.xlu0 %5850
    %5852 = vrot.lane.b32.xlu0 %v921, 112
    %v5853 = vpop.permute.xlu0 %5852
    %v5855 = vsel %vm923, %v5851, 0
    %v5858 = vsel %vm923, %v5853, 0
    %5860 = vmatprep.subr.bf16.mxu0 0
    %5861 = vmatpush1.bf16.xpose.msra.mxu0 0
    %5862 = vmatprep.subr.bf16.mxu0 0
    %5863 = vmatpush1.bf16.xpose.msra.mxu0 0
    %5864 = vmatprep.subr.bf16.mxu0 0
    %5865 = vmatpush1.bf16.xpose.msra.mxu0 0
    %5866 = vmatprep.subr.bf16.mxu0 0
    %5867 = vmatpush1.bf16.xpose.msra.mxu0 0
    %5868 = vmatprep.subr.bf16.mxu0 0
    %5869 = vmatpush1.bf16.xpose.msra.mxu0 0
    %5870 = vmatprep.subr.bf16.mxu0 0
    %5871 = vmatpush1.bf16.xpose.msra.mxu0 0
    %5872 = vmatprep.subr.bf16.mxu0 0
    %5873 = vmatpush1.bf16.xpose.msra.mxu0 0
    %5874 = vmatprep.subr.bf16.mxu0 0
    %5875 = vmatpush1.bf16.xpose.msra.mxu0 %v5858
    %5876 = vmatprep.subr.bf16.mxu0 0
    %5877 = vmatpush2.bf16.xpose.msra.mxu0 0
    %5878 = vmatprep.subr.bf16.mxu0 0
    %5879 = vmatpush2.bf16.xpose.msra.mxu0 0
    %5880 = vmatprep.subr.bf16.mxu0 0
    %5881 = vmatpush2.bf16.xpose.msra.mxu0 0
    %5882 = vmatprep.subr.bf16.mxu0 0
    %5883 = vmatpush2.bf16.xpose.msra.mxu0 0
    %5884 = vmatprep.subr.bf16.mxu0 0
    %5885 = vmatpush2.bf16.xpose.msra.mxu0 0
    %5886 = vmatprep.subr.bf16.mxu0 0
    %5887 = vmatpush2.bf16.xpose.msra.mxu0 0
    %5888 = vmatprep.subr.bf16.mxu0 0
    %5889 = vmatpush2.bf16.xpose.msra.mxu0 0
    %5890 = vmatprep.subr.bf16.mxu0 0
    %5891 = vmatpush2.bf16.xpose.msra.mxu0 0
    %5892 = vmatprep.mubr.bf16.mxu0 0
    %5893 = vmatmul.mubr.bf16.gmra.mxu0 %v5855
    %v5894 = vpop.f32.mrf.mxu0
    %v5895 = vadd.f32 0.0, %v5894
    %v5896 = vpop.f32.mrf.mxu0
    %v5897 = vpop.f32.mrf.mxu0
    %v5898 = vpop.f32.mrf.mxu0
    %5899 = vdwg.mxu0
    %5900 = vrot.lane.b32.xlu0 %v842, 112
    %v5901 = vpop.permute.xlu0 %5900
    %5902 = vrot.lane.b32.xlu0 %v922, 112
    %v5903 = vpop.permute.xlu0 %5902
    %v5905 = vsel %vm923, %v5901, 0
    %v5908 = vsel %vm923, %v5903, 0
    %5910 = vmatprep.subr.bf16.mxu0 0
    %5911 = vmatpush1.bf16.xpose.msra.mxu0 0
    %5912 = vmatprep.subr.bf16.mxu0 0
    %5913 = vmatpush1.bf16.xpose.msra.mxu0 0
    %5914 = vmatprep.subr.bf16.mxu0 0
    %5915 = vmatpush1.bf16.xpose.msra.mxu0 0
    %5916 = vmatprep.subr.bf16.mxu0 0
    %5917 = vmatpush1.bf16.xpose.msra.mxu0 0
    %5918 = vmatprep.subr.bf16.mxu0 0
    %5919 = vmatpush1.bf16.xpose.msra.mxu0 0
    %5920 = vmatprep.subr.bf16.mxu0 0
    %5921 = vmatpush1.bf16.xpose.msra.mxu0 0
    %5922 = vmatprep.subr.bf16.mxu0 0
    %5923 = vmatpush1.bf16.xpose.msra.mxu0 0
    %5924 = vmatprep.subr.bf16.mxu0 0
    %5925 = vmatpush1.bf16.xpose.msra.mxu0 %v5908
    %5926 = vmatprep.subr.bf16.mxu0 0
    %5927 = vmatpush2.bf16.xpose.msra.mxu0 0
    %5928 = vmatprep.subr.bf16.mxu0 0
    %5929 = vmatpush2.bf16.xpose.msra.mxu0 0
    %5930 = vmatprep.subr.bf16.mxu0 0
    %5931 = vmatpush2.bf16.xpose.msra.mxu0 0
    %5932 = vmatprep.subr.bf16.mxu0 0
    %5933 = vmatpush2.bf16.xpose.msra.mxu0 0
    %5934 = vmatprep.subr.bf16.mxu0 0
    %5935 = vmatpush2.bf16.xpose.msra.mxu0 0
    %5936 = vmatprep.subr.bf16.mxu0 0
    %5937 = vmatpush2.bf16.xpose.msra.mxu0 0
    %5938 = vmatprep.subr.bf16.mxu0 0
    %5939 = vmatpush2.bf16.xpose.msra.mxu0 0
    %5940 = vmatprep.subr.bf16.mxu0 0
    %5941 = vmatpush2.bf16.xpose.msra.mxu0 0
    %5942 = vmatprep.mubr.bf16.mxu0 0
    %5943 = vmatmul.mubr.bf16.gmra.mxu0 %v5905
    %v5944 = vpop.f32.mrf.mxu0
    %v5945 = vadd.f32 0.0, %v5944
    %v5946 = vpop.f32.mrf.mxu0
    %v5947 = vpop.f32.mrf.mxu0
    %v5948 = vpop.f32.mrf.mxu0
    %5949 = vdwg.mxu0
    %v5950 = vmul.f32 %v4395, 0.25
    %v5951 = vmul.f32 %v4445, 0.25
    %v5952 = vmul.f32 %v4495, 0.25
    %v5953 = vmul.f32 %v4545, 0.25
    %v5954 = vmul.f32 %v4595, 0.25
    %v5955 = vmul.f32 %v4645, 0.25
    %v5956 = vmul.f32 %v4695, 0.25
    %v5957 = vmul.f32 %v4745, 0.25
    %v5958 = vmul.f32 %v4795, 0.25
    %v5959 = vmul.f32 %v4845, 0.25
    %v5960 = vmul.f32 %v4895, 0.25
    %v5961 = vmul.f32 %v4945, 0.25
    %v5962 = vmul.f32 %v4995, 0.25
    %v5963 = vmul.f32 %v5045, 0.25
    %v5964 = vmul.f32 %v5095, 0.25
    %v5965 = vmul.f32 %v5145, 0.25
    %v5966 = vmul.f32 %v5195, 0.25
    %v5967 = vmul.f32 %v5245, 0.25
    %v5968 = vmul.f32 %v5295, 0.25
    %v5969 = vmul.f32 %v5345, 0.25
    %v5970 = vmul.f32 %v5395, 0.25
    %v5971 = vmul.f32 %v5445, 0.25
    %v5972 = vmul.f32 %v5495, 0.25
    %v5973 = vmul.f32 %v5545, 0.25
    %v5974 = vmul.f32 %v5595, 0.25
    %v5975 = vmul.f32 %v5645, 0.25
    %v5976 = vmul.f32 %v5695, 0.25
    %v5977 = vmul.f32 %v5745, 0.25
    %v5978 = vmul.f32 %v5795, 0.25
    %v5979 = vmul.f32 %v5845, 0.25
    %v5980 = vmul.f32 %v5895, 0.25
    %v5981 = vmul.f32 %v5945, 0.25
    %v5982 = vsel %vm2428, %v5950, -inf
    %5983 = vmax.xlane.f32.xlu0 %v5982
    %v5984 = vpop.xlane.xlu0 %5983
    %v5985 = vsel %vm2428, %v5951, -inf
    %5986 = vmax.xlane.f32.xlu0 %v5985
    %v5987 = vpop.xlane.xlu0 %5986
    %v5988 = vsel %vm2428, %v5952, -inf
    %5989 = vmax.xlane.f32.xlu0 %v5988
    %v5990 = vpop.xlane.xlu0 %5989
    %v5991 = vsel %vm2428, %v5953, -inf
    %5992 = vmax.xlane.f32.xlu0 %v5991
    %v5993 = vpop.xlane.xlu0 %5992
    %v5994 = vsel %vm2428, %v5954, -inf
    %5995 = vmax.xlane.f32.xlu0 %v5994
    %v5996 = vpop.xlane.xlu0 %5995
    %v5997 = vsel %vm2428, %v5955, -inf
    %5998 = vmax.xlane.f32.xlu0 %v5997
    %v5999 = vpop.xlane.xlu0 %5998
    %v6000 = vsel %vm2428, %v5956, -inf
    %6001 = vmax.xlane.f32.xlu0 %v6000
    %v6002 = vpop.xlane.xlu0 %6001
    %v6003 = vsel %vm2428, %v5957, -inf
    %6004 = vmax.xlane.f32.xlu0 %v6003
    %v6005 = vpop.xlane.xlu0 %6004
    %v6006 = vsel %vm2428, %v5958, -inf
    %6007 = vmax.xlane.f32.xlu0 %v6006
    %v6008 = vpop.xlane.xlu0 %6007
    %v6009 = vsel %vm2428, %v5959, -inf
    %6010 = vmax.xlane.f32.xlu0 %v6009
    %v6011 = vpop.xlane.xlu0 %6010
    %v6012 = vsel %vm2428, %v5960, -inf
    %6013 = vmax.xlane.f32.xlu0 %v6012
    %v6014 = vpop.xlane.xlu0 %6013
    %v6015 = vsel %vm2428, %v5961, -inf
    %6016 = vmax.xlane.f32.xlu0 %v6015
    %v6017 = vpop.xlane.xlu0 %6016
    %v6018 = vsel %vm2428, %v5962, -inf
    %6019 = vmax.xlane.f32.xlu0 %v6018
    %v6020 = vpop.xlane.xlu0 %6019
    %v6021 = vsel %vm2428, %v5963, -inf
    %6022 = vmax.xlane.f32.xlu0 %v6021
    %v6023 = vpop.xlane.xlu0 %6022
    %v6024 = vsel %vm2428, %v5964, -inf
    %6025 = vmax.xlane.f32.xlu0 %v6024
    %v6026 = vpop.xlane.xlu0 %6025
    %v6027 = vsel %vm2428, %v5965, -inf
    %6028 = vmax.xlane.f32.xlu0 %v6027
    %v6029 = vpop.xlane.xlu0 %6028
    %v6030 = vsel %vm2428, %v5966, -inf
    %6031 = vmax.xlane.f32.xlu0 %v6030
    %v6032 = vpop.xlane.xlu0 %6031
    %v6033 = vsel %vm2428, %v5967, -inf
    %6034 = vmax.xlane.f32.xlu0 %v6033
    %v6035 = vpop.xlane.xlu0 %6034
    %v6036 = vsel %vm2428, %v5968, -inf
    %6037 = vmax.xlane.f32.xlu0 %v6036
    %v6038 = vpop.xlane.xlu0 %6037
    %v6039 = vsel %vm2428, %v5969, -inf
    %6040 = vmax.xlane.f32.xlu0 %v6039
    %v6041 = vpop.xlane.xlu0 %6040
    %v6042 = vsel %vm2428, %v5970, -inf
    %6043 = vmax.xlane.f32.xlu0 %v6042
    %v6044 = vpop.xlane.xlu0 %6043
    %v6045 = vsel %vm2428, %v5971, -inf
    %6046 = vmax.xlane.f32.xlu0 %v6045
    %v6047 = vpop.xlane.xlu0 %6046
    %v6048 = vsel %vm2428, %v5972, -inf
    %6049 = vmax.xlane.f32.xlu0 %v6048
    %v6050 = vpop.xlane.xlu0 %6049
    %v6051 = vsel %vm2428, %v5973, -inf
    %6052 = vmax.xlane.f32.xlu0 %v6051
    %v6053 = vpop.xlane.xlu0 %6052
    %v6054 = vsel %vm2428, %v5974, -inf
    %6055 = vmax.xlane.f32.xlu0 %v6054
    %v6056 = vpop.xlane.xlu0 %6055
    %v6057 = vsel %vm2428, %v5975, -inf
    %6058 = vmax.xlane.f32.xlu0 %v6057
    %v6059 = vpop.xlane.xlu0 %6058
    %v6060 = vsel %vm2428, %v5976, -inf
    %6061 = vmax.xlane.f32.xlu0 %v6060
    %v6062 = vpop.xlane.xlu0 %6061
    %v6063 = vsel %vm2428, %v5977, -inf
    %6064 = vmax.xlane.f32.xlu0 %v6063
    %v6065 = vpop.xlane.xlu0 %6064
    %v6066 = vsel %vm2428, %v5978, -inf
    %6067 = vmax.xlane.f32.xlu0 %v6066
    %v6068 = vpop.xlane.xlu0 %6067
    %v6069 = vsel %vm2428, %v5979, -inf
    %6070 = vmax.xlane.f32.xlu0 %v6069
    %v6071 = vpop.xlane.xlu0 %6070
    %v6072 = vsel %vm2428, %v5980, -inf
    %6073 = vmax.xlane.f32.xlu0 %v6072
    %v6074 = vpop.xlane.xlu0 %6073
    %v6075 = vsel %vm2428, %v5981, -inf
    %6076 = vmax.xlane.f32.xlu0 %v6075
    %v6077 = vpop.xlane.xlu0 %6076
    %v6078 = vsub.f32 %v5950, %v5984
    %v6079 = vsub.f32 %v5951, %v5987
    %v6080 = vsub.f32 %v5952, %v5990
    %v6081 = vsub.f32 %v5953, %v5993
    %v6082 = vsub.f32 %v5954, %v5996
    %v6083 = vsub.f32 %v5955, %v5999
    %v6084 = vsub.f32 %v5956, %v6002
    %v6085 = vsub.f32 %v5957, %v6005
    %v6086 = vsub.f32 %v5958, %v6008
    %v6087 = vsub.f32 %v5959, %v6011
    %v6088 = vsub.f32 %v5960, %v6014
    %v6089 = vsub.f32 %v5961, %v6017
    %v6090 = vsub.f32 %v5962, %v6020
    %v6091 = vsub.f32 %v5963, %v6023
    %v6092 = vsub.f32 %v5964, %v6026
    %v6093 = vsub.f32 %v5965, %v6029
    %v6094 = vsub.f32 %v5966, %v6032
    %v6095 = vsub.f32 %v5967, %v6035
    %v6096 = vsub.f32 %v5968, %v6038
    %v6097 = vsub.f32 %v5969, %v6041
    %v6098 = vsub.f32 %v5970, %v6044
    %v6099 = vsub.f32 %v5971, %v6047
    %v6100 = vsub.f32 %v5972, %v6050
    %v6101 = vsub.f32 %v5973, %v6053
    %v6102 = vsub.f32 %v5974, %v6056
    %v6103 = vsub.f32 %v5975, %v6059
    %v6104 = vsub.f32 %v5976, %v6062
    %v6105 = vsub.f32 %v5977, %v6065
    %v6106 = vsub.f32 %v5978, %v6068
    %v6107 = vsub.f32 %v5979, %v6071
    %v6108 = vsub.f32 %v5980, %v6074
    %v6109 = vsub.f32 %v5981, %v6077
    %v6110 = vmul.f32 %v6078, 1.442695
    %v6111 = vpow.pop %v6110
    %v6112 = vmul.f32 %v6079, 1.442695
    %v6113 = vpow.pop %v6112
    %v6114 = vmul.f32 %v6080, 1.442695
    %v6115 = vpow.pop %v6114
    %v6116 = vmul.f32 %v6081, 1.442695
    %v6117 = vpow.pop %v6116
    %v6118 = vmul.f32 %v6082, 1.442695
    %v6119 = vpow.pop %v6118
    %v6120 = vmul.f32 %v6083, 1.442695
    %v6121 = vpow.pop %v6120
    %v6122 = vmul.f32 %v6084, 1.442695
    %v6123 = vpow.pop %v6122
    %v6124 = vmul.f32 %v6085, 1.442695
    %v6125 = vpow.pop %v6124
    %v6126 = vmul.f32 %v6086, 1.442695
    %v6127 = vpow.pop %v6126
    %v6128 = vmul.f32 %v6087, 1.442695
    %v6129 = vpow.pop %v6128
    %v6130 = vmul.f32 %v6088, 1.442695
    %v6131 = vpow.pop %v6130
    %v6132 = vmul.f32 %v6089, 1.442695
    %v6133 = vpow.pop %v6132
    %v6134 = vmul.f32 %v6090, 1.442695
    %v6135 = vpow.pop %v6134
    %v6136 = vmul.f32 %v6091, 1.442695
    %v6137 = vpow.pop %v6136
    %v6138 = vmul.f32 %v6092, 1.442695
    %v6139 = vpow.pop %v6138
    %v6140 = vmul.f32 %v6093, 1.442695
    %v6141 = vpow.pop %v6140
    %v6142 = vmul.f32 %v6094, 1.442695
    %v6143 = vpow.pop %v6142
    %v6144 = vmul.f32 %v6095, 1.442695
    %v6145 = vpow.pop %v6144
    %v6146 = vmul.f32 %v6096, 1.442695
    %v6147 = vpow.pop %v6146
    %v6148 = vmul.f32 %v6097, 1.442695
    %v6149 = vpow.pop %v6148
    %v6150 = vmul.f32 %v6098, 1.442695
    %v6151 = vpow.pop %v6150
    %v6152 = vmul.f32 %v6099, 1.442695
    %v6153 = vpow.pop %v6152
    %v6154 = vmul.f32 %v6100, 1.442695
    %v6155 = vpow.pop %v6154
    %v6156 = vmul.f32 %v6101, 1.442695
    %v6157 = vpow.pop %v6156
    %v6158 = vmul.f32 %v6102, 1.442695
    %v6159 = vpow.pop %v6158
    %v6160 = vmul.f32 %v6103, 1.442695
    %v6161 = vpow.pop %v6160
    %v6162 = vmul.f32 %v6104, 1.442695
    %v6163 = vpow.pop %v6162
    %v6164 = vmul.f32 %v6105, 1.442695
    %v6165 = vpow.pop %v6164
    %v6166 = vmul.f32 %v6106, 1.442695
    %v6167 = vpow.pop %v6166
    %v6168 = vmul.f32 %v6107, 1.442695
    %v6169 = vpow.pop %v6168
    %v6170 = vmul.f32 %v6108, 1.442695
    %v6171 = vpow.pop %v6170
    %v6172 = vmul.f32 %v6109, 1.442695
    %v6173 = vpow.pop %v6172
    %v6174 = vsel %vm2428, %v6111, 0.0
    %6175 = vadd.xlane.f32.xlu0 %v6174
    %v6176 = vpop.xlane.xlu0 %6175
    %v6177 = vsel %vm2428, %v6113, 0.0
    %6178 = vadd.xlane.f32.xlu0 %v6177
    %v6179 = vpop.xlane.xlu0 %6178
    %v6180 = vsel %vm2428, %v6115, 0.0
    %6181 = vadd.xlane.f32.xlu0 %v6180
    %v6182 = vpop.xlane.xlu0 %6181
    %v6183 = vsel %vm2428, %v6117, 0.0
    %6184 = vadd.xlane.f32.xlu0 %v6183
    %v6185 = vpop.xlane.xlu0 %6184
    %v6186 = vsel %vm2428, %v6119, 0.0
    %6187 = vadd.xlane.f32.xlu0 %v6186
    %v6188 = vpop.xlane.xlu0 %6187
    %v6189 = vsel %vm2428, %v6121, 0.0
    %6190 = vadd.xlane.f32.xlu0 %v6189
    %v6191 = vpop.xlane.xlu0 %6190
    %v6192 = vsel %vm2428, %v6123, 0.0
    %6193 = vadd.xlane.f32.xlu0 %v6192
    %v6194 = vpop.xlane.xlu0 %6193
    %v6195 = vsel %vm2428, %v6125, 0.0
    %6196 = vadd.xlane.f32.xlu0 %v6195
    %v6197 = vpop.xlane.xlu0 %6196
    %v6198 = vsel %vm2428, %v6127, 0.0
    %6199 = vadd.xlane.f32.xlu0 %v6198
    %v6200 = vpop.xlane.xlu0 %6199
    %v6201 = vsel %vm2428, %v6129, 0.0
    %6202 = vadd.xlane.f32.xlu0 %v6201
    %v6203 = vpop.xlane.xlu0 %6202
    %v6204 = vsel %vm2428, %v6131, 0.0
    %6205 = vadd.xlane.f32.xlu0 %v6204
    %v6206 = vpop.xlane.xlu0 %6205
    %v6207 = vsel %vm2428, %v6133, 0.0
    %6208 = vadd.xlane.f32.xlu0 %v6207
    %v6209 = vpop.xlane.xlu0 %6208
    %v6210 = vsel %vm2428, %v6135, 0.0
    %6211 = vadd.xlane.f32.xlu0 %v6210
    %v6212 = vpop.xlane.xlu0 %6211
    %v6213 = vsel %vm2428, %v6137, 0.0
    %6214 = vadd.xlane.f32.xlu0 %v6213
    %v6215 = vpop.xlane.xlu0 %6214
    %v6216 = vsel %vm2428, %v6139, 0.0
    %6217 = vadd.xlane.f32.xlu0 %v6216
    %v6218 = vpop.xlane.xlu0 %6217
    %v6219 = vsel %vm2428, %v6141, 0.0
    %6220 = vadd.xlane.f32.xlu0 %v6219
    %v6221 = vpop.xlane.xlu0 %6220
    %v6222 = vsel %vm2428, %v6143, 0.0
    %6223 = vadd.xlane.f32.xlu0 %v6222
    %v6224 = vpop.xlane.xlu0 %6223
    %v6225 = vsel %vm2428, %v6145, 0.0
    %6226 = vadd.xlane.f32.xlu0 %v6225
    %v6227 = vpop.xlane.xlu0 %6226
    %v6228 = vsel %vm2428, %v6147, 0.0
    %6229 = vadd.xlane.f32.xlu0 %v6228
    %v6230 = vpop.xlane.xlu0 %6229
    %v6231 = vsel %vm2428, %v6149, 0.0
    %6232 = vadd.xlane.f32.xlu0 %v6231
    %v6233 = vpop.xlane.xlu0 %6232
    %v6234 = vsel %vm2428, %v6151, 0.0
    %6235 = vadd.xlane.f32.xlu0 %v6234
    %v6236 = vpop.xlane.xlu0 %6235
    %v6237 = vsel %vm2428, %v6153, 0.0
    %6238 = vadd.xlane.f32.xlu0 %v6237
    %v6239 = vpop.xlane.xlu0 %6238
    %v6240 = vsel %vm2428, %v6155, 0.0
    %6241 = vadd.xlane.f32.xlu0 %v6240
    %v6242 = vpop.xlane.xlu0 %6241
    %v6243 = vsel %vm2428, %v6157, 0.0
    %6244 = vadd.xlane.f32.xlu0 %v6243
    %v6245 = vpop.xlane.xlu0 %6244
    %v6246 = vsel %vm2428, %v6159, 0.0
    %6247 = vadd.xlane.f32.xlu0 %v6246
    %v6248 = vpop.xlane.xlu0 %6247
    %v6249 = vsel %vm2428, %v6161, 0.0
    %6250 = vadd.xlane.f32.xlu0 %v6249
    %v6251 = vpop.xlane.xlu0 %6250
    %v6252 = vsel %vm2428, %v6163, 0.0
    %6253 = vadd.xlane.f32.xlu0 %v6252
    %v6254 = vpop.xlane.xlu0 %6253
    %v6255 = vsel %vm2428, %v6165, 0.0
    %6256 = vadd.xlane.f32.xlu0 %v6255
    %v6257 = vpop.xlane.xlu0 %6256
    %v6258 = vsel %vm2428, %v6167, 0.0
    %6259 = vadd.xlane.f32.xlu0 %v6258
    %v6260 = vpop.xlane.xlu0 %6259
    %v6261 = vsel %vm2428, %v6169, 0.0
    %6262 = vadd.xlane.f32.xlu0 %v6261
    %v6263 = vpop.xlane.xlu0 %6262
    %v6264 = vsel %vm2428, %v6171, 0.0
    %6265 = vadd.xlane.f32.xlu0 %v6264
    %v6266 = vpop.xlane.xlu0 %6265
    %v6267 = vsel %vm2428, %v6173, 0.0
    %6268 = vadd.xlane.f32.xlu0 %v6267
    %v6269 = vpop.xlane.xlu0 %6268
    %v6270 = vrcp.pop %v6176
    %v6271 = vrcp.pop %v6179
    %v6272 = vrcp.pop %v6182
    %v6273 = vrcp.pop %v6185
    %v6274 = vrcp.pop %v6188
    %v6275 = vrcp.pop %v6191
    %v6276 = vrcp.pop %v6194
    %v6277 = vrcp.pop %v6197
    %v6278 = vrcp.pop %v6200
    %v6279 = vrcp.pop %v6203
    %v6280 = vrcp.pop %v6206
    %v6281 = vrcp.pop %v6209
    %v6282 = vrcp.pop %v6212
    %v6283 = vrcp.pop %v6215
    %v6284 = vrcp.pop %v6218
    %v6285 = vrcp.pop %v6221
    %v6286 = vrcp.pop %v6224
    %v6287 = vrcp.pop %v6227
    %v6288 = vrcp.pop %v6230
    %v6289 = vrcp.pop %v6233
    %v6290 = vrcp.pop %v6236
    %v6291 = vrcp.pop %v6239
    %v6292 = vrcp.pop %v6242
    %v6293 = vrcp.pop %v6245
    %v6294 = vrcp.pop %v6248
    %v6295 = vrcp.pop %v6251
    %v6296 = vrcp.pop %v6254
    %v6297 = vrcp.pop %v6257
    %v6298 = vrcp.pop %v6260
    %v6299 = vrcp.pop %v6263
    %v6300 = vrcp.pop %v6266
    %v6301 = vrcp.pop %v6269
    %v6302 = vmul.f32 %v6111, %v6270
    %v6303 = vmul.f32 %v6113, %v6271
    %v6304 = vmul.f32 %v6115, %v6272
    %v6305 = vmul.f32 %v6117, %v6273
    %v6306 = vmul.f32 %v6119, %v6274
    %v6307 = vmul.f32 %v6121, %v6275
    %v6308 = vmul.f32 %v6123, %v6276
    %v6309 = vmul.f32 %v6125, %v6277
    %v6310 = vmul.f32 %v6127, %v6278
    %v6311 = vmul.f32 %v6129, %v6279
    %v6312 = vmul.f32 %v6131, %v6280
    %v6313 = vmul.f32 %v6133, %v6281
    %v6314 = vmul.f32 %v6135, %v6282
    %v6315 = vmul.f32 %v6137, %v6283
    %v6316 = vmul.f32 %v6139, %v6284
    %v6317 = vmul.f32 %v6141, %v6285
    %v6318 = vmul.f32 %v6143, %v6286
    %v6319 = vmul.f32 %v6145, %v6287
    %v6320 = vmul.f32 %v6147, %v6288
    %v6321 = vmul.f32 %v6149, %v6289
    %v6322 = vmul.f32 %v6151, %v6290
    %v6323 = vmul.f32 %v6153, %v6291
    %v6324 = vmul.f32 %v6155, %v6292
    %v6325 = vmul.f32 %v6157, %v6293
    %v6326 = vmul.f32 %v6159, %v6294
    %v6327 = vmul.f32 %v6161, %v6295
    %v6328 = vmul.f32 %v6163, %v6296
    %v6329 = vmul.f32 %v6165, %v6297
    %v6330 = vmul.f32 %v6167, %v6298
    %v6331 = vmul.f32 %v6169, %v6299
    %v6332 = vmul.f32 %v6171, %v6300
    %v6333 = vmul.f32 %v6173, %v6301
    %v6334 = vpack.c.bf16 %v6302, %v6302
    %v6335 = vpack.c.bf16 %v6303, %v6303
    %v6336 = vpack.c.bf16 %v6304, %v6304
    %v6337 = vpack.c.bf16 %v6305, %v6305
    %v6338 = vpack.c.bf16 %v6306, %v6306
    %v6339 = vpack.c.bf16 %v6307, %v6307
    %v6340 = vpack.c.bf16 %v6308, %v6308
    %v6341 = vpack.c.bf16 %v6309, %v6309
    %v6342 = vpack.c.bf16 %v6310, %v6310
    %v6343 = vpack.c.bf16 %v6311, %v6311
    %v6344 = vpack.c.bf16 %v6312, %v6312
    %v6345 = vpack.c.bf16 %v6313, %v6313
    %v6346 = vpack.c.bf16 %v6314, %v6314
    %v6347 = vpack.c.bf16 %v6315, %v6315
    %v6348 = vpack.c.bf16 %v6316, %v6316
    %v6349 = vpack.c.bf16 %v6317, %v6317
    %v6350 = vpack.c.bf16 %v6318, %v6318
    %v6351 = vpack.c.bf16 %v6319, %v6319
    %v6352 = vpack.c.bf16 %v6320, %v6320
    %v6353 = vpack.c.bf16 %v6321, %v6321
    %v6354 = vpack.c.bf16 %v6322, %v6322
    %v6355 = vpack.c.bf16 %v6323, %v6323
    %v6356 = vpack.c.bf16 %v6324, %v6324
    %v6357 = vpack.c.bf16 %v6325, %v6325
    %v6358 = vpack.c.bf16 %v6326, %v6326
    %v6359 = vpack.c.bf16 %v6327, %v6327
    %v6360 = vpack.c.bf16 %v6328, %v6328
    %v6361 = vpack.c.bf16 %v6329, %v6329
    %v6362 = vpack.c.bf16 %v6330, %v6330
    %v6363 = vpack.c.bf16 %v6331, %v6331
    %v6364 = vpack.c.bf16 %v6332, %v6332
    %v6365 = vpack.c.bf16 %v6333, %v6333
    %6366 = vrot.lane.b32.xlu0 %v891, 80
    %v6367 = vpop.permute.xlu0 %6366
    %v6369 = vsel %vm2428, %v6334, 0
    %v6372 = vsel %vm2818, %v6367, 0
    %6374 = vmatprep.subr.bf16.mxu0 0
    %6375 = vmatpush1.bf16.msra.mxu0 0
    %6376 = vmatprep.subr.bf16.mxu0 0
    %6377 = vmatpush1.bf16.msra.mxu0 0
    %6378 = vmatprep.subr.bf16.mxu0 0
    %6379 = vmatpush1.bf16.msra.mxu0 0
    %6380 = vmatprep.subr.bf16.mxu0 0
    %6381 = vmatpush1.bf16.msra.mxu0 0
    %6382 = vmatprep.subr.bf16.mxu0 0
    %6383 = vmatpush1.bf16.msra.mxu0 0
    %6384 = vmatprep.subr.bf16.mxu0 0
    %6385 = vmatpush1.bf16.msra.mxu0 0
    %6386 = vmatprep.subr.bf16.mxu0 0
    %6387 = vmatpush1.bf16.msra.mxu0 0
    %6388 = vmatprep.subr.bf16.mxu0 0
    %6389 = vmatpush1.bf16.msra.mxu0 %v6372
    %6390 = vmatprep.subr.bf16.mxu0 0
    %6391 = vmatpush2.bf16.msra.mxu0 0
    %6392 = vmatprep.subr.bf16.mxu0 0
    %6393 = vmatpush2.bf16.msra.mxu0 0
    %6394 = vmatprep.subr.bf16.mxu0 0
    %6395 = vmatpush2.bf16.msra.mxu0 0
    %6396 = vmatprep.subr.bf16.mxu0 0
    %6397 = vmatpush2.bf16.msra.mxu0 0
    %6398 = vmatprep.subr.bf16.mxu0 0
    %6399 = vmatpush2.bf16.msra.mxu0 0
    %6400 = vmatprep.subr.bf16.mxu0 0
    %6401 = vmatpush2.bf16.msra.mxu0 0
    %6402 = vmatprep.subr.bf16.mxu0 0
    %6403 = vmatpush2.bf16.msra.mxu0 0
    %6404 = vmatprep.subr.bf16.mxu0 0
    %6405 = vmatpush2.bf16.msra.mxu0 0
    %6406 = vmatprep.mubr.bf16.mxu0 0
    %6407 = vmatmul.mubr.bf16.gmra.mxu0 %v6369
    %v6408 = vpop.f32.mrf.mxu0
    %v6409 = vadd.f32 0.0, %v6408
    %v6410 = vpop.f32.mrf.mxu0
    %v6411 = vpop.f32.mrf.mxu0
    %v6412 = vpop.f32.mrf.mxu0
    %6413 = vdwg.mxu0
    %6414 = vrot.lane.b32.xlu0 %v892, 80
    %v6415 = vpop.permute.xlu0 %6414
    %v6417 = vsel %vm2428, %v6335, 0
    %v6420 = vsel %vm2818, %v6415, 0
    %6422 = vmatprep.subr.bf16.mxu0 0
    %6423 = vmatpush1.bf16.msra.mxu0 0
    %6424 = vmatprep.subr.bf16.mxu0 0
    %6425 = vmatpush1.bf16.msra.mxu0 0
    %6426 = vmatprep.subr.bf16.mxu0 0
    %6427 = vmatpush1.bf16.msra.mxu0 0
    %6428 = vmatprep.subr.bf16.mxu0 0
    %6429 = vmatpush1.bf16.msra.mxu0 0
    %6430 = vmatprep.subr.bf16.mxu0 0
    %6431 = vmatpush1.bf16.msra.mxu0 0
    %6432 = vmatprep.subr.bf16.mxu0 0
    %6433 = vmatpush1.bf16.msra.mxu0 0
    %6434 = vmatprep.subr.bf16.mxu0 0
    %6435 = vmatpush1.bf16.msra.mxu0 0
    %6436 = vmatprep.subr.bf16.mxu0 0
    %6437 = vmatpush1.bf16.msra.mxu0 %v6420
    %6438 = vmatprep.subr.bf16.mxu0 0
    %6439 = vmatpush2.bf16.msra.mxu0 0
    %6440 = vmatprep.subr.bf16.mxu0 0
    %6441 = vmatpush2.bf16.msra.mxu0 0
    %6442 = vmatprep.subr.bf16.mxu0 0
    %6443 = vmatpush2.bf16.msra.mxu0 0
    %6444 = vmatprep.subr.bf16.mxu0 0
    %6445 = vmatpush2.bf16.msra.mxu0 0
    %6446 = vmatprep.subr.bf16.mxu0 0
    %6447 = vmatpush2.bf16.msra.mxu0 0
    %6448 = vmatprep.subr.bf16.mxu0 0
    %6449 = vmatpush2.bf16.msra.mxu0 0
    %6450 = vmatprep.subr.bf16.mxu0 0
    %6451 = vmatpush2.bf16.msra.mxu0 0
    %6452 = vmatprep.subr.bf16.mxu0 0
    %6453 = vmatpush2.bf16.msra.mxu0 0
    %6454 = vmatprep.mubr.bf16.mxu0 0
    %6455 = vmatmul.mubr.bf16.gmra.mxu0 %v6417
    %v6456 = vpop.f32.mrf.mxu0
    %v6457 = vadd.f32 0.0, %v6456
    %v6458 = vpop.f32.mrf.mxu0
    %v6459 = vpop.f32.mrf.mxu0
    %v6460 = vpop.f32.mrf.mxu0
    %6461 = vdwg.mxu0
    %6462 = vrot.lane.b32.xlu0 %v893, 80
    %v6463 = vpop.permute.xlu0 %6462
    %v6465 = vsel %vm2428, %v6336, 0
    %v6468 = vsel %vm2818, %v6463, 0
    %6470 = vmatprep.subr.bf16.mxu0 0
    %6471 = vmatpush1.bf16.msra.mxu0 0
    %6472 = vmatprep.subr.bf16.mxu0 0
    %6473 = vmatpush1.bf16.msra.mxu0 0
    %6474 = vmatprep.subr.bf16.mxu0 0
    %6475 = vmatpush1.bf16.msra.mxu0 0
    %6476 = vmatprep.subr.bf16.mxu0 0
    %6477 = vmatpush1.bf16.msra.mxu0 0
    %6478 = vmatprep.subr.bf16.mxu0 0
    %6479 = vmatpush1.bf16.msra.mxu0 0
    %6480 = vmatprep.subr.bf16.mxu0 0
    %6481 = vmatpush1.bf16.msra.mxu0 0
    %6482 = vmatprep.subr.bf16.mxu0 0
    %6483 = vmatpush1.bf16.msra.mxu0 0
    %6484 = vmatprep.subr.bf16.mxu0 0
    %6485 = vmatpush1.bf16.msra.mxu0 %v6468
    %6486 = vmatprep.subr.bf16.mxu0 0
    %6487 = vmatpush2.bf16.msra.mxu0 0
    %6488 = vmatprep.subr.bf16.mxu0 0
    %6489 = vmatpush2.bf16.msra.mxu0 0
    %6490 = vmatprep.subr.bf16.mxu0 0
    %6491 = vmatpush2.bf16.msra.mxu0 0
    %6492 = vmatprep.subr.bf16.mxu0 0
    %6493 = vmatpush2.bf16.msra.mxu0 0
    %6494 = vmatprep.subr.bf16.mxu0 0
    %6495 = vmatpush2.bf16.msra.mxu0 0
    %6496 = vmatprep.subr.bf16.mxu0 0
    %6497 = vmatpush2.bf16.msra.mxu0 0
    %6498 = vmatprep.subr.bf16.mxu0 0
    %6499 = vmatpush2.bf16.msra.mxu0 0
    %6500 = vmatprep.subr.bf16.mxu0 0
    %6501 = vmatpush2.bf16.msra.mxu0 0
    %6502 = vmatprep.mubr.bf16.mxu0 0
    %6503 = vmatmul.mubr.bf16.gmra.mxu0 %v6465
    %v6504 = vpop.f32.mrf.mxu0
    %v6505 = vadd.f32 0.0, %v6504
    %v6506 = vpop.f32.mrf.mxu0
    %v6507 = vpop.f32.mrf.mxu0
    %v6508 = vpop.f32.mrf.mxu0
    %6509 = vdwg.mxu0
    %6510 = vrot.lane.b32.xlu0 %v894, 80
    %v6511 = vpop.permute.xlu0 %6510
    %v6513 = vsel %vm2428, %v6337, 0
    %v6516 = vsel %vm2818, %v6511, 0
    %6518 = vmatprep.subr.bf16.mxu0 0
    %6519 = vmatpush1.bf16.msra.mxu0 0
    %6520 = vmatprep.subr.bf16.mxu0 0
    %6521 = vmatpush1.bf16.msra.mxu0 0
    %6522 = vmatprep.subr.bf16.mxu0 0
    %6523 = vmatpush1.bf16.msra.mxu0 0
    %6524 = vmatprep.subr.bf16.mxu0 0
    %6525 = vmatpush1.bf16.msra.mxu0 0
    %6526 = vmatprep.subr.bf16.mxu0 0
    %6527 = vmatpush1.bf16.msra.mxu0 0
    %6528 = vmatprep.subr.bf16.mxu0 0
    %6529 = vmatpush1.bf16.msra.mxu0 0
    %6530 = vmatprep.subr.bf16.mxu0 0
    %6531 = vmatpush1.bf16.msra.mxu0 0
    %6532 = vmatprep.subr.bf16.mxu0 0
    %6533 = vmatpush1.bf16.msra.mxu0 %v6516
    %6534 = vmatprep.subr.bf16.mxu0 0
    %6535 = vmatpush2.bf16.msra.mxu0 0
    %6536 = vmatprep.subr.bf16.mxu0 0
    %6537 = vmatpush2.bf16.msra.mxu0 0
    %6538 = vmatprep.subr.bf16.mxu0 0
    %6539 = vmatpush2.bf16.msra.mxu0 0
    %6540 = vmatprep.subr.bf16.mxu0 0
    %6541 = vmatpush2.bf16.msra.mxu0 0
    %6542 = vmatprep.subr.bf16.mxu0 0
    %6543 = vmatpush2.bf16.msra.mxu0 0
    %6544 = vmatprep.subr.bf16.mxu0 0
    %6545 = vmatpush2.bf16.msra.mxu0 0
    %6546 = vmatprep.subr.bf16.mxu0 0
    %6547 = vmatpush2.bf16.msra.mxu0 0
    %6548 = vmatprep.subr.bf16.mxu0 0
    %6549 = vmatpush2.bf16.msra.mxu0 0
    %6550 = vmatprep.mubr.bf16.mxu0 0
    %6551 = vmatmul.mubr.bf16.gmra.mxu0 %v6513
    %v6552 = vpop.f32.mrf.mxu0
    %v6553 = vadd.f32 0.0, %v6552
    %v6554 = vpop.f32.mrf.mxu0
    %v6555 = vpop.f32.mrf.mxu0
    %v6556 = vpop.f32.mrf.mxu0
    %6557 = vdwg.mxu0
    %6558 = vrot.lane.b32.xlu0 %v895, 80
    %v6559 = vpop.permute.xlu0 %6558
    %v6561 = vsel %vm2428, %v6338, 0
    %v6564 = vsel %vm2818, %v6559, 0
    %6566 = vmatprep.subr.bf16.mxu0 0
    %6567 = vmatpush1.bf16.msra.mxu0 0
    %6568 = vmatprep.subr.bf16.mxu0 0
    %6569 = vmatpush1.bf16.msra.mxu0 0
    %6570 = vmatprep.subr.bf16.mxu0 0
    %6571 = vmatpush1.bf16.msra.mxu0 0
    %6572 = vmatprep.subr.bf16.mxu0 0
    %6573 = vmatpush1.bf16.msra.mxu0 0
    %6574 = vmatprep.subr.bf16.mxu0 0
    %6575 = vmatpush1.bf16.msra.mxu0 0
    %6576 = vmatprep.subr.bf16.mxu0 0
    %6577 = vmatpush1.bf16.msra.mxu0 0
    %6578 = vmatprep.subr.bf16.mxu0 0
    %6579 = vmatpush1.bf16.msra.mxu0 0
    %6580 = vmatprep.subr.bf16.mxu0 0
    %6581 = vmatpush1.bf16.msra.mxu0 %v6564
    %6582 = vmatprep.subr.bf16.mxu0 0
    %6583 = vmatpush2.bf16.msra.mxu0 0
    %6584 = vmatprep.subr.bf16.mxu0 0
    %6585 = vmatpush2.bf16.msra.mxu0 0
    %6586 = vmatprep.subr.bf16.mxu0 0
    %6587 = vmatpush2.bf16.msra.mxu0 0
    %6588 = vmatprep.subr.bf16.mxu0 0
    %6589 = vmatpush2.bf16.msra.mxu0 0
    %6590 = vmatprep.subr.bf16.mxu0 0
    %6591 = vmatpush2.bf16.msra.mxu0 0
    %6592 = vmatprep.subr.bf16.mxu0 0
    %6593 = vmatpush2.bf16.msra.mxu0 0
    %6594 = vmatprep.subr.bf16.mxu0 0
    %6595 = vmatpush2.bf16.msra.mxu0 0
    %6596 = vmatprep.subr.bf16.mxu0 0
    %6597 = vmatpush2.bf16.msra.mxu0 0
    %6598 = vmatprep.mubr.bf16.mxu0 0
    %6599 = vmatmul.mubr.bf16.gmra.mxu0 %v6561
    %v6600 = vpop.f32.mrf.mxu0
    %v6601 = vadd.f32 0.0, %v6600
    %v6602 = vpop.f32.mrf.mxu0
    %v6603 = vpop.f32.mrf.mxu0
    %v6604 = vpop.f32.mrf.mxu0
    %6605 = vdwg.mxu0
    %6606 = vrot.lane.b32.xlu0 %v896, 80
    %v6607 = vpop.permute.xlu0 %6606
    %v6609 = vsel %vm2428, %v6339, 0
    %v6612 = vsel %vm2818, %v6607, 0
    %6614 = vmatprep.subr.bf16.mxu0 0
    %6615 = vmatpush1.bf16.msra.mxu0 0
    %6616 = vmatprep.subr.bf16.mxu0 0
    %6617 = vmatpush1.bf16.msra.mxu0 0
    %6618 = vmatprep.subr.bf16.mxu0 0
    %6619 = vmatpush1.bf16.msra.mxu0 0
    %6620 = vmatprep.subr.bf16.mxu0 0
    %6621 = vmatpush1.bf16.msra.mxu0 0
    %6622 = vmatprep.subr.bf16.mxu0 0
    %6623 = vmatpush1.bf16.msra.mxu0 0
    %6624 = vmatprep.subr.bf16.mxu0 0
    %6625 = vmatpush1.bf16.msra.mxu0 0
    %6626 = vmatprep.subr.bf16.mxu0 0
    %6627 = vmatpush1.bf16.msra.mxu0 0
    %6628 = vmatprep.subr.bf16.mxu0 0
    %6629 = vmatpush1.bf16.msra.mxu0 %v6612
    %6630 = vmatprep.subr.bf16.mxu0 0
    %6631 = vmatpush2.bf16.msra.mxu0 0
    %6632 = vmatprep.subr.bf16.mxu0 0
    %6633 = vmatpush2.bf16.msra.mxu0 0
    %6634 = vmatprep.subr.bf16.mxu0 0
    %6635 = vmatpush2.bf16.msra.mxu0 0
    %6636 = vmatprep.subr.bf16.mxu0 0
    %6637 = vmatpush2.bf16.msra.mxu0 0
    %6638 = vmatprep.subr.bf16.mxu0 0
    %6639 = vmatpush2.bf16.msra.mxu0 0
    %6640 = vmatprep.subr.bf16.mxu0 0
    %6641 = vmatpush2.bf16.msra.mxu0 0
    %6642 = vmatprep.subr.bf16.mxu0 0
    %6643 = vmatpush2.bf16.msra.mxu0 0
    %6644 = vmatprep.subr.bf16.mxu0 0
    %6645 = vmatpush2.bf16.msra.mxu0 0
    %6646 = vmatprep.mubr.bf16.mxu0 0
    %6647 = vmatmul.mubr.bf16.gmra.mxu0 %v6609
    %v6648 = vpop.f32.mrf.mxu0
    %v6649 = vadd.f32 0.0, %v6648
    %v6650 = vpop.f32.mrf.mxu0
    %v6651 = vpop.f32.mrf.mxu0
    %v6652 = vpop.f32.mrf.mxu0
    %6653 = vdwg.mxu0
    %6654 = vrot.lane.b32.xlu0 %v897, 80
    %v6655 = vpop.permute.xlu0 %6654
    %v6657 = vsel %vm2428, %v6340, 0
    %v6660 = vsel %vm2818, %v6655, 0
    %6662 = vmatprep.subr.bf16.mxu0 0
    %6663 = vmatpush1.bf16.msra.mxu0 0
    %6664 = vmatprep.subr.bf16.mxu0 0
    %6665 = vmatpush1.bf16.msra.mxu0 0
    %6666 = vmatprep.subr.bf16.mxu0 0
    %6667 = vmatpush1.bf16.msra.mxu0 0
    %6668 = vmatprep.subr.bf16.mxu0 0
    %6669 = vmatpush1.bf16.msra.mxu0 0
    %6670 = vmatprep.subr.bf16.mxu0 0
    %6671 = vmatpush1.bf16.msra.mxu0 0
    %6672 = vmatprep.subr.bf16.mxu0 0
    %6673 = vmatpush1.bf16.msra.mxu0 0
    %6674 = vmatprep.subr.bf16.mxu0 0
    %6675 = vmatpush1.bf16.msra.mxu0 0
    %6676 = vmatprep.subr.bf16.mxu0 0
    %6677 = vmatpush1.bf16.msra.mxu0 %v6660
    %6678 = vmatprep.subr.bf16.mxu0 0
    %6679 = vmatpush2.bf16.msra.mxu0 0
    %6680 = vmatprep.subr.bf16.mxu0 0
    %6681 = vmatpush2.bf16.msra.mxu0 0
    %6682 = vmatprep.subr.bf16.mxu0 0
    %6683 = vmatpush2.bf16.msra.mxu0 0
    %6684 = vmatprep.subr.bf16.mxu0 0
    %6685 = vmatpush2.bf16.msra.mxu0 0
    %6686 = vmatprep.subr.bf16.mxu0 0
    %6687 = vmatpush2.bf16.msra.mxu0 0
    %6688 = vmatprep.subr.bf16.mxu0 0
    %6689 = vmatpush2.bf16.msra.mxu0 0
    %6690 = vmatprep.subr.bf16.mxu0 0
    %6691 = vmatpush2.bf16.msra.mxu0 0
    %6692 = vmatprep.subr.bf16.mxu0 0
    %6693 = vmatpush2.bf16.msra.mxu0 0
    %6694 = vmatprep.mubr.bf16.mxu0 0
    %6695 = vmatmul.mubr.bf16.gmra.mxu0 %v6657
    %v6696 = vpop.f32.mrf.mxu0
    %v6697 = vadd.f32 0.0, %v6696
    %v6698 = vpop.f32.mrf.mxu0
    %v6699 = vpop.f32.mrf.mxu0
    %v6700 = vpop.f32.mrf.mxu0
    %6701 = vdwg.mxu0
    %6702 = vrot.lane.b32.xlu0 %v898, 80
    %v6703 = vpop.permute.xlu0 %6702
    %v6705 = vsel %vm2428, %v6341, 0
    %v6708 = vsel %vm2818, %v6703, 0
    %6710 = vmatprep.subr.bf16.mxu0 0
    %6711 = vmatpush1.bf16.msra.mxu0 0
    %6712 = vmatprep.subr.bf16.mxu0 0
    %6713 = vmatpush1.bf16.msra.mxu0 0
    %6714 = vmatprep.subr.bf16.mxu0 0
    %6715 = vmatpush1.bf16.msra.mxu0 0
    %6716 = vmatprep.subr.bf16.mxu0 0
    %6717 = vmatpush1.bf16.msra.mxu0 0
    %6718 = vmatprep.subr.bf16.mxu0 0
    %6719 = vmatpush1.bf16.msra.mxu0 0
    %6720 = vmatprep.subr.bf16.mxu0 0
    %6721 = vmatpush1.bf16.msra.mxu0 0
    %6722 = vmatprep.subr.bf16.mxu0 0
    %6723 = vmatpush1.bf16.msra.mxu0 0
    %6724 = vmatprep.subr.bf16.mxu0 0
    %6725 = vmatpush1.bf16.msra.mxu0 %v6708
    %6726 = vmatprep.subr.bf16.mxu0 0
    %6727 = vmatpush2.bf16.msra.mxu0 0
    %6728 = vmatprep.subr.bf16.mxu0 0
    %6729 = vmatpush2.bf16.msra.mxu0 0
    %6730 = vmatprep.subr.bf16.mxu0 0
    %6731 = vmatpush2.bf16.msra.mxu0 0
    %6732 = vmatprep.subr.bf16.mxu0 0
    %6733 = vmatpush2.bf16.msra.mxu0 0
    %6734 = vmatprep.subr.bf16.mxu0 0
    %6735 = vmatpush2.bf16.msra.mxu0 0
    %6736 = vmatprep.subr.bf16.mxu0 0
    %6737 = vmatpush2.bf16.msra.mxu0 0
    %6738 = vmatprep.subr.bf16.mxu0 0
    %6739 = vmatpush2.bf16.msra.mxu0 0
    %6740 = vmatprep.subr.bf16.mxu0 0
    %6741 = vmatpush2.bf16.msra.mxu0 0
    %6742 = vmatprep.mubr.bf16.mxu0 0
    %6743 = vmatmul.mubr.bf16.gmra.mxu0 %v6705
    %v6744 = vpop.f32.mrf.mxu0
    %v6745 = vadd.f32 0.0, %v6744
    %v6746 = vpop.f32.mrf.mxu0
    %v6747 = vpop.f32.mrf.mxu0
    %v6748 = vpop.f32.mrf.mxu0
    %6749 = vdwg.mxu0
    %6750 = vrot.lane.b32.xlu0 %v899, 80
    %v6751 = vpop.permute.xlu0 %6750
    %v6753 = vsel %vm2428, %v6342, 0
    %v6756 = vsel %vm2818, %v6751, 0
    %6758 = vmatprep.subr.bf16.mxu0 0
    %6759 = vmatpush1.bf16.msra.mxu0 0
    %6760 = vmatprep.subr.bf16.mxu0 0
    %6761 = vmatpush1.bf16.msra.mxu0 0
    %6762 = vmatprep.subr.bf16.mxu0 0
    %6763 = vmatpush1.bf16.msra.mxu0 0
    %6764 = vmatprep.subr.bf16.mxu0 0
    %6765 = vmatpush1.bf16.msra.mxu0 0
    %6766 = vmatprep.subr.bf16.mxu0 0
    %6767 = vmatpush1.bf16.msra.mxu0 0
    %6768 = vmatprep.subr.bf16.mxu0 0
    %6769 = vmatpush1.bf16.msra.mxu0 0
    %6770 = vmatprep.subr.bf16.mxu0 0
    %6771 = vmatpush1.bf16.msra.mxu0 0
    %6772 = vmatprep.subr.bf16.mxu0 0
    %6773 = vmatpush1.bf16.msra.mxu0 %v6756
    %6774 = vmatprep.subr.bf16.mxu0 0
    %6775 = vmatpush2.bf16.msra.mxu0 0
    %6776 = vmatprep.subr.bf16.mxu0 0
    %6777 = vmatpush2.bf16.msra.mxu0 0
    %6778 = vmatprep.subr.bf16.mxu0 0
    %6779 = vmatpush2.bf16.msra.mxu0 0
    %6780 = vmatprep.subr.bf16.mxu0 0
    %6781 = vmatpush2.bf16.msra.mxu0 0
    %6782 = vmatprep.subr.bf16.mxu0 0
    %6783 = vmatpush2.bf16.msra.mxu0 0
    %6784 = vmatprep.subr.bf16.mxu0 0
    %6785 = vmatpush2.bf16.msra.mxu0 0
    %6786 = vmatprep.subr.bf16.mxu0 0
    %6787 = vmatpush2.bf16.msra.mxu0 0
    %6788 = vmatprep.subr.bf16.mxu0 0
    %6789 = vmatpush2.bf16.msra.mxu0 0
    %6790 = vmatprep.mubr.bf16.mxu0 0
    %6791 = vmatmul.mubr.bf16.gmra.mxu0 %v6753
    %v6792 = vpop.f32.mrf.mxu0
    %v6793 = vadd.f32 0.0, %v6792
    %v6794 = vpop.f32.mrf.mxu0
    %v6795 = vpop.f32.mrf.mxu0
    %v6796 = vpop.f32.mrf.mxu0
    %6797 = vdwg.mxu0
    %6798 = vrot.lane.b32.xlu0 %v900, 80
    %v6799 = vpop.permute.xlu0 %6798
    %v6801 = vsel %vm2428, %v6343, 0
    %v6804 = vsel %vm2818, %v6799, 0
    %6806 = vmatprep.subr.bf16.mxu0 0
    %6807 = vmatpush1.bf16.msra.mxu0 0
    %6808 = vmatprep.subr.bf16.mxu0 0
    %6809 = vmatpush1.bf16.msra.mxu0 0
    %6810 = vmatprep.subr.bf16.mxu0 0
    %6811 = vmatpush1.bf16.msra.mxu0 0
    %6812 = vmatprep.subr.bf16.mxu0 0
    %6813 = vmatpush1.bf16.msra.mxu0 0
    %6814 = vmatprep.subr.bf16.mxu0 0
    %6815 = vmatpush1.bf16.msra.mxu0 0
    %6816 = vmatprep.subr.bf16.mxu0 0
    %6817 = vmatpush1.bf16.msra.mxu0 0
    %6818 = vmatprep.subr.bf16.mxu0 0
    %6819 = vmatpush1.bf16.msra.mxu0 0
    %6820 = vmatprep.subr.bf16.mxu0 0
    %6821 = vmatpush1.bf16.msra.mxu0 %v6804
    %6822 = vmatprep.subr.bf16.mxu0 0
    %6823 = vmatpush2.bf16.msra.mxu0 0
    %6824 = vmatprep.subr.bf16.mxu0 0
    %6825 = vmatpush2.bf16.msra.mxu0 0
    %6826 = vmatprep.subr.bf16.mxu0 0
    %6827 = vmatpush2.bf16.msra.mxu0 0
    %6828 = vmatprep.subr.bf16.mxu0 0
    %6829 = vmatpush2.bf16.msra.mxu0 0
    %6830 = vmatprep.subr.bf16.mxu0 0
    %6831 = vmatpush2.bf16.msra.mxu0 0
    %6832 = vmatprep.subr.bf16.mxu0 0
    %6833 = vmatpush2.bf16.msra.mxu0 0
    %6834 = vmatprep.subr.bf16.mxu0 0
    %6835 = vmatpush2.bf16.msra.mxu0 0
    %6836 = vmatprep.subr.bf16.mxu0 0
    %6837 = vmatpush2.bf16.msra.mxu0 0
    %6838 = vmatprep.mubr.bf16.mxu0 0
    %6839 = vmatmul.mubr.bf16.gmra.mxu0 %v6801
    %v6840 = vpop.f32.mrf.mxu0
    %v6841 = vadd.f32 0.0, %v6840
    %v6842 = vpop.f32.mrf.mxu0
    %v6843 = vpop.f32.mrf.mxu0
    %v6844 = vpop.f32.mrf.mxu0
    %6845 = vdwg.mxu0
    %6846 = vrot.lane.b32.xlu0 %v901, 80
    %v6847 = vpop.permute.xlu0 %6846
    %v6849 = vsel %vm2428, %v6344, 0
    %v6852 = vsel %vm2818, %v6847, 0
    %6854 = vmatprep.subr.bf16.mxu0 0
    %6855 = vmatpush1.bf16.msra.mxu0 0
    %6856 = vmatprep.subr.bf16.mxu0 0
    %6857 = vmatpush1.bf16.msra.mxu0 0
    %6858 = vmatprep.subr.bf16.mxu0 0
    %6859 = vmatpush1.bf16.msra.mxu0 0
    %6860 = vmatprep.subr.bf16.mxu0 0
    %6861 = vmatpush1.bf16.msra.mxu0 0
    %6862 = vmatprep.subr.bf16.mxu0 0
    %6863 = vmatpush1.bf16.msra.mxu0 0
    %6864 = vmatprep.subr.bf16.mxu0 0
    %6865 = vmatpush1.bf16.msra.mxu0 0
    %6866 = vmatprep.subr.bf16.mxu0 0
    %6867 = vmatpush1.bf16.msra.mxu0 0
    %6868 = vmatprep.subr.bf16.mxu0 0
    %6869 = vmatpush1.bf16.msra.mxu0 %v6852
    %6870 = vmatprep.subr.bf16.mxu0 0
    %6871 = vmatpush2.bf16.msra.mxu0 0
    %6872 = vmatprep.subr.bf16.mxu0 0
    %6873 = vmatpush2.bf16.msra.mxu0 0
    %6874 = vmatprep.subr.bf16.mxu0 0
    %6875 = vmatpush2.bf16.msra.mxu0 0
    %6876 = vmatprep.subr.bf16.mxu0 0
    %6877 = vmatpush2.bf16.msra.mxu0 0
    %6878 = vmatprep.subr.bf16.mxu0 0
    %6879 = vmatpush2.bf16.msra.mxu0 0
    %6880 = vmatprep.subr.bf16.mxu0 0
    %6881 = vmatpush2.bf16.msra.mxu0 0
    %6882 = vmatprep.subr.bf16.mxu0 0
    %6883 = vmatpush2.bf16.msra.mxu0 0
    %6884 = vmatprep.subr.bf16.mxu0 0
    %6885 = vmatpush2.bf16.msra.mxu0 0
    %6886 = vmatprep.mubr.bf16.mxu0 0
    %6887 = vmatmul.mubr.bf16.gmra.mxu0 %v6849
    %v6888 = vpop.f32.mrf.mxu0
    %v6889 = vadd.f32 0.0, %v6888
    %v6890 = vpop.f32.mrf.mxu0
    %v6891 = vpop.f32.mrf.mxu0
    %v6892 = vpop.f32.mrf.mxu0
    %6893 = vdwg.mxu0
    %6894 = vrot.lane.b32.xlu0 %v902, 80
    %v6895 = vpop.permute.xlu0 %6894
    %v6897 = vsel %vm2428, %v6345, 0
    %v6900 = vsel %vm2818, %v6895, 0
    %6902 = vmatprep.subr.bf16.mxu0 0
    %6903 = vmatpush1.bf16.msra.mxu0 0
    %6904 = vmatprep.subr.bf16.mxu0 0
    %6905 = vmatpush1.bf16.msra.mxu0 0
    %6906 = vmatprep.subr.bf16.mxu0 0
    %6907 = vmatpush1.bf16.msra.mxu0 0
    %6908 = vmatprep.subr.bf16.mxu0 0
    %6909 = vmatpush1.bf16.msra.mxu0 0
    %6910 = vmatprep.subr.bf16.mxu0 0
    %6911 = vmatpush1.bf16.msra.mxu0 0
    %6912 = vmatprep.subr.bf16.mxu0 0
    %6913 = vmatpush1.bf16.msra.mxu0 0
    %6914 = vmatprep.subr.bf16.mxu0 0
    %6915 = vmatpush1.bf16.msra.mxu0 0
    %6916 = vmatprep.subr.bf16.mxu0 0
    %6917 = vmatpush1.bf16.msra.mxu0 %v6900
    %6918 = vmatprep.subr.bf16.mxu0 0
    %6919 = vmatpush2.bf16.msra.mxu0 0
    %6920 = vmatprep.subr.bf16.mxu0 0
    %6921 = vmatpush2.bf16.msra.mxu0 0
    %6922 = vmatprep.subr.bf16.mxu0 0
    %6923 = vmatpush2.bf16.msra.mxu0 0
    %6924 = vmatprep.subr.bf16.mxu0 0
    %6925 = vmatpush2.bf16.msra.mxu0 0
    %6926 = vmatprep.subr.bf16.mxu0 0
    %6927 = vmatpush2.bf16.msra.mxu0 0
    %6928 = vmatprep.subr.bf16.mxu0 0
    %6929 = vmatpush2.bf16.msra.mxu0 0
    %6930 = vmatprep.subr.bf16.mxu0 0
    %6931 = vmatpush2.bf16.msra.mxu0 0
    %6932 = vmatprep.subr.bf16.mxu0 0
    %6933 = vmatpush2.bf16.msra.mxu0 0
    %6934 = vmatprep.mubr.bf16.mxu0 0
    %6935 = vmatmul.mubr.bf16.gmra.mxu0 %v6897
    %v6936 = vpop.f32.mrf.mxu0
    %v6937 = vadd.f32 0.0, %v6936
    %v6938 = vpop.f32.mrf.mxu0
    %v6939 = vpop.f32.mrf.mxu0
    %v6940 = vpop.f32.mrf.mxu0
    %6941 = vdwg.mxu0
    %6942 = vrot.lane.b32.xlu0 %v903, 80
    %v6943 = vpop.permute.xlu0 %6942
    %v6945 = vsel %vm2428, %v6346, 0
    %v6948 = vsel %vm2818, %v6943, 0
    %6950 = vmatprep.subr.bf16.mxu0 0
    %6951 = vmatpush1.bf16.msra.mxu0 0
    %6952 = vmatprep.subr.bf16.mxu0 0
    %6953 = vmatpush1.bf16.msra.mxu0 0
    %6954 = vmatprep.subr.bf16.mxu0 0
    %6955 = vmatpush1.bf16.msra.mxu0 0
    %6956 = vmatprep.subr.bf16.mxu0 0
    %6957 = vmatpush1.bf16.msra.mxu0 0
    %6958 = vmatprep.subr.bf16.mxu0 0
    %6959 = vmatpush1.bf16.msra.mxu0 0
    %6960 = vmatprep.subr.bf16.mxu0 0
    %6961 = vmatpush1.bf16.msra.mxu0 0
    %6962 = vmatprep.subr.bf16.mxu0 0
    %6963 = vmatpush1.bf16.msra.mxu0 0
    %6964 = vmatprep.subr.bf16.mxu0 0
    %6965 = vmatpush1.bf16.msra.mxu0 %v6948
    %6966 = vmatprep.subr.bf16.mxu0 0
    %6967 = vmatpush2.bf16.msra.mxu0 0
    %6968 = vmatprep.subr.bf16.mxu0 0
    %6969 = vmatpush2.bf16.msra.mxu0 0
    %6970 = vmatprep.subr.bf16.mxu0 0
    %6971 = vmatpush2.bf16.msra.mxu0 0
    %6972 = vmatprep.subr.bf16.mxu0 0
    %6973 = vmatpush2.bf16.msra.mxu0 0
    %6974 = vmatprep.subr.bf16.mxu0 0
    %6975 = vmatpush2.bf16.msra.mxu0 0
    %6976 = vmatprep.subr.bf16.mxu0 0
    %6977 = vmatpush2.bf16.msra.mxu0 0
    %6978 = vmatprep.subr.bf16.mxu0 0
    %6979 = vmatpush2.bf16.msra.mxu0 0
    %6980 = vmatprep.subr.bf16.mxu0 0
    %6981 = vmatpush2.bf16.msra.mxu0 0
    %6982 = vmatprep.mubr.bf16.mxu0 0
    %6983 = vmatmul.mubr.bf16.gmra.mxu0 %v6945
    %v6984 = vpop.f32.mrf.mxu0
    %v6985 = vadd.f32 0.0, %v6984
    %v6986 = vpop.f32.mrf.mxu0
    %v6987 = vpop.f32.mrf.mxu0
    %v6988 = vpop.f32.mrf.mxu0
    %6989 = vdwg.mxu0
    %6990 = vrot.lane.b32.xlu0 %v904, 80
    %v6991 = vpop.permute.xlu0 %6990
    %v6993 = vsel %vm2428, %v6347, 0
    %v6996 = vsel %vm2818, %v6991, 0
    %6998 = vmatprep.subr.bf16.mxu0 0
    %6999 = vmatpush1.bf16.msra.mxu0 0
    %7000 = vmatprep.subr.bf16.mxu0 0
    %7001 = vmatpush1.bf16.msra.mxu0 0
    %7002 = vmatprep.subr.bf16.mxu0 0
    %7003 = vmatpush1.bf16.msra.mxu0 0
    %7004 = vmatprep.subr.bf16.mxu0 0
    %7005 = vmatpush1.bf16.msra.mxu0 0
    %7006 = vmatprep.subr.bf16.mxu0 0
    %7007 = vmatpush1.bf16.msra.mxu0 0
    %7008 = vmatprep.subr.bf16.mxu0 0
    %7009 = vmatpush1.bf16.msra.mxu0 0
    %7010 = vmatprep.subr.bf16.mxu0 0
    %7011 = vmatpush1.bf16.msra.mxu0 0
    %7012 = vmatprep.subr.bf16.mxu0 0
    %7013 = vmatpush1.bf16.msra.mxu0 %v6996
    %7014 = vmatprep.subr.bf16.mxu0 0
    %7015 = vmatpush2.bf16.msra.mxu0 0
    %7016 = vmatprep.subr.bf16.mxu0 0
    %7017 = vmatpush2.bf16.msra.mxu0 0
    %7018 = vmatprep.subr.bf16.mxu0 0
    %7019 = vmatpush2.bf16.msra.mxu0 0
    %7020 = vmatprep.subr.bf16.mxu0 0
    %7021 = vmatpush2.bf16.msra.mxu0 0
    %7022 = vmatprep.subr.bf16.mxu0 0
    %7023 = vmatpush2.bf16.msra.mxu0 0
    %7024 = vmatprep.subr.bf16.mxu0 0
    %7025 = vmatpush2.bf16.msra.mxu0 0
    %7026 = vmatprep.subr.bf16.mxu0 0
    %7027 = vmatpush2.bf16.msra.mxu0 0
    %7028 = vmatprep.subr.bf16.mxu0 0
    %7029 = vmatpush2.bf16.msra.mxu0 0
    %7030 = vmatprep.mubr.bf16.mxu0 0
    %7031 = vmatmul.mubr.bf16.gmra.mxu0 %v6993
    %v7032 = vpop.f32.mrf.mxu0
    %v7033 = vadd.f32 0.0, %v7032
    %v7034 = vpop.f32.mrf.mxu0
    %v7035 = vpop.f32.mrf.mxu0
    %v7036 = vpop.f32.mrf.mxu0
    %7037 = vdwg.mxu0
    %7038 = vrot.lane.b32.xlu0 %v905, 80
    %v7039 = vpop.permute.xlu0 %7038
    %v7041 = vsel %vm2428, %v6348, 0
    %v7044 = vsel %vm2818, %v7039, 0
    %7046 = vmatprep.subr.bf16.mxu0 0
    %7047 = vmatpush1.bf16.msra.mxu0 0
    %7048 = vmatprep.subr.bf16.mxu0 0
    %7049 = vmatpush1.bf16.msra.mxu0 0
    %7050 = vmatprep.subr.bf16.mxu0 0
    %7051 = vmatpush1.bf16.msra.mxu0 0
    %7052 = vmatprep.subr.bf16.mxu0 0
    %7053 = vmatpush1.bf16.msra.mxu0 0
    %7054 = vmatprep.subr.bf16.mxu0 0
    %7055 = vmatpush1.bf16.msra.mxu0 0
    %7056 = vmatprep.subr.bf16.mxu0 0
    %7057 = vmatpush1.bf16.msra.mxu0 0
    %7058 = vmatprep.subr.bf16.mxu0 0
    %7059 = vmatpush1.bf16.msra.mxu0 0
    %7060 = vmatprep.subr.bf16.mxu0 0
    %7061 = vmatpush1.bf16.msra.mxu0 %v7044
    %7062 = vmatprep.subr.bf16.mxu0 0
    %7063 = vmatpush2.bf16.msra.mxu0 0
    %7064 = vmatprep.subr.bf16.mxu0 0
    %7065 = vmatpush2.bf16.msra.mxu0 0
    %7066 = vmatprep.subr.bf16.mxu0 0
    %7067 = vmatpush2.bf16.msra.mxu0 0
    %7068 = vmatprep.subr.bf16.mxu0 0
    %7069 = vmatpush2.bf16.msra.mxu0 0
    %7070 = vmatprep.subr.bf16.mxu0 0
    %7071 = vmatpush2.bf16.msra.mxu0 0
    %7072 = vmatprep.subr.bf16.mxu0 0
    %7073 = vmatpush2.bf16.msra.mxu0 0
    %7074 = vmatprep.subr.bf16.mxu0 0
    %7075 = vmatpush2.bf16.msra.mxu0 0
    %7076 = vmatprep.subr.bf16.mxu0 0
    %7077 = vmatpush2.bf16.msra.mxu0 0
    %7078 = vmatprep.mubr.bf16.mxu0 0
    %7079 = vmatmul.mubr.bf16.gmra.mxu0 %v7041
    %v7080 = vpop.f32.mrf.mxu0
    %v7081 = vadd.f32 0.0, %v7080
    %v7082 = vpop.f32.mrf.mxu0
    %v7083 = vpop.f32.mrf.mxu0
    %v7084 = vpop.f32.mrf.mxu0
    %7085 = vdwg.mxu0
    %7086 = vrot.lane.b32.xlu0 %v906, 80
    %v7087 = vpop.permute.xlu0 %7086
    %v7089 = vsel %vm2428, %v6349, 0
    %v7092 = vsel %vm2818, %v7087, 0
    %7094 = vmatprep.subr.bf16.mxu0 0
    %7095 = vmatpush1.bf16.msra.mxu0 0
    %7096 = vmatprep.subr.bf16.mxu0 0
    %7097 = vmatpush1.bf16.msra.mxu0 0
    %7098 = vmatprep.subr.bf16.mxu0 0
    %7099 = vmatpush1.bf16.msra.mxu0 0
    %7100 = vmatprep.subr.bf16.mxu0 0
    %7101 = vmatpush1.bf16.msra.mxu0 0
    %7102 = vmatprep.subr.bf16.mxu0 0
    %7103 = vmatpush1.bf16.msra.mxu0 0
    %7104 = vmatprep.subr.bf16.mxu0 0
    %7105 = vmatpush1.bf16.msra.mxu0 0
    %7106 = vmatprep.subr.bf16.mxu0 0
    %7107 = vmatpush1.bf16.msra.mxu0 0
    %7108 = vmatprep.subr.bf16.mxu0 0
    %7109 = vmatpush1.bf16.msra.mxu0 %v7092
    %7110 = vmatprep.subr.bf16.mxu0 0
    %7111 = vmatpush2.bf16.msra.mxu0 0
    %7112 = vmatprep.subr.bf16.mxu0 0
    %7113 = vmatpush2.bf16.msra.mxu0 0
    %7114 = vmatprep.subr.bf16.mxu0 0
    %7115 = vmatpush2.bf16.msra.mxu0 0
    %7116 = vmatprep.subr.bf16.mxu0 0
    %7117 = vmatpush2.bf16.msra.mxu0 0
    %7118 = vmatprep.subr.bf16.mxu0 0
    %7119 = vmatpush2.bf16.msra.mxu0 0
    %7120 = vmatprep.subr.bf16.mxu0 0
    %7121 = vmatpush2.bf16.msra.mxu0 0
    %7122 = vmatprep.subr.bf16.mxu0 0
    %7123 = vmatpush2.bf16.msra.mxu0 0
    %7124 = vmatprep.subr.bf16.mxu0 0
    %7125 = vmatpush2.bf16.msra.mxu0 0
    %7126 = vmatprep.mubr.bf16.mxu0 0
    %7127 = vmatmul.mubr.bf16.gmra.mxu0 %v7089
    %v7128 = vpop.f32.mrf.mxu0
    %v7129 = vadd.f32 0.0, %v7128
    %v7130 = vpop.f32.mrf.mxu0
    %v7131 = vpop.f32.mrf.mxu0
    %v7132 = vpop.f32.mrf.mxu0
    %7133 = vdwg.mxu0
    %7134 = vrot.lane.b32.xlu0 %v907, 80
    %v7135 = vpop.permute.xlu0 %7134
    %v7137 = vsel %vm2428, %v6350, 0
    %v7140 = vsel %vm2818, %v7135, 0
    %7142 = vmatprep.subr.bf16.mxu0 0
    %7143 = vmatpush1.bf16.msra.mxu0 0
    %7144 = vmatprep.subr.bf16.mxu0 0
    %7145 = vmatpush1.bf16.msra.mxu0 0
    %7146 = vmatprep.subr.bf16.mxu0 0
    %7147 = vmatpush1.bf16.msra.mxu0 0
    %7148 = vmatprep.subr.bf16.mxu0 0
    %7149 = vmatpush1.bf16.msra.mxu0 0
    %7150 = vmatprep.subr.bf16.mxu0 0
    %7151 = vmatpush1.bf16.msra.mxu0 0
    %7152 = vmatprep.subr.bf16.mxu0 0
    %7153 = vmatpush1.bf16.msra.mxu0 0
    %7154 = vmatprep.subr.bf16.mxu0 0
    %7155 = vmatpush1.bf16.msra.mxu0 0
    %7156 = vmatprep.subr.bf16.mxu0 0
    %7157 = vmatpush1.bf16.msra.mxu0 %v7140
    %7158 = vmatprep.subr.bf16.mxu0 0
    %7159 = vmatpush2.bf16.msra.mxu0 0
    %7160 = vmatprep.subr.bf16.mxu0 0
    %7161 = vmatpush2.bf16.msra.mxu0 0
    %7162 = vmatprep.subr.bf16.mxu0 0
    %7163 = vmatpush2.bf16.msra.mxu0 0
    %7164 = vmatprep.subr.bf16.mxu0 0
    %7165 = vmatpush2.bf16.msra.mxu0 0
    %7166 = vmatprep.subr.bf16.mxu0 0
    %7167 = vmatpush2.bf16.msra.mxu0 0
    %7168 = vmatprep.subr.bf16.mxu0 0
    %7169 = vmatpush2.bf16.msra.mxu0 0
    %7170 = vmatprep.subr.bf16.mxu0 0
    %7171 = vmatpush2.bf16.msra.mxu0 0
    %7172 = vmatprep.subr.bf16.mxu0 0
    %7173 = vmatpush2.bf16.msra.mxu0 0
    %7174 = vmatprep.mubr.bf16.mxu0 0
    %7175 = vmatmul.mubr.bf16.gmra.mxu0 %v7137
    %v7176 = vpop.f32.mrf.mxu0
    %v7177 = vadd.f32 0.0, %v7176
    %v7178 = vpop.f32.mrf.mxu0
    %v7179 = vpop.f32.mrf.mxu0
    %v7180 = vpop.f32.mrf.mxu0
    %7181 = vdwg.mxu0
    %7182 = vrot.lane.b32.xlu0 %v908, 80
    %v7183 = vpop.permute.xlu0 %7182
    %v7185 = vsel %vm2428, %v6351, 0
    %v7188 = vsel %vm2818, %v7183, 0
    %7190 = vmatprep.subr.bf16.mxu0 0
    %7191 = vmatpush1.bf16.msra.mxu0 0
    %7192 = vmatprep.subr.bf16.mxu0 0
    %7193 = vmatpush1.bf16.msra.mxu0 0
    %7194 = vmatprep.subr.bf16.mxu0 0
    %7195 = vmatpush1.bf16.msra.mxu0 0
    %7196 = vmatprep.subr.bf16.mxu0 0
    %7197 = vmatpush1.bf16.msra.mxu0 0
    %7198 = vmatprep.subr.bf16.mxu0 0
    %7199 = vmatpush1.bf16.msra.mxu0 0
    %7200 = vmatprep.subr.bf16.mxu0 0
    %7201 = vmatpush1.bf16.msra.mxu0 0
    %7202 = vmatprep.subr.bf16.mxu0 0
    %7203 = vmatpush1.bf16.msra.mxu0 0
    %7204 = vmatprep.subr.bf16.mxu0 0
    %7205 = vmatpush1.bf16.msra.mxu0 %v7188
    %7206 = vmatprep.subr.bf16.mxu0 0
    %7207 = vmatpush2.bf16.msra.mxu0 0
    %7208 = vmatprep.subr.bf16.mxu0 0
    %7209 = vmatpush2.bf16.msra.mxu0 0
    %7210 = vmatprep.subr.bf16.mxu0 0
    %7211 = vmatpush2.bf16.msra.mxu0 0
    %7212 = vmatprep.subr.bf16.mxu0 0
    %7213 = vmatpush2.bf16.msra.mxu0 0
    %7214 = vmatprep.subr.bf16.mxu0 0
    %7215 = vmatpush2.bf16.msra.mxu0 0
    %7216 = vmatprep.subr.bf16.mxu0 0
    %7217 = vmatpush2.bf16.msra.mxu0 0
    %7218 = vmatprep.subr.bf16.mxu0 0
    %7219 = vmatpush2.bf16.msra.mxu0 0
    %7220 = vmatprep.subr.bf16.mxu0 0
    %7221 = vmatpush2.bf16.msra.mxu0 0
    %7222 = vmatprep.mubr.bf16.mxu0 0
    %7223 = vmatmul.mubr.bf16.gmra.mxu0 %v7185
    %v7224 = vpop.f32.mrf.mxu0
    %v7225 = vadd.f32 0.0, %v7224
    %v7226 = vpop.f32.mrf.mxu0
    %v7227 = vpop.f32.mrf.mxu0
    %v7228 = vpop.f32.mrf.mxu0
    %7229 = vdwg.mxu0
    %7230 = vrot.lane.b32.xlu0 %v909, 80
    %v7231 = vpop.permute.xlu0 %7230
    %v7233 = vsel %vm2428, %v6352, 0
    %v7236 = vsel %vm2818, %v7231, 0
    %7238 = vmatprep.subr.bf16.mxu0 0
    %7239 = vmatpush1.bf16.msra.mxu0 0
    %7240 = vmatprep.subr.bf16.mxu0 0
    %7241 = vmatpush1.bf16.msra.mxu0 0
    %7242 = vmatprep.subr.bf16.mxu0 0
    %7243 = vmatpush1.bf16.msra.mxu0 0
    %7244 = vmatprep.subr.bf16.mxu0 0
    %7245 = vmatpush1.bf16.msra.mxu0 0
    %7246 = vmatprep.subr.bf16.mxu0 0
    %7247 = vmatpush1.bf16.msra.mxu0 0
    %7248 = vmatprep.subr.bf16.mxu0 0
    %7249 = vmatpush1.bf16.msra.mxu0 0
    %7250 = vmatprep.subr.bf16.mxu0 0
    %7251 = vmatpush1.bf16.msra.mxu0 0
    %7252 = vmatprep.subr.bf16.mxu0 0
    %7253 = vmatpush1.bf16.msra.mxu0 %v7236
    %7254 = vmatprep.subr.bf16.mxu0 0
    %7255 = vmatpush2.bf16.msra.mxu0 0
    %7256 = vmatprep.subr.bf16.mxu0 0
    %7257 = vmatpush2.bf16.msra.mxu0 0
    %7258 = vmatprep.subr.bf16.mxu0 0
    %7259 = vmatpush2.bf16.msra.mxu0 0
    %7260 = vmatprep.subr.bf16.mxu0 0
    %7261 = vmatpush2.bf16.msra.mxu0 0
    %7262 = vmatprep.subr.bf16.mxu0 0
    %7263 = vmatpush2.bf16.msra.mxu0 0
    %7264 = vmatprep.subr.bf16.mxu0 0
    %7265 = vmatpush2.bf16.msra.mxu0 0
    %7266 = vmatprep.subr.bf16.mxu0 0
    %7267 = vmatpush2.bf16.msra.mxu0 0
    %7268 = vmatprep.subr.bf16.mxu0 0
    %7269 = vmatpush2.bf16.msra.mxu0 0
    %7270 = vmatprep.mubr.bf16.mxu0 0
    %7271 = vmatmul.mubr.bf16.gmra.mxu0 %v7233
    %v7272 = vpop.f32.mrf.mxu0
    %v7273 = vadd.f32 0.0, %v7272
    %v7274 = vpop.f32.mrf.mxu0
    %v7275 = vpop.f32.mrf.mxu0
    %v7276 = vpop.f32.mrf.mxu0
    %7277 = vdwg.mxu0
    %7278 = vrot.lane.b32.xlu0 %v910, 80
    %v7279 = vpop.permute.xlu0 %7278
    %v7281 = vsel %vm2428, %v6353, 0
    %v7284 = vsel %vm2818, %v7279, 0
    %7286 = vmatprep.subr.bf16.mxu0 0
    %7287 = vmatpush1.bf16.msra.mxu0 0
    %7288 = vmatprep.subr.bf16.mxu0 0
    %7289 = vmatpush1.bf16.msra.mxu0 0
    %7290 = vmatprep.subr.bf16.mxu0 0
    %7291 = vmatpush1.bf16.msra.mxu0 0
    %7292 = vmatprep.subr.bf16.mxu0 0
    %7293 = vmatpush1.bf16.msra.mxu0 0
    %7294 = vmatprep.subr.bf16.mxu0 0
    %7295 = vmatpush1.bf16.msra.mxu0 0
    %7296 = vmatprep.subr.bf16.mxu0 0
    %7297 = vmatpush1.bf16.msra.mxu0 0
    %7298 = vmatprep.subr.bf16.mxu0 0
    %7299 = vmatpush1.bf16.msra.mxu0 0
    %7300 = vmatprep.subr.bf16.mxu0 0
    %7301 = vmatpush1.bf16.msra.mxu0 %v7284
    %7302 = vmatprep.subr.bf16.mxu0 0
    %7303 = vmatpush2.bf16.msra.mxu0 0
    %7304 = vmatprep.subr.bf16.mxu0 0
    %7305 = vmatpush2.bf16.msra.mxu0 0
    %7306 = vmatprep.subr.bf16.mxu0 0
    %7307 = vmatpush2.bf16.msra.mxu0 0
    %7308 = vmatprep.subr.bf16.mxu0 0
    %7309 = vmatpush2.bf16.msra.mxu0 0
    %7310 = vmatprep.subr.bf16.mxu0 0
    %7311 = vmatpush2.bf16.msra.mxu0 0
    %7312 = vmatprep.subr.bf16.mxu0 0
    %7313 = vmatpush2.bf16.msra.mxu0 0
    %7314 = vmatprep.subr.bf16.mxu0 0
    %7315 = vmatpush2.bf16.msra.mxu0 0
    %7316 = vmatprep.subr.bf16.mxu0 0
    %7317 = vmatpush2.bf16.msra.mxu0 0
    %7318 = vmatprep.mubr.bf16.mxu0 0
    %7319 = vmatmul.mubr.bf16.gmra.mxu0 %v7281
    %v7320 = vpop.f32.mrf.mxu0
    %v7321 = vadd.f32 0.0, %v7320
    %v7322 = vpop.f32.mrf.mxu0
    %v7323 = vpop.f32.mrf.mxu0
    %v7324 = vpop.f32.mrf.mxu0
    %7325 = vdwg.mxu0
    %7326 = vrot.lane.b32.xlu0 %v911, 80
    %v7327 = vpop.permute.xlu0 %7326
    %v7329 = vsel %vm2428, %v6354, 0
    %v7332 = vsel %vm2818, %v7327, 0
    %7334 = vmatprep.subr.bf16.mxu0 0
    %7335 = vmatpush1.bf16.msra.mxu0 0
    %7336 = vmatprep.subr.bf16.mxu0 0
    %7337 = vmatpush1.bf16.msra.mxu0 0
    %7338 = vmatprep.subr.bf16.mxu0 0
    %7339 = vmatpush1.bf16.msra.mxu0 0
    %7340 = vmatprep.subr.bf16.mxu0 0
    %7341 = vmatpush1.bf16.msra.mxu0 0
    %7342 = vmatprep.subr.bf16.mxu0 0
    %7343 = vmatpush1.bf16.msra.mxu0 0
    %7344 = vmatprep.subr.bf16.mxu0 0
    %7345 = vmatpush1.bf16.msra.mxu0 0
    %7346 = vmatprep.subr.bf16.mxu0 0
    %7347 = vmatpush1.bf16.msra.mxu0 0
    %7348 = vmatprep.subr.bf16.mxu0 0
    %7349 = vmatpush1.bf16.msra.mxu0 %v7332
    %7350 = vmatprep.subr.bf16.mxu0 0
    %7351 = vmatpush2.bf16.msra.mxu0 0
    %7352 = vmatprep.subr.bf16.mxu0 0
    %7353 = vmatpush2.bf16.msra.mxu0 0
    %7354 = vmatprep.subr.bf16.mxu0 0
    %7355 = vmatpush2.bf16.msra.mxu0 0
    %7356 = vmatprep.subr.bf16.mxu0 0
    %7357 = vmatpush2.bf16.msra.mxu0 0
    %7358 = vmatprep.subr.bf16.mxu0 0
    %7359 = vmatpush2.bf16.msra.mxu0 0
    %7360 = vmatprep.subr.bf16.mxu0 0
    %7361 = vmatpush2.bf16.msra.mxu0 0
    %7362 = vmatprep.subr.bf16.mxu0 0
    %7363 = vmatpush2.bf16.msra.mxu0 0
    %7364 = vmatprep.subr.bf16.mxu0 0
    %7365 = vmatpush2.bf16.msra.mxu0 0
    %7366 = vmatprep.mubr.bf16.mxu0 0
    %7367 = vmatmul.mubr.bf16.gmra.mxu0 %v7329
    %v7368 = vpop.f32.mrf.mxu0
    %v7369 = vadd.f32 0.0, %v7368
    %v7370 = vpop.f32.mrf.mxu0
    %v7371 = vpop.f32.mrf.mxu0
    %v7372 = vpop.f32.mrf.mxu0
    %7373 = vdwg.mxu0
    %7374 = vrot.lane.b32.xlu0 %v912, 80
    %v7375 = vpop.permute.xlu0 %7374
    %v7377 = vsel %vm2428, %v6355, 0
    %v7380 = vsel %vm2818, %v7375, 0
    %7382 = vmatprep.subr.bf16.mxu0 0
    %7383 = vmatpush1.bf16.msra.mxu0 0
    %7384 = vmatprep.subr.bf16.mxu0 0
    %7385 = vmatpush1.bf16.msra.mxu0 0
    %7386 = vmatprep.subr.bf16.mxu0 0
    %7387 = vmatpush1.bf16.msra.mxu0 0
    %7388 = vmatprep.subr.bf16.mxu0 0
    %7389 = vmatpush1.bf16.msra.mxu0 0
    %7390 = vmatprep.subr.bf16.mxu0 0
    %7391 = vmatpush1.bf16.msra.mxu0 0
    %7392 = vmatprep.subr.bf16.mxu0 0
    %7393 = vmatpush1.bf16.msra.mxu0 0
    %7394 = vmatprep.subr.bf16.mxu0 0
    %7395 = vmatpush1.bf16.msra.mxu0 0
    %7396 = vmatprep.subr.bf16.mxu0 0
    %7397 = vmatpush1.bf16.msra.mxu0 %v7380
    %7398 = vmatprep.subr.bf16.mxu0 0
    %7399 = vmatpush2.bf16.msra.mxu0 0
    %7400 = vmatprep.subr.bf16.mxu0 0
    %7401 = vmatpush2.bf16.msra.mxu0 0
    %7402 = vmatprep.subr.bf16.mxu0 0
    %7403 = vmatpush2.bf16.msra.mxu0 0
    %7404 = vmatprep.subr.bf16.mxu0 0
    %7405 = vmatpush2.bf16.msra.mxu0 0
    %7406 = vmatprep.subr.bf16.mxu0 0
    %7407 = vmatpush2.bf16.msra.mxu0 0
    %7408 = vmatprep.subr.bf16.mxu0 0
    %7409 = vmatpush2.bf16.msra.mxu0 0
    %7410 = vmatprep.subr.bf16.mxu0 0
    %7411 = vmatpush2.bf16.msra.mxu0 0
    %7412 = vmatprep.subr.bf16.mxu0 0
    %7413 = vmatpush2.bf16.msra.mxu0 0
    %7414 = vmatprep.mubr.bf16.mxu0 0
    %7415 = vmatmul.mubr.bf16.gmra.mxu0 %v7377
    %v7416 = vpop.f32.mrf.mxu0
    %v7417 = vadd.f32 0.0, %v7416
    %v7418 = vpop.f32.mrf.mxu0
    %v7419 = vpop.f32.mrf.mxu0
    %v7420 = vpop.f32.mrf.mxu0
    %7421 = vdwg.mxu0
    %7422 = vrot.lane.b32.xlu0 %v913, 80
    %v7423 = vpop.permute.xlu0 %7422
    %v7425 = vsel %vm2428, %v6356, 0
    %v7428 = vsel %vm2818, %v7423, 0
    %7430 = vmatprep.subr.bf16.mxu0 0
    %7431 = vmatpush1.bf16.msra.mxu0 0
    %7432 = vmatprep.subr.bf16.mxu0 0
    %7433 = vmatpush1.bf16.msra.mxu0 0
    %7434 = vmatprep.subr.bf16.mxu0 0
    %7435 = vmatpush1.bf16.msra.mxu0 0
    %7436 = vmatprep.subr.bf16.mxu0 0
    %7437 = vmatpush1.bf16.msra.mxu0 0
    %7438 = vmatprep.subr.bf16.mxu0 0
    %7439 = vmatpush1.bf16.msra.mxu0 0
    %7440 = vmatprep.subr.bf16.mxu0 0
    %7441 = vmatpush1.bf16.msra.mxu0 0
    %7442 = vmatprep.subr.bf16.mxu0 0
    %7443 = vmatpush1.bf16.msra.mxu0 0
    %7444 = vmatprep.subr.bf16.mxu0 0
    %7445 = vmatpush1.bf16.msra.mxu0 %v7428
    %7446 = vmatprep.subr.bf16.mxu0 0
    %7447 = vmatpush2.bf16.msra.mxu0 0
    %7448 = vmatprep.subr.bf16.mxu0 0
    %7449 = vmatpush2.bf16.msra.mxu0 0
    %7450 = vmatprep.subr.bf16.mxu0 0
    %7451 = vmatpush2.bf16.msra.mxu0 0
    %7452 = vmatprep.subr.bf16.mxu0 0
    %7453 = vmatpush2.bf16.msra.mxu0 0
    %7454 = vmatprep.subr.bf16.mxu0 0
    %7455 = vmatpush2.bf16.msra.mxu0 0
    %7456 = vmatprep.subr.bf16.mxu0 0
    %7457 = vmatpush2.bf16.msra.mxu0 0
    %7458 = vmatprep.subr.bf16.mxu0 0
    %7459 = vmatpush2.bf16.msra.mxu0 0
    %7460 = vmatprep.subr.bf16.mxu0 0
    %7461 = vmatpush2.bf16.msra.mxu0 0
    %7462 = vmatprep.mubr.bf16.mxu0 0
    %7463 = vmatmul.mubr.bf16.gmra.mxu0 %v7425
    %v7464 = vpop.f32.mrf.mxu0
    %v7465 = vadd.f32 0.0, %v7464
    %v7466 = vpop.f32.mrf.mxu0
    %v7467 = vpop.f32.mrf.mxu0
    %v7468 = vpop.f32.mrf.mxu0
    %7469 = vdwg.mxu0
    %7470 = vrot.lane.b32.xlu0 %v914, 80
    %v7471 = vpop.permute.xlu0 %7470
    %v7473 = vsel %vm2428, %v6357, 0
    %v7476 = vsel %vm2818, %v7471, 0
    %7478 = vmatprep.subr.bf16.mxu0 0
    %7479 = vmatpush1.bf16.msra.mxu0 0
    %7480 = vmatprep.subr.bf16.mxu0 0
    %7481 = vmatpush1.bf16.msra.mxu0 0
    %7482 = vmatprep.subr.bf16.mxu0 0
    %7483 = vmatpush1.bf16.msra.mxu0 0
    %7484 = vmatprep.subr.bf16.mxu0 0
    %7485 = vmatpush1.bf16.msra.mxu0 0
    %7486 = vmatprep.subr.bf16.mxu0 0
    %7487 = vmatpush1.bf16.msra.mxu0 0
    %7488 = vmatprep.subr.bf16.mxu0 0
    %7489 = vmatpush1.bf16.msra.mxu0 0
    %7490 = vmatprep.subr.bf16.mxu0 0
    %7491 = vmatpush1.bf16.msra.mxu0 0
    %7492 = vmatprep.subr.bf16.mxu0 0
    %7493 = vmatpush1.bf16.msra.mxu0 %v7476
    %7494 = vmatprep.subr.bf16.mxu0 0
    %7495 = vmatpush2.bf16.msra.mxu0 0
    %7496 = vmatprep.subr.bf16.mxu0 0
    %7497 = vmatpush2.bf16.msra.mxu0 0
    %7498 = vmatprep.subr.bf16.mxu0 0
    %7499 = vmatpush2.bf16.msra.mxu0 0
    %7500 = vmatprep.subr.bf16.mxu0 0
    %7501 = vmatpush2.bf16.msra.mxu0 0
    %7502 = vmatprep.subr.bf16.mxu0 0
    %7503 = vmatpush2.bf16.msra.mxu0 0
    %7504 = vmatprep.subr.bf16.mxu0 0
    %7505 = vmatpush2.bf16.msra.mxu0 0
    %7506 = vmatprep.subr.bf16.mxu0 0
    %7507 = vmatpush2.bf16.msra.mxu0 0
    %7508 = vmatprep.subr.bf16.mxu0 0
    %7509 = vmatpush2.bf16.msra.mxu0 0
    %7510 = vmatprep.mubr.bf16.mxu0 0
    %7511 = vmatmul.mubr.bf16.gmra.mxu0 %v7473
    %v7512 = vpop.f32.mrf.mxu0
    %v7513 = vadd.f32 0.0, %v7512
    %v7514 = vpop.f32.mrf.mxu0
    %v7515 = vpop.f32.mrf.mxu0
    %v7516 = vpop.f32.mrf.mxu0
    %7517 = vdwg.mxu0
    %7518 = vrot.lane.b32.xlu0 %v915, 80
    %v7519 = vpop.permute.xlu0 %7518
    %v7521 = vsel %vm2428, %v6358, 0
    %v7524 = vsel %vm2818, %v7519, 0
    %7526 = vmatprep.subr.bf16.mxu0 0
    %7527 = vmatpush1.bf16.msra.mxu0 0
    %7528 = vmatprep.subr.bf16.mxu0 0
    %7529 = vmatpush1.bf16.msra.mxu0 0
    %7530 = vmatprep.subr.bf16.mxu0 0
    %7531 = vmatpush1.bf16.msra.mxu0 0
    %7532 = vmatprep.subr.bf16.mxu0 0
    %7533 = vmatpush1.bf16.msra.mxu0 0
    %7534 = vmatprep.subr.bf16.mxu0 0
    %7535 = vmatpush1.bf16.msra.mxu0 0
    %7536 = vmatprep.subr.bf16.mxu0 0
    %7537 = vmatpush1.bf16.msra.mxu0 0
    %7538 = vmatprep.subr.bf16.mxu0 0
    %7539 = vmatpush1.bf16.msra.mxu0 0
    %7540 = vmatprep.subr.bf16.mxu0 0
    %7541 = vmatpush1.bf16.msra.mxu0 %v7524
    %7542 = vmatprep.subr.bf16.mxu0 0
    %7543 = vmatpush2.bf16.msra.mxu0 0
    %7544 = vmatprep.subr.bf16.mxu0 0
    %7545 = vmatpush2.bf16.msra.mxu0 0
    %7546 = vmatprep.subr.bf16.mxu0 0
    %7547 = vmatpush2.bf16.msra.mxu0 0
    %7548 = vmatprep.subr.bf16.mxu0 0
    %7549 = vmatpush2.bf16.msra.mxu0 0
    %7550 = vmatprep.subr.bf16.mxu0 0
    %7551 = vmatpush2.bf16.msra.mxu0 0
    %7552 = vmatprep.subr.bf16.mxu0 0
    %7553 = vmatpush2.bf16.msra.mxu0 0
    %7554 = vmatprep.subr.bf16.mxu0 0
    %7555 = vmatpush2.bf16.msra.mxu0 0
    %7556 = vmatprep.subr.bf16.mxu0 0
    %7557 = vmatpush2.bf16.msra.mxu0 0
    %7558 = vmatprep.mubr.bf16.mxu0 0
    %7559 = vmatmul.mubr.bf16.gmra.mxu0 %v7521
    %v7560 = vpop.f32.mrf.mxu0
    %v7561 = vadd.f32 0.0, %v7560
    %v7562 = vpop.f32.mrf.mxu0
    %v7563 = vpop.f32.mrf.mxu0
    %v7564 = vpop.f32.mrf.mxu0
    %7565 = vdwg.mxu0
    %7566 = vrot.lane.b32.xlu0 %v916, 80
    %v7567 = vpop.permute.xlu0 %7566
    %v7569 = vsel %vm2428, %v6359, 0
    %v7572 = vsel %vm2818, %v7567, 0
    %7574 = vmatprep.subr.bf16.mxu0 0
    %7575 = vmatpush1.bf16.msra.mxu0 0
    %7576 = vmatprep.subr.bf16.mxu0 0
    %7577 = vmatpush1.bf16.msra.mxu0 0
    %7578 = vmatprep.subr.bf16.mxu0 0
    %7579 = vmatpush1.bf16.msra.mxu0 0
    %7580 = vmatprep.subr.bf16.mxu0 0
    %7581 = vmatpush1.bf16.msra.mxu0 0
    %7582 = vmatprep.subr.bf16.mxu0 0
    %7583 = vmatpush1.bf16.msra.mxu0 0
    %7584 = vmatprep.subr.bf16.mxu0 0
    %7585 = vmatpush1.bf16.msra.mxu0 0
    %7586 = vmatprep.subr.bf16.mxu0 0
    %7587 = vmatpush1.bf16.msra.mxu0 0
    %7588 = vmatprep.subr.bf16.mxu0 0
    %7589 = vmatpush1.bf16.msra.mxu0 %v7572
    %7590 = vmatprep.subr.bf16.mxu0 0
    %7591 = vmatpush2.bf16.msra.mxu0 0
    %7592 = vmatprep.subr.bf16.mxu0 0
    %7593 = vmatpush2.bf16.msra.mxu0 0
    %7594 = vmatprep.subr.bf16.mxu0 0
    %7595 = vmatpush2.bf16.msra.mxu0 0
    %7596 = vmatprep.subr.bf16.mxu0 0
    %7597 = vmatpush2.bf16.msra.mxu0 0
    %7598 = vmatprep.subr.bf16.mxu0 0
    %7599 = vmatpush2.bf16.msra.mxu0 0
    %7600 = vmatprep.subr.bf16.mxu0 0
    %7601 = vmatpush2.bf16.msra.mxu0 0
    %7602 = vmatprep.subr.bf16.mxu0 0
    %7603 = vmatpush2.bf16.msra.mxu0 0
    %7604 = vmatprep.subr.bf16.mxu0 0
    %7605 = vmatpush2.bf16.msra.mxu0 0
    %7606 = vmatprep.mubr.bf16.mxu0 0
    %7607 = vmatmul.mubr.bf16.gmra.mxu0 %v7569
    %v7608 = vpop.f32.mrf.mxu0
    %v7609 = vadd.f32 0.0, %v7608
    %v7610 = vpop.f32.mrf.mxu0
    %v7611 = vpop.f32.mrf.mxu0
    %v7612 = vpop.f32.mrf.mxu0
    %7613 = vdwg.mxu0
    %7614 = vrot.lane.b32.xlu0 %v917, 80
    %v7615 = vpop.permute.xlu0 %7614
    %v7617 = vsel %vm2428, %v6360, 0
    %v7620 = vsel %vm2818, %v7615, 0
    %7622 = vmatprep.subr.bf16.mxu0 0
    %7623 = vmatpush1.bf16.msra.mxu0 0
    %7624 = vmatprep.subr.bf16.mxu0 0
    %7625 = vmatpush1.bf16.msra.mxu0 0
    %7626 = vmatprep.subr.bf16.mxu0 0
    %7627 = vmatpush1.bf16.msra.mxu0 0
    %7628 = vmatprep.subr.bf16.mxu0 0
    %7629 = vmatpush1.bf16.msra.mxu0 0
    %7630 = vmatprep.subr.bf16.mxu0 0
    %7631 = vmatpush1.bf16.msra.mxu0 0
    %7632 = vmatprep.subr.bf16.mxu0 0
    %7633 = vmatpush1.bf16.msra.mxu0 0
    %7634 = vmatprep.subr.bf16.mxu0 0
    %7635 = vmatpush1.bf16.msra.mxu0 0
    %7636 = vmatprep.subr.bf16.mxu0 0
    %7637 = vmatpush1.bf16.msra.mxu0 %v7620
    %7638 = vmatprep.subr.bf16.mxu0 0
    %7639 = vmatpush2.bf16.msra.mxu0 0
    %7640 = vmatprep.subr.bf16.mxu0 0
    %7641 = vmatpush2.bf16.msra.mxu0 0
    %7642 = vmatprep.subr.bf16.mxu0 0
    %7643 = vmatpush2.bf16.msra.mxu0 0
    %7644 = vmatprep.subr.bf16.mxu0 0
    %7645 = vmatpush2.bf16.msra.mxu0 0
    %7646 = vmatprep.subr.bf16.mxu0 0
    %7647 = vmatpush2.bf16.msra.mxu0 0
    %7648 = vmatprep.subr.bf16.mxu0 0
    %7649 = vmatpush2.bf16.msra.mxu0 0
    %7650 = vmatprep.subr.bf16.mxu0 0
    %7651 = vmatpush2.bf16.msra.mxu0 0
    %7652 = vmatprep.subr.bf16.mxu0 0
    %7653 = vmatpush2.bf16.msra.mxu0 0
    %7654 = vmatprep.mubr.bf16.mxu0 0
    %7655 = vmatmul.mubr.bf16.gmra.mxu0 %v7617
    %v7656 = vpop.f32.mrf.mxu0
    %v7657 = vadd.f32 0.0, %v7656
    %v7658 = vpop.f32.mrf.mxu0
    %v7659 = vpop.f32.mrf.mxu0
    %v7660 = vpop.f32.mrf.mxu0
    %7661 = vdwg.mxu0
    %7662 = vrot.lane.b32.xlu0 %v918, 80
    %v7663 = vpop.permute.xlu0 %7662
    %v7665 = vsel %vm2428, %v6361, 0
    %v7668 = vsel %vm2818, %v7663, 0
    %7670 = vmatprep.subr.bf16.mxu0 0
    %7671 = vmatpush1.bf16.msra.mxu0 0
    %7672 = vmatprep.subr.bf16.mxu0 0
    %7673 = vmatpush1.bf16.msra.mxu0 0
    %7674 = vmatprep.subr.bf16.mxu0 0
    %7675 = vmatpush1.bf16.msra.mxu0 0
    %7676 = vmatprep.subr.bf16.mxu0 0
    %7677 = vmatpush1.bf16.msra.mxu0 0
    %7678 = vmatprep.subr.bf16.mxu0 0
    %7679 = vmatpush1.bf16.msra.mxu0 0
    %7680 = vmatprep.subr.bf16.mxu0 0
    %7681 = vmatpush1.bf16.msra.mxu0 0
    %7682 = vmatprep.subr.bf16.mxu0 0
    %7683 = vmatpush1.bf16.msra.mxu0 0
    %7684 = vmatprep.subr.bf16.mxu0 0
    %7685 = vmatpush1.bf16.msra.mxu0 %v7668
    %7686 = vmatprep.subr.bf16.mxu0 0
    %7687 = vmatpush2.bf16.msra.mxu0 0
    %7688 = vmatprep.subr.bf16.mxu0 0
    %7689 = vmatpush2.bf16.msra.mxu0 0
    %7690 = vmatprep.subr.bf16.mxu0 0
    %7691 = vmatpush2.bf16.msra.mxu0 0
    %7692 = vmatprep.subr.bf16.mxu0 0
    %7693 = vmatpush2.bf16.msra.mxu0 0
    %7694 = vmatprep.subr.bf16.mxu0 0
    %7695 = vmatpush2.bf16.msra.mxu0 0
    %7696 = vmatprep.subr.bf16.mxu0 0
    %7697 = vmatpush2.bf16.msra.mxu0 0
    %7698 = vmatprep.subr.bf16.mxu0 0
    %7699 = vmatpush2.bf16.msra.mxu0 0
    %7700 = vmatprep.subr.bf16.mxu0 0
    %7701 = vmatpush2.bf16.msra.mxu0 0
    %7702 = vmatprep.mubr.bf16.mxu0 0
    %7703 = vmatmul.mubr.bf16.gmra.mxu0 %v7665
    %v7704 = vpop.f32.mrf.mxu0
    %v7705 = vadd.f32 0.0, %v7704
    %v7706 = vpop.f32.mrf.mxu0
    %v7707 = vpop.f32.mrf.mxu0
    %v7708 = vpop.f32.mrf.mxu0
    %7709 = vdwg.mxu0
    %7710 = vrot.lane.b32.xlu0 %v919, 80
    %v7711 = vpop.permute.xlu0 %7710
    %v7713 = vsel %vm2428, %v6362, 0
    %v7716 = vsel %vm2818, %v7711, 0
    %7718 = vmatprep.subr.bf16.mxu0 0
    %7719 = vmatpush1.bf16.msra.mxu0 0
    %7720 = vmatprep.subr.bf16.mxu0 0
    %7721 = vmatpush1.bf16.msra.mxu0 0
    %7722 = vmatprep.subr.bf16.mxu0 0
    %7723 = vmatpush1.bf16.msra.mxu0 0
    %7724 = vmatprep.subr.bf16.mxu0 0
    %7725 = vmatpush1.bf16.msra.mxu0 0
    %7726 = vmatprep.subr.bf16.mxu0 0
    %7727 = vmatpush1.bf16.msra.mxu0 0
    %7728 = vmatprep.subr.bf16.mxu0 0
    %7729 = vmatpush1.bf16.msra.mxu0 0
    %7730 = vmatprep.subr.bf16.mxu0 0
    %7731 = vmatpush1.bf16.msra.mxu0 0
    %7732 = vmatprep.subr.bf16.mxu0 0
    %7733 = vmatpush1.bf16.msra.mxu0 %v7716
    %7734 = vmatprep.subr.bf16.mxu0 0
    %7735 = vmatpush2.bf16.msra.mxu0 0
    %7736 = vmatprep.subr.bf16.mxu0 0
    %7737 = vmatpush2.bf16.msra.mxu0 0
    %7738 = vmatprep.subr.bf16.mxu0 0
    %7739 = vmatpush2.bf16.msra.mxu0 0
    %7740 = vmatprep.subr.bf16.mxu0 0
    %7741 = vmatpush2.bf16.msra.mxu0 0
    %7742 = vmatprep.subr.bf16.mxu0 0
    %7743 = vmatpush2.bf16.msra.mxu0 0
    %7744 = vmatprep.subr.bf16.mxu0 0
    %7745 = vmatpush2.bf16.msra.mxu0 0
    %7746 = vmatprep.subr.bf16.mxu0 0
    %7747 = vmatpush2.bf16.msra.mxu0 0
    %7748 = vmatprep.subr.bf16.mxu0 0
    %7749 = vmatpush2.bf16.msra.mxu0 0
    %7750 = vmatprep.mubr.bf16.mxu0 0
    %7751 = vmatmul.mubr.bf16.gmra.mxu0 %v7713
    %v7752 = vpop.f32.mrf.mxu0
    %v7753 = vadd.f32 0.0, %v7752
    %v7754 = vpop.f32.mrf.mxu0
    %v7755 = vpop.f32.mrf.mxu0
    %v7756 = vpop.f32.mrf.mxu0
    %7757 = vdwg.mxu0
    %7758 = vrot.lane.b32.xlu0 %v920, 80
    %v7759 = vpop.permute.xlu0 %7758
    %v7761 = vsel %vm2428, %v6363, 0
    %v7764 = vsel %vm2818, %v7759, 0
    %7766 = vmatprep.subr.bf16.mxu0 0
    %7767 = vmatpush1.bf16.msra.mxu0 0
    %7768 = vmatprep.subr.bf16.mxu0 0
    %7769 = vmatpush1.bf16.msra.mxu0 0
    %7770 = vmatprep.subr.bf16.mxu0 0
    %7771 = vmatpush1.bf16.msra.mxu0 0
    %7772 = vmatprep.subr.bf16.mxu0 0
    %7773 = vmatpush1.bf16.msra.mxu0 0
    %7774 = vmatprep.subr.bf16.mxu0 0
    %7775 = vmatpush1.bf16.msra.mxu0 0
    %7776 = vmatprep.subr.bf16.mxu0 0
    %7777 = vmatpush1.bf16.msra.mxu0 0
    %7778 = vmatprep.subr.bf16.mxu0 0
    %7779 = vmatpush1.bf16.msra.mxu0 0
    %7780 = vmatprep.subr.bf16.mxu0 0
    %7781 = vmatpush1.bf16.msra.mxu0 %v7764
    %7782 = vmatprep.subr.bf16.mxu0 0
    %7783 = vmatpush2.bf16.msra.mxu0 0
    %7784 = vmatprep.subr.bf16.mxu0 0
    %7785 = vmatpush2.bf16.msra.mxu0 0
    %7786 = vmatprep.subr.bf16.mxu0 0
    %7787 = vmatpush2.bf16.msra.mxu0 0
    %7788 = vmatprep.subr.bf16.mxu0 0
    %7789 = vmatpush2.bf16.msra.mxu0 0
    %7790 = vmatprep.subr.bf16.mxu0 0
    %7791 = vmatpush2.bf16.msra.mxu0 0
    %7792 = vmatprep.subr.bf16.mxu0 0
    %7793 = vmatpush2.bf16.msra.mxu0 0
    %7794 = vmatprep.subr.bf16.mxu0 0
    %7795 = vmatpush2.bf16.msra.mxu0 0
    %7796 = vmatprep.subr.bf16.mxu0 0
    %7797 = vmatpush2.bf16.msra.mxu0 0
    %7798 = vmatprep.mubr.bf16.mxu0 0
    %7799 = vmatmul.mubr.bf16.gmra.mxu0 %v7761
    %v7800 = vpop.f32.mrf.mxu0
    %v7801 = vadd.f32 0.0, %v7800
    %v7802 = vpop.f32.mrf.mxu0
    %v7803 = vpop.f32.mrf.mxu0
    %v7804 = vpop.f32.mrf.mxu0
    %7805 = vdwg.mxu0
    %7806 = vrot.lane.b32.xlu0 %v921, 80
    %v7807 = vpop.permute.xlu0 %7806
    %v7809 = vsel %vm2428, %v6364, 0
    %v7812 = vsel %vm2818, %v7807, 0
    %7814 = vmatprep.subr.bf16.mxu0 0
    %7815 = vmatpush1.bf16.msra.mxu0 0
    %7816 = vmatprep.subr.bf16.mxu0 0
    %7817 = vmatpush1.bf16.msra.mxu0 0
    %7818 = vmatprep.subr.bf16.mxu0 0
    %7819 = vmatpush1.bf16.msra.mxu0 0
    %7820 = vmatprep.subr.bf16.mxu0 0
    %7821 = vmatpush1.bf16.msra.mxu0 0
    %7822 = vmatprep.subr.bf16.mxu0 0
    %7823 = vmatpush1.bf16.msra.mxu0 0
    %7824 = vmatprep.subr.bf16.mxu0 0
    %7825 = vmatpush1.bf16.msra.mxu0 0
    %7826 = vmatprep.subr.bf16.mxu0 0
    %7827 = vmatpush1.bf16.msra.mxu0 0
    %7828 = vmatprep.subr.bf16.mxu0 0
    %7829 = vmatpush1.bf16.msra.mxu0 %v7812
    %7830 = vmatprep.subr.bf16.mxu0 0
    %7831 = vmatpush2.bf16.msra.mxu0 0
    %7832 = vmatprep.subr.bf16.mxu0 0
    %7833 = vmatpush2.bf16.msra.mxu0 0
    %7834 = vmatprep.subr.bf16.mxu0 0
    %7835 = vmatpush2.bf16.msra.mxu0 0
    %7836 = vmatprep.subr.bf16.mxu0 0
    %7837 = vmatpush2.bf16.msra.mxu0 0
    %7838 = vmatprep.subr.bf16.mxu0 0
    %7839 = vmatpush2.bf16.msra.mxu0 0
    %7840 = vmatprep.subr.bf16.mxu0 0
    %7841 = vmatpush2.bf16.msra.mxu0 0
    %7842 = vmatprep.subr.bf16.mxu0 0
    %7843 = vmatpush2.bf16.msra.mxu0 0
    %7844 = vmatprep.subr.bf16.mxu0 0
    %7845 = vmatpush2.bf16.msra.mxu0 0
    %7846 = vmatprep.mubr.bf16.mxu0 0
    %7847 = vmatmul.mubr.bf16.gmra.mxu0 %v7809
    %v7848 = vpop.f32.mrf.mxu0
    %v7849 = vadd.f32 0.0, %v7848
    %v7850 = vpop.f32.mrf.mxu0
    %v7851 = vpop.f32.mrf.mxu0
    %v7852 = vpop.f32.mrf.mxu0
    %7853 = vdwg.mxu0
    %7854 = vrot.lane.b32.xlu0 %v922, 80
    %v7855 = vpop.permute.xlu0 %7854
    %v7857 = vsel %vm2428, %v6365, 0
    %v7860 = vsel %vm2818, %v7855, 0
    %7862 = vmatprep.subr.bf16.mxu0 0
    %7863 = vmatpush1.bf16.msra.mxu0 0
    %7864 = vmatprep.subr.bf16.mxu0 0
    %7865 = vmatpush1.bf16.msra.mxu0 0
    %7866 = vmatprep.subr.bf16.mxu0 0
    %7867 = vmatpush1.bf16.msra.mxu0 0
    %7868 = vmatprep.subr.bf16.mxu0 0
    %7869 = vmatpush1.bf16.msra.mxu0 0
    %7870 = vmatprep.subr.bf16.mxu0 0
    %7871 = vmatpush1.bf16.msra.mxu0 0
    %7872 = vmatprep.subr.bf16.mxu0 0
    %7873 = vmatpush1.bf16.msra.mxu0 0
    %7874 = vmatprep.subr.bf16.mxu0 0
    %7875 = vmatpush1.bf16.msra.mxu0 0
    %7876 = vmatprep.subr.bf16.mxu0 0
    %7877 = vmatpush1.bf16.msra.mxu0 %v7860
    %7878 = vmatprep.subr.bf16.mxu0 0
    %7879 = vmatpush2.bf16.msra.mxu0 0
    %7880 = vmatprep.subr.bf16.mxu0 0
    %7881 = vmatpush2.bf16.msra.mxu0 0
    %7882 = vmatprep.subr.bf16.mxu0 0
    %7883 = vmatpush2.bf16.msra.mxu0 0
    %7884 = vmatprep.subr.bf16.mxu0 0
    %7885 = vmatpush2.bf16.msra.mxu0 0
    %7886 = vmatprep.subr.bf16.mxu0 0
    %7887 = vmatpush2.bf16.msra.mxu0 0
    %7888 = vmatprep.subr.bf16.mxu0 0
    %7889 = vmatpush2.bf16.msra.mxu0 0
    %7890 = vmatprep.subr.bf16.mxu0 0
    %7891 = vmatpush2.bf16.msra.mxu0 0
    %7892 = vmatprep.subr.bf16.mxu0 0
    %7893 = vmatpush2.bf16.msra.mxu0 0
    %7894 = vmatprep.mubr.bf16.mxu0 0
    %7895 = vmatmul.mubr.bf16.gmra.mxu0 %v7857
    %v7896 = vpop.f32.mrf.mxu0
    %v7897 = vadd.f32 0.0, %v7896
    %v7898 = vpop.f32.mrf.mxu0
    %v7899 = vpop.f32.mrf.mxu0
    %v7900 = vpop.f32.mrf.mxu0
    %7901 = vdwg.mxu0
    %7934 = vrot.lane.b32.xlu0 %v6409, 16
    %v7935 = vpop.permute.xlu0 %7934
    %7936 = vrot.lane.b32.xlu0 %v6457, 16
    %v7937 = vpop.permute.xlu0 %7936
    %7938 = vrot.lane.b32.xlu0 %v6505, 16
    %v7939 = vpop.permute.xlu0 %7938
    %7940 = vrot.lane.b32.xlu0 %v6553, 16
    %v7941 = vpop.permute.xlu0 %7940
    %7942 = vrot.lane.b32.xlu0 %v6601, 16
    %v7943 = vpop.permute.xlu0 %7942
    %7944 = vrot.lane.b32.xlu0 %v6649, 16
    %v7945 = vpop.permute.xlu0 %7944
    %7946 = vrot.lane.b32.xlu0 %v6697, 16
    %v7947 = vpop.permute.xlu0 %7946
    %7948 = vrot.lane.b32.xlu0 %v6745, 16
    %v7949 = vpop.permute.xlu0 %7948
    %7950 = vrot.lane.b32.xlu0 %v6793, 16
    %v7951 = vpop.permute.xlu0 %7950
    %7952 = vrot.lane.b32.xlu0 %v6841, 16
    %v7953 = vpop.permute.xlu0 %7952
    %7954 = vrot.lane.b32.xlu0 %v6889, 16
    %v7955 = vpop.permute.xlu0 %7954
    %7956 = vrot.lane.b32.xlu0 %v6937, 16
    %v7957 = vpop.permute.xlu0 %7956
    %7958 = vrot.lane.b32.xlu0 %v6985, 16
    %v7959 = vpop.permute.xlu0 %7958
    %7960 = vrot.lane.b32.xlu0 %v7033, 16
    %v7961 = vpop.permute.xlu0 %7960
    %7962 = vrot.lane.b32.xlu0 %v7081, 16
    %v7963 = vpop.permute.xlu0 %7962
    %7964 = vrot.lane.b32.xlu0 %v7129, 16
    %v7965 = vpop.permute.xlu0 %7964
    %7966 = vrot.lane.b32.xlu0 %v7177, 16
    %v7967 = vpop.permute.xlu0 %7966
    %7968 = vrot.lane.b32.xlu0 %v7225, 16
    %v7969 = vpop.permute.xlu0 %7968
    %7970 = vrot.lane.b32.xlu0 %v7273, 16
    %v7971 = vpop.permute.xlu0 %7970
    %7972 = vrot.lane.b32.xlu0 %v7321, 16
    %v7973 = vpop.permute.xlu0 %7972
    %7974 = vrot.lane.b32.xlu0 %v7369, 16
    %v7975 = vpop.permute.xlu0 %7974
    %7976 = vrot.lane.b32.xlu0 %v7417, 16
    %v7977 = vpop.permute.xlu0 %7976
    %7978 = vrot.lane.b32.xlu0 %v7465, 16
    %v7979 = vpop.permute.xlu0 %7978
    %7980 = vrot.lane.b32.xlu0 %v7513, 16
    %v7981 = vpop.permute.xlu0 %7980
    %7982 = vrot.lane.b32.xlu0 %v7561, 16
    %v7983 = vpop.permute.xlu0 %7982
    %7984 = vrot.lane.b32.xlu0 %v7609, 16
    %v7985 = vpop.permute.xlu0 %7984
    %7986 = vrot.lane.b32.xlu0 %v7657, 16
    %v7987 = vpop.permute.xlu0 %7986
    %7988 = vrot.lane.b32.xlu0 %v7705, 16
    %v7989 = vpop.permute.xlu0 %7988
    %7990 = vrot.lane.b32.xlu0 %v7753, 16
    %v7991 = vpop.permute.xlu0 %7990
    %7992 = vrot.lane.b32.xlu0 %v7801, 16
    %v7993 = vpop.permute.xlu0 %7992
    %7994 = vrot.lane.b32.xlu0 %v7849, 16
    %v7995 = vpop.permute.xlu0 %7994
    %7996 = vrot.lane.b32.xlu0 %v7897, 16
    %v7997 = vpop.permute.xlu0 %7996
    %v8030 = vsel %vm923, %v2857, %v7935
    %v8031 = vsel %vm923, %v2905, %v7937
    %v8032 = vsel %vm923, %v2953, %v7939
    %v8033 = vsel %vm923, %v3001, %v7941
    %v8034 = vsel %vm923, %v3049, %v7943
    %v8035 = vsel %vm923, %v3097, %v7945
    %v8036 = vsel %vm923, %v3145, %v7947
    %v8037 = vsel %vm923, %v3193, %v7949
    %v8038 = vsel %vm923, %v3241, %v7951
    %v8039 = vsel %vm923, %v3289, %v7953
    %v8040 = vsel %vm923, %v3337, %v7955
    %v8041 = vsel %vm923, %v3385, %v7957
    %v8042 = vsel %vm923, %v3433, %v7959
    %v8043 = vsel %vm923, %v3481, %v7961
    %v8044 = vsel %vm923, %v3529, %v7963
    %v8045 = vsel %vm923, %v3577, %v7965
    %v8046 = vsel %vm923, %v3625, %v7967
    %v8047 = vsel %vm923, %v3673, %v7969
    %v8048 = vsel %vm923, %v3721, %v7971
    %v8049 = vsel %vm923, %v3769, %v7973
    %v8050 = vsel %vm923, %v3817, %v7975
    %v8051 = vsel %vm923, %v3865, %v7977
    %v8052 = vsel %vm923, %v3913, %v7979
    %v8053 = vsel %vm923, %v3961, %v7981
    %v8054 = vsel %vm923, %v4009, %v7983
    %v8055 = vsel %vm923, %v4057, %v7985
    %v8056 = vsel %vm923, %v4105, %v7987
    %v8057 = vsel %vm923, %v4153, %v7989
    %v8058 = vsel %vm923, %v4201, %v7991
    %v8059 = vsel %vm923, %v4249, %v7993
    %v8060 = vsel %vm923, %v4297, %v7995
    %v8061 = vsel %vm923, %v4345, %v7997
    %v8062 = vcombine.low %v8030, %v8032
    %v8063 = vcombine.high %v8030, %v8032
    %v8065 = vunpack.c.l.s4 1983009808
    %v8066 = vunpack.c.0.s8 %v8065
    %v8067 = vlaneseq
    %v8068 = vshrl.u32 %v8067, 7
    %v8069 = vsub.s32 %v8066, %v8068
    %v8070 = vrot.slane %v8062, %v8069
    %v8072 = vunpack.c.l.s4 1983009808
    %v8073 = vunpack.c.0.s8 %v8072
    %v8074 = vlaneseq
    %v8075 = vshrl.u32 %v8074, 7
    %v8076 = vsub.s32 %v8073, %v8075
    %v8077 = vrot.slane %v8063, %v8076
    %v8078 = vcombine.low %v8031, %v8033
    %v8079 = vcombine.high %v8031, %v8033
    %v8081 = vunpack.c.l.s4 1983009808
    %v8082 = vunpack.c.0.s8 %v8081
    %v8083 = vlaneseq
    %v8084 = vshrl.u32 %v8083, 7
    %v8085 = vsub.s32 %v8082, %v8084
    %v8086 = vrot.slane %v8078, %v8085
    %v8088 = vunpack.c.l.s4 1983009808
    %v8089 = vunpack.c.0.s8 %v8088
    %v8090 = vlaneseq
    %v8091 = vshrl.u32 %v8090, 7
    %v8092 = vsub.s32 %v8089, %v8091
    %v8093 = vrot.slane %v8079, %v8092
    %v8094 = vcombine.low %v8034, %v8036
    %v8095 = vcombine.high %v8034, %v8036
    %v8097 = vunpack.c.l.s4 1983009808
    %v8098 = vunpack.c.0.s8 %v8097
    %v8099 = vlaneseq
    %v8100 = vshrl.u32 %v8099, 7
    %v8101 = vsub.s32 %v8098, %v8100
    %v8102 = vrot.slane %v8094, %v8101
    %v8104 = vunpack.c.l.s4 1983009808
    %v8105 = vunpack.c.0.s8 %v8104
    %v8106 = vlaneseq
    %v8107 = vshrl.u32 %v8106, 7
    %v8108 = vsub.s32 %v8105, %v8107
    %v8109 = vrot.slane %v8095, %v8108
    %v8110 = vcombine.low %v8035, %v8037
    %v8111 = vcombine.high %v8035, %v8037
    %v8113 = vunpack.c.l.s4 1983009808
    %v8114 = vunpack.c.0.s8 %v8113
    %v8115 = vlaneseq
    %v8116 = vshrl.u32 %v8115, 7
    %v8117 = vsub.s32 %v8114, %v8116
    %v8118 = vrot.slane %v8110, %v8117
    %v8120 = vunpack.c.l.s4 1983009808
    %v8121 = vunpack.c.0.s8 %v8120
    %v8122 = vlaneseq
    %v8123 = vshrl.u32 %v8122, 7
    %v8124 = vsub.s32 %v8121, %v8123
    %v8125 = vrot.slane %v8111, %v8124
    %v8126 = vcombine.low %v8070, %v8086
    %v8127 = vcombine.high %v8070, %v8086
    %v8129 = vunpack.c.l.s4 1934713408
    %v8130 = vunpack.c.0.s8 %v8129
    %v8131 = vlaneseq
    %v8132 = vshrl.u32 %v8131, 7
    %v8133 = vsub.s32 %v8130, %v8132
    %v8134 = vrot.slane %v8126, %v8133
    %v8136 = vunpack.c.l.s4 1934713408
    %v8137 = vunpack.c.0.s8 %v8136
    %v8138 = vlaneseq
    %v8139 = vshrl.u32 %v8138, 7
    %v8140 = vsub.s32 %v8137, %v8139
    %v8141 = vrot.slane %v8127, %v8140
    %v8142 = vcombine.low %v8077, %v8093
    %v8143 = vcombine.high %v8077, %v8093
    %v8145 = vunpack.c.l.s4 1934713408
    %v8146 = vunpack.c.0.s8 %v8145
    %v8147 = vlaneseq
    %v8148 = vshrl.u32 %v8147, 7
    %v8149 = vsub.s32 %v8146, %v8148
    %v8150 = vrot.slane %v8142, %v8149
    %v8152 = vunpack.c.l.s4 1934713408
    %v8153 = vunpack.c.0.s8 %v8152
    %v8154 = vlaneseq
    %v8155 = vshrl.u32 %v8154, 7
    %v8156 = vsub.s32 %v8153, %v8155
    %v8157 = vrot.slane %v8143, %v8156
    %v8158 = vcombine.low %v8102, %v8118
    %v8159 = vcombine.high %v8102, %v8118
    %v8161 = vunpack.c.l.s4 1934713408
    %v8162 = vunpack.c.0.s8 %v8161
    %v8163 = vlaneseq
    %v8164 = vshrl.u32 %v8163, 7
    %v8165 = vsub.s32 %v8162, %v8164
    %v8166 = vrot.slane %v8158, %v8165
    %v8168 = vunpack.c.l.s4 1934713408
    %v8169 = vunpack.c.0.s8 %v8168
    %v8170 = vlaneseq
    %v8171 = vshrl.u32 %v8170, 7
    %v8172 = vsub.s32 %v8169, %v8171
    %v8173 = vrot.slane %v8159, %v8172
    %v8174 = vcombine.low %v8109, %v8125
    %v8175 = vcombine.high %v8109, %v8125
    %v8177 = vunpack.c.l.s4 1934713408
    %v8178 = vunpack.c.0.s8 %v8177
    %v8179 = vlaneseq
    %v8180 = vshrl.u32 %v8179, 7
    %v8181 = vsub.s32 %v8178, %v8180
    %v8182 = vrot.slane %v8174, %v8181
    %v8184 = vunpack.c.l.s4 1934713408
    %v8185 = vunpack.c.0.s8 %v8184
    %v8186 = vlaneseq
    %v8187 = vshrl.u32 %v8186, 7
    %v8188 = vsub.s32 %v8185, %v8187
    %v8189 = vrot.slane %v8175, %v8188
    %v8190 = vcombine.low %v8134, %v8166
    %v8191 = vcombine.high %v8134, %v8166
    %v8192 = vcombine.low %v8141, %v8173
    %v8193 = vcombine.high %v8141, %v8173
    %v8194 = vcombine.low %v8150, %v8182
    %v8195 = vcombine.high %v8150, %v8182
    %v8196 = vcombine.low %v8157, %v8189
    %v8197 = vcombine.high %v8157, %v8189
    %v8198 = vcombine.low %v8038, %v8040
    %v8199 = vcombine.high %v8038, %v8040
    %v8201 = vunpack.c.l.s4 1983009808
    %v8202 = vunpack.c.0.s8 %v8201
    %v8203 = vlaneseq
    %v8204 = vshrl.u32 %v8203, 7
    %v8205 = vsub.s32 %v8202, %v8204
    %v8206 = vrot.slane %v8198, %v8205
    %v8208 = vunpack.c.l.s4 1983009808
    %v8209 = vunpack.c.0.s8 %v8208
    %v8210 = vlaneseq
    %v8211 = vshrl.u32 %v8210, 7
    %v8212 = vsub.s32 %v8209, %v8211
    %v8213 = vrot.slane %v8199, %v8212
    %v8214 = vcombine.low %v8039, %v8041
    %v8215 = vcombine.high %v8039, %v8041
    %v8217 = vunpack.c.l.s4 1983009808
    %v8218 = vunpack.c.0.s8 %v8217
    %v8219 = vlaneseq
    %v8220 = vshrl.u32 %v8219, 7
    %v8221 = vsub.s32 %v8218, %v8220
    %v8222 = vrot.slane %v8214, %v8221
    %v8224 = vunpack.c.l.s4 1983009808
    %v8225 = vunpack.c.0.s8 %v8224
    %v8226 = vlaneseq
    %v8227 = vshrl.u32 %v8226, 7
    %v8228 = vsub.s32 %v8225, %v8227
    %v8229 = vrot.slane %v8215, %v8228
    %v8230 = vcombine.low %v8042, %v8044
    %v8231 = vcombine.high %v8042, %v8044
    %v8233 = vunpack.c.l.s4 1983009808
    %v8234 = vunpack.c.0.s8 %v8233
    %v8235 = vlaneseq
    %v8236 = vshrl.u32 %v8235, 7
    %v8237 = vsub.s32 %v8234, %v8236
    %v8238 = vrot.slane %v8230, %v8237
    %v8240 = vunpack.c.l.s4 1983009808
    %v8241 = vunpack.c.0.s8 %v8240
    %v8242 = vlaneseq
    %v8243 = vshrl.u32 %v8242, 7
    %v8244 = vsub.s32 %v8241, %v8243
    %v8245 = vrot.slane %v8231, %v8244
    %v8246 = vcombine.low %v8043, %v8045
    %v8247 = vcombine.high %v8043, %v8045
    %v8249 = vunpack.c.l.s4 1983009808
    %v8250 = vunpack.c.0.s8 %v8249
    %v8251 = vlaneseq
    %v8252 = vshrl.u32 %v8251, 7
    %v8253 = vsub.s32 %v8250, %v8252
    %v8254 = vrot.slane %v8246, %v8253
    %v8256 = vunpack.c.l.s4 1983009808
    %v8257 = vunpack.c.0.s8 %v8256
    %v8258 = vlaneseq
    %v8259 = vshrl.u32 %v8258, 7
    %v8260 = vsub.s32 %v8257, %v8259
    %v8261 = vrot.slane %v8247, %v8260
    %v8262 = vcombine.low %v8206, %v8222
    %v8263 = vcombine.high %v8206, %v8222
    %v8265 = vunpack.c.l.s4 1934713408
    %v8266 = vunpack.c.0.s8 %v8265
    %v8267 = vlaneseq
    %v8268 = vshrl.u32 %v8267, 7
    %v8269 = vsub.s32 %v8266, %v8268
    %v8270 = vrot.slane %v8262, %v8269
    %v8272 = vunpack.c.l.s4 1934713408
    %v8273 = vunpack.c.0.s8 %v8272
    %v8274 = vlaneseq
    %v8275 = vshrl.u32 %v8274, 7
    %v8276 = vsub.s32 %v8273, %v8275
    %v8277 = vrot.slane %v8263, %v8276
    %v8278 = vcombine.low %v8213, %v8229
    %v8279 = vcombine.high %v8213, %v8229
    %v8281 = vunpack.c.l.s4 1934713408
    %v8282 = vunpack.c.0.s8 %v8281
    %v8283 = vlaneseq
    %v8284 = vshrl.u32 %v8283, 7
    %v8285 = vsub.s32 %v8282, %v8284
    %v8286 = vrot.slane %v8278, %v8285
    %v8288 = vunpack.c.l.s4 1934713408
    %v8289 = vunpack.c.0.s8 %v8288
    %v8290 = vlaneseq
    %v8291 = vshrl.u32 %v8290, 7
    %v8292 = vsub.s32 %v8289, %v8291
    %v8293 = vrot.slane %v8279, %v8292
    %v8294 = vcombine.low %v8238, %v8254
    %v8295 = vcombine.high %v8238, %v8254
    %v8297 = vunpack.c.l.s4 1934713408
    %v8298 = vunpack.c.0.s8 %v8297
    %v8299 = vlaneseq
    %v8300 = vshrl.u32 %v8299, 7
    %v8301 = vsub.s32 %v8298, %v8300
    %v8302 = vrot.slane %v8294, %v8301
    %v8304 = vunpack.c.l.s4 1934713408
    %v8305 = vunpack.c.0.s8 %v8304
    %v8306 = vlaneseq
    %v8307 = vshrl.u32 %v8306, 7
    %v8308 = vsub.s32 %v8305, %v8307
    %v8309 = vrot.slane %v8295, %v8308
    %v8310 = vcombine.low %v8245, %v8261
    %v8311 = vcombine.high %v8245, %v8261
    %v8313 = vunpack.c.l.s4 1934713408
    %v8314 = vunpack.c.0.s8 %v8313
    %v8315 = vlaneseq
    %v8316 = vshrl.u32 %v8315, 7
    %v8317 = vsub.s32 %v8314, %v8316
    %v8318 = vrot.slane %v8310, %v8317
    %v8320 = vunpack.c.l.s4 1934713408
    %v8321 = vunpack.c.0.s8 %v8320
    %v8322 = vlaneseq
    %v8323 = vshrl.u32 %v8322, 7
    %v8324 = vsub.s32 %v8321, %v8323
    %v8325 = vrot.slane %v8311, %v8324
    %v8326 = vcombine.low %v8270, %v8302
    %v8327 = vcombine.high %v8270, %v8302
    %v8328 = vcombine.low %v8277, %v8309
    %v8329 = vcombine.high %v8277, %v8309
    %v8330 = vcombine.low %v8286, %v8318
    %v8331 = vcombine.high %v8286, %v8318
    %v8332 = vcombine.low %v8293, %v8325
    %v8333 = vcombine.high %v8293, %v8325
    %v8334 = vcombine.low %v8046, %v8048
    %v8335 = vcombine.high %v8046, %v8048
    %v8337 = vunpack.c.l.s4 1983009808
    %v8338 = vunpack.c.0.s8 %v8337
    %v8339 = vlaneseq
    %v8340 = vshrl.u32 %v8339, 7
    %v8341 = vsub.s32 %v8338, %v8340
    %v8342 = vrot.slane %v8334, %v8341
    %v8344 = vunpack.c.l.s4 1983009808
    %v8345 = vunpack.c.0.s8 %v8344
    %v8346 = vlaneseq
    %v8347 = vshrl.u32 %v8346, 7
    %v8348 = vsub.s32 %v8345, %v8347
    %v8349 = vrot.slane %v8335, %v8348
    %v8350 = vcombine.low %v8047, %v8049
    %v8351 = vcombine.high %v8047, %v8049
    %v8353 = vunpack.c.l.s4 1983009808
    %v8354 = vunpack.c.0.s8 %v8353
    %v8355 = vlaneseq
    %v8356 = vshrl.u32 %v8355, 7
    %v8357 = vsub.s32 %v8354, %v8356
    %v8358 = vrot.slane %v8350, %v8357
    %v8360 = vunpack.c.l.s4 1983009808
    %v8361 = vunpack.c.0.s8 %v8360
    %v8362 = vlaneseq
    %v8363 = vshrl.u32 %v8362, 7
    %v8364 = vsub.s32 %v8361, %v8363
    %v8365 = vrot.slane %v8351, %v8364
    %v8366 = vcombine.low %v8050, %v8052
    %v8367 = vcombine.high %v8050, %v8052
    %v8369 = vunpack.c.l.s4 1983009808
    %v8370 = vunpack.c.0.s8 %v8369
    %v8371 = vlaneseq
    %v8372 = vshrl.u32 %v8371, 7
    %v8373 = vsub.s32 %v8370, %v8372
    %v8374 = vrot.slane %v8366, %v8373
    %v8376 = vunpack.c.l.s4 1983009808
    %v8377 = vunpack.c.0.s8 %v8376
    %v8378 = vlaneseq
    %v8379 = vshrl.u32 %v8378, 7
    %v8380 = vsub.s32 %v8377, %v8379
    %v8381 = vrot.slane %v8367, %v8380
    %v8382 = vcombine.low %v8051, %v8053
    %v8383 = vcombine.high %v8051, %v8053
    %v8385 = vunpack.c.l.s4 1983009808
    %v8386 = vunpack.c.0.s8 %v8385
    %v8387 = vlaneseq
    %v8388 = vshrl.u32 %v8387, 7
    %v8389 = vsub.s32 %v8386, %v8388
    %v8390 = vrot.slane %v8382, %v8389
    %v8392 = vunpack.c.l.s4 1983009808
    %v8393 = vunpack.c.0.s8 %v8392
    %v8394 = vlaneseq
    %v8395 = vshrl.u32 %v8394, 7
    %v8396 = vsub.s32 %v8393, %v8395
    %v8397 = vrot.slane %v8383, %v8396
    %v8398 = vcombine.low %v8342, %v8358
    %v8399 = vcombine.high %v8342, %v8358
    %v8401 = vunpack.c.l.s4 1934713408
    %v8402 = vunpack.c.0.s8 %v8401
    %v8403 = vlaneseq
    %v8404 = vshrl.u32 %v8403, 7
    %v8405 = vsub.s32 %v8402, %v8404
    %v8406 = vrot.slane %v8398, %v8405
    %v8408 = vunpack.c.l.s4 1934713408
    %v8409 = vunpack.c.0.s8 %v8408
    %v8410 = vlaneseq
    %v8411 = vshrl.u32 %v8410, 7
    %v8412 = vsub.s32 %v8409, %v8411
    %v8413 = vrot.slane %v8399, %v8412
    %v8414 = vcombine.low %v8349, %v8365
    %v8415 = vcombine.high %v8349, %v8365
    %v8417 = vunpack.c.l.s4 1934713408
    %v8418 = vunpack.c.0.s8 %v8417
    %v8419 = vlaneseq
    %v8420 = vshrl.u32 %v8419, 7
    %v8421 = vsub.s32 %v8418, %v8420
    %v8422 = vrot.slane %v8414, %v8421
    %v8424 = vunpack.c.l.s4 1934713408
    %v8425 = vunpack.c.0.s8 %v8424
    %v8426 = vlaneseq
    %v8427 = vshrl.u32 %v8426, 7
    %v8428 = vsub.s32 %v8425, %v8427
    %v8429 = vrot.slane %v8415, %v8428
    %v8430 = vcombine.low %v8374, %v8390
    %v8431 = vcombine.high %v8374, %v8390
    %v8433 = vunpack.c.l.s4 1934713408
    %v8434 = vunpack.c.0.s8 %v8433
    %v8435 = vlaneseq
    %v8436 = vshrl.u32 %v8435, 7
    %v8437 = vsub.s32 %v8434, %v8436
    %v8438 = vrot.slane %v8430, %v8437
    %v8440 = vunpack.c.l.s4 1934713408
    %v8441 = vunpack.c.0.s8 %v8440
    %v8442 = vlaneseq
    %v8443 = vshrl.u32 %v8442, 7
    %v8444 = vsub.s32 %v8441, %v8443
    %v8445 = vrot.slane %v8431, %v8444
    %v8446 = vcombine.low %v8381, %v8397
    %v8447 = vcombine.high %v8381, %v8397
    %v8449 = vunpack.c.l.s4 1934713408
    %v8450 = vunpack.c.0.s8 %v8449
    %v8451 = vlaneseq
    %v8452 = vshrl.u32 %v8451, 7
    %v8453 = vsub.s32 %v8450, %v8452
    %v8454 = vrot.slane %v8446, %v8453
    %v8456 = vunpack.c.l.s4 1934713408
    %v8457 = vunpack.c.0.s8 %v8456
    %v8458 = vlaneseq
    %v8459 = vshrl.u32 %v8458, 7
    %v8460 = vsub.s32 %v8457, %v8459
    %v8461 = vrot.slane %v8447, %v8460
    %v8462 = vcombine.low %v8406, %v8438
    %v8463 = vcombine.high %v8406, %v8438
    %v8464 = vcombine.low %v8413, %v8445
    %v8465 = vcombine.high %v8413, %v8445
    %v8466 = vcombine.low %v8422, %v8454
    %v8467 = vcombine.high %v8422, %v8454
    %v8468 = vcombine.low %v8429, %v8461
    %v8469 = vcombine.high %v8429, %v8461
    %v8470 = vcombine.low %v8054, %v8056
    %v8471 = vcombine.high %v8054, %v8056
    %v8473 = vunpack.c.l.s4 1983009808
    %v8474 = vunpack.c.0.s8 %v8473
    %v8475 = vlaneseq
    %v8476 = vshrl.u32 %v8475, 7
    %v8477 = vsub.s32 %v8474, %v8476
    %v8478 = vrot.slane %v8470, %v8477
    %v8480 = vunpack.c.l.s4 1983009808
    %v8481 = vunpack.c.0.s8 %v8480
    %v8482 = vlaneseq
    %v8483 = vshrl.u32 %v8482, 7
    %v8484 = vsub.s32 %v8481, %v8483
    %v8485 = vrot.slane %v8471, %v8484
    %v8486 = vcombine.low %v8055, %v8057
    %v8487 = vcombine.high %v8055, %v8057
    %v8489 = vunpack.c.l.s4 1983009808
    %v8490 = vunpack.c.0.s8 %v8489
    %v8491 = vlaneseq
    %v8492 = vshrl.u32 %v8491, 7
    %v8493 = vsub.s32 %v8490, %v8492
    %v8494 = vrot.slane %v8486, %v8493
    %v8496 = vunpack.c.l.s4 1983009808
    %v8497 = vunpack.c.0.s8 %v8496
    %v8498 = vlaneseq
    %v8499 = vshrl.u32 %v8498, 7
    %v8500 = vsub.s32 %v8497, %v8499
    %v8501 = vrot.slane %v8487, %v8500
    %v8502 = vcombine.low %v8058, %v8060
    %v8503 = vcombine.high %v8058, %v8060
    %v8505 = vunpack.c.l.s4 1983009808
    %v8506 = vunpack.c.0.s8 %v8505
    %v8507 = vlaneseq
    %v8508 = vshrl.u32 %v8507, 7
    %v8509 = vsub.s32 %v8506, %v8508
    %v8510 = vrot.slane %v8502, %v8509
    %v8512 = vunpack.c.l.s4 1983009808
    %v8513 = vunpack.c.0.s8 %v8512
    %v8514 = vlaneseq
    %v8515 = vshrl.u32 %v8514, 7
    %v8516 = vsub.s32 %v8513, %v8515
    %v8517 = vrot.slane %v8503, %v8516
    %v8518 = vcombine.low %v8059, %v8061
    %v8519 = vcombine.high %v8059, %v8061
    %v8521 = vunpack.c.l.s4 1983009808
    %v8522 = vunpack.c.0.s8 %v8521
    %v8523 = vlaneseq
    %v8524 = vshrl.u32 %v8523, 7
    %v8525 = vsub.s32 %v8522, %v8524
    %v8526 = vrot.slane %v8518, %v8525
    %v8528 = vunpack.c.l.s4 1983009808
    %v8529 = vunpack.c.0.s8 %v8528
    %v8530 = vlaneseq
    %v8531 = vshrl.u32 %v8530, 7
    %v8532 = vsub.s32 %v8529, %v8531
    %v8533 = vrot.slane %v8519, %v8532
    %v8534 = vcombine.low %v8478, %v8494
    %v8535 = vcombine.high %v8478, %v8494
    %v8537 = vunpack.c.l.s4 1934713408
    %v8538 = vunpack.c.0.s8 %v8537
    %v8539 = vlaneseq
    %v8540 = vshrl.u32 %v8539, 7
    %v8541 = vsub.s32 %v8538, %v8540
    %v8542 = vrot.slane %v8534, %v8541
    %v8544 = vunpack.c.l.s4 1934713408
    %v8545 = vunpack.c.0.s8 %v8544
    %v8546 = vlaneseq
    %v8547 = vshrl.u32 %v8546, 7
    %v8548 = vsub.s32 %v8545, %v8547
    %v8549 = vrot.slane %v8535, %v8548
    %v8550 = vcombine.low %v8485, %v8501
    %v8551 = vcombine.high %v8485, %v8501
    %v8553 = vunpack.c.l.s4 1934713408
    %v8554 = vunpack.c.0.s8 %v8553
    %v8555 = vlaneseq
    %v8556 = vshrl.u32 %v8555, 7
    %v8557 = vsub.s32 %v8554, %v8556
    %v8558 = vrot.slane %v8550, %v8557
    %v8560 = vunpack.c.l.s4 1934713408
    %v8561 = vunpack.c.0.s8 %v8560
    %v8562 = vlaneseq
    %v8563 = vshrl.u32 %v8562, 7
    %v8564 = vsub.s32 %v8561, %v8563
    %v8565 = vrot.slane %v8551, %v8564
    %v8566 = vcombine.low %v8510, %v8526
    %v8567 = vcombine.high %v8510, %v8526
    %v8569 = vunpack.c.l.s4 1934713408
    %v8570 = vunpack.c.0.s8 %v8569
    %v8571 = vlaneseq
    %v8572 = vshrl.u32 %v8571, 7
    %v8573 = vsub.s32 %v8570, %v8572
    %v8574 = vrot.slane %v8566, %v8573
    %v8576 = vunpack.c.l.s4 1934713408
    %v8577 = vunpack.c.0.s8 %v8576
    %v8578 = vlaneseq
    %v8579 = vshrl.u32 %v8578, 7
    %v8580 = vsub.s32 %v8577, %v8579
    %v8581 = vrot.slane %v8567, %v8580
    %v8582 = vcombine.low %v8517, %v8533
    %v8583 = vcombine.high %v8517, %v8533
    %v8585 = vunpack.c.l.s4 1934713408
    %v8586 = vunpack.c.0.s8 %v8585
    %v8587 = vlaneseq
    %v8588 = vshrl.u32 %v8587, 7
    %v8589 = vsub.s32 %v8586, %v8588
    %v8590 = vrot.slane %v8582, %v8589
    %v8592 = vunpack.c.l.s4 1934713408
    %v8593 = vunpack.c.0.s8 %v8592
    %v8594 = vlaneseq
    %v8595 = vshrl.u32 %v8594, 7
    %v8596 = vsub.s32 %v8593, %v8595
    %v8597 = vrot.slane %v8583, %v8596
    %v8598 = vcombine.low %v8542, %v8574
    %v8599 = vcombine.high %v8542, %v8574
    %v8600 = vcombine.low %v8549, %v8581
    %v8601 = vcombine.high %v8549, %v8581
    %v8602 = vcombine.low %v8558, %v8590
    %v8603 = vcombine.high %v8558, %v8590
    %v8604 = vcombine.low %v8565, %v8597
    %v8605 = vcombine.high %v8565, %v8597
    %8610 = vrot.lane.b32.xlu0 %v8191, 32
    %v8611 = vpop.permute.xlu0 %8610
    %8612 = vrot.lane.b32.xlu0 %v8327, 32
    %v8613 = vpop.permute.xlu0 %8612
    %8614 = vrot.lane.b32.xlu0 %v8463, 32
    %v8615 = vpop.permute.xlu0 %8614
    %8616 = vrot.lane.b32.xlu0 %v8599, 32
    %v8617 = vpop.permute.xlu0 %8616
    %8626 = vrot.lane.b32.xlu0 %v8192, 64
    %v8627 = vpop.permute.xlu0 %8626
    %8628 = vrot.lane.b32.xlu0 %v8328, 64
    %v8629 = vpop.permute.xlu0 %8628
    %8630 = vrot.lane.b32.xlu0 %v8464, 64
    %v8631 = vpop.permute.xlu0 %8630
    %8632 = vrot.lane.b32.xlu0 %v8600, 64
    %v8633 = vpop.permute.xlu0 %8632
    %8642 = vrot.lane.b32.xlu0 %v8193, 96
    %v8643 = vpop.permute.xlu0 %8642
    %8644 = vrot.lane.b32.xlu0 %v8329, 96
    %v8645 = vpop.permute.xlu0 %8644
    %8646 = vrot.lane.b32.xlu0 %v8465, 96
    %v8647 = vpop.permute.xlu0 %8646
    %8648 = vrot.lane.b32.xlu0 %v8601, 96
    %v8649 = vpop.permute.xlu0 %8648
    %8658 = vrot.lane.b32.xlu0 %v8195, 32
    %v8659 = vpop.permute.xlu0 %8658
    %8660 = vrot.lane.b32.xlu0 %v8331, 32
    %v8661 = vpop.permute.xlu0 %8660
    %8662 = vrot.lane.b32.xlu0 %v8467, 32
    %v8663 = vpop.permute.xlu0 %8662
    %8664 = vrot.lane.b32.xlu0 %v8603, 32
    %v8665 = vpop.permute.xlu0 %8664
    %8674 = vrot.lane.b32.xlu0 %v8196, 64
    %v8675 = vpop.permute.xlu0 %8674
    %8676 = vrot.lane.b32.xlu0 %v8332, 64
    %v8677 = vpop.permute.xlu0 %8676
    %8678 = vrot.lane.b32.xlu0 %v8468, 64
    %v8679 = vpop.permute.xlu0 %8678
    %8680 = vrot.lane.b32.xlu0 %v8604, 64
    %v8681 = vpop.permute.xlu0 %8680
    %8690 = vrot.lane.b32.xlu0 %v8197, 96
    %v8691 = vpop.permute.xlu0 %8690
    %8692 = vrot.lane.b32.xlu0 %v8333, 96
    %v8693 = vpop.permute.xlu0 %8692
    %8694 = vrot.lane.b32.xlu0 %v8469, 96
    %v8695 = vpop.permute.xlu0 %8694
    %8696 = vrot.lane.b32.xlu0 %v8605, 96
    %v8697 = vpop.permute.xlu0 %8696
    %v8702 = vsel %vm521, %v8190, %v8611
    %v8703 = vsel %vm521, %v8326, %v8613
    %v8704 = vsel %vm521, %v8462, %v8615
    %v8705 = vsel %vm521, %v8598, %v8617
    %vm8706 = vcmask 523264
    %v8707 = vsel %vm8706, %v8702, %v8627
    %v8708 = vsel %vm8706, %v8703, %v8629
    %v8709 = vsel %vm8706, %v8704, %v8631
    %v8710 = vsel %vm8706, %v8705, %v8633
    %vm8711 = vcmask 785408
    %v8712 = vsel %vm8711, %v8707, %v8643
    %v8713 = vsel %vm8711, %v8708, %v8645
    %v8714 = vsel %vm8711, %v8709, %v8647
    %v8715 = vsel %vm8711, %v8710, %v8649
    %v8716 = vsel %vm521, %v8194, %v8659
    %v8717 = vsel %vm521, %v8330, %v8661
    %v8718 = vsel %vm521, %v8466, %v8663
    %v8719 = vsel %vm521, %v8602, %v8665
    %v8720 = vsel %vm8706, %v8716, %v8675
    %v8721 = vsel %vm8706, %v8717, %v8677
    %v8722 = vsel %vm8706, %v8718, %v8679
    %v8723 = vsel %vm8706, %v8719, %v8681
    %v8724 = vsel %vm8711, %v8720, %v8691
    %v8725 = vsel %vm8711, %v8721, %v8693
    %v8726 = vsel %vm8711, %v8722, %v8695
    %v8727 = vsel %vm8711, %v8723, %v8697
    %8728 = vst [vmem:[#allocation7] sm:$0xff] %v8712
    %8729 = vst [vmem:[#allocation7 + $0x8] sm:$0xff] %v8724
    %8730 = vst [vmem:[#allocation7 + $0x10] sm:$0xff] %v8713
    %8731 = vst [vmem:[#allocation7 + $0x18] sm:$0xff] %v8725
    %8732 = vst [vmem:[#allocation7 + $0x20] sm:$0xff] %v8714
    %8733 = vst [vmem:[#allocation7 + $0x28] sm:$0xff] %v8726
    %8734 = vst [vmem:[#allocation7 + $0x30] sm:$0xff] %v8715
    %8735 = vst [vmem:[#allocation7 + $0x38] sm:$0xff] %v8727
    // Predicated region
    $region26: #{tpu_custom_call.1} parent=1 // pred_check
      _
    $region27: #{tpu_custom_call.1} parent=1 // pred_check_branch
      %8737 = sbr.rel (0) target = $region29
    $region28: #{tpu_custom_call.1} parent=1 // pred_region
      %s8739 = ssub.s32 1024, 1024
      %8740 = vsyncadd [#allocation4], %s8739
      %s8741 = sshll.u32 [#allocation7], 4
      %s8742 = int_to_ptr.vmem [resolvable:$true] %s8741
      %8747 = dma.vmem_to_hbm [thread:$0]  %s8742, 1024, %s4, [#allocation4], 256, 256, 16
    $region29: #{tpu_custom_call.1} parent=1 // pred_fallthru
      _
    // Predicated region
    $region30: #{tpu_custom_call.1} parent=1 // pred_check
      _
    $region31: #{tpu_custom_call.1} parent=1 // pred_check_branch
      %8749 = sbr.rel (0) target = $region33
    $region32: #{tpu_custom_call.1} parent=1 // pred_region
      %8750 = dma.done [#allocation4], 1024
    $region33: #{tpu_custom_call.1} parent=1 // pred_fallthru
      _
    %8751 = vsyncpa [#allocation3], 1
    %8752 = vsyncpa [#allocation6], 1
    %8753 = vsyncpa [#allocation4], 1

</llo_original>
